<compile_context>
chip_gen: v7x
topology: tpu7x:2x2x1
jax: 0.10.0
libtpu: 0.0.40
codegen_flags: <defaults>
</compile_context>

<pallas_src>
import functools

import jax
import jax.numpy as jnp
from jax import lax
from jax.experimental import pallas as pl
from jax.experimental.pallas import tpu as pltpu


def _transformer_layer_kernel(
    *refs,
    bb,              # batch elements per row block
    seq,             # sequence length S
    fold_vo,         # static: fold Wv/Wo to the splat side
    mm_precision,    # precision for projection / FFN / splat matmuls
    dist_precision,  # precision for the x @ centers' distance matmul
    approx_recip,    # use EUP approximate reciprocal for the normalization
):
    if fold_vo:
        (x_ref, csc_ref, inv2s_ref, bias_ref, wvo_ref,
         ln1w_ref, ln1b_ref, w1t_ref, b1_ref, w2t_ref, b2_ref,
         ln2w_ref, ln2b_ref, out_ref) = refs
    else:
        (x_ref, csc_ref, inv2s_ref, bias_ref, wvt_ref, wot_ref,
         ln1w_ref, ln1b_ref, w1t_ref, b1_ref, w2t_ref, b2_ref,
         ln2w_ref, ln2b_ref, out_ref) = refs

    rows = bb * seq
    x = x_ref[...]                                           # (R, D) f32

    # ---------- SimplifiedSplatFlowAttention ----------
    # Fused logits: x @ (2*inv2s*c)^T - ||x||^2 * inv2s + (log(sigmoid(a)) - ||c||^2*inv2s)
    # == -0.5 * (dist/scale)^2 + log(sigmoid(a)).  Padded splats have bias=-1e30 -> exp=0.
    x_sq = jnp.sum(x * x, axis=-1, keepdims=True)            # (R, 1)
    logits = lax.dot_general(
        x, csc_ref[...], (((1,), (1,)), ((), ())),
        preferred_element_type=jnp.float32, precision=dist_precision)   # (R, Np)
    logits = logits - x_sq * inv2s_ref[0, :] + bias_ref[0, :]
    attn = jnp.exp(logits)                                   # (R, Np)
    denom = jnp.maximum(jnp.sum(attn, axis=-1, keepdims=True), 1e-8)
    if approx_recip:
        attn = attn * pl.reciprocal(denom, approx=True)      # EUP slot
    else:
        attn = attn / denom

    attn_b = attn.reshape(bb, seq, -1)                       # (bb, S, Np)

    # NOTE: the first splat contraction contracts the sublane (S) axis of both
    # operands (A^T @ B per batch); acceptable per review, flagged for a bundle
    # check if the XLU relayout shows up at production shapes.
    if fold_vo:
        # attn @ (attn^T @ x) @ (Wv^T Wo^T): two R x D x D matmuls replaced by one
        # (bb*Np) x D x D matmul — only taken when Np is clearly smaller than S.
        x_b = x.reshape(bb, seq, -1)
        splat_x = lax.dot_general(
            attn_b, x_b, (((1,), (1,)), ((0,), (0,))),
            preferred_element_type=jnp.float32, precision=mm_precision)  # (bb, Np, D)
        n_pad = splat_x.shape[1]
        sp = splat_x.reshape(bb * n_pad, -1)
        sp = jnp.dot(sp.astype(wvo_ref.dtype), wvo_ref[...],
                     preferred_element_type=jnp.float32,
                     precision=mm_precision).reshape(bb, n_pad, -1)
        attn_out = lax.dot_general(
            attn_b, sp, (((2,), (1,)), ((0,), (0,))),
            preferred_element_type=jnp.float32,
            precision=mm_precision).reshape(rows, -1)                    # (R, D)
    else:
        values = jnp.dot(x.astype(wvt_ref.dtype), wvt_ref[...],
                         preferred_element_type=jnp.float32,
                         precision=mm_precision)                         # (R, D)
        vals_b = values.reshape(bb, seq, -1)
        splat_values = lax.dot_general(
            attn_b, vals_b, (((1,), (1,)), ((0,), (0,))),
            preferred_element_type=jnp.float32, precision=mm_precision)  # (bb, Np, D)
        attn_out = lax.dot_general(
            attn_b, splat_values, (((2,), (1,)), ((0,), (0,))),
            preferred_element_type=jnp.float32,
            precision=mm_precision).reshape(rows, -1)                    # (R, D)
        attn_out = jnp.dot(attn_out.astype(wot_ref.dtype), wot_ref[...],
                           preferred_element_type=jnp.float32,
                           precision=mm_precision)                       # (R, D)

    # ---------- residual + LayerNorm (one-pass: var = E[h^2] - mu^2, eps = 1e-5) ----------
    def layernorm(v, w_ref, b_ref):
        mu = jnp.mean(v, axis=-1, keepdims=True)
        msq = jnp.mean(v * v, axis=-1, keepdims=True)
        var = jnp.maximum(msq - mu * mu, 0.0)
        return (v - mu) * lax.rsqrt(var + 1e-5) * w_ref[0, :] + b_ref[0, :]

    h = layernorm(x + attn_out, ln1w_ref, ln1b_ref)

    # ---------- feed-forward: Linear -> exact GELU -> Linear (Dropout = identity) ----------
    ff = jnp.dot(h.astype(w1t_ref.dtype), w1t_ref[...],
                 preferred_element_type=jnp.float32,
                 precision=mm_precision) + b1_ref[0, :]
    inv_sqrt2 = jnp.float32(0.7071067811865476)
    ff = 0.5 * ff * (1.0 + lax.erf(ff * inv_sqrt2))          # nn.GELU() (erf form)
    ff = jnp.dot(ff.astype(w2t_ref.dtype), w2t_ref[...],
                 preferred_element_type=jnp.float32,
                 precision=mm_precision) + b2_ref[0, :]

    # ---------- residual + LayerNorm 2 ----------
    y = layernorm(h + ff, ln2w_ref, ln2b_ref)
    out_ref[...] = y.astype(out_ref.dtype)


def simplified_transformer_layer(x, params, *, batch_block=None, precise=False):
    B, S, D = x.shape
    N = params["centers"].shape[0]
    H = params["w1"].shape[0]

    # ----- splat-axis padding to a lane-dense multiple of 128 (exact no-op splats) -----
    N_pad = ((N + 127) // 128) * 128

    # ----- grid-invariant preprocessing, done once in plain XLA -----
    scales = jnp.clip(jnp.exp(params["scales"]), 0.1, 2.0)
    inv2s = 0.5 / (scales * scales)                                      # (N,)
    log_amp = jax.nn.log_sigmoid(params["amps"])                         # (N,)
    csq = jnp.sum(params["centers"] * params["centers"], axis=-1)        # (N,)
    centers_scaled = params["centers"] * (2.0 * inv2s)[:, None]          # (N, D)
    bias = log_amp - csq * inv2s                                         # (N,)

    pad = N_pad - N
    if pad:
        centers_scaled = jnp.concatenate(
            [centers_scaled, jnp.zeros((pad, D), jnp.float32)], axis=0)
        inv2s_p = jnp.concatenate([inv2s, jnp.zeros((pad,), jnp.float32)])
        bias_p = jnp.concatenate([bias, jnp.full((pad,), -1e30, jnp.float32)])
    else:
        inv2s_p, bias_p = inv2s, bias
    inv2s_p = inv2s_p.reshape(1, N_pad)
    bias_p = bias_p.reshape(1, N_pad)

    # ----- weight prep: pre-transpose once; bf16 weights on the fast path -----
    w_dtype = jnp.float32 if precise else jnp.bfloat16
    wv_t = params["wv"].T.astype(w_dtype)                                # (D, D)
    wo_t = params["wo"].T.astype(w_dtype)                                # (D, D)
    w1_t = params["w1"].T.astype(w_dtype)                                # (D, H)
    w2_t = params["w2"].T.astype(w_dtype)                                # (H, D)

    # Fold Wv/Wo onto the splat side only when the (padded) splat count is
    # clearly smaller than the sequence length (FLOP win of ~S/Np).
    fold_vo = (2 * N_pad) <= S
    if fold_vo:
        w_vo = jnp.dot(params["wv"].T, params["wo"].T,
                       precision=lax.Precision.HIGHEST).astype(w_dtype)  # (D, D)

    # ----- precision config -----
    if precise:
        mm_prec = lax.Precision.HIGHEST
        dist_prec = lax.Precision.HIGHEST
        approx_recip = False
    else:
        mm_prec = lax.Precision.DEFAULT      # bf16 operands, f32 accumulation
        dist_prec = lax.Precision.HIGH       # bf16_3x — feeds an exp, modest accuracy need
        approx_recip = True

    # ----- row-block selection: 8-aligned, >= 2 grid steps when possible,
    #       targeting the 256-wide MXU, capped by a VMEM budget -----
    if batch_block is None:
        target_rows = 512
        vmem_budget = 24 * 2 ** 20

        def score(d):
            rows_d = d * S
            ok_layout = (rows_d % 8 == 0) or (d == B)   # (8,128) sublane rule
            fits = rows_d * (D + H + N_pad) * 4 * 4 <= vmem_budget
            multi = (B // d) >= 2                       # >= 2 grid steps (v7x megacore)
            return (not ok_layout, not fits, not multi, abs(rows_d - target_rows))

        batch_block = min((d for d in range(1, B + 1) if B % d == 0), key=score)
        # TODO(synk): when no divisor of B yields 8-aligned rows, pad rows instead of
        # collapsing to a single grid step (review item); not hit at these shapes.
    assert B % batch_block == 0
    rows = batch_block * S
    grid = (B // batch_block,)

    x_flat = x.reshape(B * S, D)

    proj_operands = [w_vo] if fold_vo else [wv_t, wo_t]
    operands = [
        x_flat,
        centers_scaled,
        inv2s_p,
        bias_p,
        *proj_operands,
        params["ln1_w"].reshape(1, D),
        params["ln1_b"].reshape(1, D),
        w1_t,
        params["b1"].reshape(1, H),
        w2_t,
        params["b2"].reshape(1, D),
        params["ln2_w"].reshape(1, D),
        params["ln2_b"].reshape(1, D),
    ]

    def inv_spec(shape, single_buffer):
        nd = len(shape)
        idx = lambda b, _nd=nd: (0,) * _nd                  # grid-invariant
        if single_buffer:
            # Invariant inputs never change across the grid -> 1 buffer, half the VMEM.
            return pl.BlockSpec(shape, idx, pipeline_mode=pl.Buffered(1))
        return pl.BlockSpec(shape, idx)

    def build_specs(single_buffer):
        specs = [pl.BlockSpec((rows, D), lambda b: (b, 0))]  # x rows (double-buffered)
        for op in operands[1:]:
            specs.append(inv_spec(op.shape, single_buffer))
        return specs

    # ----- cost estimate + explicit VMEM limit -----
    R = B * S
    proj_flops = (2 * B * N_pad * D * D) if fold_vo else (4 * R * D * D)
    flops = 2 * R * N_pad * D + 4 * R * N_pad * D + proj_flops + 4 * R * D * H
    in_bytes = sum(int(op.size) * op.dtype.itemsize for op in operands)
    cost = pl.CostEstimate(
        flops=int(flops),
        transcendentals=int(R * (N_pad + H + 4)),
        bytes_accessed=int(in_bytes + R * D * 4),
    )

    inv_bytes = sum(int(op.size) * op.dtype.itemsize for op in operands[1:])
    block_bytes = rows * D * 4
    inter_bytes = rows * (N_pad + H + 2 * D) * 4
    # NOTE: cap at 100 MiB (fine for 128 MiB parts); re-derive the row-block cap
    # for v7x's 64 MiB physical VMEM at production D/H.
    vmem_limit = int(min(100 * 2 ** 20,
                         max(32 * 2 ** 20,
                             2 * (inv_bytes + 4 * block_bytes + inter_bytes))))

    kernel = functools.partial(
        _transformer_layer_kernel,
        bb=batch_block, seq=S, fold_vo=fold_vo,
        mm_precision=mm_prec, dist_precision=dist_prec, approx_recip=approx_recip)

    def run(single_buffer_invariants):
        return pl.pallas_call(
            kernel,
            out_shape=jax.ShapeDtypeStruct((B * S, D), x.dtype),
            grid=grid,
            in_specs=build_specs(single_buffer_invariants),
            out_specs=pl.BlockSpec((rows, D), lambda b: (b, 0)),
            compiler_params=pltpu.CompilerParams(
                dimension_semantics=("parallel",),
                vmem_limit_bytes=vmem_limit),
            cost_estimate=cost,
        )(*operands)

    try:
        out = run(True)      # single-buffer the grid-invariant weight inputs
    except Exception:        # pl.Buffered(1) unsupported on this JAX version -> default buffering
        out = run(False)
    return out.reshape(B, S, D)


def reference_forward(x, p):
    """Plain-JAX mirror of the PyTorch forward (eval mode).

    Matmuls pinned to HIGHEST so the reference is the true f32 answer on TPU
    (default MXU precision would otherwise inject bf16-level error here too).
    """
    hp = lax.Precision.HIGHEST
    diff = x[:, :, None, :] - p["centers"][None, None, :, :]
    dist = jnp.linalg.norm(diff, axis=-1)                           # (B, S, N)
    scales = jnp.clip(jnp.exp(p["scales"]), 0.1, 2.0)
    gw = jnp.exp(-0.5 * (dist / scales[None, None, :]) ** 2)
    amps = jax.nn.sigmoid(p["amps"])
    aw = gw * amps[None, None, :]
    aw = aw / jnp.maximum(jnp.sum(aw, axis=-1, keepdims=True), 1e-8)
    values = jnp.matmul(x, p["wv"].T, precision=hp)
    splat_values = jnp.einsum("bsn,bsd->bnd", aw, values, precision=hp)
    out = jnp.einsum("bsn,bnd->bsd", aw, splat_values, precision=hp)
    out = jnp.matmul(out, p["wo"].T, precision=hp)

    def ln(v, w, b):
        mu = jnp.mean(v, axis=-1, keepdims=True)
        var = jnp.mean((v - mu) ** 2, axis=-1, keepdims=True)
        return (v - mu) * lax.rsqrt(var + 1e-5) * w + b

    h = ln(x + out, p["ln1_w"], p["ln1_b"])
    ff = jnp.matmul(h, p["w1"].T, precision=hp) + p["b1"]
    ff = 0.5 * ff * (1.0 + lax.erf(ff / jnp.sqrt(2.0)))
    ff = jnp.matmul(ff, p["w2"].T, precision=hp) + p["b2"]
    return ln(h + ff, p["ln2_w"], p["ln2_b"])


if __name__ == "__main__":
    B, S, D, N = 2, 8, 32, 12
    H = 4 * D

    key = jax.random.PRNGKey(0)
    ks = jax.random.split(key, 8)

    params = {
        "centers": jax.random.normal(ks[0], (N, D), jnp.float32) * 0.1,
        "scales": jnp.ones((N,), jnp.float32) * 0.5,
        "amps": jnp.ones((N,), jnp.float32) * 0.8,
        "wv": jax.random.normal(ks[1], (D, D), jnp.float32) / jnp.sqrt(D),
        "wo": jax.random.normal(ks[2], (D, D), jnp.float32) / jnp.sqrt(D),
        "ln1_w": jnp.ones((D,), jnp.float32),
        "ln1_b": jnp.zeros((D,), jnp.float32),
        "w1": jax.random.normal(ks[3], (H, D), jnp.float32) / jnp.sqrt(D),
        "b1": jax.random.normal(ks[4], (H,), jnp.float32) * 0.01,
        "w2": jax.random.normal(ks[5], (D, H), jnp.float32) / jnp.sqrt(H),
        "b2": jax.random.normal(ks[6], (D,), jnp.float32) * 0.01,
        "ln2_w": jnp.ones((D,), jnp.float32),
        "ln2_b": jnp.zeros((D,), jnp.float32),
    }

    x = jax.random.normal(ks[7], (B, S, D), jnp.float32)

    ref = jax.block_until_ready(reference_forward(x, params))

    # 1) Full-precision configuration: tight correctness check.
    out_precise = jax.block_until_ready(
        simplified_transformer_layer(x, params, precise=True))
    assert out_precise.shape == (B, S, D)
    err_precise = float(jnp.max(jnp.abs(out_precise - ref)))
    assert jnp.allclose(out_precise, ref, atol=2e-3, rtol=2e-3), err_precise

    # 2) Production configuration (bf16 weights, HIGH distance matmul, approx
    #    reciprocal): loose sanity check only — bf16 operands bound accuracy.
    out_fast = jax.block_until_ready(simplified_transformer_layer(x, params))
    assert out_fast.shape == (B, S, D)
    assert bool(jnp.isfinite(out_fast).all())
    err_fast = float(jnp.max(jnp.abs(out_fast - ref)))
    assert jnp.allclose(out_fast, ref, atol=1e-1, rtol=1e-1), err_fast

    print("KERNEL_OK")
</pallas_src>

<mosaic_0001>
module attributes {stable_mosaic.version = 11 : i64} {
  func.func @_transformer_layer_kernel(%arg0: i32, %arg1: memref<8x32xf32, #tpu.memory_space<vmem>>, %arg2: memref<128x32xf32, #tpu.memory_space<vmem>>, %arg3: memref<1x128xf32, #tpu.memory_space<vmem>>, %arg4: memref<1x128xf32, #tpu.memory_space<vmem>>, %arg5: memref<32x32xf32, #tpu.memory_space<vmem>>, %arg6: memref<32x32xf32, #tpu.memory_space<vmem>>, %arg7: memref<1x32xf32, #tpu.memory_space<vmem>>, %arg8: memref<1x32xf32, #tpu.memory_space<vmem>>, %arg9: memref<32x128xf32, #tpu.memory_space<vmem>>, %arg10: memref<1x128xf32, #tpu.memory_space<vmem>>, %arg11: memref<128x32xf32, #tpu.memory_space<vmem>>, %arg12: memref<1x32xf32, #tpu.memory_space<vmem>>, %arg13: memref<1x32xf32, #tpu.memory_space<vmem>>, %arg14: memref<1x32xf32, #tpu.memory_space<vmem>>, %arg15: memref<8x32xf32, #tpu.memory_space<vmem>>) attributes {dimension_semantics = [#tpu.dimension_semantics<parallel>], iteration_bounds = array<i64: 2>, scalar_prefetch = 0 : i64, scratch_operands = 0 : i64, tpu.core_type = #tpu.core_type<tc>, window_params = [{transform_indices = @transform_0, window_bounds = array<i64: 8, 32>}, {pipeline_mode = #tpu.pipeline_mode<synchronous>, transform_indices = @transform_1, window_bounds = array<i64: 128, 32>}, {pipeline_mode = #tpu.pipeline_mode<synchronous>, transform_indices = @transform_2, window_bounds = array<i64: 1, 128>}, {pipeline_mode = #tpu.pipeline_mode<synchronous>, transform_indices = @transform_3, window_bounds = array<i64: 1, 128>}, {pipeline_mode = #tpu.pipeline_mode<synchronous>, transform_indices = @transform_4, window_bounds = array<i64: 32, 32>}, {pipeline_mode = #tpu.pipeline_mode<synchronous>, transform_indices = @transform_5, window_bounds = array<i64: 32, 32>}, {pipeline_mode = #tpu.pipeline_mode<synchronous>, transform_indices = @transform_6, window_bounds = array<i64: 1, 32>}, {pipeline_mode = #tpu.pipeline_mode<synchronous>, transform_indices = @transform_7, window_bounds = array<i64: 1, 32>}, {pipeline_mode = #tpu.pipeline_mode<synchronous>, transform_indices = @transform_8, window_bounds = array<i64: 32, 128>}, {pipeline_mode = #tpu.pipeline_mode<synchronous>, transform_indices = @transform_9, window_bounds = array<i64: 1, 128>}, {pipeline_mode = #tpu.pipeline_mode<synchronous>, transform_indices = @transform_10, window_bounds = array<i64: 128, 32>}, {pipeline_mode = #tpu.pipeline_mode<synchronous>, transform_indices = @transform_11, window_bounds = array<i64: 1, 32>}, {pipeline_mode = #tpu.pipeline_mode<synchronous>, transform_indices = @transform_12, window_bounds = array<i64: 1, 32>}, {pipeline_mode = #tpu.pipeline_mode<synchronous>, transform_indices = @transform_13, window_bounds = array<i64: 1, 32>}, {transform_indices = @transform_14, window_bounds = array<i64: 8, 32>}]} {
    %c0 = arith.constant 0 : index
    %c0_0 = arith.constant 0 : index
    %0 = vector.load %arg1[%c0, %c0_0] : memref<8x32xf32, #tpu.memory_space<vmem>>, vector<8x32xf32>
    %1 = arith.mulf %0, %0 : vector<8x32xf32>
    %cst = arith.constant dense<0.000000e+00> : vector<8xf32>
    %2 = vector.multi_reduction <add>, %1, %cst [1] : vector<8x32xf32> to vector<8xf32>
    %3 = vector.shape_cast %2 : vector<8xf32> to vector<8x1xf32>
    %c0_1 = arith.constant 0 : index
    %c0_2 = arith.constant 0 : index
    %4 = vector.load %arg2[%c0_1, %c0_2] : memref<128x32xf32, #tpu.memory_space<vmem>>, vector<128x32xf32>
    %cst_3 = arith.constant dense<0.000000e+00> : vector<8x128xf32>
    %5 = tpu.matmul %0, %4, %cst_3 {dimension_numbers = #tpu.dot_dimension_numbers<[1], [1], [0], [0], [0, 0, 1, 0], [], []>, precision = #tpu.contract_precision<fp32>} : vector<8x32xf32>, vector<128x32xf32>, vector<8x128xf32> -> vector<8x128xf32>
    %c0_4 = arith.constant 0 : index
    %c0_5 = arith.constant 0 : index
    %6 = vector.load %arg3[%c0_4, %c0_5] : memref<1x128xf32, #tpu.memory_space<vmem>>, vector<1x128xf32>
    %7 = vector.shape_cast %6 : vector<1x128xf32> to vector<128xf32>
    %8 = vector.shape_cast %7 : vector<128xf32> to vector<1x128xf32>
    %9 = vector.broadcast %3 : vector<8x1xf32> to vector<8x128xf32>
    %10 = vector.broadcast %8 : vector<1x128xf32> to vector<8x128xf32>
    %11 = arith.mulf %9, %10 : vector<8x128xf32>
    %12 = arith.subf %5, %11 : vector<8x128xf32>
    %c0_6 = arith.constant 0 : index
    %c0_7 = arith.constant 0 : index
    %13 = vector.load %arg4[%c0_6, %c0_7] : memref<1x128xf32, #tpu.memory_space<vmem>>, vector<1x128xf32>
    %14 = vector.shape_cast %13 : vector<1x128xf32> to vector<128xf32>
    %15 = vector.shape_cast %14 : vector<128xf32> to vector<1x128xf32>
    %16 = vector.broadcast %15 : vector<1x128xf32> to vector<8x128xf32>
    %17 = arith.addf %12, %16 : vector<8x128xf32>
    %18 = math.exp %17 : vector<8x128xf32>
    %cst_8 = arith.constant dense<0.000000e+00> : vector<8xf32>
    %19 = vector.multi_reduction <add>, %18, %cst_8 [1] : vector<8x128xf32> to vector<8xf32>
    %20 = vector.shape_cast %19 : vector<8xf32> to vector<8x1xf32>
    %cst_9 = arith.constant 9.99999993E-9 : f32
    %21 = vector.broadcast %cst_9 : f32 to vector<8x1xf32>
    %22 = arith.maximumf %20, %21 : vector<8x1xf32>
    %23 = vector.broadcast %22 : vector<8x1xf32> to vector<8x128xf32>
    %24 = arith.divf %18, %23 : vector<8x128xf32>
    %25 = vector.shape_cast %24 : vector<8x128xf32> to vector<1x8x128xf32>
    %c0_10 = arith.constant 0 : index
    %c0_11 = arith.constant 0 : index
    %26 = vector.load %arg5[%c0_10, %c0_11] : memref<32x32xf32, #tpu.memory_space<vmem>>, vector<32x32xf32>
    %cst_12 = arith.constant dense<0.000000e+00> : vector<8x32xf32>
    %27 = tpu.matmul %0, %26, %cst_12 {dimension_numbers = #tpu.dot_dimension_numbers<[1], [0], [0], [1], [0, 0, 1, 1], [], []>, precision = #tpu.contract_precision<fp32>} : vector<8x32xf32>, vector<32x32xf32>, vector<8x32xf32> -> vector<8x32xf32>
    %28 = vector.shape_cast %27 : vector<8x32xf32> to vector<1x8x32xf32>
    %cst_13 = arith.constant dense<0.000000e+00> : vector<1x128x32xf32>
    %29 = tpu.matmul %25, %28, %cst_13 {dimension_numbers = #tpu.dot_dimension_numbers<[1], [1], [2], [2], [0, 0, 0, 2, 1, 2], [0], [0]>, precision = #tpu.contract_precision<fp32>} : vector<1x8x128xf32>, vector<1x8x32xf32>, vector<1x128x32xf32> -> vector<1x128x32xf32>
    %cst_14 = arith.constant dense<0.000000e+00> : vector<1x8x32xf32>
    %30 = tpu.matmul %25, %29, %cst_14 {dimension_numbers = #tpu.dot_dimension_numbers<[2], [1], [1], [2], [0, 0, 0, 1, 1, 2], [0], [0]>, precision = #tpu.contract_precision<fp32>} : vector<1x8x128xf32>, vector<1x128x32xf32>, vector<1x8x32xf32> -> vector<1x8x32xf32>
    %31 = vector.shape_cast %30 : vector<1x8x32xf32> to vector<8x32xf32>
    %c0_15 = arith.constant 0 : index
    %c0_16 = arith.constant 0 : index
    %32 = vector.load %arg6[%c0_15, %c0_16] : memref<32x32xf32, #tpu.memory_space<vmem>>, vector<32x32xf32>
    %cst_17 = arith.constant dense<0.000000e+00> : vector<8x32xf32>
    %33 = tpu.matmul %31, %32, %cst_17 {dimension_numbers = #tpu.dot_dimension_numbers<[1], [0], [0], [1], [0, 0, 1, 1], [], []>, precision = #tpu.contract_precision<fp32>} : vector<8x32xf32>, vector<32x32xf32>, vector<8x32xf32> -> vector<8x32xf32>
    %34 = arith.addf %0, %33 : vector<8x32xf32>
    %cst_18 = arith.constant dense<0.000000e+00> : vector<8xf32>
    %35 = vector.multi_reduction <add>, %34, %cst_18 [1] : vector<8x32xf32> to vector<8xf32>
    %36 = vector.shape_cast %35 : vector<8xf32> to vector<8x1xf32>
    %cst_19 = arith.constant 3.200000e+01 : f32
    %37 = vector.broadcast %cst_19 : f32 to vector<8x1xf32>
    %38 = arith.divf %36, %37 : vector<8x1xf32>
    %39 = arith.mulf %34, %34 : vector<8x32xf32>
    %cst_20 = arith.constant dense<0.000000e+00> : vector<8xf32>
    %40 = vector.multi_reduction <add>, %39, %cst_20 [1] : vector<8x32xf32> to vector<8xf32>
    %41 = vector.shape_cast %40 : vector<8xf32> to vector<8x1xf32>
    %cst_21 = arith.constant 3.200000e+01 : f32
    %42 = vector.broadcast %cst_21 : f32 to vector<8x1xf32>
    %43 = arith.divf %41, %42 : vector<8x1xf32>
    %44 = arith.mulf %38, %38 : vector<8x1xf32>
    %45 = arith.subf %43, %44 : vector<8x1xf32>
    %cst_22 = arith.constant 0.000000e+00 : f32
    %46 = vector.broadcast %cst_22 : f32 to vector<8x1xf32>
    %47 = arith.maximumf %45, %46 : vector<8x1xf32>
    %48 = vector.broadcast %38 : vector<8x1xf32> to vector<8x32xf32>
    %49 = arith.subf %34, %48 : vector<8x32xf32>
    %cst_23 = arith.constant 9.99999974E-6 : f32
    %50 = vector.broadcast %cst_23 : f32 to vector<8x1xf32>
    %51 = arith.addf %47, %50 : vector<8x1xf32>
    %52 = math.rsqrt %51 : vector<8x1xf32>
    %53 = vector.broadcast %52 : vector<8x1xf32> to vector<8x32xf32>
    %54 = arith.mulf %49, %53 : vector<8x32xf32>
    %c0_24 = arith.constant 0 : index
    %c0_25 = arith.constant 0 : index
    %55 = vector.load %arg7[%c0_24, %c0_25] : memref<1x32xf32, #tpu.memory_space<vmem>>, vector<1x32xf32>
    %56 = vector.shape_cast %55 : vector<1x32xf32> to vector<32xf32>
    %57 = vector.shape_cast %56 : vector<32xf32> to vector<1x32xf32>
    %58 = vector.broadcast %57 : vector<1x32xf32> to vector<8x32xf32>
    %59 = arith.mulf %54, %58 : vector<8x32xf32>
    %c0_26 = arith.constant 0 : index
    %c0_27 = arith.constant 0 : index
    %60 = vector.load %arg8[%c0_26, %c0_27] : memref<1x32xf32, #tpu.memory_space<vmem>>, vector<1x32xf32>
    %61 = vector.shape_cast %60 : vector<1x32xf32> to vector<32xf32>
    %62 = vector.shape_cast %61 : vector<32xf32> to vector<1x32xf32>
    %63 = vector.broadcast %62 : vector<1x32xf32> to vector<8x32xf32>
    %64 = arith.addf %59, %63 : vector<8x32xf32>
    %c0_28 = arith.constant 0 : index
    %c0_29 = arith.constant 0 : index
    %65 = vector.load %arg9[%c0_28, %c0_29] : memref<32x128xf32, #tpu.memory_space<vmem>>, vector<32x128xf32>
    %cst_30 = arith.constant dense<0.000000e+00> : vector<8x128xf32>
    %66 = tpu.matmul %64, %65, %cst_30 {dimension_numbers = #tpu.dot_dimension_numbers<[1], [0], [0], [1], [0, 0, 1, 1], [], []>, precision = #tpu.contract_precision<fp32>} : vector<8x32xf32>, vector<32x128xf32>, vector<8x128xf32> -> vector<8x128xf32>
    %c0_31 = arith.constant 0 : index
    %c0_32 = arith.constant 0 : index
    %67 = vector.load %arg10[%c0_31, %c0_32] : memref<1x128xf32, #tpu.memory_space<vmem>>, vector<1x128xf32>
    %68 = vector.shape_cast %67 : vector<1x128xf32> to vector<128xf32>
    %69 = vector.shape_cast %68 : vector<128xf32> to vector<1x128xf32>
    %70 = vector.broadcast %69 : vector<1x128xf32> to vector<8x128xf32>
    %71 = arith.addf %66, %70 : vector<8x128xf32>
    %cst_33 = arith.constant 5.000000e-01 : f32
    %72 = vector.broadcast %cst_33 : f32 to vector<8x128xf32>
    %73 = arith.mulf %72, %71 : vector<8x128xf32>
    %cst_34 = arith.constant 0.707106769 : f32
    %74 = vector.broadcast %cst_34 : f32 to vector<8x128xf32>
    %75 = arith.mulf %71, %74 : vector<8x128xf32>
    %76 = math.erf %75 : vector<8x128xf32>
    %cst_35 = arith.constant 1.000000e+00 : f32
    %77 = vector.broadcast %cst_35 : f32 to vector<8x128xf32>
    %78 = arith.addf %77, %76 : vector<8x128xf32>
    %79 = arith.mulf %73, %78 : vector<8x128xf32>
    %c0_36 = arith.constant 0 : index
    %c0_37 = arith.constant 0 : index
    %80 = vector.load %arg11[%c0_36, %c0_37] : memref<128x32xf32, #tpu.memory_space<vmem>>, vector<128x32xf32>
    %cst_38 = arith.constant dense<0.000000e+00> : vector<8x32xf32>
    %81 = tpu.matmul %79, %80, %cst_38 {dimension_numbers = #tpu.dot_dimension_numbers<[1], [0], [0], [1], [0, 0, 1, 1], [], []>, precision = #tpu.contract_precision<fp32>} : vector<8x128xf32>, vector<128x32xf32>, vector<8x32xf32> -> vector<8x32xf32>
    %c0_39 = arith.constant 0 : index
    %c0_40 = arith.constant 0 : index
    %82 = vector.load %arg12[%c0_39, %c0_40] : memref<1x32xf32, #tpu.memory_space<vmem>>, vector<1x32xf32>
    %83 = vector.shape_cast %82 : vector<1x32xf32> to vector<32xf32>
    %84 = vector.shape_cast %83 : vector<32xf32> to vector<1x32xf32>
    %85 = vector.broadcast %84 : vector<1x32xf32> to vector<8x32xf32>
    %86 = arith.addf %81, %85 : vector<8x32xf32>
    %87 = arith.addf %64, %86 : vector<8x32xf32>
    %cst_41 = arith.constant dense<0.000000e+00> : vector<8xf32>
    %88 = vector.multi_reduction <add>, %87, %cst_41 [1] : vector<8x32xf32> to vector<8xf32>
    %89 = vector.shape_cast %88 : vector<8xf32> to vector<8x1xf32>
    %cst_42 = arith.constant 3.200000e+01 : f32
    %90 = vector.broadcast %cst_42 : f32 to vector<8x1xf32>
    %91 = arith.divf %89, %90 : vector<8x1xf32>
    %92 = arith.mulf %87, %87 : vector<8x32xf32>
    %cst_43 = arith.constant dense<0.000000e+00> : vector<8xf32>
    %93 = vector.multi_reduction <add>, %92, %cst_43 [1] : vector<8x32xf32> to vector<8xf32>
    %94 = vector.shape_cast %93 : vector<8xf32> to vector<8x1xf32>
    %cst_44 = arith.constant 3.200000e+01 : f32
    %95 = vector.broadcast %cst_44 : f32 to vector<8x1xf32>
    %96 = arith.divf %94, %95 : vector<8x1xf32>
    %97 = arith.mulf %91, %91 : vector<8x1xf32>
    %98 = arith.subf %96, %97 : vector<8x1xf32>
    %cst_45 = arith.constant 0.000000e+00 : f32
    %99 = vector.broadcast %cst_45 : f32 to vector<8x1xf32>
    %100 = arith.maximumf %98, %99 : vector<8x1xf32>
    %101 = vector.broadcast %91 : vector<8x1xf32> to vector<8x32xf32>
    %102 = arith.subf %87, %101 : vector<8x32xf32>
    %cst_46 = arith.constant 9.99999974E-6 : f32
    %103 = vector.broadcast %cst_46 : f32 to vector<8x1xf32>
    %104 = arith.addf %100, %103 : vector<8x1xf32>
    %105 = math.rsqrt %104 : vector<8x1xf32>
    %106 = vector.broadcast %105 : vector<8x1xf32> to vector<8x32xf32>
    %107 = arith.mulf %102, %106 : vector<8x32xf32>
    %c0_47 = arith.constant 0 : index
    %c0_48 = arith.constant 0 : index
    %108 = vector.load %arg13[%c0_47, %c0_48] : memref<1x32xf32, #tpu.memory_space<vmem>>, vector<1x32xf32>
    %109 = vector.shape_cast %108 : vector<1x32xf32> to vector<32xf32>
    %110 = vector.shape_cast %109 : vector<32xf32> to vector<1x32xf32>
    %111 = vector.broadcast %110 : vector<1x32xf32> to vector<8x32xf32>
    %112 = arith.mulf %107, %111 : vector<8x32xf32>
    %c0_49 = arith.constant 0 : index
    %c0_50 = arith.constant 0 : index
    %113 = vector.load %arg14[%c0_49, %c0_50] : memref<1x32xf32, #tpu.memory_space<vmem>>, vector<1x32xf32>
    %114 = vector.shape_cast %113 : vector<1x32xf32> to vector<32xf32>
    %115 = vector.shape_cast %114 : vector<32xf32> to vector<1x32xf32>
    %116 = vector.broadcast %115 : vector<1x32xf32> to vector<8x32xf32>
    %117 = arith.addf %112, %116 : vector<8x32xf32>
    %c0_51 = arith.constant 0 : index
    %c0_52 = arith.constant 0 : index
    %118 = vector.load %arg15[%c0_51, %c0_52] : memref<8x32xf32, #tpu.memory_space<vmem>>, vector<8x32xf32>
    tpu.vector_store %arg15[%c0_51, %c0_52], %117 {strides = array<i32>} : memref<8x32xf32, #tpu.memory_space<vmem>>, vector<8x32xf32>,
    return
  }
  func.func @transform_0(%arg0: i32) -> (i32, i32) {
    %c0_i32 = arith.constant 0 : i32
    %c0_i32_0 = arith.constant 0 : i32
    return %arg0, %c0_i32 : i32, i32
  }
  func.func @transform_1(%arg0: i32) -> (i32, i32) {
    %c0_i32 = arith.constant 0 : i32
    %c0_i32_0 = arith.constant 0 : i32
    %c0_i32_1 = arith.constant 0 : i32
    return %c0_i32, %c0_i32_0 : i32, i32
  }
  func.func @transform_2(%arg0: i32) -> (i32, i32) {
    %c0_i32 = arith.constant 0 : i32
    %c0_i32_0 = arith.constant 0 : i32
    %c0_i32_1 = arith.constant 0 : i32
    return %c0_i32, %c0_i32_0 : i32, i32
  }
  func.func @transform_3(%arg0: i32) -> (i32, i32) {
    %c0_i32 = arith.constant 0 : i32
    %c0_i32_0 = arith.constant 0 : i32
    %c0_i32_1 = arith.constant 0 : i32
    return %c0_i32, %c0_i32_0 : i32, i32
  }
  func.func @transform_4(%arg0: i32) -> (i32, i32) {
    %c0_i32 = arith.constant 0 : i32
    %c0_i32_0 = arith.constant 0 : i32
    %c0_i32_1 = arith.constant 0 : i32
    return %c0_i32, %c0_i32_0 : i32, i32
  }
  func.func @transform_5(%arg0: i32) -> (i32, i32) {
    %c0_i32 = arith.constant 0 : i32
    %c0_i32_0 = arith.constant 0 : i32
    %c0_i32_1 = arith.constant 0 : i32
    return %c0_i32, %c0_i32_0 : i32, i32
  }
  func.func @transform_6(%arg0: i32) -> (i32, i32) {
    %c0_i32 = arith.constant 0 : i32
    %c0_i32_0 = arith.constant 0 : i32
    %c0_i32_1 = arith.constant 0 : i32
    return %c0_i32, %c0_i32_0 : i32, i32
  }
  func.func @transform_7(%arg0: i32) -> (i32, i32) {
    %c0_i32 = arith.constant 0 : i32
    %c0_i32_0 = arith.constant 0 : i32
    %c0_i32_1 = arith.constant 0 : i32
    return %c0_i32, %c0_i32_0 : i32, i32
  }
  func.func @transform_8(%arg0: i32) -> (i32, i32) {
    %c0_i32 = arith.constant 0 : i32
    %c0_i32_0 = arith.constant 0 : i32
    %c0_i32_1 = arith.constant 0 : i32
    return %c0_i32, %c0_i32_0 : i32, i32
  }
  func.func @transform_9(%arg0: i32) -> (i32, i32) {
    %c0_i32 = arith.constant 0 : i32
    %c0_i32_0 = arith.constant 0 : i32
    %c0_i32_1 = arith.constant 0 : i32
    return %c0_i32, %c0_i32_0 : i32, i32
  }
  func.func @transform_10(%arg0: i32) -> (i32, i32) {
    %c0_i32 = arith.constant 0 : i32
    %c0_i32_0 = arith.constant 0 : i32
    %c0_i32_1 = arith.constant 0 : i32
    return %c0_i32, %c0_i32_0 : i32, i32
  }
  func.func @transform_11(%arg0: i32) -> (i32, i32) {
    %c0_i32 = arith.constant 0 : i32
    %c0_i32_0 = arith.constant 0 : i32
    %c0_i32_1 = arith.constant 0 : i32
    return %c0_i32, %c0_i32_0 : i32, i32
  }
  func.func @transform_12(%arg0: i32) -> (i32, i32) {
    %c0_i32 = arith.constant 0 : i32
    %c0_i32_0 = arith.constant 0 : i32
    %c0_i32_1 = arith.constant 0 : i32
    return %c0_i32, %c0_i32_0 : i32, i32
  }
  func.func @transform_13(%arg0: i32) -> (i32, i32) {
    %c0_i32 = arith.constant 0 : i32
    %c0_i32_0 = arith.constant 0 : i32
    %c0_i32_1 = arith.constant 0 : i32
    return %c0_i32, %c0_i32_0 : i32, i32
  }
  func.func @transform_14(%arg0: i32) -> (i32, i32) {
    %c0_i32 = arith.constant 0 : i32
    %c0_i32_0 = arith.constant 0 : i32
    return %arg0, %c0_i32 : i32, i32
  }
}

module attributes {stable_mosaic.version = 11 : i64} {
  func.func @_transformer_layer_kernel(%arg0: i32, %arg1: memref<8x32xf32, #tpu.memory_space<vmem>>, %arg2: memref<128x32xf32, #tpu.memory_space<vmem>>, %arg3: memref<1x128xf32, #tpu.memory_space<vmem>>, %arg4: memref<1x128xf32, #tpu.memory_space<vmem>>, %arg5: memref<32x32xf32, #tpu.memory_space<vmem>>, %arg6: memref<32x32xf32, #tpu.memory_space<vmem>>, %arg7: memref<1x32xf32, #tpu.memory_space<vmem>>, %arg8: memref<1x32xf32, #tpu.memory_space<vmem>>, %arg9: memref<32x128xf32, #tpu.memory_space<vmem>>, %arg10: memref<1x128xf32, #tpu.memory_space<vmem>>, %arg11: memref<128x32xf32, #tpu.memory_space<vmem>>, %arg12: memref<1x32xf32, #tpu.memory_space<vmem>>, %arg13: memref<1x32xf32, #tpu.memory_space<vmem>>, %arg14: memref<1x32xf32, #tpu.memory_space<vmem>>, %arg15: memref<8x32xf32, #tpu.memory_space<vmem>>) attributes {dimension_semantics = [#tpu.dimension_semantics<parallel>], iteration_bounds = array<i64: 2>, scalar_prefetch = 0 : i64, scratch_operands = 0 : i64, tpu.core_type = #tpu.core_type<tc>, window_params = [{transform_indices = @transform_0, window_bounds = array<i64: 8, 32>}, {pipeline_mode = #tpu.pipeline_mode<synchronous>, transform_indices = @transform_1, window_bounds = array<i64: 128, 32>}, {pipeline_mode = #tpu.pipeline_mode<synchronous>, transform_indices = @transform_2, window_bounds = array<i64: 1, 128>}, {pipeline_mode = #tpu.pipeline_mode<synchronous>, transform_indices = @transform_3, window_bounds = array<i64: 1, 128>}, {pipeline_mode = #tpu.pipeline_mode<synchronous>, transform_indices = @transform_4, window_bounds = array<i64: 32, 32>}, {pipeline_mode = #tpu.pipeline_mode<synchronous>, transform_indices = @transform_5, window_bounds = array<i64: 32, 32>}, {pipeline_mode = #tpu.pipeline_mode<synchronous>, transform_indices = @transform_6, window_bounds = array<i64: 1, 32>}, {pipeline_mode = #tpu.pipeline_mode<synchronous>, transform_indices = @transform_7, window_bounds = array<i64: 1, 32>}, {pipeline_mode = #tpu.pipeline_mode<synchronous>, transform_indices = @transform_8, window_bounds = array<i64: 32, 128>}, {pipeline_mode = #tpu.pipeline_mode<synchronous>, transform_indices = @transform_9, window_bounds = array<i64: 1, 128>}, {pipeline_mode = #tpu.pipeline_mode<synchronous>, transform_indices = @transform_10, window_bounds = array<i64: 128, 32>}, {pipeline_mode = #tpu.pipeline_mode<synchronous>, transform_indices = @transform_11, window_bounds = array<i64: 1, 32>}, {pipeline_mode = #tpu.pipeline_mode<synchronous>, transform_indices = @transform_12, window_bounds = array<i64: 1, 32>}, {pipeline_mode = #tpu.pipeline_mode<synchronous>, transform_indices = @transform_13, window_bounds = array<i64: 1, 32>}, {transform_indices = @transform_14, window_bounds = array<i64: 8, 32>}]} {
    %c0 = arith.constant 0 : index
    %c0_0 = arith.constant 0 : index
    %0 = vector.load %arg1[%c0, %c0_0] : memref<8x32xf32, #tpu.memory_space<vmem>>, vector<8x32xf32>
    %1 = arith.mulf %0, %0 : vector<8x32xf32>
    %cst = arith.constant dense<0.000000e+00> : vector<8xf32>
    %2 = vector.multi_reduction <add>, %1, %cst [1] : vector<8x32xf32> to vector<8xf32>
    %3 = vector.shape_cast %2 : vector<8xf32> to vector<8x1xf32>
    %c0_1 = arith.constant 0 : index
    %c0_2 = arith.constant 0 : index
    %4 = vector.load %arg2[%c0_1, %c0_2] : memref<128x32xf32, #tpu.memory_space<vmem>>, vector<128x32xf32>
    %cst_3 = arith.constant dense<0.000000e+00> : vector<8x128xf32>
    %5 = tpu.matmul %0, %4, %cst_3 {dimension_numbers = #tpu.dot_dimension_numbers<[1], [1], [0], [0], [0, 0, 1, 0], [], []>, precision = #tpu.contract_precision<fp32>} : vector<8x32xf32>, vector<128x32xf32>, vector<8x128xf32> -> vector<8x128xf32>
    %c0_4 = arith.constant 0 : index
    %c0_5 = arith.constant 0 : index
    %6 = vector.load %arg3[%c0_4, %c0_5] : memref<1x128xf32, #tpu.memory_space<vmem>>, vector<1x128xf32>
    %7 = vector.shape_cast %6 : vector<1x128xf32> to vector<128xf32>
    %8 = vector.shape_cast %7 : vector<128xf32> to vector<1x128xf32>
    %9 = vector.broadcast %3 : vector<8x1xf32> to vector<8x128xf32>
    %10 = vector.broadcast %8 : vector<1x128xf32> to vector<8x128xf32>
    %11 = arith.mulf %9, %10 : vector<8x128xf32>
    %12 = arith.subf %5, %11 : vector<8x128xf32>
    %c0_6 = arith.constant 0 : index
    %c0_7 = arith.constant 0 : index
    %13 = vector.load %arg4[%c0_6, %c0_7] : memref<1x128xf32, #tpu.memory_space<vmem>>, vector<1x128xf32>
    %14 = vector.shape_cast %13 : vector<1x128xf32> to vector<128xf32>
    %15 = vector.shape_cast %14 : vector<128xf32> to vector<1x128xf32>
    %16 = vector.broadcast %15 : vector<1x128xf32> to vector<8x128xf32>
    %17 = arith.addf %12, %16 : vector<8x128xf32>
    %18 = math.exp %17 : vector<8x128xf32>
    %cst_8 = arith.constant dense<0.000000e+00> : vector<8xf32>
    %19 = vector.multi_reduction <add>, %18, %cst_8 [1] : vector<8x128xf32> to vector<8xf32>
    %20 = vector.shape_cast %19 : vector<8xf32> to vector<8x1xf32>
    %cst_9 = arith.constant 9.99999993E-9 : f32
    %21 = vector.broadcast %cst_9 : f32 to vector<8x1xf32>
    %22 = arith.maximumf %20, %21 : vector<8x1xf32>
    %23 = vector.broadcast %22 : vector<8x1xf32> to vector<8x128xf32>
    %24 = arith.divf %18, %23 : vector<8x128xf32>
    %25 = vector.shape_cast %24 : vector<8x128xf32> to vector<1x8x128xf32>
    %c0_10 = arith.constant 0 : index
    %c0_11 = arith.constant 0 : index
    %26 = vector.load %arg5[%c0_10, %c0_11] : memref<32x32xf32, #tpu.memory_space<vmem>>, vector<32x32xf32>
    %cst_12 = arith.constant dense<0.000000e+00> : vector<8x32xf32>
    %27 = tpu.matmul %0, %26, %cst_12 {dimension_numbers = #tpu.dot_dimension_numbers<[1], [0], [0], [1], [0, 0, 1, 1], [], []>, precision = #tpu.contract_precision<fp32>} : vector<8x32xf32>, vector<32x32xf32>, vector<8x32xf32> -> vector<8x32xf32>
    %28 = vector.shape_cast %27 : vector<8x32xf32> to vector<1x8x32xf32>
    %cst_13 = arith.constant dense<0.000000e+00> : vector<1x128x32xf32>
    %29 = tpu.matmul %25, %28, %cst_13 {dimension_numbers = #tpu.dot_dimension_numbers<[1], [1], [2], [2], [0, 0, 0, 2, 1, 2], [0], [0]>, precision = #tpu.contract_precision<fp32>} : vector<1x8x128xf32>, vector<1x8x32xf32>, vector<1x128x32xf32> -> vector<1x128x32xf32>
    %cst_14 = arith.constant dense<0.000000e+00> : vector<1x8x32xf32>
    %30 = tpu.matmul %25, %29, %cst_14 {dimension_numbers = #tpu.dot_dimension_numbers<[2], [1], [1], [2], [0, 0, 0, 1, 1, 2], [0], [0]>, precision = #tpu.contract_precision<fp32>} : vector<1x8x128xf32>, vector<1x128x32xf32>, vector<1x8x32xf32> -> vector<1x8x32xf32>
    %31 = vector.shape_cast %30 : vector<1x8x32xf32> to vector<8x32xf32>
    %c0_15 = arith.constant 0 : index
    %c0_16 = arith.constant 0 : index
    %32 = vector.load %arg6[%c0_15, %c0_16] : memref<32x32xf32, #tpu.memory_space<vmem>>, vector<32x32xf32>
    %cst_17 = arith.constant dense<0.000000e+00> : vector<8x32xf32>
    %33 = tpu.matmul %31, %32, %cst_17 {dimension_numbers = #tpu.dot_dimension_numbers<[1], [0], [0], [1], [0, 0, 1, 1], [], []>, precision = #tpu.contract_precision<fp32>} : vector<8x32xf32>, vector<32x32xf32>, vector<8x32xf32> -> vector<8x32xf32>
    %34 = arith.addf %0, %33 : vector<8x32xf32>
    %cst_18 = arith.constant dense<0.000000e+00> : vector<8xf32>
    %35 = vector.multi_reduction <add>, %34, %cst_18 [1] : vector<8x32xf32> to vector<8xf32>
    %36 = vector.shape_cast %35 : vector<8xf32> to vector<8x1xf32>
    %cst_19 = arith.constant 3.200000e+01 : f32
    %37 = vector.broadcast %cst_19 : f32 to vector<8x1xf32>
    %38 = arith.divf %36, %37 : vector<8x1xf32>
    %39 = arith.mulf %34, %34 : vector<8x32xf32>
    %cst_20 = arith.constant dense<0.000000e+00> : vector<8xf32>
    %40 = vector.multi_reduction <add>, %39, %cst_20 [1] : vector<8x32xf32> to vector<8xf32>
    %41 = vector.shape_cast %40 : vector<8xf32> to vector<8x1xf32>
    %cst_21 = arith.constant 3.200000e+01 : f32
    %42 = vector.broadcast %cst_21 : f32 to vector<8x1xf32>
    %43 = arith.divf %41, %42 : vector<8x1xf32>
    %44 = arith.mulf %38, %38 : vector<8x1xf32>
    %45 = arith.subf %43, %44 : vector<8x1xf32>
    %cst_22 = arith.constant 0.000000e+00 : f32
    %46 = vector.broadcast %cst_22 : f32 to vector<8x1xf32>
    %47 = arith.maximumf %45, %46 : vector<8x1xf32>
    %48 = vector.broadcast %38 : vector<8x1xf32> to vector<8x32xf32>
    %49 = arith.subf %34, %48 : vector<8x32xf32>
    %cst_23 = arith.constant 9.99999974E-6 : f32
    %50 = vector.broadcast %cst_23 : f32 to vector<8x1xf32>
    %51 = arith.addf %47, %50 : vector<8x1xf32>
    %52 = math.rsqrt %51 : vector<8x1xf32>
    %53 = vector.broadcast %52 : vector<8x1xf32> to vector<8x32xf32>
    %54 = arith.mulf %49, %53 : vector<8x32xf32>
    %c0_24 = arith.constant 0 : index
    %c0_25 = arith.constant 0 : index
    %55 = vector.load %arg7[%c0_24, %c0_25] : memref<1x32xf32, #tpu.memory_space<vmem>>, vector<1x32xf32>
    %56 = vector.shape_cast %55 : vector<1x32xf32> to vector<32xf32>
    %57 = vector.shape_cast %56 : vector<32xf32> to vector<1x32xf32>
    %58 = vector.broadcast %57 : vector<1x32xf32> to vector<8x32xf32>
    %59 = arith.mulf %54, %58 : vector<8x32xf32>
    %c0_26 = arith.constant 0 : index
    %c0_27 = arith.constant 0 : index
    %60 = vector.load %arg8[%c0_26, %c0_27] : memref<1x32xf32, #tpu.memory_space<vmem>>, vector<1x32xf32>
    %61 = vector.shape_cast %60 : vector<1x32xf32> to vector<32xf32>
    %62 = vector.shape_cast %61 : vector<32xf32> to vector<1x32xf32>
    %63 = vector.broadcast %62 : vector<1x32xf32> to vector<8x32xf32>
    %64 = arith.addf %59, %63 : vector<8x32xf32>
    %c0_28 = arith.constant 0 : index
    %c0_29 = arith.constant 0 : index
    %65 = vector.load %arg9[%c0_28, %c0_29] : memref<32x128xf32, #tpu.memory_space<vmem>>, vector<32x128xf32>
    %cst_30 = arith.constant dense<0.000000e+00> : vector<8x128xf32>
    %66 = tpu.matmul %64, %65, %cst_30 {dimension_numbers = #tpu.dot_dimension_numbers<[1], [0], [0], [1], [0, 0, 1, 1], [], []>, precision = #tpu.contract_precision<fp32>} : vector<8x32xf32>, vector<32x128xf32>, vector<8x128xf32> -> vector<8x128xf32>
    %c0_31 = arith.constant 0 : index
    %c0_32 = arith.constant 0 : index
    %67 = vector.load %arg10[%c0_31, %c0_32] : memref<1x128xf32, #tpu.memory_space<vmem>>, vector<1x128xf32>
    %68 = vector.shape_cast %67 : vector<1x128xf32> to vector<128xf32>
    %69 = vector.shape_cast %68 : vector<128xf32> to vector<1x128xf32>
    %70 = vector.broadcast %69 : vector<1x128xf32> to vector<8x128xf32>
    %71 = arith.addf %66, %70 : vector<8x128xf32>
    %cst_33 = arith.constant 5.000000e-01 : f32
    %72 = vector.broadcast %cst_33 : f32 to vector<8x128xf32>
    %73 = arith.mulf %72, %71 : vector<8x128xf32>
    %cst_34 = arith.constant 0.707106769 : f32
    %74 = vector.broadcast %cst_34 : f32 to vector<8x128xf32>
    %75 = arith.mulf %71, %74 : vector<8x128xf32>
    %76 = math.erf %75 : vector<8x128xf32>
    %cst_35 = arith.constant 1.000000e+00 : f32
    %77 = vector.broadcast %cst_35 : f32 to vector<8x128xf32>
    %78 = arith.addf %77, %76 : vector<8x128xf32>
    %79 = arith.mulf %73, %78 : vector<8x128xf32>
    %c0_36 = arith.constant 0 : index
    %c0_37 = arith.constant 0 : index
    %80 = vector.load %arg11[%c0_36, %c0_37] : memref<128x32xf32, #tpu.memory_space<vmem>>, vector<128x32xf32>
    %cst_38 = arith.constant dense<0.000000e+00> : vector<8x32xf32>
    %81 = tpu.matmul %79, %80, %cst_38 {dimension_numbers = #tpu.dot_dimension_numbers<[1], [0], [0], [1], [0, 0, 1, 1], [], []>, precision = #tpu.contract_precision<fp32>} : vector<8x128xf32>, vector<128x32xf32>, vector<8x32xf32> -> vector<8x32xf32>
    %c0_39 = arith.constant 0 : index
    %c0_40 = arith.constant 0 : index
    %82 = vector.load %arg12[%c0_39, %c0_40] : memref<1x32xf32, #tpu.memory_space<vmem>>, vector<1x32xf32>
    %83 = vector.shape_cast %82 : vector<1x32xf32> to vector<32xf32>
    %84 = vector.shape_cast %83 : vector<32xf32> to vector<1x32xf32>
    %85 = vector.broadcast %84 : vector<1x32xf32> to vector<8x32xf32>
    %86 = arith.addf %81, %85 : vector<8x32xf32>
    %87 = arith.addf %64, %86 : vector<8x32xf32>
    %cst_41 = arith.constant dense<0.000000e+00> : vector<8xf32>
    %88 = vector.multi_reduction <add>, %87, %cst_41 [1] : vector<8x32xf32> to vector<8xf32>
    %89 = vector.shape_cast %88 : vector<8xf32> to vector<8x1xf32>
    %cst_42 = arith.constant 3.200000e+01 : f32
    %90 = vector.broadcast %cst_42 : f32 to vector<8x1xf32>
    %91 = arith.divf %89, %90 : vector<8x1xf32>
    %92 = arith.mulf %87, %87 : vector<8x32xf32>
    %cst_43 = arith.constant dense<0.000000e+00> : vector<8xf32>
    %93 = vector.multi_reduction <add>, %92, %cst_43 [1] : vector<8x32xf32> to vector<8xf32>
    %94 = vector.shape_cast %93 : vector<8xf32> to vector<8x1xf32>
    %cst_44 = arith.constant 3.200000e+01 : f32
    %95 = vector.broadcast %cst_44 : f32 to vector<8x1xf32>
    %96 = arith.divf %94, %95 : vector<8x1xf32>
    %97 = arith.mulf %91, %91 : vector<8x1xf32>
    %98 = arith.subf %96, %97 : vector<8x1xf32>
    %cst_45 = arith.constant 0.000000e+00 : f32
    %99 = vector.broadcast %cst_45 : f32 to vector<8x1xf32>
    %100 = arith.maximumf %98, %99 : vector<8x1xf32>
    %101 = vector.broadcast %91 : vector<8x1xf32> to vector<8x32xf32>
    %102 = arith.subf %87, %101 : vector<8x32xf32>
    %cst_46 = arith.constant 9.99999974E-6 : f32
    %103 = vector.broadcast %cst_46 : f32 to vector<8x1xf32>
    %104 = arith.addf %100, %103 : vector<8x1xf32>
    %105 = math.rsqrt %104 : vector<8x1xf32>
    %106 = vector.broadcast %105 : vector<8x1xf32> to vector<8x32xf32>
    %107 = arith.mulf %102, %106 : vector<8x32xf32>
    %c0_47 = arith.constant 0 : index
    %c0_48 = arith.constant 0 : index
    %108 = vector.load %arg13[%c0_47, %c0_48] : memref<1x32xf32, #tpu.memory_space<vmem>>, vector<1x32xf32>
    %109 = vector.shape_cast %108 : vector<1x32xf32> to vector<32xf32>
    %110 = vector.shape_cast %109 : vector<32xf32> to vector<1x32xf32>
    %111 = vector.broadcast %110 : vector<1x32xf32> to vector<8x32xf32>
    %112 = arith.mulf %107, %111 : vector<8x32xf32>
    %c0_49 = arith.constant 0 : index
    %c0_50 = arith.constant 0 : index
    %113 = vector.load %arg14[%c0_49, %c0_50] : memref<1x32xf32, #tpu.memory_space<vmem>>, vector<1x32xf32>
    %114 = vector.shape_cast %113 : vector<1x32xf32> to vector<32xf32>
    %115 = vector.shape_cast %114 : vector<32xf32> to vector<1x32xf32>
    %116 = vector.broadcast %115 : vector<1x32xf32> to vector<8x32xf32>
    %117 = arith.addf %112, %116 : vector<8x32xf32>
    %c0_51 = arith.constant 0 : index
    %c0_52 = arith.constant 0 : index
    %118 = vector.load %arg15[%c0_51, %c0_52] : memref<8x32xf32, #tpu.memory_space<vmem>>, vector<8x32xf32>
    tpu.vector_store %arg15[%c0_51, %c0_52], %117 {strides = array<i32>} : memref<8x32xf32, #tpu.memory_space<vmem>>, vector<8x32xf32>,
    return
  }
  func.func @transform_0(%arg0: i32) -> (i32, i32) {
    %c0_i32 = arith.constant 0 : i32
    %c0_i32_0 = arith.constant 0 : i32
    return %arg0, %c0_i32 : i32, i32
  }
  func.func @transform_1(%arg0: i32) -> (i32, i32) {
    %c0_i32 = arith.constant 0 : i32
    %c0_i32_0 = arith.constant 0 : i32
    %c0_i32_1 = arith.constant 0 : i32
    return %c0_i32, %c0_i32_0 : i32, i32
  }
  func.func @transform_2(%arg0: i32) -> (i32, i32) {
    %c0_i32 = arith.constant 0 : i32
    %c0_i32_0 = arith.constant 0 : i32
    %c0_i32_1 = arith.constant 0 : i32
    return %c0_i32, %c0_i32_0 : i32, i32
  }
  func.func @transform_3(%arg0: i32) -> (i32, i32) {
    %c0_i32 = arith.constant 0 : i32
    %c0_i32_0 = arith.constant 0 : i32
    %c0_i32_1 = arith.constant 0 : i32
    return %c0_i32, %c0_i32_0 : i32, i32
  }
  func.func @transform_4(%arg0: i32) -> (i32, i32) {
    %c0_i32 = arith.constant 0 : i32
    %c0_i32_0 = arith.constant 0 : i32
    %c0_i32_1 = arith.constant 0 : i32
    return %c0_i32, %c0_i32_0 : i32, i32
  }
  func.func @transform_5(%arg0: i32) -> (i32, i32) {
    %c0_i32 = arith.constant 0 : i32
    %c0_i32_0 = arith.constant 0 : i32
    %c0_i32_1 = arith.constant 0 : i32
    return %c0_i32, %c0_i32_0 : i32, i32
  }
  func.func @transform_6(%arg0: i32) -> (i32, i32) {
    %c0_i32 = arith.constant 0 : i32
    %c0_i32_0 = arith.constant 0 : i32
    %c0_i32_1 = arith.constant 0 : i32
    return %c0_i32, %c0_i32_0 : i32, i32
  }
  func.func @transform_7(%arg0: i32) -> (i32, i32) {
    %c0_i32 = arith.constant 0 : i32
    %c0_i32_0 = arith.constant 0 : i32
    %c0_i32_1 = arith.constant 0 : i32
    return %c0_i32, %c0_i32_0 : i32, i32
  }
  func.func @transform_8(%arg0: i32) -> (i32, i32) {
    %c0_i32 = arith.constant 0 : i32
    %c0_i32_0 = arith.constant 0 : i32
    %c0_i32_1 = arith.constant 0 : i32
    return %c0_i32, %c0_i32_0 : i32, i32
  }
  func.func @transform_9(%arg0: i32) -> (i32, i32) {
    %c0_i32 = arith.constant 0 : i32
    %c0_i32_0 = arith.constant 0 : i32
    %c0_i32_1 = arith.constant 0 : i32
    return %c0_i32, %c0_i32_0 : i32, i32
  }
  func.func @transform_10(%arg0: i32) -> (i32, i32) {
    %c0_i32 = arith.constant 0 : i32
    %c0_i32_0 = arith.constant 0 : i32
    %c0_i32_1 = arith.constant 0 : i32
    return %c0_i32, %c0_i32_0 : i32, i32
  }
  func.func @transform_11(%arg0: i32) -> (i32, i32) {
    %c0_i32 = arith.constant 0 : i32
    %c0_i32_0 = arith.constant 0 : i32
    %c0_i32_1 = arith.constant 0 : i32
    return %c0_i32, %c0_i32_0 : i32, i32
  }
  func.func @transform_12(%arg0: i32) -> (i32, i32) {
    %c0_i32 = arith.constant 0 : i32
    %c0_i32_0 = arith.constant 0 : i32
    %c0_i32_1 = arith.constant 0 : i32
    return %c0_i32, %c0_i32_0 : i32, i32
  }
  func.func @transform_13(%arg0: i32) -> (i32, i32) {
    %c0_i32 = arith.constant 0 : i32
    %c0_i32_0 = arith.constant 0 : i32
    %c0_i32_1 = arith.constant 0 : i32
    return %c0_i32, %c0_i32_0 : i32, i32
  }
  func.func @transform_14(%arg0: i32) -> (i32, i32) {
    %c0_i32 = arith.constant 0 : i32
    %c0_i32_0 = arith.constant 0 : i32
    return %arg0, %c0_i32 : i32, i32
  }
}

</mosaic_0001>

<llo_original>
// kernel: tpu_custom_call.1
$region0: #{tpu_custom_call.1}
  #allocation0 [shape = 'u32[]', space=smem, size = 0x4, offset = 0x4, fixed_abs, tag = 'smem constant byte address 0x4 - core index']
  #allocation1 [shape = 'u32[144,128]{1,0:T(1,128)}', space=vmem, size = 0x12000, scoped, tag = 'internal scratch']
  %s0 = inlined_call_operand.vmem [shape: f32[16,32], index: 0, kind: input, shape index: {}]
  %s1 = inlined_call_operand.vmem [shape: f32[128,32], index: 1, kind: input, shape index: {}]
  %s2 = inlined_call_operand.vmem [shape: f32[1,128], index: 2, kind: input, shape index: {}]
  %s3 = inlined_call_operand.vmem [shape: f32[1,128], index: 3, kind: input, shape index: {}]
  %s4 = inlined_call_operand.vmem [shape: f32[32,32], index: 4, kind: input, shape index: {}]
  %s5 = inlined_call_operand.vmem [shape: f32[32,32], index: 5, kind: input, shape index: {}]
  %s6 = inlined_call_operand.vmem [shape: f32[1,32], index: 6, kind: input, shape index: {}]
  %s7 = inlined_call_operand.vmem [shape: f32[1,32], index: 7, kind: input, shape index: {}]
  %s8 = inlined_call_operand.vmem [shape: f32[32,128], index: 8, kind: input, shape index: {}]
  %s9 = inlined_call_operand.vmem [shape: f32[1,128], index: 9, kind: input, shape index: {}]
  %s10 = inlined_call_operand.vmem [shape: f32[128,32], index: 10, kind: input, shape index: {}]
  %s11 = inlined_call_operand.vmem [shape: f32[1,32], index: 11, kind: input, shape index: {}]
  %s12 = inlined_call_operand.vmem [shape: f32[1,32], index: 12, kind: input, shape index: {}]
  %s13 = inlined_call_operand.vmem [shape: f32[1,32], index: 13, kind: input, shape index: {}]
  %s14 = inlined_call_operand.hbm [shape: f32[16,32], index: 14, kind: output, shape index: {}]
  %s15 = sld [smem:[#allocation0]]
  $region89: #{tpu_custom_call.1} parent=0
    _
  %s17 = ssub.s32 1, %s15
  %s18 = scalar_select 0, %s17, %s15
  $region1: #{tpu_custom_call.1} parent=0
    #allocation2 [shape = 'u8[8192]{0}', space=vmem, size = 0x2000, scoped, tag = 'output window, operand 0']
    #allocation3 [shape = 's32[2]{0}', space=sflag, size = 0x8, scoped, tag = 'scoped memory for tpu_custom_call.1']
    %19 = vsyncpa [#allocation3], 0
    %s20 = scalar_lea.sflag [#allocation3], 1
    %21 = vsyncpa %s20, 0
    loop: start=0, step=1, limit=4
    $region2: #{tpu_custom_call.1} parent=1 // loop_pre_header
      _
    $region3: #{tpu_custom_call.1} parent=1 // loop_header
      %s23 = sphi 0, %s27
      %p24 = scmp.ge.s32.totalorder %s23, 4
      %s33 = sphi 0, %s35
      %s36 = sphi 0, %s33
      %s37 = sphi 0, %s36
      %s53 = sphi 0, %s37
      %s57 = sphi 0, %s57
      %s59 = sphi 0, %s57
      %s60 = sphi 0, %s59
      %s74 = sphi 0, %s60
      %s78 = sphi 0, %s78
      %s80 = sphi 0, %s78
      %s81 = sphi 0, %s80
      %s95 = sphi 0, %s81
      %s99 = sphi 0, %s99
      %s101 = sphi 0, %s99
      %s102 = sphi 0, %s101
      %s116 = sphi 0, %s102
      %s120 = sphi 0, %s120
      %s122 = sphi 0, %s120
      %s123 = sphi 0, %s122
      %s137 = sphi 0, %s123
      %s141 = sphi 0, %s141
      %s143 = sphi 0, %s141
      %s144 = sphi 0, %s143
      %s158 = sphi 0, %s144
      %s162 = sphi 0, %s162
      %s164 = sphi 0, %s162
      %s165 = sphi 0, %s164
      %s179 = sphi 0, %s165
      %s183 = sphi 0, %s183
      %s185 = sphi 0, %s183
      %s186 = sphi 0, %s185
      %s200 = sphi 0, %s186
      %s204 = sphi 0, %s204
      %s206 = sphi 0, %s204
      %s207 = sphi 0, %s206
      %s221 = sphi 0, %s207
      %s225 = sphi 0, %s225
      %s227 = sphi 0, %s225
      %s228 = sphi 0, %s227
      %s242 = sphi 0, %s228
      %s246 = sphi 0, %s246
      %s248 = sphi 0, %s246
      %s249 = sphi 0, %s248
      %s263 = sphi 0, %s249
      %s267 = sphi 0, %s267
      %s269 = sphi 0, %s267
      %s270 = sphi 0, %s269
      %s284 = sphi 0, %s270
      %s288 = sphi 0, %s288
      %s290 = sphi 0, %s288
      %s291 = sphi 0, %s290
      %s305 = sphi 0, %s291
      %s309 = sphi 0, %s309
      %s311 = sphi 0, %s309
      %s312 = sphi 0, %s311
      %s326 = sphi 0, %s312
      %s332 = sphi 0, %s334
      %s335 = sphi 0, %s332
      %s336 = sphi 0, %s335
      %s352 = sphi 0, %s336
    $region4: #{tpu_custom_call.1} parent=1 // loop_header_branch
      %26 = sbr.rel (%p24) target = $region8
    $region5: #{tpu_custom_call.1} parent=1 // loop_body
      %s28 = ssub.s32 %s23, 1
      %s29 = ssub.s32 %s23, 2
      %s30 = sadd.s32 %s23, 1
      %s31 = ssub.s32 %s23, %s30
      %p32 = scmp.eq.s32.totalorder %s31, 0
      %s34 = sadd.s32 %s33, 1
      %s35 = scalar_select %p32, %s33, %s34
      %p38 = pneg %p32
      %p39 = scmp.eq.s32.totalorder %s23, 1
      %p40 = por %p38, %p39
      %p41 = scmp.ne.s32.totalorder %s33, %s36
      %p42 = scmp.eq.s32.totalorder %s23, 0
      %p43 = por %p41, %p42
      %p44 = scmp.ne.s32.totalorder %s33, %s36
      %p45 = scmp.eq.s32.totalorder %s28, 1
      %p46 = por %p44, %p45
      %p47 = scmp.ne.s32.totalorder %s36, %s37
      %p48 = scmp.eq.s32.totalorder %s28, 0
      %p49 = por %p47, %p48
      %p50 = scmp.ne.s32.totalorder %s36, %s37
      %p51 = scmp.eq.s32.totalorder %s29, 1
      %p52 = por %p50, %p51
      %p54 = scmp.ne.s32.totalorder %s37, %s53
      %p55 = scmp.eq.s32.totalorder %s29, 0
      %p56 = por %p54, %p55
      %s58 = sadd.s32 %s57, 1
      %p61 = scmp.eq.s32.totalorder %s23, 1
      %p62 = scmp.ne.s32.totalorder %s57, %s59
      %p63 = scmp.eq.s32.totalorder %s23, 0
      %p64 = por %p62, %p63
      %p65 = scmp.ne.s32.totalorder %s57, %s59
      %p66 = scmp.eq.s32.totalorder %s28, 1
      %p67 = por %p65, %p66
      %p68 = scmp.ne.s32.totalorder %s59, %s60
      %p69 = scmp.eq.s32.totalorder %s28, 0
      %p70 = por %p68, %p69
      %p71 = scmp.ne.s32.totalorder %s59, %s60
      %p72 = scmp.eq.s32.totalorder %s29, 1
      %p73 = por %p71, %p72
      %p75 = scmp.ne.s32.totalorder %s60, %s74
      %p76 = scmp.eq.s32.totalorder %s29, 0
      %p77 = por %p75, %p76
      %s79 = sadd.s32 %s78, 1
      %p82 = scmp.eq.s32.totalorder %s23, 1
      %p83 = scmp.ne.s32.totalorder %s78, %s80
      %p84 = scmp.eq.s32.totalorder %s23, 0
      %p85 = por %p83, %p84
      %p86 = scmp.ne.s32.totalorder %s78, %s80
      %p87 = scmp.eq.s32.totalorder %s28, 1
      %p88 = por %p86, %p87
      %p89 = scmp.ne.s32.totalorder %s80, %s81
      %p90 = scmp.eq.s32.totalorder %s28, 0
      %p91 = por %p89, %p90
      %p92 = scmp.ne.s32.totalorder %s80, %s81
      %p93 = scmp.eq.s32.totalorder %s29, 1
      %p94 = por %p92, %p93
      %p96 = scmp.ne.s32.totalorder %s81, %s95
      %p97 = scmp.eq.s32.totalorder %s29, 0
      %p98 = por %p96, %p97
      %s100 = sadd.s32 %s99, 1
      %p103 = scmp.eq.s32.totalorder %s23, 1
      %p104 = scmp.ne.s32.totalorder %s99, %s101
      %p105 = scmp.eq.s32.totalorder %s23, 0
      %p106 = por %p104, %p105
      %p107 = scmp.ne.s32.totalorder %s99, %s101
      %p108 = scmp.eq.s32.totalorder %s28, 1
      %p109 = por %p107, %p108
      %p110 = scmp.ne.s32.totalorder %s101, %s102
      %p111 = scmp.eq.s32.totalorder %s28, 0
      %p112 = por %p110, %p111
      %p113 = scmp.ne.s32.totalorder %s101, %s102
      %p114 = scmp.eq.s32.totalorder %s29, 1
      %p115 = por %p113, %p114
      %p117 = scmp.ne.s32.totalorder %s102, %s116
      %p118 = scmp.eq.s32.totalorder %s29, 0
      %p119 = por %p117, %p118
      %s121 = sadd.s32 %s120, 1
      %p124 = scmp.eq.s32.totalorder %s23, 1
      %p125 = scmp.ne.s32.totalorder %s120, %s122
      %p126 = scmp.eq.s32.totalorder %s23, 0
      %p127 = por %p125, %p126
      %p128 = scmp.ne.s32.totalorder %s120, %s122
      %p129 = scmp.eq.s32.totalorder %s28, 1
      %p130 = por %p128, %p129
      %p131 = scmp.ne.s32.totalorder %s122, %s123
      %p132 = scmp.eq.s32.totalorder %s28, 0
      %p133 = por %p131, %p132
      %p134 = scmp.ne.s32.totalorder %s122, %s123
      %p135 = scmp.eq.s32.totalorder %s29, 1
      %p136 = por %p134, %p135
      %p138 = scmp.ne.s32.totalorder %s123, %s137
      %p139 = scmp.eq.s32.totalorder %s29, 0
      %p140 = por %p138, %p139
      %s142 = sadd.s32 %s141, 1
      %p145 = scmp.eq.s32.totalorder %s23, 1
      %p146 = scmp.ne.s32.totalorder %s141, %s143
      %p147 = scmp.eq.s32.totalorder %s23, 0
      %p148 = por %p146, %p147
      %p149 = scmp.ne.s32.totalorder %s141, %s143
      %p150 = scmp.eq.s32.totalorder %s28, 1
      %p151 = por %p149, %p150
      %p152 = scmp.ne.s32.totalorder %s143, %s144
      %p153 = scmp.eq.s32.totalorder %s28, 0
      %p154 = por %p152, %p153
      %p155 = scmp.ne.s32.totalorder %s143, %s144
      %p156 = scmp.eq.s32.totalorder %s29, 1
      %p157 = por %p155, %p156
      %p159 = scmp.ne.s32.totalorder %s144, %s158
      %p160 = scmp.eq.s32.totalorder %s29, 0
      %p161 = por %p159, %p160
      %s163 = sadd.s32 %s162, 1
      %p166 = scmp.eq.s32.totalorder %s23, 1
      %p167 = scmp.ne.s32.totalorder %s162, %s164
      %p168 = scmp.eq.s32.totalorder %s23, 0
      %p169 = por %p167, %p168
      %p170 = scmp.ne.s32.totalorder %s162, %s164
      %p171 = scmp.eq.s32.totalorder %s28, 1
      %p172 = por %p170, %p171
      %p173 = scmp.ne.s32.totalorder %s164, %s165
      %p174 = scmp.eq.s32.totalorder %s28, 0
      %p175 = por %p173, %p174
      %p176 = scmp.ne.s32.totalorder %s164, %s165
      %p177 = scmp.eq.s32.totalorder %s29, 1
      %p178 = por %p176, %p177
      %p180 = scmp.ne.s32.totalorder %s165, %s179
      %p181 = scmp.eq.s32.totalorder %s29, 0
      %p182 = por %p180, %p181
      %s184 = sadd.s32 %s183, 1
      %p187 = scmp.eq.s32.totalorder %s23, 1
      %p188 = scmp.ne.s32.totalorder %s183, %s185
      %p189 = scmp.eq.s32.totalorder %s23, 0
      %p190 = por %p188, %p189
      %p191 = scmp.ne.s32.totalorder %s183, %s185
      %p192 = scmp.eq.s32.totalorder %s28, 1
      %p193 = por %p191, %p192
      %p194 = scmp.ne.s32.totalorder %s185, %s186
      %p195 = scmp.eq.s32.totalorder %s28, 0
      %p196 = por %p194, %p195
      %p197 = scmp.ne.s32.totalorder %s185, %s186
      %p198 = scmp.eq.s32.totalorder %s29, 1
      %p199 = por %p197, %p198
      %p201 = scmp.ne.s32.totalorder %s186, %s200
      %p202 = scmp.eq.s32.totalorder %s29, 0
      %p203 = por %p201, %p202
      %s205 = sadd.s32 %s204, 1
      %p208 = scmp.eq.s32.totalorder %s23, 1
      %p209 = scmp.ne.s32.totalorder %s204, %s206
      %p210 = scmp.eq.s32.totalorder %s23, 0
      %p211 = por %p209, %p210
      %p212 = scmp.ne.s32.totalorder %s204, %s206
      %p213 = scmp.eq.s32.totalorder %s28, 1
      %p214 = por %p212, %p213
      %p215 = scmp.ne.s32.totalorder %s206, %s207
      %p216 = scmp.eq.s32.totalorder %s28, 0
      %p217 = por %p215, %p216
      %p218 = scmp.ne.s32.totalorder %s206, %s207
      %p219 = scmp.eq.s32.totalorder %s29, 1
      %p220 = por %p218, %p219
      %p222 = scmp.ne.s32.totalorder %s207, %s221
      %p223 = scmp.eq.s32.totalorder %s29, 0
      %p224 = por %p222, %p223
      %s226 = sadd.s32 %s225, 1
      %p229 = scmp.eq.s32.totalorder %s23, 1
      %p230 = scmp.ne.s32.totalorder %s225, %s227
      %p231 = scmp.eq.s32.totalorder %s23, 0
      %p232 = por %p230, %p231
      %p233 = scmp.ne.s32.totalorder %s225, %s227
      %p234 = scmp.eq.s32.totalorder %s28, 1
      %p235 = por %p233, %p234
      %p236 = scmp.ne.s32.totalorder %s227, %s228
      %p237 = scmp.eq.s32.totalorder %s28, 0
      %p238 = por %p236, %p237
      %p239 = scmp.ne.s32.totalorder %s227, %s228
      %p240 = scmp.eq.s32.totalorder %s29, 1
      %p241 = por %p239, %p240
      %p243 = scmp.ne.s32.totalorder %s228, %s242
      %p244 = scmp.eq.s32.totalorder %s29, 0
      %p245 = por %p243, %p244
      %s247 = sadd.s32 %s246, 1
      %p250 = scmp.eq.s32.totalorder %s23, 1
      %p251 = scmp.ne.s32.totalorder %s246, %s248
      %p252 = scmp.eq.s32.totalorder %s23, 0
      %p253 = por %p251, %p252
      %p254 = scmp.ne.s32.totalorder %s246, %s248
      %p255 = scmp.eq.s32.totalorder %s28, 1
      %p256 = por %p254, %p255
      %p257 = scmp.ne.s32.totalorder %s248, %s249
      %p258 = scmp.eq.s32.totalorder %s28, 0
      %p259 = por %p257, %p258
      %p260 = scmp.ne.s32.totalorder %s248, %s249
      %p261 = scmp.eq.s32.totalorder %s29, 1
      %p262 = por %p260, %p261
      %p264 = scmp.ne.s32.totalorder %s249, %s263
      %p265 = scmp.eq.s32.totalorder %s29, 0
      %p266 = por %p264, %p265
      %s268 = sadd.s32 %s267, 1
      %p271 = scmp.eq.s32.totalorder %s23, 1
      %p272 = scmp.ne.s32.totalorder %s267, %s269
      %p273 = scmp.eq.s32.totalorder %s23, 0
      %p274 = por %p272, %p273
      %p275 = scmp.ne.s32.totalorder %s267, %s269
      %p276 = scmp.eq.s32.totalorder %s28, 1
      %p277 = por %p275, %p276
      %p278 = scmp.ne.s32.totalorder %s269, %s270
      %p279 = scmp.eq.s32.totalorder %s28, 0
      %p280 = por %p278, %p279
      %p281 = scmp.ne.s32.totalorder %s269, %s270
      %p282 = scmp.eq.s32.totalorder %s29, 1
      %p283 = por %p281, %p282
      %p285 = scmp.ne.s32.totalorder %s270, %s284
      %p286 = scmp.eq.s32.totalorder %s29, 0
      %p287 = por %p285, %p286
      %s289 = sadd.s32 %s288, 1
      %p292 = scmp.eq.s32.totalorder %s23, 1
      %p293 = scmp.ne.s32.totalorder %s288, %s290
      %p294 = scmp.eq.s32.totalorder %s23, 0
      %p295 = por %p293, %p294
      %p296 = scmp.ne.s32.totalorder %s288, %s290
      %p297 = scmp.eq.s32.totalorder %s28, 1
      %p298 = por %p296, %p297
      %p299 = scmp.ne.s32.totalorder %s290, %s291
      %p300 = scmp.eq.s32.totalorder %s28, 0
      %p301 = por %p299, %p300
      %p302 = scmp.ne.s32.totalorder %s290, %s291
      %p303 = scmp.eq.s32.totalorder %s29, 1
      %p304 = por %p302, %p303
      %p306 = scmp.ne.s32.totalorder %s291, %s305
      %p307 = scmp.eq.s32.totalorder %s29, 0
      %p308 = por %p306, %p307
      %s310 = sadd.s32 %s309, 1
      %p313 = scmp.eq.s32.totalorder %s23, 1
      %p314 = scmp.ne.s32.totalorder %s309, %s311
      %p315 = scmp.eq.s32.totalorder %s23, 0
      %p316 = por %p314, %p315
      %p317 = scmp.ne.s32.totalorder %s309, %s311
      %p318 = scmp.eq.s32.totalorder %s28, 1
      %p319 = por %p317, %p318
      %p320 = scmp.ne.s32.totalorder %s311, %s312
      %p321 = scmp.eq.s32.totalorder %s28, 0
      %p322 = por %p320, %p321
      %p323 = scmp.ne.s32.totalorder %s311, %s312
      %p324 = scmp.eq.s32.totalorder %s29, 1
      %p325 = por %p323, %p324
      %p327 = scmp.ne.s32.totalorder %s312, %s326
      %p328 = scmp.eq.s32.totalorder %s29, 0
      %p329 = por %p327, %p328
      %s330 = ssub.s32 %s23, %s30
      %p331 = scmp.eq.s32.totalorder %s330, 0
      %s333 = sadd.s32 %s332, 1
      %s334 = scalar_select %p331, %s332, %s333
      %p337 = pneg %p331
      %p338 = scmp.eq.s32.totalorder %s23, 1
      %p339 = por %p337, %p338
      %p340 = scmp.ne.s32.totalorder %s332, %s335
      %p341 = scmp.eq.s32.totalorder %s23, 0
      %p342 = por %p340, %p341
      %p343 = scmp.ne.s32.totalorder %s332, %s335
      %p344 = scmp.eq.s32.totalorder %s28, 1
      %p345 = por %p343, %p344
      %p346 = scmp.ne.s32.totalorder %s335, %s336
      %p347 = scmp.eq.s32.totalorder %s28, 0
      %p348 = por %p346, %p347
      %p349 = scmp.ne.s32.totalorder %s335, %s336
      %p350 = scmp.eq.s32.totalorder %s29, 1
      %p351 = por %p349, %p350
      %p353 = scmp.ne.s32.totalorder %s336, %s352
      %p354 = scmp.eq.s32.totalorder %s29, 0
      %p355 = por %p353, %p354
      %p356 = scmp.le.s32.totalorder 1, %s23
      %p357 = scmp.lt.s32.totalorder %s23, 3
      %p358 = pnand %p356, %p357
      %p359 = pneg %p358
      // Predicated region
      $region9: #{tpu_custom_call.1} parent=5 // pred_check
        _
      $region10: #{tpu_custom_call.1} parent=5 // pred_check_branch
        %361 = sbr.rel (%p358) target = $region12
      $region11: #{tpu_custom_call.1} parent=5 // pred_region
        %s362 = ssub.s32 %s23, 1
        // Predicated region
        $region13: #{tpu_custom_call.1} parent=11 // pred_check
          %p363 = pneg %p70
        $region14: #{tpu_custom_call.1} parent=11 // pred_check_branch
          %365 = sbr.rel (%p363) target = $region16
        $region15: #{tpu_custom_call.1} parent=11 // pred_region
          _
        $region16: #{tpu_custom_call.1} parent=11 // pred_fallthru
          _
        // Predicated region
        $region17: #{tpu_custom_call.1} parent=11 // pred_check
          %p366 = pneg %p91
        $region18: #{tpu_custom_call.1} parent=11 // pred_check_branch
          %368 = sbr.rel (%p366) target = $region20
        $region19: #{tpu_custom_call.1} parent=11 // pred_region
          _
        $region20: #{tpu_custom_call.1} parent=11 // pred_fallthru
          _
        // Predicated region
        $region21: #{tpu_custom_call.1} parent=11 // pred_check
          %p369 = pneg %p112
        $region22: #{tpu_custom_call.1} parent=11 // pred_check_branch
          %371 = sbr.rel (%p369) target = $region24
        $region23: #{tpu_custom_call.1} parent=11 // pred_region
          _
        $region24: #{tpu_custom_call.1} parent=11 // pred_fallthru
          _
        // Predicated region
        $region25: #{tpu_custom_call.1} parent=11 // pred_check
          %p372 = pneg %p133
        $region26: #{tpu_custom_call.1} parent=11 // pred_check_branch
          %374 = sbr.rel (%p372) target = $region28
        $region27: #{tpu_custom_call.1} parent=11 // pred_region
          _
        $region28: #{tpu_custom_call.1} parent=11 // pred_fallthru
          _
        // Predicated region
        $region29: #{tpu_custom_call.1} parent=11 // pred_check
          %p375 = pneg %p154
        $region30: #{tpu_custom_call.1} parent=11 // pred_check_branch
          %377 = sbr.rel (%p375) target = $region32
        $region31: #{tpu_custom_call.1} parent=11 // pred_region
          _
        $region32: #{tpu_custom_call.1} parent=11 // pred_fallthru
          _
        // Predicated region
        $region33: #{tpu_custom_call.1} parent=11 // pred_check
          %p378 = pneg %p175
        $region34: #{tpu_custom_call.1} parent=11 // pred_check_branch
          %380 = sbr.rel (%p378) target = $region36
        $region35: #{tpu_custom_call.1} parent=11 // pred_region
          _
        $region36: #{tpu_custom_call.1} parent=11 // pred_fallthru
          _
        // Predicated region
        $region37: #{tpu_custom_call.1} parent=11 // pred_check
          %p381 = pneg %p196
        $region38: #{tpu_custom_call.1} parent=11 // pred_check_branch
          %383 = sbr.rel (%p381) target = $region40
        $region39: #{tpu_custom_call.1} parent=11 // pred_region
          _
        $region40: #{tpu_custom_call.1} parent=11 // pred_fallthru
          _
        // Predicated region
        $region41: #{tpu_custom_call.1} parent=11 // pred_check
          %p384 = pneg %p217
        $region42: #{tpu_custom_call.1} parent=11 // pred_check_branch
          %386 = sbr.rel (%p384) target = $region44
        $region43: #{tpu_custom_call.1} parent=11 // pred_region
          _
        $region44: #{tpu_custom_call.1} parent=11 // pred_fallthru
          _
        // Predicated region
        $region45: #{tpu_custom_call.1} parent=11 // pred_check
          %p387 = pneg %p238
        $region46: #{tpu_custom_call.1} parent=11 // pred_check_branch
          %389 = sbr.rel (%p387) target = $region48
        $region47: #{tpu_custom_call.1} parent=11 // pred_region
          _
        $region48: #{tpu_custom_call.1} parent=11 // pred_fallthru
          _
        // Predicated region
        $region49: #{tpu_custom_call.1} parent=11 // pred_check
          %p390 = pneg %p259
        $region50: #{tpu_custom_call.1} parent=11 // pred_check_branch
          %392 = sbr.rel (%p390) target = $region52
        $region51: #{tpu_custom_call.1} parent=11 // pred_region
          _
        $region52: #{tpu_custom_call.1} parent=11 // pred_fallthru
          _
        // Predicated region
        $region53: #{tpu_custom_call.1} parent=11 // pred_check
          %p393 = pneg %p280
        $region54: #{tpu_custom_call.1} parent=11 // pred_check_branch
          %395 = sbr.rel (%p393) target = $region56
        $region55: #{tpu_custom_call.1} parent=11 // pred_region
          _
        $region56: #{tpu_custom_call.1} parent=11 // pred_fallthru
          _
        // Predicated region
        $region57: #{tpu_custom_call.1} parent=11 // pred_check
          %p396 = pneg %p301
        $region58: #{tpu_custom_call.1} parent=11 // pred_check_branch
          %398 = sbr.rel (%p396) target = $region60
        $region59: #{tpu_custom_call.1} parent=11 // pred_region
          _
        $region60: #{tpu_custom_call.1} parent=11 // pred_fallthru
          _
        // Predicated region
        $region61: #{tpu_custom_call.1} parent=11 // pred_check
          %p399 = pneg %p322
        $region62: #{tpu_custom_call.1} parent=11 // pred_check_branch
          %401 = sbr.rel (%p399) target = $region64
        $region63: #{tpu_custom_call.1} parent=11 // pred_region
          _
        $region64: #{tpu_custom_call.1} parent=11 // pred_fallthru
          _
      $region12: #{tpu_custom_call.1} parent=5 // pred_fallthru
        _
      %p402 = scmp.lt.s32.totalorder %s23, 2
      // Predicated region
      $region65: #{tpu_custom_call.1} parent=5 // pred_check
        %p403 = pneg %p402
      $region66: #{tpu_custom_call.1} parent=5 // pred_check_branch
        %405 = sbr.rel (%p403) target = $region68
      $region67: #{tpu_custom_call.1} parent=5 // pred_region
        // Predicated region
        $region69: #{tpu_custom_call.1} parent=67 // pred_check
          %p406 = pneg %p43
        $region70: #{tpu_custom_call.1} parent=67 // pred_check_branch
          %408 = sbr.rel (%p406) target = $region72
        $region71: #{tpu_custom_call.1} parent=67 // pred_region
          %p409 = scmp.lt.s32.totalorder %s23, 1
          %s410 = scalar_select %p409, %s23, 1
          %s411 = smul.addr %s410, 8
          %s412 = scalar_lea.vmem %s0, %s411
        $region72: #{tpu_custom_call.1} parent=67 // pred_fallthru
          _
      $region68: #{tpu_custom_call.1} parent=5 // pred_fallthru
        _
      %p413 = scmp.le.s32.totalorder 1, %s23
      %p414 = scmp.lt.s32.totalorder %s23, 3
      %p415 = pnand %p413, %p414
      %p416 = pneg %p415
      // Predicated region
      $region73: #{tpu_custom_call.1} parent=5 // pred_check
        _
      $region74: #{tpu_custom_call.1} parent=5 // pred_check_branch
        %418 = sbr.rel (%p415) target = $region76
      $region75: #{tpu_custom_call.1} parent=5 // pred_region
        %s419 = ssub.s32 %s23, 1
        %p420 = scmp.lt.s32.totalorder %s28, 1
        %s421 = scalar_select %p420, %s28, 1
        %s422 = smul.addr %s421, 8
        %s423 = scalar_lea.vmem %s0, %s422
        %p424 = pneg %p49
        %p425 = pneg %p46
        %p426 = pneg %p70
        %p427 = pneg %p67
        %p428 = pneg %p91
        %p429 = pneg %p88
        %p430 = pneg %p112
        %p431 = pneg %p109
        %p432 = pneg %p133
        %p433 = pneg %p130
        %p434 = pneg %p154
        %p435 = pneg %p151
        %p436 = pneg %p175
        %p437 = pneg %p172
        %p438 = pneg %p196
        %p439 = pneg %p193
        %p440 = pneg %p217
        %p441 = pneg %p214
        %p442 = pneg %p238
        %p443 = pneg %p235
        %p444 = pneg %p259
        %p445 = pneg %p256
        %p446 = pneg %p280
        %p447 = pneg %p277
        %p448 = pneg %p301
        %p449 = pneg %p298
        %p450 = pneg %p322
        %p451 = pneg %p319
        %p452 = pneg %p348
        %p453 = pneg %p345
        %s454 = sand.u32 %s335, 1
        %s455 = scalar_lea.sflag [#allocation3], %s454
        %s456 = sand.u32 %s335, 1
        %s457 = smul.addr %s456, 8
        %s458 = scalar_lea.vmem [#allocation2], %s457
        %p459 = scmp.lt.s32.totalorder %s28, 1
        %s460 = scalar_select %p459, %s28, 1
        %s461 = smul.addr %s460, 8
        %s462 = scalar_lea.vmem %s0, %s461
        %v463 = vld [vmem:[%s462] sm:$0xff]
        %v464 = vmul.f32 %v463, %v463
        %vm465 = vcmask 261120
        %v466 = vsel %vm465, %v464, 0.0
        %467 = vadd.xlane.f32.xlu0 %v466
        %v468 = vpop.xlane.xlu0 %467
        %v469 = vld [vmem:[%s1] sm:$0xff]
        %v470 = vld [vmem:[%s1 + $0x8] sm:$0xff]
        %v471 = vld [vmem:[%s1 + $0x10] sm:$0xff]
        %v472 = vld [vmem:[%s1 + $0x18] sm:$0xff]
        %v473 = vld [vmem:[%s1 + $0x20] sm:$0xff]
        %v474 = vld [vmem:[%s1 + $0x28] sm:$0xff]
        %v475 = vld [vmem:[%s1 + $0x30] sm:$0xff]
        %v476 = vld [vmem:[%s1 + $0x38] sm:$0xff]
        %v477 = vld [vmem:[%s1 + $0x40] sm:$0xff]
        %v478 = vld [vmem:[%s1 + $0x48] sm:$0xff]
        %v479 = vld [vmem:[%s1 + $0x50] sm:$0xff]
        %v480 = vld [vmem:[%s1 + $0x58] sm:$0xff]
        %v481 = vld [vmem:[%s1 + $0x60] sm:$0xff]
        %v482 = vld [vmem:[%s1 + $0x68] sm:$0xff]
        %v483 = vld [vmem:[%s1 + $0x70] sm:$0xff]
        %v484 = vld [vmem:[%s1 + $0x78] sm:$0xff]
        %v486 = vsel %vm465, %v463, 0
        %v489 = vsel %vm465, %v469, 0
        %v492 = vsel %vm465, %v470, 0
        %v495 = vsel %vm465, %v471, 0
        %v498 = vsel %vm465, %v472, 0
        %v501 = vsel %vm465, %v473, 0
        %v504 = vsel %vm465, %v474, 0
        %v507 = vsel %vm465, %v475, 0
        %v510 = vsel %vm465, %v476, 0
        %v513 = vsel %vm465, %v477, 0
        %v516 = vsel %vm465, %v478, 0
        %v519 = vsel %vm465, %v479, 0
        %v522 = vsel %vm465, %v480, 0
        %v525 = vsel %vm465, %v481, 0
        %v528 = vsel %vm465, %v482, 0
        %v531 = vsel %vm465, %v483, 0
        %v534 = vsel %vm465, %v484, 0
        %536 = vmatprep.subr.mxu0 0.0
        %v537 = vand.u32 %v489, 4294901760
        %538 = vmatpush1.xpose.msra.mxu0 %v537
        %539 = vmatprep.subr.mxu0 0.0
        %v540 = vand.u32 %v492, 4294901760
        %541 = vmatpush1.xpose.msra.mxu0 %v540
        %542 = vmatprep.subr.mxu0 0.0
        %v543 = vand.u32 %v495, 4294901760
        %544 = vmatpush1.xpose.msra.mxu0 %v543
        %545 = vmatprep.subr.mxu0 0.0
        %v546 = vand.u32 %v498, 4294901760
        %547 = vmatpush1.xpose.msra.mxu0 %v546
        %548 = vmatprep.subr.mxu0 0.0
        %v549 = vand.u32 %v501, 4294901760
        %550 = vmatpush1.xpose.msra.mxu0 %v549
        %551 = vmatprep.subr.mxu0 0.0
        %v552 = vand.u32 %v504, 4294901760
        %553 = vmatpush1.xpose.msra.mxu0 %v552
        %554 = vmatprep.subr.mxu0 0.0
        %v555 = vand.u32 %v507, 4294901760
        %556 = vmatpush1.xpose.msra.mxu0 %v555
        %557 = vmatprep.subr.mxu0 0.0
        %v558 = vand.u32 %v510, 4294901760
        %559 = vmatpush1.xpose.msra.mxu0 %v558
        %560 = vmatprep.subr.mxu0 0.0
        %v561 = vand.u32 %v513, 4294901760
        %562 = vmatpush1.xpose.msra.mxu0 %v561
        %563 = vmatprep.subr.mxu0 0.0
        %v564 = vand.u32 %v516, 4294901760
        %565 = vmatpush1.xpose.msra.mxu0 %v564
        %566 = vmatprep.subr.mxu0 0.0
        %v567 = vand.u32 %v519, 4294901760
        %568 = vmatpush1.xpose.msra.mxu0 %v567
        %569 = vmatprep.subr.mxu0 0.0
        %v570 = vand.u32 %v522, 4294901760
        %571 = vmatpush1.xpose.msra.mxu0 %v570
        %572 = vmatprep.subr.mxu0 0.0
        %v573 = vand.u32 %v525, 4294901760
        %574 = vmatpush1.xpose.msra.mxu0 %v573
        %575 = vmatprep.subr.mxu0 0.0
        %v576 = vand.u32 %v528, 4294901760
        %577 = vmatpush1.xpose.msra.mxu0 %v576
        %578 = vmatprep.subr.mxu0 0.0
        %v579 = vand.u32 %v531, 4294901760
        %580 = vmatpush1.xpose.msra.mxu0 %v579
        %581 = vmatprep.subr.mxu0 0.0
        %v582 = vand.u32 %v534, 4294901760
        %583 = vmatpush1.xpose.msra.mxu0 %v582
        %584 = vmatprep.subr.mxu0 0.0
        %585 = vmatpush1.xpose.msra.mxu0 0.0
        %586 = vmatprep.subr.mxu0 0.0
        %587 = vmatpush1.xpose.msra.mxu0 0.0
        %588 = vmatprep.subr.mxu0 0.0
        %589 = vmatpush1.xpose.msra.mxu0 0.0
        %590 = vmatprep.subr.mxu0 0.0
        %591 = vmatpush1.xpose.msra.mxu0 0.0
        %592 = vmatprep.subr.mxu0 0.0
        %593 = vmatpush1.xpose.msra.mxu0 0.0
        %594 = vmatprep.subr.mxu0 0.0
        %595 = vmatpush1.xpose.msra.mxu0 0.0
        %596 = vmatprep.subr.mxu0 0.0
        %597 = vmatpush1.xpose.msra.mxu0 0.0
        %598 = vmatprep.subr.mxu0 0.0
        %599 = vmatpush1.xpose.msra.mxu0 0.0
        %600 = vmatprep.subr.mxu0 0.0
        %601 = vmatpush1.xpose.msra.mxu0 0.0
        %602 = vmatprep.subr.mxu0 0.0
        %603 = vmatpush1.xpose.msra.mxu0 0.0
        %604 = vmatprep.subr.mxu0 0.0
        %605 = vmatpush1.xpose.msra.mxu0 0.0
        %606 = vmatprep.subr.mxu0 0.0
        %607 = vmatpush1.xpose.msra.mxu0 0.0
        %608 = vmatprep.subr.mxu0 0.0
        %609 = vmatpush1.xpose.msra.mxu0 0.0
        %610 = vmatprep.subr.mxu0 0.0
        %611 = vmatpush1.xpose.msra.mxu0 0.0
        %612 = vmatprep.subr.mxu0 0.0
        %613 = vmatpush1.xpose.msra.mxu0 0.0
        %614 = vmatprep.subr.mxu0 0.0
        %615 = vmatpush1.xpose.msra.mxu0 0.0
        %616 = vmatprep.mubr.f32.mxu0 0.0
        %v617 = vand.u32 %v486, 4294901760
        %v618 = vsub.f32 %v486, %v617
        %v619 = vand.u32 %v618, 4294901760
        %v620 = vsub.f32 %v618, %v619
        %v621 = vand.u32 %v620, 4294901760
        %622 = vmatmul.mubr.f32.gmra.mrb[0].mxu0 %v621
        %v623 = vpop.f32.mrb[0].mxu0
        %v624 = vadd.f32 0.0, %v623
        %v625 = vpop.f32.mrb[0].mxu0
        %626 = vdwg.mxu0
        %627 = vmatprep.subr.mxu0 0.0
        %v628 = vand.u32 %v489, 4294901760
        %v629 = vsub.f32 %v489, %v628
        %v630 = vand.u32 %v629, 4294901760
        %v631 = vsub.f32 %v629, %v630
        %v632 = vand.u32 %v631, 4294901760
        %633 = vmatpush1.xpose.msra.mxu0 %v632
        %634 = vmatprep.subr.mxu0 0.0
        %v635 = vand.u32 %v492, 4294901760
        %v636 = vsub.f32 %v492, %v635
        %v637 = vand.u32 %v636, 4294901760
        %v638 = vsub.f32 %v636, %v637
        %v639 = vand.u32 %v638, 4294901760
        %640 = vmatpush1.xpose.msra.mxu0 %v639
        %641 = vmatprep.subr.mxu0 0.0
        %v642 = vand.u32 %v495, 4294901760
        %v643 = vsub.f32 %v495, %v642
        %v644 = vand.u32 %v643, 4294901760
        %v645 = vsub.f32 %v643, %v644
        %v646 = vand.u32 %v645, 4294901760
        %647 = vmatpush1.xpose.msra.mxu0 %v646
        %648 = vmatprep.subr.mxu0 0.0
        %v649 = vand.u32 %v498, 4294901760
        %v650 = vsub.f32 %v498, %v649
        %v651 = vand.u32 %v650, 4294901760
        %v652 = vsub.f32 %v650, %v651
        %v653 = vand.u32 %v652, 4294901760
        %654 = vmatpush1.xpose.msra.mxu0 %v653
        %655 = vmatprep.subr.mxu0 0.0
        %v656 = vand.u32 %v501, 4294901760
        %v657 = vsub.f32 %v501, %v656
        %v658 = vand.u32 %v657, 4294901760
        %v659 = vsub.f32 %v657, %v658
        %v660 = vand.u32 %v659, 4294901760
        %661 = vmatpush1.xpose.msra.mxu0 %v660
        %662 = vmatprep.subr.mxu0 0.0
        %v663 = vand.u32 %v504, 4294901760
        %v664 = vsub.f32 %v504, %v663
        %v665 = vand.u32 %v664, 4294901760
        %v666 = vsub.f32 %v664, %v665
        %v667 = vand.u32 %v666, 4294901760
        %668 = vmatpush1.xpose.msra.mxu0 %v667
        %669 = vmatprep.subr.mxu0 0.0
        %v670 = vand.u32 %v507, 4294901760
        %v671 = vsub.f32 %v507, %v670
        %v672 = vand.u32 %v671, 4294901760
        %v673 = vsub.f32 %v671, %v672
        %v674 = vand.u32 %v673, 4294901760
        %675 = vmatpush1.xpose.msra.mxu0 %v674
        %676 = vmatprep.subr.mxu0 0.0
        %v677 = vand.u32 %v510, 4294901760
        %v678 = vsub.f32 %v510, %v677
        %v679 = vand.u32 %v678, 4294901760
        %v680 = vsub.f32 %v678, %v679
        %v681 = vand.u32 %v680, 4294901760
        %682 = vmatpush1.xpose.msra.mxu0 %v681
        %683 = vmatprep.subr.mxu0 0.0
        %v684 = vand.u32 %v513, 4294901760
        %v685 = vsub.f32 %v513, %v684
        %v686 = vand.u32 %v685, 4294901760
        %v687 = vsub.f32 %v685, %v686
        %v688 = vand.u32 %v687, 4294901760
        %689 = vmatpush1.xpose.msra.mxu0 %v688
        %690 = vmatprep.subr.mxu0 0.0
        %v691 = vand.u32 %v516, 4294901760
        %v692 = vsub.f32 %v516, %v691
        %v693 = vand.u32 %v692, 4294901760
        %v694 = vsub.f32 %v692, %v693
        %v695 = vand.u32 %v694, 4294901760
        %696 = vmatpush1.xpose.msra.mxu0 %v695
        %697 = vmatprep.subr.mxu0 0.0
        %v698 = vand.u32 %v519, 4294901760
        %v699 = vsub.f32 %v519, %v698
        %v700 = vand.u32 %v699, 4294901760
        %v701 = vsub.f32 %v699, %v700
        %v702 = vand.u32 %v701, 4294901760
        %703 = vmatpush1.xpose.msra.mxu0 %v702
        %704 = vmatprep.subr.mxu0 0.0
        %v705 = vand.u32 %v522, 4294901760
        %v706 = vsub.f32 %v522, %v705
        %v707 = vand.u32 %v706, 4294901760
        %v708 = vsub.f32 %v706, %v707
        %v709 = vand.u32 %v708, 4294901760
        %710 = vmatpush1.xpose.msra.mxu0 %v709
        %711 = vmatprep.subr.mxu0 0.0
        %v712 = vand.u32 %v525, 4294901760
        %v713 = vsub.f32 %v525, %v712
        %v714 = vand.u32 %v713, 4294901760
        %v715 = vsub.f32 %v713, %v714
        %v716 = vand.u32 %v715, 4294901760
        %717 = vmatpush1.xpose.msra.mxu0 %v716
        %718 = vmatprep.subr.mxu0 0.0
        %v719 = vand.u32 %v528, 4294901760
        %v720 = vsub.f32 %v528, %v719
        %v721 = vand.u32 %v720, 4294901760
        %v722 = vsub.f32 %v720, %v721
        %v723 = vand.u32 %v722, 4294901760
        %724 = vmatpush1.xpose.msra.mxu0 %v723
        %725 = vmatprep.subr.mxu0 0.0
        %v726 = vand.u32 %v531, 4294901760
        %v727 = vsub.f32 %v531, %v726
        %v728 = vand.u32 %v727, 4294901760
        %v729 = vsub.f32 %v727, %v728
        %v730 = vand.u32 %v729, 4294901760
        %731 = vmatpush1.xpose.msra.mxu0 %v730
        %732 = vmatprep.subr.mxu0 0.0
        %v733 = vand.u32 %v534, 4294901760
        %v734 = vsub.f32 %v534, %v733
        %v735 = vand.u32 %v734, 4294901760
        %v736 = vsub.f32 %v734, %v735
        %v737 = vand.u32 %v736, 4294901760
        %738 = vmatpush1.xpose.msra.mxu0 %v737
        %739 = vmatprep.subr.mxu0 0.0
        %740 = vmatpush1.xpose.msra.mxu0 0.0
        %741 = vmatprep.subr.mxu0 0.0
        %742 = vmatpush1.xpose.msra.mxu0 0.0
        %743 = vmatprep.subr.mxu0 0.0
        %744 = vmatpush1.xpose.msra.mxu0 0.0
        %745 = vmatprep.subr.mxu0 0.0
        %746 = vmatpush1.xpose.msra.mxu0 0.0
        %747 = vmatprep.subr.mxu0 0.0
        %748 = vmatpush1.xpose.msra.mxu0 0.0
        %749 = vmatprep.subr.mxu0 0.0
        %750 = vmatpush1.xpose.msra.mxu0 0.0
        %751 = vmatprep.subr.mxu0 0.0
        %752 = vmatpush1.xpose.msra.mxu0 0.0
        %753 = vmatprep.subr.mxu0 0.0
        %754 = vmatpush1.xpose.msra.mxu0 0.0
        %755 = vmatprep.subr.mxu0 0.0
        %756 = vmatpush1.xpose.msra.mxu0 0.0
        %757 = vmatprep.subr.mxu0 0.0
        %758 = vmatpush1.xpose.msra.mxu0 0.0
        %759 = vmatprep.subr.mxu0 0.0
        %760 = vmatpush1.xpose.msra.mxu0 0.0
        %761 = vmatprep.subr.mxu0 0.0
        %762 = vmatpush1.xpose.msra.mxu0 0.0
        %763 = vmatprep.subr.mxu0 0.0
        %764 = vmatpush1.xpose.msra.mxu0 0.0
        %765 = vmatprep.subr.mxu0 0.0
        %766 = vmatpush1.xpose.msra.mxu0 0.0
        %767 = vmatprep.subr.mxu0 0.0
        %768 = vmatpush1.xpose.msra.mxu0 0.0
        %769 = vmatprep.subr.mxu0 0.0
        %770 = vmatpush1.xpose.msra.mxu0 0.0
        %771 = vmatprep.mubr.f32.mxu0 0.0
        %v772 = vand.u32 %v486, 4294901760
        %773 = vmatmul.mubr.f32.gmra.mrb[0].mxu0 %v772
        %v774 = vpop.f32.mrb[0].mxu0
        %v775 = vadd.f32 %v624, %v774
        %v776 = vpop.f32.mrb[0].mxu0
        %777 = vdwg.mxu0
        %778 = vmatprep.subr.mxu0 0.0
        %v779 = vand.u32 %v489, 4294901760
        %v780 = vsub.f32 %v489, %v779
        %781 = vmatpush1.xpose.msra.mxu0 %v780
        %782 = vmatprep.subr.mxu0 0.0
        %v783 = vand.u32 %v492, 4294901760
        %v784 = vsub.f32 %v492, %v783
        %785 = vmatpush1.xpose.msra.mxu0 %v784
        %786 = vmatprep.subr.mxu0 0.0
        %v787 = vand.u32 %v495, 4294901760
        %v788 = vsub.f32 %v495, %v787
        %789 = vmatpush1.xpose.msra.mxu0 %v788
        %790 = vmatprep.subr.mxu0 0.0
        %v791 = vand.u32 %v498, 4294901760
        %v792 = vsub.f32 %v498, %v791
        %793 = vmatpush1.xpose.msra.mxu0 %v792
        %794 = vmatprep.subr.mxu0 0.0
        %v795 = vand.u32 %v501, 4294901760
        %v796 = vsub.f32 %v501, %v795
        %797 = vmatpush1.xpose.msra.mxu0 %v796
        %798 = vmatprep.subr.mxu0 0.0
        %v799 = vand.u32 %v504, 4294901760
        %v800 = vsub.f32 %v504, %v799
        %801 = vmatpush1.xpose.msra.mxu0 %v800
        %802 = vmatprep.subr.mxu0 0.0
        %v803 = vand.u32 %v507, 4294901760
        %v804 = vsub.f32 %v507, %v803
        %805 = vmatpush1.xpose.msra.mxu0 %v804
        %806 = vmatprep.subr.mxu0 0.0
        %v807 = vand.u32 %v510, 4294901760
        %v808 = vsub.f32 %v510, %v807
        %809 = vmatpush1.xpose.msra.mxu0 %v808
        %810 = vmatprep.subr.mxu0 0.0
        %v811 = vand.u32 %v513, 4294901760
        %v812 = vsub.f32 %v513, %v811
        %813 = vmatpush1.xpose.msra.mxu0 %v812
        %814 = vmatprep.subr.mxu0 0.0
        %v815 = vand.u32 %v516, 4294901760
        %v816 = vsub.f32 %v516, %v815
        %817 = vmatpush1.xpose.msra.mxu0 %v816
        %818 = vmatprep.subr.mxu0 0.0
        %v819 = vand.u32 %v519, 4294901760
        %v820 = vsub.f32 %v519, %v819
        %821 = vmatpush1.xpose.msra.mxu0 %v820
        %822 = vmatprep.subr.mxu0 0.0
        %v823 = vand.u32 %v522, 4294901760
        %v824 = vsub.f32 %v522, %v823
        %825 = vmatpush1.xpose.msra.mxu0 %v824
        %826 = vmatprep.subr.mxu0 0.0
        %v827 = vand.u32 %v525, 4294901760
        %v828 = vsub.f32 %v525, %v827
        %829 = vmatpush1.xpose.msra.mxu0 %v828
        %830 = vmatprep.subr.mxu0 0.0
        %v831 = vand.u32 %v528, 4294901760
        %v832 = vsub.f32 %v528, %v831
        %833 = vmatpush1.xpose.msra.mxu0 %v832
        %834 = vmatprep.subr.mxu0 0.0
        %v835 = vand.u32 %v531, 4294901760
        %v836 = vsub.f32 %v531, %v835
        %837 = vmatpush1.xpose.msra.mxu0 %v836
        %838 = vmatprep.subr.mxu0 0.0
        %v839 = vand.u32 %v534, 4294901760
        %v840 = vsub.f32 %v534, %v839
        %841 = vmatpush1.xpose.msra.mxu0 %v840
        %842 = vmatprep.subr.mxu0 0.0
        %843 = vmatpush1.xpose.msra.mxu0 0.0
        %844 = vmatprep.subr.mxu0 0.0
        %845 = vmatpush1.xpose.msra.mxu0 0.0
        %846 = vmatprep.subr.mxu0 0.0
        %847 = vmatpush1.xpose.msra.mxu0 0.0
        %848 = vmatprep.subr.mxu0 0.0
        %849 = vmatpush1.xpose.msra.mxu0 0.0
        %850 = vmatprep.subr.mxu0 0.0
        %851 = vmatpush1.xpose.msra.mxu0 0.0
        %852 = vmatprep.subr.mxu0 0.0
        %853 = vmatpush1.xpose.msra.mxu0 0.0
        %854 = vmatprep.subr.mxu0 0.0
        %855 = vmatpush1.xpose.msra.mxu0 0.0
        %856 = vmatprep.subr.mxu0 0.0
        %857 = vmatpush1.xpose.msra.mxu0 0.0
        %858 = vmatprep.subr.mxu0 0.0
        %859 = vmatpush1.xpose.msra.mxu0 0.0
        %860 = vmatprep.subr.mxu0 0.0
        %861 = vmatpush1.xpose.msra.mxu0 0.0
        %862 = vmatprep.subr.mxu0 0.0
        %863 = vmatpush1.xpose.msra.mxu0 0.0
        %864 = vmatprep.subr.mxu0 0.0
        %865 = vmatpush1.xpose.msra.mxu0 0.0
        %866 = vmatprep.subr.mxu0 0.0
        %867 = vmatpush1.xpose.msra.mxu0 0.0
        %868 = vmatprep.subr.mxu0 0.0
        %869 = vmatpush1.xpose.msra.mxu0 0.0
        %870 = vmatprep.subr.mxu0 0.0
        %871 = vmatpush1.xpose.msra.mxu0 0.0
        %872 = vmatprep.subr.mxu0 0.0
        %873 = vmatpush1.xpose.msra.mxu0 0.0
        %874 = vmatprep.mubr.f32.mxu0 0.0
        %v875 = vand.u32 %v486, 4294901760
        %v876 = vsub.f32 %v486, %v875
        %877 = vmatmul.mubr.f32.gmra.mrb[0].mxu0 %v876
        %v878 = vpop.f32.mrb[0].mxu0
        %v879 = vadd.f32 %v775, %v878
        %v880 = vpop.f32.mrb[0].mxu0
        %881 = vdwg.mxu0
        %882 = vmatprep.subr.mxu0 0.0
        %v883 = vand.u32 %v489, 4294901760
        %884 = vmatpush1.xpose.msra.mxu0 %v883
        %885 = vmatprep.subr.mxu0 0.0
        %v886 = vand.u32 %v492, 4294901760
        %887 = vmatpush1.xpose.msra.mxu0 %v886
        %888 = vmatprep.subr.mxu0 0.0
        %v889 = vand.u32 %v495, 4294901760
        %890 = vmatpush1.xpose.msra.mxu0 %v889
        %891 = vmatprep.subr.mxu0 0.0
        %v892 = vand.u32 %v498, 4294901760
        %893 = vmatpush1.xpose.msra.mxu0 %v892
        %894 = vmatprep.subr.mxu0 0.0
        %v895 = vand.u32 %v501, 4294901760
        %896 = vmatpush1.xpose.msra.mxu0 %v895
        %897 = vmatprep.subr.mxu0 0.0
        %v898 = vand.u32 %v504, 4294901760
        %899 = vmatpush1.xpose.msra.mxu0 %v898
        %900 = vmatprep.subr.mxu0 0.0
        %v901 = vand.u32 %v507, 4294901760
        %902 = vmatpush1.xpose.msra.mxu0 %v901
        %903 = vmatprep.subr.mxu0 0.0
        %v904 = vand.u32 %v510, 4294901760
        %905 = vmatpush1.xpose.msra.mxu0 %v904
        %906 = vmatprep.subr.mxu0 0.0
        %v907 = vand.u32 %v513, 4294901760
        %908 = vmatpush1.xpose.msra.mxu0 %v907
        %909 = vmatprep.subr.mxu0 0.0
        %v910 = vand.u32 %v516, 4294901760
        %911 = vmatpush1.xpose.msra.mxu0 %v910
        %912 = vmatprep.subr.mxu0 0.0
        %v913 = vand.u32 %v519, 4294901760
        %914 = vmatpush1.xpose.msra.mxu0 %v913
        %915 = vmatprep.subr.mxu0 0.0
        %v916 = vand.u32 %v522, 4294901760
        %917 = vmatpush1.xpose.msra.mxu0 %v916
        %918 = vmatprep.subr.mxu0 0.0
        %v919 = vand.u32 %v525, 4294901760
        %920 = vmatpush1.xpose.msra.mxu0 %v919
        %921 = vmatprep.subr.mxu0 0.0
        %v922 = vand.u32 %v528, 4294901760
        %923 = vmatpush1.xpose.msra.mxu0 %v922
        %924 = vmatprep.subr.mxu0 0.0
        %v925 = vand.u32 %v531, 4294901760
        %926 = vmatpush1.xpose.msra.mxu0 %v925
        %927 = vmatprep.subr.mxu0 0.0
        %v928 = vand.u32 %v534, 4294901760
        %929 = vmatpush1.xpose.msra.mxu0 %v928
        %930 = vmatprep.subr.mxu0 0.0
        %931 = vmatpush1.xpose.msra.mxu0 0.0
        %932 = vmatprep.subr.mxu0 0.0
        %933 = vmatpush1.xpose.msra.mxu0 0.0
        %934 = vmatprep.subr.mxu0 0.0
        %935 = vmatpush1.xpose.msra.mxu0 0.0
        %936 = vmatprep.subr.mxu0 0.0
        %937 = vmatpush1.xpose.msra.mxu0 0.0
        %938 = vmatprep.subr.mxu0 0.0
        %939 = vmatpush1.xpose.msra.mxu0 0.0
        %940 = vmatprep.subr.mxu0 0.0
        %941 = vmatpush1.xpose.msra.mxu0 0.0
        %942 = vmatprep.subr.mxu0 0.0
        %943 = vmatpush1.xpose.msra.mxu0 0.0
        %944 = vmatprep.subr.mxu0 0.0
        %945 = vmatpush1.xpose.msra.mxu0 0.0
        %946 = vmatprep.subr.mxu0 0.0
        %947 = vmatpush1.xpose.msra.mxu0 0.0
        %948 = vmatprep.subr.mxu0 0.0
        %949 = vmatpush1.xpose.msra.mxu0 0.0
        %950 = vmatprep.subr.mxu0 0.0
        %951 = vmatpush1.xpose.msra.mxu0 0.0
        %952 = vmatprep.subr.mxu0 0.0
        %953 = vmatpush1.xpose.msra.mxu0 0.0
        %954 = vmatprep.subr.mxu0 0.0
        %955 = vmatpush1.xpose.msra.mxu0 0.0
        %956 = vmatprep.subr.mxu0 0.0
        %957 = vmatpush1.xpose.msra.mxu0 0.0
        %958 = vmatprep.subr.mxu0 0.0
        %959 = vmatpush1.xpose.msra.mxu0 0.0
        %960 = vmatprep.subr.mxu0 0.0
        %961 = vmatpush1.xpose.msra.mxu0 0.0
        %962 = vmatprep.mubr.f32.mxu0 0.0
        %v963 = vand.u32 %v486, 4294901760
        %v964 = vsub.f32 %v486, %v963
        %v965 = vand.u32 %v964, 4294901760
        %966 = vmatmul.mubr.f32.gmra.mrb[0].mxu0 %v965
        %v967 = vpop.f32.mrb[0].mxu0
        %v968 = vadd.f32 %v879, %v967
        %v969 = vpop.f32.mrb[0].mxu0
        %970 = vdwg.mxu0
        %971 = vmatprep.subr.mxu0 0.0
        %v972 = vand.u32 %v489, 4294901760
        %v973 = vsub.f32 %v489, %v972
        %v974 = vand.u32 %v973, 4294901760
        %975 = vmatpush1.xpose.msra.mxu0 %v974
        %976 = vmatprep.subr.mxu0 0.0
        %v977 = vand.u32 %v492, 4294901760
        %v978 = vsub.f32 %v492, %v977
        %v979 = vand.u32 %v978, 4294901760
        %980 = vmatpush1.xpose.msra.mxu0 %v979
        %981 = vmatprep.subr.mxu0 0.0
        %v982 = vand.u32 %v495, 4294901760
        %v983 = vsub.f32 %v495, %v982
        %v984 = vand.u32 %v983, 4294901760
        %985 = vmatpush1.xpose.msra.mxu0 %v984
        %986 = vmatprep.subr.mxu0 0.0
        %v987 = vand.u32 %v498, 4294901760
        %v988 = vsub.f32 %v498, %v987
        %v989 = vand.u32 %v988, 4294901760
        %990 = vmatpush1.xpose.msra.mxu0 %v989
        %991 = vmatprep.subr.mxu0 0.0
        %v992 = vand.u32 %v501, 4294901760
        %v993 = vsub.f32 %v501, %v992
        %v994 = vand.u32 %v993, 4294901760
        %995 = vmatpush1.xpose.msra.mxu0 %v994
        %996 = vmatprep.subr.mxu0 0.0
        %v997 = vand.u32 %v504, 4294901760
        %v998 = vsub.f32 %v504, %v997
        %v999 = vand.u32 %v998, 4294901760
        %1000 = vmatpush1.xpose.msra.mxu0 %v999
        %1001 = vmatprep.subr.mxu0 0.0
        %v1002 = vand.u32 %v507, 4294901760
        %v1003 = vsub.f32 %v507, %v1002
        %v1004 = vand.u32 %v1003, 4294901760
        %1005 = vmatpush1.xpose.msra.mxu0 %v1004
        %1006 = vmatprep.subr.mxu0 0.0
        %v1007 = vand.u32 %v510, 4294901760
        %v1008 = vsub.f32 %v510, %v1007
        %v1009 = vand.u32 %v1008, 4294901760
        %1010 = vmatpush1.xpose.msra.mxu0 %v1009
        %1011 = vmatprep.subr.mxu0 0.0
        %v1012 = vand.u32 %v513, 4294901760
        %v1013 = vsub.f32 %v513, %v1012
        %v1014 = vand.u32 %v1013, 4294901760
        %1015 = vmatpush1.xpose.msra.mxu0 %v1014
        %1016 = vmatprep.subr.mxu0 0.0
        %v1017 = vand.u32 %v516, 4294901760
        %v1018 = vsub.f32 %v516, %v1017
        %v1019 = vand.u32 %v1018, 4294901760
        %1020 = vmatpush1.xpose.msra.mxu0 %v1019
        %1021 = vmatprep.subr.mxu0 0.0
        %v1022 = vand.u32 %v519, 4294901760
        %v1023 = vsub.f32 %v519, %v1022
        %v1024 = vand.u32 %v1023, 4294901760
        %1025 = vmatpush1.xpose.msra.mxu0 %v1024
        %1026 = vmatprep.subr.mxu0 0.0
        %v1027 = vand.u32 %v522, 4294901760
        %v1028 = vsub.f32 %v522, %v1027
        %v1029 = vand.u32 %v1028, 4294901760
        %1030 = vmatpush1.xpose.msra.mxu0 %v1029
        %1031 = vmatprep.subr.mxu0 0.0
        %v1032 = vand.u32 %v525, 4294901760
        %v1033 = vsub.f32 %v525, %v1032
        %v1034 = vand.u32 %v1033, 4294901760
        %1035 = vmatpush1.xpose.msra.mxu0 %v1034
        %1036 = vmatprep.subr.mxu0 0.0
        %v1037 = vand.u32 %v528, 4294901760
        %v1038 = vsub.f32 %v528, %v1037
        %v1039 = vand.u32 %v1038, 4294901760
        %1040 = vmatpush1.xpose.msra.mxu0 %v1039
        %1041 = vmatprep.subr.mxu0 0.0
        %v1042 = vand.u32 %v531, 4294901760
        %v1043 = vsub.f32 %v531, %v1042
        %v1044 = vand.u32 %v1043, 4294901760
        %1045 = vmatpush1.xpose.msra.mxu0 %v1044
        %1046 = vmatprep.subr.mxu0 0.0
        %v1047 = vand.u32 %v534, 4294901760
        %v1048 = vsub.f32 %v534, %v1047
        %v1049 = vand.u32 %v1048, 4294901760
        %1050 = vmatpush1.xpose.msra.mxu0 %v1049
        %1051 = vmatprep.subr.mxu0 0.0
        %1052 = vmatpush1.xpose.msra.mxu0 0.0
        %1053 = vmatprep.subr.mxu0 0.0
        %1054 = vmatpush1.xpose.msra.mxu0 0.0
        %1055 = vmatprep.subr.mxu0 0.0
        %1056 = vmatpush1.xpose.msra.mxu0 0.0
        %1057 = vmatprep.subr.mxu0 0.0
        %1058 = vmatpush1.xpose.msra.mxu0 0.0
        %1059 = vmatprep.subr.mxu0 0.0
        %1060 = vmatpush1.xpose.msra.mxu0 0.0
        %1061 = vmatprep.subr.mxu0 0.0
        %1062 = vmatpush1.xpose.msra.mxu0 0.0
        %1063 = vmatprep.subr.mxu0 0.0
        %1064 = vmatpush1.xpose.msra.mxu0 0.0
        %1065 = vmatprep.subr.mxu0 0.0
        %1066 = vmatpush1.xpose.msra.mxu0 0.0
        %1067 = vmatprep.subr.mxu0 0.0
        %1068 = vmatpush1.xpose.msra.mxu0 0.0
        %1069 = vmatprep.subr.mxu0 0.0
        %1070 = vmatpush1.xpose.msra.mxu0 0.0
        %1071 = vmatprep.subr.mxu0 0.0
        %1072 = vmatpush1.xpose.msra.mxu0 0.0
        %1073 = vmatprep.subr.mxu0 0.0
        %1074 = vmatpush1.xpose.msra.mxu0 0.0
        %1075 = vmatprep.subr.mxu0 0.0
        %1076 = vmatpush1.xpose.msra.mxu0 0.0
        %1077 = vmatprep.subr.mxu0 0.0
        %1078 = vmatpush1.xpose.msra.mxu0 0.0
        %1079 = vmatprep.subr.mxu0 0.0
        %1080 = vmatpush1.xpose.msra.mxu0 0.0
        %1081 = vmatprep.subr.mxu0 0.0
        %1082 = vmatpush1.xpose.msra.mxu0 0.0
        %1083 = vmatprep.mubr.f32.mxu0 0.0
        %v1084 = vand.u32 %v486, 4294901760
        %1085 = vmatmul.mubr.f32.gmra.mrb[0].mxu0 %v1084
        %v1086 = vpop.f32.mrb[0].mxu0
        %v1087 = vadd.f32 %v968, %v1086
        %v1088 = vpop.f32.mrb[0].mxu0
        %1089 = vdwg.mxu0
        %1090 = vmatprep.subr.mxu0 0.0
        %v1091 = vand.u32 %v489, 4294901760
        %1092 = vmatpush1.xpose.msra.mxu0 %v1091
        %1093 = vmatprep.subr.mxu0 0.0
        %v1094 = vand.u32 %v492, 4294901760
        %1095 = vmatpush1.xpose.msra.mxu0 %v1094
        %1096 = vmatprep.subr.mxu0 0.0
        %v1097 = vand.u32 %v495, 4294901760
        %1098 = vmatpush1.xpose.msra.mxu0 %v1097
        %1099 = vmatprep.subr.mxu0 0.0
        %v1100 = vand.u32 %v498, 4294901760
        %1101 = vmatpush1.xpose.msra.mxu0 %v1100
        %1102 = vmatprep.subr.mxu0 0.0
        %v1103 = vand.u32 %v501, 4294901760
        %1104 = vmatpush1.xpose.msra.mxu0 %v1103
        %1105 = vmatprep.subr.mxu0 0.0
        %v1106 = vand.u32 %v504, 4294901760
        %1107 = vmatpush1.xpose.msra.mxu0 %v1106
        %1108 = vmatprep.subr.mxu0 0.0
        %v1109 = vand.u32 %v507, 4294901760
        %1110 = vmatpush1.xpose.msra.mxu0 %v1109
        %1111 = vmatprep.subr.mxu0 0.0
        %v1112 = vand.u32 %v510, 4294901760
        %1113 = vmatpush1.xpose.msra.mxu0 %v1112
        %1114 = vmatprep.subr.mxu0 0.0
        %v1115 = vand.u32 %v513, 4294901760
        %1116 = vmatpush1.xpose.msra.mxu0 %v1115
        %1117 = vmatprep.subr.mxu0 0.0
        %v1118 = vand.u32 %v516, 4294901760
        %1119 = vmatpush1.xpose.msra.mxu0 %v1118
        %1120 = vmatprep.subr.mxu0 0.0
        %v1121 = vand.u32 %v519, 4294901760
        %1122 = vmatpush1.xpose.msra.mxu0 %v1121
        %1123 = vmatprep.subr.mxu0 0.0
        %v1124 = vand.u32 %v522, 4294901760
        %1125 = vmatpush1.xpose.msra.mxu0 %v1124
        %1126 = vmatprep.subr.mxu0 0.0
        %v1127 = vand.u32 %v525, 4294901760
        %1128 = vmatpush1.xpose.msra.mxu0 %v1127
        %1129 = vmatprep.subr.mxu0 0.0
        %v1130 = vand.u32 %v528, 4294901760
        %1131 = vmatpush1.xpose.msra.mxu0 %v1130
        %1132 = vmatprep.subr.mxu0 0.0
        %v1133 = vand.u32 %v531, 4294901760
        %1134 = vmatpush1.xpose.msra.mxu0 %v1133
        %1135 = vmatprep.subr.mxu0 0.0
        %v1136 = vand.u32 %v534, 4294901760
        %1137 = vmatpush1.xpose.msra.mxu0 %v1136
        %1138 = vmatprep.subr.mxu0 0.0
        %1139 = vmatpush1.xpose.msra.mxu0 0.0
        %1140 = vmatprep.subr.mxu0 0.0
        %1141 = vmatpush1.xpose.msra.mxu0 0.0
        %1142 = vmatprep.subr.mxu0 0.0
        %1143 = vmatpush1.xpose.msra.mxu0 0.0
        %1144 = vmatprep.subr.mxu0 0.0
        %1145 = vmatpush1.xpose.msra.mxu0 0.0
        %1146 = vmatprep.subr.mxu0 0.0
        %1147 = vmatpush1.xpose.msra.mxu0 0.0
        %1148 = vmatprep.subr.mxu0 0.0
        %1149 = vmatpush1.xpose.msra.mxu0 0.0
        %1150 = vmatprep.subr.mxu0 0.0
        %1151 = vmatpush1.xpose.msra.mxu0 0.0
        %1152 = vmatprep.subr.mxu0 0.0
        %1153 = vmatpush1.xpose.msra.mxu0 0.0
        %1154 = vmatprep.subr.mxu0 0.0
        %1155 = vmatpush1.xpose.msra.mxu0 0.0
        %1156 = vmatprep.subr.mxu0 0.0
        %1157 = vmatpush1.xpose.msra.mxu0 0.0
        %1158 = vmatprep.subr.mxu0 0.0
        %1159 = vmatpush1.xpose.msra.mxu0 0.0
        %1160 = vmatprep.subr.mxu0 0.0
        %1161 = vmatpush1.xpose.msra.mxu0 0.0
        %1162 = vmatprep.subr.mxu0 0.0
        %1163 = vmatpush1.xpose.msra.mxu0 0.0
        %1164 = vmatprep.subr.mxu0 0.0
        %1165 = vmatpush1.xpose.msra.mxu0 0.0
        %1166 = vmatprep.subr.mxu0 0.0
        %1167 = vmatpush1.xpose.msra.mxu0 0.0
        %1168 = vmatprep.subr.mxu0 0.0
        %1169 = vmatpush1.xpose.msra.mxu0 0.0
        %1170 = vmatprep.mubr.f32.mxu0 0.0
        %v1171 = vand.u32 %v486, 4294901760
        %1172 = vmatmul.mubr.f32.gmra.mrb[0].mxu0 %v1171
        %v1173 = vpop.f32.mrb[0].mxu0
        %v1174 = vadd.f32 %v1087, %v1173
        %v1175 = vpop.f32.mrb[0].mxu0
        %1176 = vdwg.mxu0
        %v1177 = vld [vmem:[%s2] sm:$0x1]
        %v1179 = vlaneseq
        %v1180 = vshrl.u32 %v1179, 7
        %v1181 = vsub.s32 0, %v1180
        %v1182 = vrot.slane %v1177, %v1181
        %v1184 = vmul.f32 %v468, %v1182
        %v1185 = vsub.f32 %v1174, %v1184
        %v1186 = vld [vmem:[%s3] sm:$0x1]
        %v1188 = vlaneseq
        %v1189 = vshrl.u32 %v1188, 7
        %v1190 = vsub.s32 0, %v1189
        %v1191 = vrot.slane %v1186, %v1190
        %v1193 = vadd.f32 %v1185, %v1191
        %v1194 = vmul.f32 %v1193, 1.442695
        %v1195 = vpow.pop %v1194
        %1196 = vadd.xlane.f32.xlu0 %v1195
        %v1197 = vpop.xlane.xlu0 %1196
        %v1198 = vmax.f32 %v1197, 1e-08
        %v1199 = vrcp.pop %v1198
        %v1200 = vmul.f32 %v1195, %v1199
        %v1201 = vld [vmem:[%s4] sm:$0xff]
        %v1202 = vld [vmem:[%s4 + $0x8] sm:$0xff]
        %v1203 = vld [vmem:[%s4 + $0x10] sm:$0xff]
        %v1204 = vld [vmem:[%s4 + $0x18] sm:$0xff]
        %1205 = vmatprep.subr.mxu0 0.0
        %v1206 = vand.u32 %v1201, 4294901760
        %1207 = vmatpush1.msra.mxu0 %v1206
        %1208 = vmatprep.subr.mxu0 0.0
        %v1209 = vand.u32 %v1202, 4294901760
        %1210 = vmatpush1.msra.mxu0 %v1209
        %1211 = vmatprep.subr.mxu0 0.0
        %v1212 = vand.u32 %v1203, 4294901760
        %1213 = vmatpush1.msra.mxu0 %v1212
        %1214 = vmatprep.subr.mxu0 0.0
        %v1215 = vand.u32 %v1204, 4294901760
        %1216 = vmatpush1.msra.mxu0 %v1215
        %1217 = vmatprep.subr.mxu0 0.0
        %1218 = vmatpush1.msra.mxu0 0.0
        %1219 = vmatprep.subr.mxu0 0.0
        %1220 = vmatpush1.msra.mxu0 0.0
        %1221 = vmatprep.subr.mxu0 0.0
        %1222 = vmatpush1.msra.mxu0 0.0
        %1223 = vmatprep.subr.mxu0 0.0
        %1224 = vmatpush1.msra.mxu0 0.0
        %1225 = vmatprep.subr.mxu0 0.0
        %1226 = vmatpush1.msra.mxu0 0.0
        %1227 = vmatprep.subr.mxu0 0.0
        %1228 = vmatpush1.msra.mxu0 0.0
        %1229 = vmatprep.subr.mxu0 0.0
        %1230 = vmatpush1.msra.mxu0 0.0
        %1231 = vmatprep.subr.mxu0 0.0
        %1232 = vmatpush1.msra.mxu0 0.0
        %1233 = vmatprep.subr.mxu0 0.0
        %1234 = vmatpush1.msra.mxu0 0.0
        %1235 = vmatprep.subr.mxu0 0.0
        %1236 = vmatpush1.msra.mxu0 0.0
        %1237 = vmatprep.subr.mxu0 0.0
        %1238 = vmatpush1.msra.mxu0 0.0
        %1239 = vmatprep.subr.mxu0 0.0
        %1240 = vmatpush1.msra.mxu0 0.0
        %1241 = vmatprep.subr.mxu0 0.0
        %1242 = vmatpush1.msra.mxu0 0.0
        %1243 = vmatprep.subr.mxu0 0.0
        %1244 = vmatpush1.msra.mxu0 0.0
        %1245 = vmatprep.subr.mxu0 0.0
        %1246 = vmatpush1.msra.mxu0 0.0
        %1247 = vmatprep.subr.mxu0 0.0
        %1248 = vmatpush1.msra.mxu0 0.0
        %1249 = vmatprep.subr.mxu0 0.0
        %1250 = vmatpush1.msra.mxu0 0.0
        %1251 = vmatprep.subr.mxu0 0.0
        %1252 = vmatpush1.msra.mxu0 0.0
        %1253 = vmatprep.subr.mxu0 0.0
        %1254 = vmatpush1.msra.mxu0 0.0
        %1255 = vmatprep.subr.mxu0 0.0
        %1256 = vmatpush1.msra.mxu0 0.0
        %1257 = vmatprep.subr.mxu0 0.0
        %1258 = vmatpush1.msra.mxu0 0.0
        %1259 = vmatprep.subr.mxu0 0.0
        %1260 = vmatpush1.msra.mxu0 0.0
        %1261 = vmatprep.subr.mxu0 0.0
        %1262 = vmatpush1.msra.mxu0 0.0
        %1263 = vmatprep.subr.mxu0 0.0
        %1264 = vmatpush1.msra.mxu0 0.0
        %1265 = vmatprep.subr.mxu0 0.0
        %1266 = vmatpush1.msra.mxu0 0.0
        %1267 = vmatprep.subr.mxu0 0.0
        %1268 = vmatpush1.msra.mxu0 0.0
        %1269 = vmatprep.subr.mxu0 0.0
        %1270 = vmatpush1.msra.mxu0 0.0
        %1271 = vmatprep.subr.mxu0 0.0
        %1272 = vmatpush1.msra.mxu0 0.0
        %1273 = vmatprep.mubr.f32.mxu0 0.0
        %v1274 = vand.u32 %v486, 4294901760
        %v1275 = vsub.f32 %v486, %v1274
        %v1276 = vand.u32 %v1275, 4294901760
        %v1277 = vsub.f32 %v1275, %v1276
        %v1278 = vand.u32 %v1277, 4294901760
        %1279 = vmatmul.mubr.f32.gmra.mrb[0].mxu0 %v1278
        %v1280 = vpop.f32.mrb[0].mxu0
        %v1281 = vadd.f32 0.0, %v1280
        %v1282 = vpop.f32.mrb[0].mxu0
        %1283 = vdwg.mxu0
        %1284 = vmatprep.subr.mxu0 0.0
        %v1285 = vand.u32 %v1201, 4294901760
        %v1286 = vsub.f32 %v1201, %v1285
        %v1287 = vand.u32 %v1286, 4294901760
        %v1288 = vsub.f32 %v1286, %v1287
        %v1289 = vand.u32 %v1288, 4294901760
        %1290 = vmatpush1.msra.mxu0 %v1289
        %1291 = vmatprep.subr.mxu0 0.0
        %v1292 = vand.u32 %v1202, 4294901760
        %v1293 = vsub.f32 %v1202, %v1292
        %v1294 = vand.u32 %v1293, 4294901760
        %v1295 = vsub.f32 %v1293, %v1294
        %v1296 = vand.u32 %v1295, 4294901760
        %1297 = vmatpush1.msra.mxu0 %v1296
        %1298 = vmatprep.subr.mxu0 0.0
        %v1299 = vand.u32 %v1203, 4294901760
        %v1300 = vsub.f32 %v1203, %v1299
        %v1301 = vand.u32 %v1300, 4294901760
        %v1302 = vsub.f32 %v1300, %v1301
        %v1303 = vand.u32 %v1302, 4294901760
        %1304 = vmatpush1.msra.mxu0 %v1303
        %1305 = vmatprep.subr.mxu0 0.0
        %v1306 = vand.u32 %v1204, 4294901760
        %v1307 = vsub.f32 %v1204, %v1306
        %v1308 = vand.u32 %v1307, 4294901760
        %v1309 = vsub.f32 %v1307, %v1308
        %v1310 = vand.u32 %v1309, 4294901760
        %1311 = vmatpush1.msra.mxu0 %v1310
        %1312 = vmatprep.subr.mxu0 0.0
        %1313 = vmatpush1.msra.mxu0 0.0
        %1314 = vmatprep.subr.mxu0 0.0
        %1315 = vmatpush1.msra.mxu0 0.0
        %1316 = vmatprep.subr.mxu0 0.0
        %1317 = vmatpush1.msra.mxu0 0.0
        %1318 = vmatprep.subr.mxu0 0.0
        %1319 = vmatpush1.msra.mxu0 0.0
        %1320 = vmatprep.subr.mxu0 0.0
        %1321 = vmatpush1.msra.mxu0 0.0
        %1322 = vmatprep.subr.mxu0 0.0
        %1323 = vmatpush1.msra.mxu0 0.0
        %1324 = vmatprep.subr.mxu0 0.0
        %1325 = vmatpush1.msra.mxu0 0.0
        %1326 = vmatprep.subr.mxu0 0.0
        %1327 = vmatpush1.msra.mxu0 0.0
        %1328 = vmatprep.subr.mxu0 0.0
        %1329 = vmatpush1.msra.mxu0 0.0
        %1330 = vmatprep.subr.mxu0 0.0
        %1331 = vmatpush1.msra.mxu0 0.0
        %1332 = vmatprep.subr.mxu0 0.0
        %1333 = vmatpush1.msra.mxu0 0.0
        %1334 = vmatprep.subr.mxu0 0.0
        %1335 = vmatpush1.msra.mxu0 0.0
        %1336 = vmatprep.subr.mxu0 0.0
        %1337 = vmatpush1.msra.mxu0 0.0
        %1338 = vmatprep.subr.mxu0 0.0
        %1339 = vmatpush1.msra.mxu0 0.0
        %1340 = vmatprep.subr.mxu0 0.0
        %1341 = vmatpush1.msra.mxu0 0.0
        %1342 = vmatprep.subr.mxu0 0.0
        %1343 = vmatpush1.msra.mxu0 0.0
        %1344 = vmatprep.subr.mxu0 0.0
        %1345 = vmatpush1.msra.mxu0 0.0
        %1346 = vmatprep.subr.mxu0 0.0
        %1347 = vmatpush1.msra.mxu0 0.0
        %1348 = vmatprep.subr.mxu0 0.0
        %1349 = vmatpush1.msra.mxu0 0.0
        %1350 = vmatprep.subr.mxu0 0.0
        %1351 = vmatpush1.msra.mxu0 0.0
        %1352 = vmatprep.subr.mxu0 0.0
        %1353 = vmatpush1.msra.mxu0 0.0
        %1354 = vmatprep.subr.mxu0 0.0
        %1355 = vmatpush1.msra.mxu0 0.0
        %1356 = vmatprep.subr.mxu0 0.0
        %1357 = vmatpush1.msra.mxu0 0.0
        %1358 = vmatprep.subr.mxu0 0.0
        %1359 = vmatpush1.msra.mxu0 0.0
        %1360 = vmatprep.subr.mxu0 0.0
        %1361 = vmatpush1.msra.mxu0 0.0
        %1362 = vmatprep.subr.mxu0 0.0
        %1363 = vmatpush1.msra.mxu0 0.0
        %1364 = vmatprep.subr.mxu0 0.0
        %1365 = vmatpush1.msra.mxu0 0.0
        %1366 = vmatprep.subr.mxu0 0.0
        %1367 = vmatpush1.msra.mxu0 0.0
        %1368 = vmatprep.mubr.f32.mxu0 0.0
        %v1369 = vand.u32 %v486, 4294901760
        %1370 = vmatmul.mubr.f32.gmra.mrb[0].mxu0 %v1369
        %v1371 = vpop.f32.mrb[0].mxu0
        %v1372 = vadd.f32 %v1281, %v1371
        %v1373 = vpop.f32.mrb[0].mxu0
        %1374 = vdwg.mxu0
        %1375 = vmatprep.subr.mxu0 0.0
        %v1376 = vand.u32 %v1201, 4294901760
        %v1377 = vsub.f32 %v1201, %v1376
        %1378 = vmatpush1.msra.mxu0 %v1377
        %1379 = vmatprep.subr.mxu0 0.0
        %v1380 = vand.u32 %v1202, 4294901760
        %v1381 = vsub.f32 %v1202, %v1380
        %1382 = vmatpush1.msra.mxu0 %v1381
        %1383 = vmatprep.subr.mxu0 0.0
        %v1384 = vand.u32 %v1203, 4294901760
        %v1385 = vsub.f32 %v1203, %v1384
        %1386 = vmatpush1.msra.mxu0 %v1385
        %1387 = vmatprep.subr.mxu0 0.0
        %v1388 = vand.u32 %v1204, 4294901760
        %v1389 = vsub.f32 %v1204, %v1388
        %1390 = vmatpush1.msra.mxu0 %v1389
        %1391 = vmatprep.subr.mxu0 0.0
        %1392 = vmatpush1.msra.mxu0 0.0
        %1393 = vmatprep.subr.mxu0 0.0
        %1394 = vmatpush1.msra.mxu0 0.0
        %1395 = vmatprep.subr.mxu0 0.0
        %1396 = vmatpush1.msra.mxu0 0.0
        %1397 = vmatprep.subr.mxu0 0.0
        %1398 = vmatpush1.msra.mxu0 0.0
        %1399 = vmatprep.subr.mxu0 0.0
        %1400 = vmatpush1.msra.mxu0 0.0
        %1401 = vmatprep.subr.mxu0 0.0
        %1402 = vmatpush1.msra.mxu0 0.0
        %1403 = vmatprep.subr.mxu0 0.0
        %1404 = vmatpush1.msra.mxu0 0.0
        %1405 = vmatprep.subr.mxu0 0.0
        %1406 = vmatpush1.msra.mxu0 0.0
        %1407 = vmatprep.subr.mxu0 0.0
        %1408 = vmatpush1.msra.mxu0 0.0
        %1409 = vmatprep.subr.mxu0 0.0
        %1410 = vmatpush1.msra.mxu0 0.0
        %1411 = vmatprep.subr.mxu0 0.0
        %1412 = vmatpush1.msra.mxu0 0.0
        %1413 = vmatprep.subr.mxu0 0.0
        %1414 = vmatpush1.msra.mxu0 0.0
        %1415 = vmatprep.subr.mxu0 0.0
        %1416 = vmatpush1.msra.mxu0 0.0
        %1417 = vmatprep.subr.mxu0 0.0
        %1418 = vmatpush1.msra.mxu0 0.0
        %1419 = vmatprep.subr.mxu0 0.0
        %1420 = vmatpush1.msra.mxu0 0.0
        %1421 = vmatprep.subr.mxu0 0.0
        %1422 = vmatpush1.msra.mxu0 0.0
        %1423 = vmatprep.subr.mxu0 0.0
        %1424 = vmatpush1.msra.mxu0 0.0
        %1425 = vmatprep.subr.mxu0 0.0
        %1426 = vmatpush1.msra.mxu0 0.0
        %1427 = vmatprep.subr.mxu0 0.0
        %1428 = vmatpush1.msra.mxu0 0.0
        %1429 = vmatprep.subr.mxu0 0.0
        %1430 = vmatpush1.msra.mxu0 0.0
        %1431 = vmatprep.subr.mxu0 0.0
        %1432 = vmatpush1.msra.mxu0 0.0
        %1433 = vmatprep.subr.mxu0 0.0
        %1434 = vmatpush1.msra.mxu0 0.0
        %1435 = vmatprep.subr.mxu0 0.0
        %1436 = vmatpush1.msra.mxu0 0.0
        %1437 = vmatprep.subr.mxu0 0.0
        %1438 = vmatpush1.msra.mxu0 0.0
        %1439 = vmatprep.subr.mxu0 0.0
        %1440 = vmatpush1.msra.mxu0 0.0
        %1441 = vmatprep.subr.mxu0 0.0
        %1442 = vmatpush1.msra.mxu0 0.0
        %1443 = vmatprep.subr.mxu0 0.0
        %1444 = vmatpush1.msra.mxu0 0.0
        %1445 = vmatprep.subr.mxu0 0.0
        %1446 = vmatpush1.msra.mxu0 0.0
        %1447 = vmatprep.mubr.f32.mxu0 0.0
        %v1448 = vand.u32 %v486, 4294901760
        %v1449 = vsub.f32 %v486, %v1448
        %1450 = vmatmul.mubr.f32.gmra.mrb[0].mxu0 %v1449
        %v1451 = vpop.f32.mrb[0].mxu0
        %v1452 = vadd.f32 %v1372, %v1451
        %v1453 = vpop.f32.mrb[0].mxu0
        %1454 = vdwg.mxu0
        %1455 = vmatprep.subr.mxu0 0.0
        %v1456 = vand.u32 %v1201, 4294901760
        %1457 = vmatpush1.msra.mxu0 %v1456
        %1458 = vmatprep.subr.mxu0 0.0
        %v1459 = vand.u32 %v1202, 4294901760
        %1460 = vmatpush1.msra.mxu0 %v1459
        %1461 = vmatprep.subr.mxu0 0.0
        %v1462 = vand.u32 %v1203, 4294901760
        %1463 = vmatpush1.msra.mxu0 %v1462
        %1464 = vmatprep.subr.mxu0 0.0
        %v1465 = vand.u32 %v1204, 4294901760
        %1466 = vmatpush1.msra.mxu0 %v1465
        %1467 = vmatprep.subr.mxu0 0.0
        %1468 = vmatpush1.msra.mxu0 0.0
        %1469 = vmatprep.subr.mxu0 0.0
        %1470 = vmatpush1.msra.mxu0 0.0
        %1471 = vmatprep.subr.mxu0 0.0
        %1472 = vmatpush1.msra.mxu0 0.0
        %1473 = vmatprep.subr.mxu0 0.0
        %1474 = vmatpush1.msra.mxu0 0.0
        %1475 = vmatprep.subr.mxu0 0.0
        %1476 = vmatpush1.msra.mxu0 0.0
        %1477 = vmatprep.subr.mxu0 0.0
        %1478 = vmatpush1.msra.mxu0 0.0
        %1479 = vmatprep.subr.mxu0 0.0
        %1480 = vmatpush1.msra.mxu0 0.0
        %1481 = vmatprep.subr.mxu0 0.0
        %1482 = vmatpush1.msra.mxu0 0.0
        %1483 = vmatprep.subr.mxu0 0.0
        %1484 = vmatpush1.msra.mxu0 0.0
        %1485 = vmatprep.subr.mxu0 0.0
        %1486 = vmatpush1.msra.mxu0 0.0
        %1487 = vmatprep.subr.mxu0 0.0
        %1488 = vmatpush1.msra.mxu0 0.0
        %1489 = vmatprep.subr.mxu0 0.0
        %1490 = vmatpush1.msra.mxu0 0.0
        %1491 = vmatprep.subr.mxu0 0.0
        %1492 = vmatpush1.msra.mxu0 0.0
        %1493 = vmatprep.subr.mxu0 0.0
        %1494 = vmatpush1.msra.mxu0 0.0
        %1495 = vmatprep.subr.mxu0 0.0
        %1496 = vmatpush1.msra.mxu0 0.0
        %1497 = vmatprep.subr.mxu0 0.0
        %1498 = vmatpush1.msra.mxu0 0.0
        %1499 = vmatprep.subr.mxu0 0.0
        %1500 = vmatpush1.msra.mxu0 0.0
        %1501 = vmatprep.subr.mxu0 0.0
        %1502 = vmatpush1.msra.mxu0 0.0
        %1503 = vmatprep.subr.mxu0 0.0
        %1504 = vmatpush1.msra.mxu0 0.0
        %1505 = vmatprep.subr.mxu0 0.0
        %1506 = vmatpush1.msra.mxu0 0.0
        %1507 = vmatprep.subr.mxu0 0.0
        %1508 = vmatpush1.msra.mxu0 0.0
        %1509 = vmatprep.subr.mxu0 0.0
        %1510 = vmatpush1.msra.mxu0 0.0
        %1511 = vmatprep.subr.mxu0 0.0
        %1512 = vmatpush1.msra.mxu0 0.0
        %1513 = vmatprep.subr.mxu0 0.0
        %1514 = vmatpush1.msra.mxu0 0.0
        %1515 = vmatprep.subr.mxu0 0.0
        %1516 = vmatpush1.msra.mxu0 0.0
        %1517 = vmatprep.subr.mxu0 0.0
        %1518 = vmatpush1.msra.mxu0 0.0
        %1519 = vmatprep.subr.mxu0 0.0
        %1520 = vmatpush1.msra.mxu0 0.0
        %1521 = vmatprep.subr.mxu0 0.0
        %1522 = vmatpush1.msra.mxu0 0.0
        %1523 = vmatprep.mubr.f32.mxu0 0.0
        %v1524 = vand.u32 %v486, 4294901760
        %v1525 = vsub.f32 %v486, %v1524
        %v1526 = vand.u32 %v1525, 4294901760
        %1527 = vmatmul.mubr.f32.gmra.mrb[0].mxu0 %v1526
        %v1528 = vpop.f32.mrb[0].mxu0
        %v1529 = vadd.f32 %v1452, %v1528
        %v1530 = vpop.f32.mrb[0].mxu0
        %1531 = vdwg.mxu0
        %1532 = vmatprep.subr.mxu0 0.0
        %v1533 = vand.u32 %v1201, 4294901760
        %v1534 = vsub.f32 %v1201, %v1533
        %v1535 = vand.u32 %v1534, 4294901760
        %1536 = vmatpush1.msra.mxu0 %v1535
        %1537 = vmatprep.subr.mxu0 0.0
        %v1538 = vand.u32 %v1202, 4294901760
        %v1539 = vsub.f32 %v1202, %v1538
        %v1540 = vand.u32 %v1539, 4294901760
        %1541 = vmatpush1.msra.mxu0 %v1540
        %1542 = vmatprep.subr.mxu0 0.0
        %v1543 = vand.u32 %v1203, 4294901760
        %v1544 = vsub.f32 %v1203, %v1543
        %v1545 = vand.u32 %v1544, 4294901760
        %1546 = vmatpush1.msra.mxu0 %v1545
        %1547 = vmatprep.subr.mxu0 0.0
        %v1548 = vand.u32 %v1204, 4294901760
        %v1549 = vsub.f32 %v1204, %v1548
        %v1550 = vand.u32 %v1549, 4294901760
        %1551 = vmatpush1.msra.mxu0 %v1550
        %1552 = vmatprep.subr.mxu0 0.0
        %1553 = vmatpush1.msra.mxu0 0.0
        %1554 = vmatprep.subr.mxu0 0.0
        %1555 = vmatpush1.msra.mxu0 0.0
        %1556 = vmatprep.subr.mxu0 0.0
        %1557 = vmatpush1.msra.mxu0 0.0
        %1558 = vmatprep.subr.mxu0 0.0
        %1559 = vmatpush1.msra.mxu0 0.0
        %1560 = vmatprep.subr.mxu0 0.0
        %1561 = vmatpush1.msra.mxu0 0.0
        %1562 = vmatprep.subr.mxu0 0.0
        %1563 = vmatpush1.msra.mxu0 0.0
        %1564 = vmatprep.subr.mxu0 0.0
        %1565 = vmatpush1.msra.mxu0 0.0
        %1566 = vmatprep.subr.mxu0 0.0
        %1567 = vmatpush1.msra.mxu0 0.0
        %1568 = vmatprep.subr.mxu0 0.0
        %1569 = vmatpush1.msra.mxu0 0.0
        %1570 = vmatprep.subr.mxu0 0.0
        %1571 = vmatpush1.msra.mxu0 0.0
        %1572 = vmatprep.subr.mxu0 0.0
        %1573 = vmatpush1.msra.mxu0 0.0
        %1574 = vmatprep.subr.mxu0 0.0
        %1575 = vmatpush1.msra.mxu0 0.0
        %1576 = vmatprep.subr.mxu0 0.0
        %1577 = vmatpush1.msra.mxu0 0.0
        %1578 = vmatprep.subr.mxu0 0.0
        %1579 = vmatpush1.msra.mxu0 0.0
        %1580 = vmatprep.subr.mxu0 0.0
        %1581 = vmatpush1.msra.mxu0 0.0
        %1582 = vmatprep.subr.mxu0 0.0
        %1583 = vmatpush1.msra.mxu0 0.0
        %1584 = vmatprep.subr.mxu0 0.0
        %1585 = vmatpush1.msra.mxu0 0.0
        %1586 = vmatprep.subr.mxu0 0.0
        %1587 = vmatpush1.msra.mxu0 0.0
        %1588 = vmatprep.subr.mxu0 0.0
        %1589 = vmatpush1.msra.mxu0 0.0
        %1590 = vmatprep.subr.mxu0 0.0
        %1591 = vmatpush1.msra.mxu0 0.0
        %1592 = vmatprep.subr.mxu0 0.0
        %1593 = vmatpush1.msra.mxu0 0.0
        %1594 = vmatprep.subr.mxu0 0.0
        %1595 = vmatpush1.msra.mxu0 0.0
        %1596 = vmatprep.subr.mxu0 0.0
        %1597 = vmatpush1.msra.mxu0 0.0
        %1598 = vmatprep.subr.mxu0 0.0
        %1599 = vmatpush1.msra.mxu0 0.0
        %1600 = vmatprep.subr.mxu0 0.0
        %1601 = vmatpush1.msra.mxu0 0.0
        %1602 = vmatprep.subr.mxu0 0.0
        %1603 = vmatpush1.msra.mxu0 0.0
        %1604 = vmatprep.subr.mxu0 0.0
        %1605 = vmatpush1.msra.mxu0 0.0
        %1606 = vmatprep.subr.mxu0 0.0
        %1607 = vmatpush1.msra.mxu0 0.0
        %1608 = vmatprep.mubr.f32.mxu0 0.0
        %v1609 = vand.u32 %v486, 4294901760
        %1610 = vmatmul.mubr.f32.gmra.mrb[0].mxu0 %v1609
        %v1611 = vpop.f32.mrb[0].mxu0
        %v1612 = vadd.f32 %v1529, %v1611
        %v1613 = vpop.f32.mrb[0].mxu0
        %1614 = vdwg.mxu0
        %1615 = vmatprep.subr.mxu0 0.0
        %v1616 = vand.u32 %v1201, 4294901760
        %1617 = vmatpush1.msra.mxu0 %v1616
        %1618 = vmatprep.subr.mxu0 0.0
        %v1619 = vand.u32 %v1202, 4294901760
        %1620 = vmatpush1.msra.mxu0 %v1619
        %1621 = vmatprep.subr.mxu0 0.0
        %v1622 = vand.u32 %v1203, 4294901760
        %1623 = vmatpush1.msra.mxu0 %v1622
        %1624 = vmatprep.subr.mxu0 0.0
        %v1625 = vand.u32 %v1204, 4294901760
        %1626 = vmatpush1.msra.mxu0 %v1625
        %1627 = vmatprep.subr.mxu0 0.0
        %1628 = vmatpush1.msra.mxu0 0.0
        %1629 = vmatprep.subr.mxu0 0.0
        %1630 = vmatpush1.msra.mxu0 0.0
        %1631 = vmatprep.subr.mxu0 0.0
        %1632 = vmatpush1.msra.mxu0 0.0
        %1633 = vmatprep.subr.mxu0 0.0
        %1634 = vmatpush1.msra.mxu0 0.0
        %1635 = vmatprep.subr.mxu0 0.0
        %1636 = vmatpush1.msra.mxu0 0.0
        %1637 = vmatprep.subr.mxu0 0.0
        %1638 = vmatpush1.msra.mxu0 0.0
        %1639 = vmatprep.subr.mxu0 0.0
        %1640 = vmatpush1.msra.mxu0 0.0
        %1641 = vmatprep.subr.mxu0 0.0
        %1642 = vmatpush1.msra.mxu0 0.0
        %1643 = vmatprep.subr.mxu0 0.0
        %1644 = vmatpush1.msra.mxu0 0.0
        %1645 = vmatprep.subr.mxu0 0.0
        %1646 = vmatpush1.msra.mxu0 0.0
        %1647 = vmatprep.subr.mxu0 0.0
        %1648 = vmatpush1.msra.mxu0 0.0
        %1649 = vmatprep.subr.mxu0 0.0
        %1650 = vmatpush1.msra.mxu0 0.0
        %1651 = vmatprep.subr.mxu0 0.0
        %1652 = vmatpush1.msra.mxu0 0.0
        %1653 = vmatprep.subr.mxu0 0.0
        %1654 = vmatpush1.msra.mxu0 0.0
        %1655 = vmatprep.subr.mxu0 0.0
        %1656 = vmatpush1.msra.mxu0 0.0
        %1657 = vmatprep.subr.mxu0 0.0
        %1658 = vmatpush1.msra.mxu0 0.0
        %1659 = vmatprep.subr.mxu0 0.0
        %1660 = vmatpush1.msra.mxu0 0.0
        %1661 = vmatprep.subr.mxu0 0.0
        %1662 = vmatpush1.msra.mxu0 0.0
        %1663 = vmatprep.subr.mxu0 0.0
        %1664 = vmatpush1.msra.mxu0 0.0
        %1665 = vmatprep.subr.mxu0 0.0
        %1666 = vmatpush1.msra.mxu0 0.0
        %1667 = vmatprep.subr.mxu0 0.0
        %1668 = vmatpush1.msra.mxu0 0.0
        %1669 = vmatprep.subr.mxu0 0.0
        %1670 = vmatpush1.msra.mxu0 0.0
        %1671 = vmatprep.subr.mxu0 0.0
        %1672 = vmatpush1.msra.mxu0 0.0
        %1673 = vmatprep.subr.mxu0 0.0
        %1674 = vmatpush1.msra.mxu0 0.0
        %1675 = vmatprep.subr.mxu0 0.0
        %1676 = vmatpush1.msra.mxu0 0.0
        %1677 = vmatprep.subr.mxu0 0.0
        %1678 = vmatpush1.msra.mxu0 0.0
        %1679 = vmatprep.subr.mxu0 0.0
        %1680 = vmatpush1.msra.mxu0 0.0
        %1681 = vmatprep.subr.mxu0 0.0
        %1682 = vmatpush1.msra.mxu0 0.0
        %1683 = vmatprep.mubr.f32.mxu0 0.0
        %v1684 = vand.u32 %v486, 4294901760
        %1685 = vmatmul.mubr.f32.gmra.mrb[0].mxu0 %v1684
        %v1686 = vpop.f32.mrb[0].mxu0
        %v1687 = vadd.f32 %v1612, %v1686
        %v1688 = vpop.f32.mrb[0].mxu0
        %1689 = vdwg.mxu0
        %1690 = vxpose.xlu0.b32.start [1/16] %v1200, 128
        %1691 = vxpose.xlu0.b32.cont [2/16] 0.0, 128
        %1692 = vxpose.xlu0.b32.cont [3/16] 0.0, 128
        %1693 = vxpose.xlu0.b32.cont [4/16] 0.0, 128
        %1694 = vxpose.xlu0.b32.cont [5/16] 0.0, 128
        %1695 = vxpose.xlu0.b32.cont [6/16] 0.0, 128
        %1696 = vxpose.xlu0.b32.cont [7/16] 0.0, 128
        %1697 = vxpose.xlu0.b32.cont [8/16] 0.0, 128
        %1698 = vxpose.xlu0.b32.cont [9/16] 0.0, 128
        %1699 = vxpose.xlu0.b32.cont [10/16] 0.0, 128
        %1700 = vxpose.xlu0.b32.cont [11/16] 0.0, 128
        %1701 = vxpose.xlu0.b32.cont [12/16] 0.0, 128
        %1702 = vxpose.xlu0.b32.cont [13/16] 0.0, 128
        %1703 = vxpose.xlu0.b32.cont [14/16] 0.0, 128
        %1704 = vxpose.xlu0.b32.cont [15/16] 0.0, 128
        %1705 = vxpose.xlu0.b32.end [16/16] 0.0, 128
        %v1706 = vpop.trf.xlu0
        %v1707 = vpop.trf.xlu0
        %v1708 = vpop.trf.xlu0
        %v1709 = vpop.trf.xlu0
        %v1710 = vpop.trf.xlu0
        %v1711 = vpop.trf.xlu0
        %v1712 = vpop.trf.xlu0
        %v1713 = vpop.trf.xlu0
        %v1714 = vpop.trf.xlu0
        %v1715 = vpop.trf.xlu0
        %v1716 = vpop.trf.xlu0
        %v1717 = vpop.trf.xlu0
        %v1718 = vpop.trf.xlu0
        %v1719 = vpop.trf.xlu0
        %v1720 = vpop.trf.xlu0
        %v1721 = vpop.trf.xlu0
        %vm1722 = vcmask 64512
        %v1724 = vsel %vm1722, %v1706, 0
        %v1727 = vsel %vm1722, %v1707, 0
        %v1730 = vsel %vm1722, %v1708, 0
        %v1733 = vsel %vm1722, %v1709, 0
        %v1736 = vsel %vm1722, %v1710, 0
        %v1739 = vsel %vm1722, %v1711, 0
        %v1742 = vsel %vm1722, %v1712, 0
        %v1745 = vsel %vm1722, %v1713, 0
        %v1748 = vsel %vm1722, %v1714, 0
        %v1751 = vsel %vm1722, %v1715, 0
        %v1754 = vsel %vm1722, %v1716, 0
        %v1757 = vsel %vm1722, %v1717, 0
        %v1760 = vsel %vm1722, %v1718, 0
        %v1763 = vsel %vm1722, %v1719, 0
        %v1766 = vsel %vm1722, %v1720, 0
        %v1769 = vsel %vm1722, %v1721, 0
        %1771 = vmatprep.subr.mxu0 0.0
        %v1772 = vand.u32 %v1687, 4294901760
        %1773 = vmatpush1.msra.mxu0 %v1772
        %1774 = vmatprep.subr.mxu0 0.0
        %1775 = vmatpush1.msra.mxu0 0.0
        %1776 = vmatprep.subr.mxu0 0.0
        %1777 = vmatpush1.msra.mxu0 0.0
        %1778 = vmatprep.subr.mxu0 0.0
        %1779 = vmatpush1.msra.mxu0 0.0
        %1780 = vmatprep.subr.mxu0 0.0
        %1781 = vmatpush1.msra.mxu0 0.0
        %1782 = vmatprep.subr.mxu0 0.0
        %1783 = vmatpush1.msra.mxu0 0.0
        %1784 = vmatprep.subr.mxu0 0.0
        %1785 = vmatpush1.msra.mxu0 0.0
        %1786 = vmatprep.subr.mxu0 0.0
        %1787 = vmatpush1.msra.mxu0 0.0
        %1788 = vmatprep.subr.mxu0 0.0
        %1789 = vmatpush1.msra.mxu0 0.0
        %1790 = vmatprep.subr.mxu0 0.0
        %1791 = vmatpush1.msra.mxu0 0.0
        %1792 = vmatprep.subr.mxu0 0.0
        %1793 = vmatpush1.msra.mxu0 0.0
        %1794 = vmatprep.subr.mxu0 0.0
        %1795 = vmatpush1.msra.mxu0 0.0
        %1796 = vmatprep.subr.mxu0 0.0
        %1797 = vmatpush1.msra.mxu0 0.0
        %1798 = vmatprep.subr.mxu0 0.0
        %1799 = vmatpush1.msra.mxu0 0.0
        %1800 = vmatprep.subr.mxu0 0.0
        %1801 = vmatpush1.msra.mxu0 0.0
        %1802 = vmatprep.subr.mxu0 0.0
        %1803 = vmatpush1.msra.mxu0 0.0
        %1804 = vmatprep.subr.mxu0 0.0
        %1805 = vmatpush1.msra.mxu0 0.0
        %1806 = vmatprep.subr.mxu0 0.0
        %1807 = vmatpush1.msra.mxu0 0.0
        %1808 = vmatprep.subr.mxu0 0.0
        %1809 = vmatpush1.msra.mxu0 0.0
        %1810 = vmatprep.subr.mxu0 0.0
        %1811 = vmatpush1.msra.mxu0 0.0
        %1812 = vmatprep.subr.mxu0 0.0
        %1813 = vmatpush1.msra.mxu0 0.0
        %1814 = vmatprep.subr.mxu0 0.0
        %1815 = vmatpush1.msra.mxu0 0.0
        %1816 = vmatprep.subr.mxu0 0.0
        %1817 = vmatpush1.msra.mxu0 0.0
        %1818 = vmatprep.subr.mxu0 0.0
        %1819 = vmatpush1.msra.mxu0 0.0
        %1820 = vmatprep.subr.mxu0 0.0
        %1821 = vmatpush1.msra.mxu0 0.0
        %1822 = vmatprep.subr.mxu0 0.0
        %1823 = vmatpush1.msra.mxu0 0.0
        %1824 = vmatprep.subr.mxu0 0.0
        %1825 = vmatpush1.msra.mxu0 0.0
        %1826 = vmatprep.subr.mxu0 0.0
        %1827 = vmatpush1.msra.mxu0 0.0
        %1828 = vmatprep.subr.mxu0 0.0
        %1829 = vmatpush1.msra.mxu0 0.0
        %1830 = vmatprep.subr.mxu0 0.0
        %1831 = vmatpush1.msra.mxu0 0.0
        %1832 = vmatprep.subr.mxu0 0.0
        %1833 = vmatpush1.msra.mxu0 0.0
        %1834 = vmatprep.subr.mxu0 0.0
        %1835 = vmatpush1.msra.mxu0 0.0
        %1836 = vmatprep.mubr.f32.mxu0 0.0
        %v1837 = vand.u32 %v1724, 4294901760
        %v1838 = vsub.f32 %v1724, %v1837
        %v1839 = vand.u32 %v1838, 4294901760
        %v1840 = vsub.f32 %v1838, %v1839
        %v1841 = vand.u32 %v1840, 4294901760
        %1842 = vmatmul.mubr.f32.gmra.mrb[0].mxu0 %v1841
        %v1843 = vpop.f32.mrb[0].mxu0
        %v1844 = vadd.f32 0.0, %v1843
        %v1845 = vpop.f32.mrb[0].mxu0
        %1846 = vmatprep.mubr.f32.mxu0 0.0
        %v1847 = vand.u32 %v1727, 4294901760
        %v1848 = vsub.f32 %v1727, %v1847
        %v1849 = vand.u32 %v1848, 4294901760
        %v1850 = vsub.f32 %v1848, %v1849
        %v1851 = vand.u32 %v1850, 4294901760
        %1852 = vmatmul.mubr.f32.gmra.mrb[0].mxu0 %v1851
        %v1853 = vpop.f32.mrb[0].mxu0
        %v1854 = vadd.f32 0.0, %v1853
        %v1855 = vpop.f32.mrb[0].mxu0
        %1856 = vmatprep.mubr.f32.mxu0 0.0
        %v1857 = vand.u32 %v1730, 4294901760
        %v1858 = vsub.f32 %v1730, %v1857
        %v1859 = vand.u32 %v1858, 4294901760
        %v1860 = vsub.f32 %v1858, %v1859
        %v1861 = vand.u32 %v1860, 4294901760
        %1862 = vmatmul.mubr.f32.gmra.mrb[0].mxu0 %v1861
        %v1863 = vpop.f32.mrb[0].mxu0
        %v1864 = vadd.f32 0.0, %v1863
        %v1865 = vpop.f32.mrb[0].mxu0
        %1866 = vmatprep.mubr.f32.mxu0 0.0
        %v1867 = vand.u32 %v1733, 4294901760
        %v1868 = vsub.f32 %v1733, %v1867
        %v1869 = vand.u32 %v1868, 4294901760
        %v1870 = vsub.f32 %v1868, %v1869
        %v1871 = vand.u32 %v1870, 4294901760
        %1872 = vmatmul.mubr.f32.gmra.mrb[0].mxu0 %v1871
        %v1873 = vpop.f32.mrb[0].mxu0
        %v1874 = vadd.f32 0.0, %v1873
        %v1875 = vpop.f32.mrb[0].mxu0
        %1876 = vmatprep.mubr.f32.mxu0 0.0
        %v1877 = vand.u32 %v1736, 4294901760
        %v1878 = vsub.f32 %v1736, %v1877
        %v1879 = vand.u32 %v1878, 4294901760
        %v1880 = vsub.f32 %v1878, %v1879
        %v1881 = vand.u32 %v1880, 4294901760
        %1882 = vmatmul.mubr.f32.gmra.mrb[0].mxu0 %v1881
        %v1883 = vpop.f32.mrb[0].mxu0
        %v1884 = vadd.f32 0.0, %v1883
        %v1885 = vpop.f32.mrb[0].mxu0
        %1886 = vmatprep.mubr.f32.mxu0 0.0
        %v1887 = vand.u32 %v1739, 4294901760
        %v1888 = vsub.f32 %v1739, %v1887
        %v1889 = vand.u32 %v1888, 4294901760
        %v1890 = vsub.f32 %v1888, %v1889
        %v1891 = vand.u32 %v1890, 4294901760
        %1892 = vmatmul.mubr.f32.gmra.mrb[0].mxu0 %v1891
        %v1893 = vpop.f32.mrb[0].mxu0
        %v1894 = vadd.f32 0.0, %v1893
        %v1895 = vpop.f32.mrb[0].mxu0
        %1896 = vmatprep.mubr.f32.mxu0 0.0
        %v1897 = vand.u32 %v1742, 4294901760
        %v1898 = vsub.f32 %v1742, %v1897
        %v1899 = vand.u32 %v1898, 4294901760
        %v1900 = vsub.f32 %v1898, %v1899
        %v1901 = vand.u32 %v1900, 4294901760
        %1902 = vmatmul.mubr.f32.gmra.mrb[0].mxu0 %v1901
        %v1903 = vpop.f32.mrb[0].mxu0
        %v1904 = vadd.f32 0.0, %v1903
        %v1905 = vpop.f32.mrb[0].mxu0
        %1906 = vmatprep.mubr.f32.mxu0 0.0
        %v1907 = vand.u32 %v1745, 4294901760
        %v1908 = vsub.f32 %v1745, %v1907
        %v1909 = vand.u32 %v1908, 4294901760
        %v1910 = vsub.f32 %v1908, %v1909
        %v1911 = vand.u32 %v1910, 4294901760
        %1912 = vmatmul.mubr.f32.gmra.mrb[0].mxu0 %v1911
        %v1913 = vpop.f32.mrb[0].mxu0
        %v1914 = vadd.f32 0.0, %v1913
        %v1915 = vpop.f32.mrb[0].mxu0
        %1916 = vmatprep.mubr.f32.mxu0 0.0
        %v1917 = vand.u32 %v1748, 4294901760
        %v1918 = vsub.f32 %v1748, %v1917
        %v1919 = vand.u32 %v1918, 4294901760
        %v1920 = vsub.f32 %v1918, %v1919
        %v1921 = vand.u32 %v1920, 4294901760
        %1922 = vmatmul.mubr.f32.gmra.mrb[0].mxu0 %v1921
        %v1923 = vpop.f32.mrb[0].mxu0
        %v1924 = vadd.f32 0.0, %v1923
        %v1925 = vpop.f32.mrb[0].mxu0
        %1926 = vmatprep.mubr.f32.mxu0 0.0
        %v1927 = vand.u32 %v1751, 4294901760
        %v1928 = vsub.f32 %v1751, %v1927
        %v1929 = vand.u32 %v1928, 4294901760
        %v1930 = vsub.f32 %v1928, %v1929
        %v1931 = vand.u32 %v1930, 4294901760
        %1932 = vmatmul.mubr.f32.gmra.mrb[0].mxu0 %v1931
        %v1933 = vpop.f32.mrb[0].mxu0
        %v1934 = vadd.f32 0.0, %v1933
        %v1935 = vpop.f32.mrb[0].mxu0
        %1936 = vmatprep.mubr.f32.mxu0 0.0
        %v1937 = vand.u32 %v1754, 4294901760
        %v1938 = vsub.f32 %v1754, %v1937
        %v1939 = vand.u32 %v1938, 4294901760
        %v1940 = vsub.f32 %v1938, %v1939
        %v1941 = vand.u32 %v1940, 4294901760
        %1942 = vmatmul.mubr.f32.gmra.mrb[0].mxu0 %v1941
        %v1943 = vpop.f32.mrb[0].mxu0
        %v1944 = vadd.f32 0.0, %v1943
        %v1945 = vpop.f32.mrb[0].mxu0
        %1946 = vmatprep.mubr.f32.mxu0 0.0
        %v1947 = vand.u32 %v1757, 4294901760
        %v1948 = vsub.f32 %v1757, %v1947
        %v1949 = vand.u32 %v1948, 4294901760
        %v1950 = vsub.f32 %v1948, %v1949
        %v1951 = vand.u32 %v1950, 4294901760
        %1952 = vmatmul.mubr.f32.gmra.mrb[0].mxu0 %v1951
        %v1953 = vpop.f32.mrb[0].mxu0
        %v1954 = vadd.f32 0.0, %v1953
        %v1955 = vpop.f32.mrb[0].mxu0
        %1956 = vmatprep.mubr.f32.mxu0 0.0
        %v1957 = vand.u32 %v1760, 4294901760
        %v1958 = vsub.f32 %v1760, %v1957
        %v1959 = vand.u32 %v1958, 4294901760
        %v1960 = vsub.f32 %v1958, %v1959
        %v1961 = vand.u32 %v1960, 4294901760
        %1962 = vmatmul.mubr.f32.gmra.mrb[0].mxu0 %v1961
        %v1963 = vpop.f32.mrb[0].mxu0
        %v1964 = vadd.f32 0.0, %v1963
        %v1965 = vpop.f32.mrb[0].mxu0
        %1966 = vmatprep.mubr.f32.mxu0 0.0
        %v1967 = vand.u32 %v1763, 4294901760
        %v1968 = vsub.f32 %v1763, %v1967
        %v1969 = vand.u32 %v1968, 4294901760
        %v1970 = vsub.f32 %v1968, %v1969
        %v1971 = vand.u32 %v1970, 4294901760
        %1972 = vmatmul.mubr.f32.gmra.mrb[0].mxu0 %v1971
        %v1973 = vpop.f32.mrb[0].mxu0
        %v1974 = vadd.f32 0.0, %v1973
        %v1975 = vpop.f32.mrb[0].mxu0
        %1976 = vmatprep.mubr.f32.mxu0 0.0
        %v1977 = vand.u32 %v1766, 4294901760
        %v1978 = vsub.f32 %v1766, %v1977
        %v1979 = vand.u32 %v1978, 4294901760
        %v1980 = vsub.f32 %v1978, %v1979
        %v1981 = vand.u32 %v1980, 4294901760
        %1982 = vmatmul.mubr.f32.gmra.mrb[0].mxu0 %v1981
        %v1983 = vpop.f32.mrb[0].mxu0
        %v1984 = vadd.f32 0.0, %v1983
        %v1985 = vpop.f32.mrb[0].mxu0
        %1986 = vmatprep.mubr.f32.mxu0 0.0
        %v1987 = vand.u32 %v1769, 4294901760
        %v1988 = vsub.f32 %v1769, %v1987
        %v1989 = vand.u32 %v1988, 4294901760
        %v1990 = vsub.f32 %v1988, %v1989
        %v1991 = vand.u32 %v1990, 4294901760
        %1992 = vmatmul.mubr.f32.gmra.mrb[0].mxu0 %v1991
        %v1993 = vpop.f32.mrb[0].mxu0
        %v1994 = vadd.f32 0.0, %v1993
        %v1995 = vpop.f32.mrb[0].mxu0
        %1996 = vdwg.mxu0
        %1997 = vmatprep.subr.mxu0 0.0
        %v1998 = vand.u32 %v1687, 4294901760
        %v1999 = vsub.f32 %v1687, %v1998
        %v2000 = vand.u32 %v1999, 4294901760
        %v2001 = vsub.f32 %v1999, %v2000
        %v2002 = vand.u32 %v2001, 4294901760
        %2003 = vmatpush1.msra.mxu0 %v2002
        %2004 = vmatprep.subr.mxu0 0.0
        %2005 = vmatpush1.msra.mxu0 0.0
        %2006 = vmatprep.subr.mxu0 0.0
        %2007 = vmatpush1.msra.mxu0 0.0
        %2008 = vmatprep.subr.mxu0 0.0
        %2009 = vmatpush1.msra.mxu0 0.0
        %2010 = vmatprep.subr.mxu0 0.0
        %2011 = vmatpush1.msra.mxu0 0.0
        %2012 = vmatprep.subr.mxu0 0.0
        %2013 = vmatpush1.msra.mxu0 0.0
        %2014 = vmatprep.subr.mxu0 0.0
        %2015 = vmatpush1.msra.mxu0 0.0
        %2016 = vmatprep.subr.mxu0 0.0
        %2017 = vmatpush1.msra.mxu0 0.0
        %2018 = vmatprep.subr.mxu0 0.0
        %2019 = vmatpush1.msra.mxu0 0.0
        %2020 = vmatprep.subr.mxu0 0.0
        %2021 = vmatpush1.msra.mxu0 0.0
        %2022 = vmatprep.subr.mxu0 0.0
        %2023 = vmatpush1.msra.mxu0 0.0
        %2024 = vmatprep.subr.mxu0 0.0
        %2025 = vmatpush1.msra.mxu0 0.0
        %2026 = vmatprep.subr.mxu0 0.0
        %2027 = vmatpush1.msra.mxu0 0.0
        %2028 = vmatprep.subr.mxu0 0.0
        %2029 = vmatpush1.msra.mxu0 0.0
        %2030 = vmatprep.subr.mxu0 0.0
        %2031 = vmatpush1.msra.mxu0 0.0
        %2032 = vmatprep.subr.mxu0 0.0
        %2033 = vmatpush1.msra.mxu0 0.0
        %2034 = vmatprep.subr.mxu0 0.0
        %2035 = vmatpush1.msra.mxu0 0.0
        %2036 = vmatprep.subr.mxu0 0.0
        %2037 = vmatpush1.msra.mxu0 0.0
        %2038 = vmatprep.subr.mxu0 0.0
        %2039 = vmatpush1.msra.mxu0 0.0
        %2040 = vmatprep.subr.mxu0 0.0
        %2041 = vmatpush1.msra.mxu0 0.0
        %2042 = vmatprep.subr.mxu0 0.0
        %2043 = vmatpush1.msra.mxu0 0.0
        %2044 = vmatprep.subr.mxu0 0.0
        %2045 = vmatpush1.msra.mxu0 0.0
        %2046 = vmatprep.subr.mxu0 0.0
        %2047 = vmatpush1.msra.mxu0 0.0
        %2048 = vmatprep.subr.mxu0 0.0
        %2049 = vmatpush1.msra.mxu0 0.0
        %2050 = vmatprep.subr.mxu0 0.0
        %2051 = vmatpush1.msra.mxu0 0.0
        %2052 = vmatprep.subr.mxu0 0.0
        %2053 = vmatpush1.msra.mxu0 0.0
        %2054 = vmatprep.subr.mxu0 0.0
        %2055 = vmatpush1.msra.mxu0 0.0
        %2056 = vmatprep.subr.mxu0 0.0
        %2057 = vmatpush1.msra.mxu0 0.0
        %2058 = vmatprep.subr.mxu0 0.0
        %2059 = vmatpush1.msra.mxu0 0.0
        %2060 = vmatprep.subr.mxu0 0.0
        %2061 = vmatpush1.msra.mxu0 0.0
        %2062 = vmatprep.subr.mxu0 0.0
        %2063 = vmatpush1.msra.mxu0 0.0
        %2064 = vmatprep.subr.mxu0 0.0
        %2065 = vmatpush1.msra.mxu0 0.0
        %2066 = vmatprep.mubr.f32.mxu0 0.0
        %v2067 = vand.u32 %v1724, 4294901760
        %2068 = vmatmul.mubr.f32.gmra.mrb[0].mxu0 %v2067
        %v2069 = vpop.f32.mrb[0].mxu0
        %v2070 = vadd.f32 %v1844, %v2069
        %v2071 = vpop.f32.mrb[0].mxu0
        %2072 = vmatprep.mubr.f32.mxu0 0.0
        %v2073 = vand.u32 %v1727, 4294901760
        %2074 = vmatmul.mubr.f32.gmra.mrb[0].mxu0 %v2073
        %v2075 = vpop.f32.mrb[0].mxu0
        %v2076 = vadd.f32 %v1854, %v2075
        %v2077 = vpop.f32.mrb[0].mxu0
        %2078 = vmatprep.mubr.f32.mxu0 0.0
        %v2079 = vand.u32 %v1730, 4294901760
        %2080 = vmatmul.mubr.f32.gmra.mrb[0].mxu0 %v2079
        %v2081 = vpop.f32.mrb[0].mxu0
        %v2082 = vadd.f32 %v1864, %v2081
        %v2083 = vpop.f32.mrb[0].mxu0
        %2084 = vmatprep.mubr.f32.mxu0 0.0
        %v2085 = vand.u32 %v1733, 4294901760
        %2086 = vmatmul.mubr.f32.gmra.mrb[0].mxu0 %v2085
        %v2087 = vpop.f32.mrb[0].mxu0
        %v2088 = vadd.f32 %v1874, %v2087
        %v2089 = vpop.f32.mrb[0].mxu0
        %2090 = vmatprep.mubr.f32.mxu0 0.0
        %v2091 = vand.u32 %v1736, 4294901760
        %2092 = vmatmul.mubr.f32.gmra.mrb[0].mxu0 %v2091
        %v2093 = vpop.f32.mrb[0].mxu0
        %v2094 = vadd.f32 %v1884, %v2093
        %v2095 = vpop.f32.mrb[0].mxu0
        %2096 = vmatprep.mubr.f32.mxu0 0.0
        %v2097 = vand.u32 %v1739, 4294901760
        %2098 = vmatmul.mubr.f32.gmra.mrb[0].mxu0 %v2097
        %v2099 = vpop.f32.mrb[0].mxu0
        %v2100 = vadd.f32 %v1894, %v2099
        %v2101 = vpop.f32.mrb[0].mxu0
        %2102 = vmatprep.mubr.f32.mxu0 0.0
        %v2103 = vand.u32 %v1742, 4294901760
        %2104 = vmatmul.mubr.f32.gmra.mrb[0].mxu0 %v2103
        %v2105 = vpop.f32.mrb[0].mxu0
        %v2106 = vadd.f32 %v1904, %v2105
        %v2107 = vpop.f32.mrb[0].mxu0
        %2108 = vmatprep.mubr.f32.mxu0 0.0
        %v2109 = vand.u32 %v1745, 4294901760
        %2110 = vmatmul.mubr.f32.gmra.mrb[0].mxu0 %v2109
        %v2111 = vpop.f32.mrb[0].mxu0
        %v2112 = vadd.f32 %v1914, %v2111
        %v2113 = vpop.f32.mrb[0].mxu0
        %2114 = vmatprep.mubr.f32.mxu0 0.0
        %v2115 = vand.u32 %v1748, 4294901760
        %2116 = vmatmul.mubr.f32.gmra.mrb[0].mxu0 %v2115
        %v2117 = vpop.f32.mrb[0].mxu0
        %v2118 = vadd.f32 %v1924, %v2117
        %v2119 = vpop.f32.mrb[0].mxu0
        %2120 = vmatprep.mubr.f32.mxu0 0.0
        %v2121 = vand.u32 %v1751, 4294901760
        %2122 = vmatmul.mubr.f32.gmra.mrb[0].mxu0 %v2121
        %v2123 = vpop.f32.mrb[0].mxu0
        %v2124 = vadd.f32 %v1934, %v2123
        %v2125 = vpop.f32.mrb[0].mxu0
        %2126 = vmatprep.mubr.f32.mxu0 0.0
        %v2127 = vand.u32 %v1754, 4294901760
        %2128 = vmatmul.mubr.f32.gmra.mrb[0].mxu0 %v2127
        %v2129 = vpop.f32.mrb[0].mxu0
        %v2130 = vadd.f32 %v1944, %v2129
        %v2131 = vpop.f32.mrb[0].mxu0
        %2132 = vmatprep.mubr.f32.mxu0 0.0
        %v2133 = vand.u32 %v1757, 4294901760
        %2134 = vmatmul.mubr.f32.gmra.mrb[0].mxu0 %v2133
        %v2135 = vpop.f32.mrb[0].mxu0
        %v2136 = vadd.f32 %v1954, %v2135
        %v2137 = vpop.f32.mrb[0].mxu0
        %2138 = vmatprep.mubr.f32.mxu0 0.0
        %v2139 = vand.u32 %v1760, 4294901760
        %2140 = vmatmul.mubr.f32.gmra.mrb[0].mxu0 %v2139
        %v2141 = vpop.f32.mrb[0].mxu0
        %v2142 = vadd.f32 %v1964, %v2141
        %v2143 = vpop.f32.mrb[0].mxu0
        %2144 = vmatprep.mubr.f32.mxu0 0.0
        %v2145 = vand.u32 %v1763, 4294901760
        %2146 = vmatmul.mubr.f32.gmra.mrb[0].mxu0 %v2145
        %v2147 = vpop.f32.mrb[0].mxu0
        %v2148 = vadd.f32 %v1974, %v2147
        %v2149 = vpop.f32.mrb[0].mxu0
        %2150 = vmatprep.mubr.f32.mxu0 0.0
        %v2151 = vand.u32 %v1766, 4294901760
        %2152 = vmatmul.mubr.f32.gmra.mrb[0].mxu0 %v2151
        %v2153 = vpop.f32.mrb[0].mxu0
        %v2154 = vadd.f32 %v1984, %v2153
        %v2155 = vpop.f32.mrb[0].mxu0
        %2156 = vmatprep.mubr.f32.mxu0 0.0
        %v2157 = vand.u32 %v1769, 4294901760
        %2158 = vmatmul.mubr.f32.gmra.mrb[0].mxu0 %v2157
        %v2159 = vpop.f32.mrb[0].mxu0
        %v2160 = vadd.f32 %v1994, %v2159
        %v2161 = vpop.f32.mrb[0].mxu0
        %2162 = vdwg.mxu0
        %2163 = vmatprep.subr.mxu0 0.0
        %v2164 = vand.u32 %v1687, 4294901760
        %v2165 = vsub.f32 %v1687, %v2164
        %2166 = vmatpush1.msra.mxu0 %v2165
        %2167 = vmatprep.subr.mxu0 0.0
        %2168 = vmatpush1.msra.mxu0 0.0
        %2169 = vmatprep.subr.mxu0 0.0
        %2170 = vmatpush1.msra.mxu0 0.0
        %2171 = vmatprep.subr.mxu0 0.0
        %2172 = vmatpush1.msra.mxu0 0.0
        %2173 = vmatprep.subr.mxu0 0.0
        %2174 = vmatpush1.msra.mxu0 0.0
        %2175 = vmatprep.subr.mxu0 0.0
        %2176 = vmatpush1.msra.mxu0 0.0
        %2177 = vmatprep.subr.mxu0 0.0
        %2178 = vmatpush1.msra.mxu0 0.0
        %2179 = vmatprep.subr.mxu0 0.0
        %2180 = vmatpush1.msra.mxu0 0.0
        %2181 = vmatprep.subr.mxu0 0.0
        %2182 = vmatpush1.msra.mxu0 0.0
        %2183 = vmatprep.subr.mxu0 0.0
        %2184 = vmatpush1.msra.mxu0 0.0
        %2185 = vmatprep.subr.mxu0 0.0
        %2186 = vmatpush1.msra.mxu0 0.0
        %2187 = vmatprep.subr.mxu0 0.0
        %2188 = vmatpush1.msra.mxu0 0.0
        %2189 = vmatprep.subr.mxu0 0.0
        %2190 = vmatpush1.msra.mxu0 0.0
        %2191 = vmatprep.subr.mxu0 0.0
        %2192 = vmatpush1.msra.mxu0 0.0
        %2193 = vmatprep.subr.mxu0 0.0
        %2194 = vmatpush1.msra.mxu0 0.0
        %2195 = vmatprep.subr.mxu0 0.0
        %2196 = vmatpush1.msra.mxu0 0.0
        %2197 = vmatprep.subr.mxu0 0.0
        %2198 = vmatpush1.msra.mxu0 0.0
        %2199 = vmatprep.subr.mxu0 0.0
        %2200 = vmatpush1.msra.mxu0 0.0
        %2201 = vmatprep.subr.mxu0 0.0
        %2202 = vmatpush1.msra.mxu0 0.0
        %2203 = vmatprep.subr.mxu0 0.0
        %2204 = vmatpush1.msra.mxu0 0.0
        %2205 = vmatprep.subr.mxu0 0.0
        %2206 = vmatpush1.msra.mxu0 0.0
        %2207 = vmatprep.subr.mxu0 0.0
        %2208 = vmatpush1.msra.mxu0 0.0
        %2209 = vmatprep.subr.mxu0 0.0
        %2210 = vmatpush1.msra.mxu0 0.0
        %2211 = vmatprep.subr.mxu0 0.0
        %2212 = vmatpush1.msra.mxu0 0.0
        %2213 = vmatprep.subr.mxu0 0.0
        %2214 = vmatpush1.msra.mxu0 0.0
        %2215 = vmatprep.subr.mxu0 0.0
        %2216 = vmatpush1.msra.mxu0 0.0
        %2217 = vmatprep.subr.mxu0 0.0
        %2218 = vmatpush1.msra.mxu0 0.0
        %2219 = vmatprep.subr.mxu0 0.0
        %2220 = vmatpush1.msra.mxu0 0.0
        %2221 = vmatprep.subr.mxu0 0.0
        %2222 = vmatpush1.msra.mxu0 0.0
        %2223 = vmatprep.subr.mxu0 0.0
        %2224 = vmatpush1.msra.mxu0 0.0
        %2225 = vmatprep.subr.mxu0 0.0
        %2226 = vmatpush1.msra.mxu0 0.0
        %2227 = vmatprep.subr.mxu0 0.0
        %2228 = vmatpush1.msra.mxu0 0.0
        %2229 = vmatprep.mubr.f32.mxu0 0.0
        %v2230 = vand.u32 %v1724, 4294901760
        %v2231 = vsub.f32 %v1724, %v2230
        %2232 = vmatmul.mubr.f32.gmra.mrb[0].mxu0 %v2231
        %v2233 = vpop.f32.mrb[0].mxu0
        %v2234 = vadd.f32 %v2070, %v2233
        %v2235 = vpop.f32.mrb[0].mxu0
        %2236 = vmatprep.mubr.f32.mxu0 0.0
        %v2237 = vand.u32 %v1727, 4294901760
        %v2238 = vsub.f32 %v1727, %v2237
        %2239 = vmatmul.mubr.f32.gmra.mrb[0].mxu0 %v2238
        %v2240 = vpop.f32.mrb[0].mxu0
        %v2241 = vadd.f32 %v2076, %v2240
        %v2242 = vpop.f32.mrb[0].mxu0
        %2243 = vmatprep.mubr.f32.mxu0 0.0
        %v2244 = vand.u32 %v1730, 4294901760
        %v2245 = vsub.f32 %v1730, %v2244
        %2246 = vmatmul.mubr.f32.gmra.mrb[0].mxu0 %v2245
        %v2247 = vpop.f32.mrb[0].mxu0
        %v2248 = vadd.f32 %v2082, %v2247
        %v2249 = vpop.f32.mrb[0].mxu0
        %2250 = vmatprep.mubr.f32.mxu0 0.0
        %v2251 = vand.u32 %v1733, 4294901760
        %v2252 = vsub.f32 %v1733, %v2251
        %2253 = vmatmul.mubr.f32.gmra.mrb[0].mxu0 %v2252
        %v2254 = vpop.f32.mrb[0].mxu0
        %v2255 = vadd.f32 %v2088, %v2254
        %v2256 = vpop.f32.mrb[0].mxu0
        %2257 = vmatprep.mubr.f32.mxu0 0.0
        %v2258 = vand.u32 %v1736, 4294901760
        %v2259 = vsub.f32 %v1736, %v2258
        %2260 = vmatmul.mubr.f32.gmra.mrb[0].mxu0 %v2259
        %v2261 = vpop.f32.mrb[0].mxu0
        %v2262 = vadd.f32 %v2094, %v2261
        %v2263 = vpop.f32.mrb[0].mxu0
        %2264 = vmatprep.mubr.f32.mxu0 0.0
        %v2265 = vand.u32 %v1739, 4294901760
        %v2266 = vsub.f32 %v1739, %v2265
        %2267 = vmatmul.mubr.f32.gmra.mrb[0].mxu0 %v2266
        %v2268 = vpop.f32.mrb[0].mxu0
        %v2269 = vadd.f32 %v2100, %v2268
        %v2270 = vpop.f32.mrb[0].mxu0
        %2271 = vmatprep.mubr.f32.mxu0 0.0
        %v2272 = vand.u32 %v1742, 4294901760
        %v2273 = vsub.f32 %v1742, %v2272
        %2274 = vmatmul.mubr.f32.gmra.mrb[0].mxu0 %v2273
        %v2275 = vpop.f32.mrb[0].mxu0
        %v2276 = vadd.f32 %v2106, %v2275
        %v2277 = vpop.f32.mrb[0].mxu0
        %2278 = vmatprep.mubr.f32.mxu0 0.0
        %v2279 = vand.u32 %v1745, 4294901760
        %v2280 = vsub.f32 %v1745, %v2279
        %2281 = vmatmul.mubr.f32.gmra.mrb[0].mxu0 %v2280
        %v2282 = vpop.f32.mrb[0].mxu0
        %v2283 = vadd.f32 %v2112, %v2282
        %v2284 = vpop.f32.mrb[0].mxu0
        %2285 = vmatprep.mubr.f32.mxu0 0.0
        %v2286 = vand.u32 %v1748, 4294901760
        %v2287 = vsub.f32 %v1748, %v2286
        %2288 = vmatmul.mubr.f32.gmra.mrb[0].mxu0 %v2287
        %v2289 = vpop.f32.mrb[0].mxu0
        %v2290 = vadd.f32 %v2118, %v2289
        %v2291 = vpop.f32.mrb[0].mxu0
        %2292 = vmatprep.mubr.f32.mxu0 0.0
        %v2293 = vand.u32 %v1751, 4294901760
        %v2294 = vsub.f32 %v1751, %v2293
        %2295 = vmatmul.mubr.f32.gmra.mrb[0].mxu0 %v2294
        %v2296 = vpop.f32.mrb[0].mxu0
        %v2297 = vadd.f32 %v2124, %v2296
        %v2298 = vpop.f32.mrb[0].mxu0
        %2299 = vmatprep.mubr.f32.mxu0 0.0
        %v2300 = vand.u32 %v1754, 4294901760
        %v2301 = vsub.f32 %v1754, %v2300
        %2302 = vmatmul.mubr.f32.gmra.mrb[0].mxu0 %v2301
        %v2303 = vpop.f32.mrb[0].mxu0
        %v2304 = vadd.f32 %v2130, %v2303
        %v2305 = vpop.f32.mrb[0].mxu0
        %2306 = vmatprep.mubr.f32.mxu0 0.0
        %v2307 = vand.u32 %v1757, 4294901760
        %v2308 = vsub.f32 %v1757, %v2307
        %2309 = vmatmul.mubr.f32.gmra.mrb[0].mxu0 %v2308
        %v2310 = vpop.f32.mrb[0].mxu0
        %v2311 = vadd.f32 %v2136, %v2310
        %v2312 = vpop.f32.mrb[0].mxu0
        %2313 = vmatprep.mubr.f32.mxu0 0.0
        %v2314 = vand.u32 %v1760, 4294901760
        %v2315 = vsub.f32 %v1760, %v2314
        %2316 = vmatmul.mubr.f32.gmra.mrb[0].mxu0 %v2315
        %v2317 = vpop.f32.mrb[0].mxu0
        %v2318 = vadd.f32 %v2142, %v2317
        %v2319 = vpop.f32.mrb[0].mxu0
        %2320 = vmatprep.mubr.f32.mxu0 0.0
        %v2321 = vand.u32 %v1763, 4294901760
        %v2322 = vsub.f32 %v1763, %v2321
        %2323 = vmatmul.mubr.f32.gmra.mrb[0].mxu0 %v2322
        %v2324 = vpop.f32.mrb[0].mxu0
        %v2325 = vadd.f32 %v2148, %v2324
        %v2326 = vpop.f32.mrb[0].mxu0
        %2327 = vmatprep.mubr.f32.mxu0 0.0
        %v2328 = vand.u32 %v1766, 4294901760
        %v2329 = vsub.f32 %v1766, %v2328
        %2330 = vmatmul.mubr.f32.gmra.mrb[0].mxu0 %v2329
        %v2331 = vpop.f32.mrb[0].mxu0
        %v2332 = vadd.f32 %v2154, %v2331
        %v2333 = vpop.f32.mrb[0].mxu0
        %2334 = vmatprep.mubr.f32.mxu0 0.0
        %v2335 = vand.u32 %v1769, 4294901760
        %v2336 = vsub.f32 %v1769, %v2335
        %2337 = vmatmul.mubr.f32.gmra.mrb[0].mxu0 %v2336
        %v2338 = vpop.f32.mrb[0].mxu0
        %v2339 = vadd.f32 %v2160, %v2338
        %v2340 = vpop.f32.mrb[0].mxu0
        %2341 = vdwg.mxu0
        %2342 = vmatprep.subr.mxu0 0.0
        %v2343 = vand.u32 %v1687, 4294901760
        %2344 = vmatpush1.msra.mxu0 %v2343
        %2345 = vmatprep.subr.mxu0 0.0
        %2346 = vmatpush1.msra.mxu0 0.0
        %2347 = vmatprep.subr.mxu0 0.0
        %2348 = vmatpush1.msra.mxu0 0.0
        %2349 = vmatprep.subr.mxu0 0.0
        %2350 = vmatpush1.msra.mxu0 0.0
        %2351 = vmatprep.subr.mxu0 0.0
        %2352 = vmatpush1.msra.mxu0 0.0
        %2353 = vmatprep.subr.mxu0 0.0
        %2354 = vmatpush1.msra.mxu0 0.0
        %2355 = vmatprep.subr.mxu0 0.0
        %2356 = vmatpush1.msra.mxu0 0.0
        %2357 = vmatprep.subr.mxu0 0.0
        %2358 = vmatpush1.msra.mxu0 0.0
        %2359 = vmatprep.subr.mxu0 0.0
        %2360 = vmatpush1.msra.mxu0 0.0
        %2361 = vmatprep.subr.mxu0 0.0
        %2362 = vmatpush1.msra.mxu0 0.0
        %2363 = vmatprep.subr.mxu0 0.0
        %2364 = vmatpush1.msra.mxu0 0.0
        %2365 = vmatprep.subr.mxu0 0.0
        %2366 = vmatpush1.msra.mxu0 0.0
        %2367 = vmatprep.subr.mxu0 0.0
        %2368 = vmatpush1.msra.mxu0 0.0
        %2369 = vmatprep.subr.mxu0 0.0
        %2370 = vmatpush1.msra.mxu0 0.0
        %2371 = vmatprep.subr.mxu0 0.0
        %2372 = vmatpush1.msra.mxu0 0.0
        %2373 = vmatprep.subr.mxu0 0.0
        %2374 = vmatpush1.msra.mxu0 0.0
        %2375 = vmatprep.subr.mxu0 0.0
        %2376 = vmatpush1.msra.mxu0 0.0
        %2377 = vmatprep.subr.mxu0 0.0
        %2378 = vmatpush1.msra.mxu0 0.0
        %2379 = vmatprep.subr.mxu0 0.0
        %2380 = vmatpush1.msra.mxu0 0.0
        %2381 = vmatprep.subr.mxu0 0.0
        %2382 = vmatpush1.msra.mxu0 0.0
        %2383 = vmatprep.subr.mxu0 0.0
        %2384 = vmatpush1.msra.mxu0 0.0
        %2385 = vmatprep.subr.mxu0 0.0
        %2386 = vmatpush1.msra.mxu0 0.0
        %2387 = vmatprep.subr.mxu0 0.0
        %2388 = vmatpush1.msra.mxu0 0.0
        %2389 = vmatprep.subr.mxu0 0.0
        %2390 = vmatpush1.msra.mxu0 0.0
        %2391 = vmatprep.subr.mxu0 0.0
        %2392 = vmatpush1.msra.mxu0 0.0
        %2393 = vmatprep.subr.mxu0 0.0
        %2394 = vmatpush1.msra.mxu0 0.0
        %2395 = vmatprep.subr.mxu0 0.0
        %2396 = vmatpush1.msra.mxu0 0.0
        %2397 = vmatprep.subr.mxu0 0.0
        %2398 = vmatpush1.msra.mxu0 0.0
        %2399 = vmatprep.subr.mxu0 0.0
        %2400 = vmatpush1.msra.mxu0 0.0
        %2401 = vmatprep.subr.mxu0 0.0
        %2402 = vmatpush1.msra.mxu0 0.0
        %2403 = vmatprep.subr.mxu0 0.0
        %2404 = vmatpush1.msra.mxu0 0.0
        %2405 = vmatprep.subr.mxu0 0.0
        %2406 = vmatpush1.msra.mxu0 0.0
        %2407 = vmatprep.mubr.f32.mxu0 0.0
        %v2408 = vand.u32 %v1724, 4294901760
        %v2409 = vsub.f32 %v1724, %v2408
        %v2410 = vand.u32 %v2409, 4294901760
        %2411 = vmatmul.mubr.f32.gmra.mrb[0].mxu0 %v2410
        %v2412 = vpop.f32.mrb[0].mxu0
        %v2413 = vadd.f32 %v2234, %v2412
        %v2414 = vpop.f32.mrb[0].mxu0
        %2415 = vmatprep.mubr.f32.mxu0 0.0
        %v2416 = vand.u32 %v1727, 4294901760
        %v2417 = vsub.f32 %v1727, %v2416
        %v2418 = vand.u32 %v2417, 4294901760
        %2419 = vmatmul.mubr.f32.gmra.mrb[0].mxu0 %v2418
        %v2420 = vpop.f32.mrb[0].mxu0
        %v2421 = vadd.f32 %v2241, %v2420
        %v2422 = vpop.f32.mrb[0].mxu0
        %2423 = vmatprep.mubr.f32.mxu0 0.0
        %v2424 = vand.u32 %v1730, 4294901760
        %v2425 = vsub.f32 %v1730, %v2424
        %v2426 = vand.u32 %v2425, 4294901760
        %2427 = vmatmul.mubr.f32.gmra.mrb[0].mxu0 %v2426
        %v2428 = vpop.f32.mrb[0].mxu0
        %v2429 = vadd.f32 %v2248, %v2428
        %v2430 = vpop.f32.mrb[0].mxu0
        %2431 = vmatprep.mubr.f32.mxu0 0.0
        %v2432 = vand.u32 %v1733, 4294901760
        %v2433 = vsub.f32 %v1733, %v2432
        %v2434 = vand.u32 %v2433, 4294901760
        %2435 = vmatmul.mubr.f32.gmra.mrb[0].mxu0 %v2434
        %v2436 = vpop.f32.mrb[0].mxu0
        %v2437 = vadd.f32 %v2255, %v2436
        %v2438 = vpop.f32.mrb[0].mxu0
        %2439 = vmatprep.mubr.f32.mxu0 0.0
        %v2440 = vand.u32 %v1736, 4294901760
        %v2441 = vsub.f32 %v1736, %v2440
        %v2442 = vand.u32 %v2441, 4294901760
        %2443 = vmatmul.mubr.f32.gmra.mrb[0].mxu0 %v2442
        %v2444 = vpop.f32.mrb[0].mxu0
        %v2445 = vadd.f32 %v2262, %v2444
        %v2446 = vpop.f32.mrb[0].mxu0
        %2447 = vmatprep.mubr.f32.mxu0 0.0
        %v2448 = vand.u32 %v1739, 4294901760
        %v2449 = vsub.f32 %v1739, %v2448
        %v2450 = vand.u32 %v2449, 4294901760
        %2451 = vmatmul.mubr.f32.gmra.mrb[0].mxu0 %v2450
        %v2452 = vpop.f32.mrb[0].mxu0
        %v2453 = vadd.f32 %v2269, %v2452
        %v2454 = vpop.f32.mrb[0].mxu0
        %2455 = vmatprep.mubr.f32.mxu0 0.0
        %v2456 = vand.u32 %v1742, 4294901760
        %v2457 = vsub.f32 %v1742, %v2456
        %v2458 = vand.u32 %v2457, 4294901760
        %2459 = vmatmul.mubr.f32.gmra.mrb[0].mxu0 %v2458
        %v2460 = vpop.f32.mrb[0].mxu0
        %v2461 = vadd.f32 %v2276, %v2460
        %v2462 = vpop.f32.mrb[0].mxu0
        %2463 = vmatprep.mubr.f32.mxu0 0.0
        %v2464 = vand.u32 %v1745, 4294901760
        %v2465 = vsub.f32 %v1745, %v2464
        %v2466 = vand.u32 %v2465, 4294901760
        %2467 = vmatmul.mubr.f32.gmra.mrb[0].mxu0 %v2466
        %v2468 = vpop.f32.mrb[0].mxu0
        %v2469 = vadd.f32 %v2283, %v2468
        %v2470 = vpop.f32.mrb[0].mxu0
        %2471 = vmatprep.mubr.f32.mxu0 0.0
        %v2472 = vand.u32 %v1748, 4294901760
        %v2473 = vsub.f32 %v1748, %v2472
        %v2474 = vand.u32 %v2473, 4294901760
        %2475 = vmatmul.mubr.f32.gmra.mrb[0].mxu0 %v2474
        %v2476 = vpop.f32.mrb[0].mxu0
        %v2477 = vadd.f32 %v2290, %v2476
        %v2478 = vpop.f32.mrb[0].mxu0
        %2479 = vmatprep.mubr.f32.mxu0 0.0
        %v2480 = vand.u32 %v1751, 4294901760
        %v2481 = vsub.f32 %v1751, %v2480
        %v2482 = vand.u32 %v2481, 4294901760
        %2483 = vmatmul.mubr.f32.gmra.mrb[0].mxu0 %v2482
        %v2484 = vpop.f32.mrb[0].mxu0
        %v2485 = vadd.f32 %v2297, %v2484
        %v2486 = vpop.f32.mrb[0].mxu0
        %2487 = vmatprep.mubr.f32.mxu0 0.0
        %v2488 = vand.u32 %v1754, 4294901760
        %v2489 = vsub.f32 %v1754, %v2488
        %v2490 = vand.u32 %v2489, 4294901760
        %2491 = vmatmul.mubr.f32.gmra.mrb[0].mxu0 %v2490
        %v2492 = vpop.f32.mrb[0].mxu0
        %v2493 = vadd.f32 %v2304, %v2492
        %v2494 = vpop.f32.mrb[0].mxu0
        %2495 = vmatprep.mubr.f32.mxu0 0.0
        %v2496 = vand.u32 %v1757, 4294901760
        %v2497 = vsub.f32 %v1757, %v2496
        %v2498 = vand.u32 %v2497, 4294901760
        %2499 = vmatmul.mubr.f32.gmra.mrb[0].mxu0 %v2498
        %v2500 = vpop.f32.mrb[0].mxu0
        %v2501 = vadd.f32 %v2311, %v2500
        %v2502 = vpop.f32.mrb[0].mxu0
        %2503 = vmatprep.mubr.f32.mxu0 0.0
        %v2504 = vand.u32 %v1760, 4294901760
        %v2505 = vsub.f32 %v1760, %v2504
        %v2506 = vand.u32 %v2505, 4294901760
        %2507 = vmatmul.mubr.f32.gmra.mrb[0].mxu0 %v2506
        %v2508 = vpop.f32.mrb[0].mxu0
        %v2509 = vadd.f32 %v2318, %v2508
        %v2510 = vpop.f32.mrb[0].mxu0
        %2511 = vmatprep.mubr.f32.mxu0 0.0
        %v2512 = vand.u32 %v1763, 4294901760
        %v2513 = vsub.f32 %v1763, %v2512
        %v2514 = vand.u32 %v2513, 4294901760
        %2515 = vmatmul.mubr.f32.gmra.mrb[0].mxu0 %v2514
        %v2516 = vpop.f32.mrb[0].mxu0
        %v2517 = vadd.f32 %v2325, %v2516
        %v2518 = vpop.f32.mrb[0].mxu0
        %2519 = vmatprep.mubr.f32.mxu0 0.0
        %v2520 = vand.u32 %v1766, 4294901760
        %v2521 = vsub.f32 %v1766, %v2520
        %v2522 = vand.u32 %v2521, 4294901760
        %2523 = vmatmul.mubr.f32.gmra.mrb[0].mxu0 %v2522
        %v2524 = vpop.f32.mrb[0].mxu0
        %v2525 = vadd.f32 %v2332, %v2524
        %v2526 = vpop.f32.mrb[0].mxu0
        %2527 = vmatprep.mubr.f32.mxu0 0.0
        %v2528 = vand.u32 %v1769, 4294901760
        %v2529 = vsub.f32 %v1769, %v2528
        %v2530 = vand.u32 %v2529, 4294901760
        %2531 = vmatmul.mubr.f32.gmra.mrb[0].mxu0 %v2530
        %v2532 = vpop.f32.mrb[0].mxu0
        %v2533 = vadd.f32 %v2339, %v2532
        %v2534 = vpop.f32.mrb[0].mxu0
        %2535 = vdwg.mxu0
        %2536 = vmatprep.subr.mxu0 0.0
        %v2537 = vand.u32 %v1687, 4294901760
        %v2538 = vsub.f32 %v1687, %v2537
        %v2539 = vand.u32 %v2538, 4294901760
        %2540 = vmatpush1.msra.mxu0 %v2539
        %2541 = vmatprep.subr.mxu0 0.0
        %2542 = vmatpush1.msra.mxu0 0.0
        %2543 = vmatprep.subr.mxu0 0.0
        %2544 = vmatpush1.msra.mxu0 0.0
        %2545 = vmatprep.subr.mxu0 0.0
        %2546 = vmatpush1.msra.mxu0 0.0
        %2547 = vmatprep.subr.mxu0 0.0
        %2548 = vmatpush1.msra.mxu0 0.0
        %2549 = vmatprep.subr.mxu0 0.0
        %2550 = vmatpush1.msra.mxu0 0.0
        %2551 = vmatprep.subr.mxu0 0.0
        %2552 = vmatpush1.msra.mxu0 0.0
        %2553 = vmatprep.subr.mxu0 0.0
        %2554 = vmatpush1.msra.mxu0 0.0
        %2555 = vmatprep.subr.mxu0 0.0
        %2556 = vmatpush1.msra.mxu0 0.0
        %2557 = vmatprep.subr.mxu0 0.0
        %2558 = vmatpush1.msra.mxu0 0.0
        %2559 = vmatprep.subr.mxu0 0.0
        %2560 = vmatpush1.msra.mxu0 0.0
        %2561 = vmatprep.subr.mxu0 0.0
        %2562 = vmatpush1.msra.mxu0 0.0
        %2563 = vmatprep.subr.mxu0 0.0
        %2564 = vmatpush1.msra.mxu0 0.0
        %2565 = vmatprep.subr.mxu0 0.0
        %2566 = vmatpush1.msra.mxu0 0.0
        %2567 = vmatprep.subr.mxu0 0.0
        %2568 = vmatpush1.msra.mxu0 0.0
        %2569 = vmatprep.subr.mxu0 0.0
        %2570 = vmatpush1.msra.mxu0 0.0
        %2571 = vmatprep.subr.mxu0 0.0
        %2572 = vmatpush1.msra.mxu0 0.0
        %2573 = vmatprep.subr.mxu0 0.0
        %2574 = vmatpush1.msra.mxu0 0.0
        %2575 = vmatprep.subr.mxu0 0.0
        %2576 = vmatpush1.msra.mxu0 0.0
        %2577 = vmatprep.subr.mxu0 0.0
        %2578 = vmatpush1.msra.mxu0 0.0
        %2579 = vmatprep.subr.mxu0 0.0
        %2580 = vmatpush1.msra.mxu0 0.0
        %2581 = vmatprep.subr.mxu0 0.0
        %2582 = vmatpush1.msra.mxu0 0.0
        %2583 = vmatprep.subr.mxu0 0.0
        %2584 = vmatpush1.msra.mxu0 0.0
        %2585 = vmatprep.subr.mxu0 0.0
        %2586 = vmatpush1.msra.mxu0 0.0
        %2587 = vmatprep.subr.mxu0 0.0
        %2588 = vmatpush1.msra.mxu0 0.0
        %2589 = vmatprep.subr.mxu0 0.0
        %2590 = vmatpush1.msra.mxu0 0.0
        %2591 = vmatprep.subr.mxu0 0.0
        %2592 = vmatpush1.msra.mxu0 0.0
        %2593 = vmatprep.subr.mxu0 0.0
        %2594 = vmatpush1.msra.mxu0 0.0
        %2595 = vmatprep.subr.mxu0 0.0
        %2596 = vmatpush1.msra.mxu0 0.0
        %2597 = vmatprep.subr.mxu0 0.0
        %2598 = vmatpush1.msra.mxu0 0.0
        %2599 = vmatprep.subr.mxu0 0.0
        %2600 = vmatpush1.msra.mxu0 0.0
        %2601 = vmatprep.subr.mxu0 0.0
        %2602 = vmatpush1.msra.mxu0 0.0
        %2603 = vmatprep.mubr.f32.mxu0 0.0
        %v2604 = vand.u32 %v1724, 4294901760
        %2605 = vmatmul.mubr.f32.gmra.mrb[0].mxu0 %v2604
        %v2606 = vpop.f32.mrb[0].mxu0
        %v2607 = vadd.f32 %v2413, %v2606
        %v2608 = vpop.f32.mrb[0].mxu0
        %2609 = vmatprep.mubr.f32.mxu0 0.0
        %v2610 = vand.u32 %v1727, 4294901760
        %2611 = vmatmul.mubr.f32.gmra.mrb[0].mxu0 %v2610
        %v2612 = vpop.f32.mrb[0].mxu0
        %v2613 = vadd.f32 %v2421, %v2612
        %v2614 = vpop.f32.mrb[0].mxu0
        %2615 = vmatprep.mubr.f32.mxu0 0.0
        %v2616 = vand.u32 %v1730, 4294901760
        %2617 = vmatmul.mubr.f32.gmra.mrb[0].mxu0 %v2616
        %v2618 = vpop.f32.mrb[0].mxu0
        %v2619 = vadd.f32 %v2429, %v2618
        %v2620 = vpop.f32.mrb[0].mxu0
        %2621 = vmatprep.mubr.f32.mxu0 0.0
        %v2622 = vand.u32 %v1733, 4294901760
        %2623 = vmatmul.mubr.f32.gmra.mrb[0].mxu0 %v2622
        %v2624 = vpop.f32.mrb[0].mxu0
        %v2625 = vadd.f32 %v2437, %v2624
        %v2626 = vpop.f32.mrb[0].mxu0
        %2627 = vmatprep.mubr.f32.mxu0 0.0
        %v2628 = vand.u32 %v1736, 4294901760
        %2629 = vmatmul.mubr.f32.gmra.mrb[0].mxu0 %v2628
        %v2630 = vpop.f32.mrb[0].mxu0
        %v2631 = vadd.f32 %v2445, %v2630
        %v2632 = vpop.f32.mrb[0].mxu0
        %2633 = vmatprep.mubr.f32.mxu0 0.0
        %v2634 = vand.u32 %v1739, 4294901760
        %2635 = vmatmul.mubr.f32.gmra.mrb[0].mxu0 %v2634
        %v2636 = vpop.f32.mrb[0].mxu0
        %v2637 = vadd.f32 %v2453, %v2636
        %v2638 = vpop.f32.mrb[0].mxu0
        %2639 = vmatprep.mubr.f32.mxu0 0.0
        %v2640 = vand.u32 %v1742, 4294901760
        %2641 = vmatmul.mubr.f32.gmra.mrb[0].mxu0 %v2640
        %v2642 = vpop.f32.mrb[0].mxu0
        %v2643 = vadd.f32 %v2461, %v2642
        %v2644 = vpop.f32.mrb[0].mxu0
        %2645 = vmatprep.mubr.f32.mxu0 0.0
        %v2646 = vand.u32 %v1745, 4294901760
        %2647 = vmatmul.mubr.f32.gmra.mrb[0].mxu0 %v2646
        %v2648 = vpop.f32.mrb[0].mxu0
        %v2649 = vadd.f32 %v2469, %v2648
        %v2650 = vpop.f32.mrb[0].mxu0
        %2651 = vmatprep.mubr.f32.mxu0 0.0
        %v2652 = vand.u32 %v1748, 4294901760
        %2653 = vmatmul.mubr.f32.gmra.mrb[0].mxu0 %v2652
        %v2654 = vpop.f32.mrb[0].mxu0
        %v2655 = vadd.f32 %v2477, %v2654
        %v2656 = vpop.f32.mrb[0].mxu0
        %2657 = vmatprep.mubr.f32.mxu0 0.0
        %v2658 = vand.u32 %v1751, 4294901760
        %2659 = vmatmul.mubr.f32.gmra.mrb[0].mxu0 %v2658
        %v2660 = vpop.f32.mrb[0].mxu0
        %v2661 = vadd.f32 %v2485, %v2660
        %v2662 = vpop.f32.mrb[0].mxu0
        %2663 = vmatprep.mubr.f32.mxu0 0.0
        %v2664 = vand.u32 %v1754, 4294901760
        %2665 = vmatmul.mubr.f32.gmra.mrb[0].mxu0 %v2664
        %v2666 = vpop.f32.mrb[0].mxu0
        %v2667 = vadd.f32 %v2493, %v2666
        %v2668 = vpop.f32.mrb[0].mxu0
        %2669 = vmatprep.mubr.f32.mxu0 0.0
        %v2670 = vand.u32 %v1757, 4294901760
        %2671 = vmatmul.mubr.f32.gmra.mrb[0].mxu0 %v2670
        %v2672 = vpop.f32.mrb[0].mxu0
        %v2673 = vadd.f32 %v2501, %v2672
        %v2674 = vpop.f32.mrb[0].mxu0
        %2675 = vmatprep.mubr.f32.mxu0 0.0
        %v2676 = vand.u32 %v1760, 4294901760
        %2677 = vmatmul.mubr.f32.gmra.mrb[0].mxu0 %v2676
        %v2678 = vpop.f32.mrb[0].mxu0
        %v2679 = vadd.f32 %v2509, %v2678
        %v2680 = vpop.f32.mrb[0].mxu0
        %2681 = vmatprep.mubr.f32.mxu0 0.0
        %v2682 = vand.u32 %v1763, 4294901760
        %2683 = vmatmul.mubr.f32.gmra.mrb[0].mxu0 %v2682
        %v2684 = vpop.f32.mrb[0].mxu0
        %v2685 = vadd.f32 %v2517, %v2684
        %v2686 = vpop.f32.mrb[0].mxu0
        %2687 = vmatprep.mubr.f32.mxu0 0.0
        %v2688 = vand.u32 %v1766, 4294901760
        %2689 = vmatmul.mubr.f32.gmra.mrb[0].mxu0 %v2688
        %v2690 = vpop.f32.mrb[0].mxu0
        %v2691 = vadd.f32 %v2525, %v2690
        %v2692 = vpop.f32.mrb[0].mxu0
        %2693 = vmatprep.mubr.f32.mxu0 0.0
        %v2694 = vand.u32 %v1769, 4294901760
        %2695 = vmatmul.mubr.f32.gmra.mrb[0].mxu0 %v2694
        %v2696 = vpop.f32.mrb[0].mxu0
        %v2697 = vadd.f32 %v2533, %v2696
        %v2698 = vpop.f32.mrb[0].mxu0
        %2699 = vdwg.mxu0
        %2700 = vmatprep.subr.mxu0 0.0
        %v2701 = vand.u32 %v1687, 4294901760
        %2702 = vmatpush1.msra.mxu0 %v2701
        %2703 = vmatprep.subr.mxu0 0.0
        %2704 = vmatpush1.msra.mxu0 0.0
        %2705 = vmatprep.subr.mxu0 0.0
        %2706 = vmatpush1.msra.mxu0 0.0
        %2707 = vmatprep.subr.mxu0 0.0
        %2708 = vmatpush1.msra.mxu0 0.0
        %2709 = vmatprep.subr.mxu0 0.0
        %2710 = vmatpush1.msra.mxu0 0.0
        %2711 = vmatprep.subr.mxu0 0.0
        %2712 = vmatpush1.msra.mxu0 0.0
        %2713 = vmatprep.subr.mxu0 0.0
        %2714 = vmatpush1.msra.mxu0 0.0
        %2715 = vmatprep.subr.mxu0 0.0
        %2716 = vmatpush1.msra.mxu0 0.0
        %2717 = vmatprep.subr.mxu0 0.0
        %2718 = vmatpush1.msra.mxu0 0.0
        %2719 = vmatprep.subr.mxu0 0.0
        %2720 = vmatpush1.msra.mxu0 0.0
        %2721 = vmatprep.subr.mxu0 0.0
        %2722 = vmatpush1.msra.mxu0 0.0
        %2723 = vmatprep.subr.mxu0 0.0
        %2724 = vmatpush1.msra.mxu0 0.0
        %2725 = vmatprep.subr.mxu0 0.0
        %2726 = vmatpush1.msra.mxu0 0.0
        %2727 = vmatprep.subr.mxu0 0.0
        %2728 = vmatpush1.msra.mxu0 0.0
        %2729 = vmatprep.subr.mxu0 0.0
        %2730 = vmatpush1.msra.mxu0 0.0
        %2731 = vmatprep.subr.mxu0 0.0
        %2732 = vmatpush1.msra.mxu0 0.0
        %2733 = vmatprep.subr.mxu0 0.0
        %2734 = vmatpush1.msra.mxu0 0.0
        %2735 = vmatprep.subr.mxu0 0.0
        %2736 = vmatpush1.msra.mxu0 0.0
        %2737 = vmatprep.subr.mxu0 0.0
        %2738 = vmatpush1.msra.mxu0 0.0
        %2739 = vmatprep.subr.mxu0 0.0
        %2740 = vmatpush1.msra.mxu0 0.0
        %2741 = vmatprep.subr.mxu0 0.0
        %2742 = vmatpush1.msra.mxu0 0.0
        %2743 = vmatprep.subr.mxu0 0.0
        %2744 = vmatpush1.msra.mxu0 0.0
        %2745 = vmatprep.subr.mxu0 0.0
        %2746 = vmatpush1.msra.mxu0 0.0
        %2747 = vmatprep.subr.mxu0 0.0
        %2748 = vmatpush1.msra.mxu0 0.0
        %2749 = vmatprep.subr.mxu0 0.0
        %2750 = vmatpush1.msra.mxu0 0.0
        %2751 = vmatprep.subr.mxu0 0.0
        %2752 = vmatpush1.msra.mxu0 0.0
        %2753 = vmatprep.subr.mxu0 0.0
        %2754 = vmatpush1.msra.mxu0 0.0
        %2755 = vmatprep.subr.mxu0 0.0
        %2756 = vmatpush1.msra.mxu0 0.0
        %2757 = vmatprep.subr.mxu0 0.0
        %2758 = vmatpush1.msra.mxu0 0.0
        %2759 = vmatprep.subr.mxu0 0.0
        %2760 = vmatpush1.msra.mxu0 0.0
        %2761 = vmatprep.subr.mxu0 0.0
        %2762 = vmatpush1.msra.mxu0 0.0
        %2763 = vmatprep.subr.mxu0 0.0
        %2764 = vmatpush1.msra.mxu0 0.0
        %2765 = vmatprep.mubr.f32.mxu0 0.0
        %v2766 = vand.u32 %v1724, 4294901760
        %2767 = vmatmul.mubr.f32.gmra.mrb[0].mxu0 %v2766
        %v2768 = vpop.f32.mrb[0].mxu0
        %v2769 = vadd.f32 %v2607, %v2768
        %v2770 = vpop.f32.mrb[0].mxu0
        %2771 = vmatprep.mubr.f32.mxu0 0.0
        %v2772 = vand.u32 %v1727, 4294901760
        %2773 = vmatmul.mubr.f32.gmra.mrb[0].mxu0 %v2772
        %v2774 = vpop.f32.mrb[0].mxu0
        %v2775 = vadd.f32 %v2613, %v2774
        %v2776 = vpop.f32.mrb[0].mxu0
        %2777 = vmatprep.mubr.f32.mxu0 0.0
        %v2778 = vand.u32 %v1730, 4294901760
        %2779 = vmatmul.mubr.f32.gmra.mrb[0].mxu0 %v2778
        %v2780 = vpop.f32.mrb[0].mxu0
        %v2781 = vadd.f32 %v2619, %v2780
        %v2782 = vpop.f32.mrb[0].mxu0
        %2783 = vmatprep.mubr.f32.mxu0 0.0
        %v2784 = vand.u32 %v1733, 4294901760
        %2785 = vmatmul.mubr.f32.gmra.mrb[0].mxu0 %v2784
        %v2786 = vpop.f32.mrb[0].mxu0
        %v2787 = vadd.f32 %v2625, %v2786
        %v2788 = vpop.f32.mrb[0].mxu0
        %2789 = vmatprep.mubr.f32.mxu0 0.0
        %v2790 = vand.u32 %v1736, 4294901760
        %2791 = vmatmul.mubr.f32.gmra.mrb[0].mxu0 %v2790
        %v2792 = vpop.f32.mrb[0].mxu0
        %v2793 = vadd.f32 %v2631, %v2792
        %v2794 = vpop.f32.mrb[0].mxu0
        %2795 = vmatprep.mubr.f32.mxu0 0.0
        %v2796 = vand.u32 %v1739, 4294901760
        %2797 = vmatmul.mubr.f32.gmra.mrb[0].mxu0 %v2796
        %v2798 = vpop.f32.mrb[0].mxu0
        %v2799 = vadd.f32 %v2637, %v2798
        %v2800 = vpop.f32.mrb[0].mxu0
        %2801 = vmatprep.mubr.f32.mxu0 0.0
        %v2802 = vand.u32 %v1742, 4294901760
        %2803 = vmatmul.mubr.f32.gmra.mrb[0].mxu0 %v2802
        %v2804 = vpop.f32.mrb[0].mxu0
        %v2805 = vadd.f32 %v2643, %v2804
        %v2806 = vpop.f32.mrb[0].mxu0
        %2807 = vmatprep.mubr.f32.mxu0 0.0
        %v2808 = vand.u32 %v1745, 4294901760
        %2809 = vmatmul.mubr.f32.gmra.mrb[0].mxu0 %v2808
        %v2810 = vpop.f32.mrb[0].mxu0
        %v2811 = vadd.f32 %v2649, %v2810
        %v2812 = vpop.f32.mrb[0].mxu0
        %2813 = vmatprep.mubr.f32.mxu0 0.0
        %v2814 = vand.u32 %v1748, 4294901760
        %2815 = vmatmul.mubr.f32.gmra.mrb[0].mxu0 %v2814
        %v2816 = vpop.f32.mrb[0].mxu0
        %v2817 = vadd.f32 %v2655, %v2816
        %v2818 = vpop.f32.mrb[0].mxu0
        %2819 = vmatprep.mubr.f32.mxu0 0.0
        %v2820 = vand.u32 %v1751, 4294901760
        %2821 = vmatmul.mubr.f32.gmra.mrb[0].mxu0 %v2820
        %v2822 = vpop.f32.mrb[0].mxu0
        %v2823 = vadd.f32 %v2661, %v2822
        %v2824 = vpop.f32.mrb[0].mxu0
        %2825 = vmatprep.mubr.f32.mxu0 0.0
        %v2826 = vand.u32 %v1754, 4294901760
        %2827 = vmatmul.mubr.f32.gmra.mrb[0].mxu0 %v2826
        %v2828 = vpop.f32.mrb[0].mxu0
        %v2829 = vadd.f32 %v2667, %v2828
        %v2830 = vpop.f32.mrb[0].mxu0
        %2831 = vmatprep.mubr.f32.mxu0 0.0
        %v2832 = vand.u32 %v1757, 4294901760
        %2833 = vmatmul.mubr.f32.gmra.mrb[0].mxu0 %v2832
        %v2834 = vpop.f32.mrb[0].mxu0
        %v2835 = vadd.f32 %v2673, %v2834
        %v2836 = vpop.f32.mrb[0].mxu0
        %2837 = vmatprep.mubr.f32.mxu0 0.0
        %v2838 = vand.u32 %v1760, 4294901760
        %2839 = vmatmul.mubr.f32.gmra.mrb[0].mxu0 %v2838
        %v2840 = vpop.f32.mrb[0].mxu0
        %v2841 = vadd.f32 %v2679, %v2840
        %v2842 = vpop.f32.mrb[0].mxu0
        %2843 = vmatprep.mubr.f32.mxu0 0.0
        %v2844 = vand.u32 %v1763, 4294901760
        %2845 = vmatmul.mubr.f32.gmra.mrb[0].mxu0 %v2844
        %v2846 = vpop.f32.mrb[0].mxu0
        %v2847 = vadd.f32 %v2685, %v2846
        %v2848 = vpop.f32.mrb[0].mxu0
        %2849 = vmatprep.mubr.f32.mxu0 0.0
        %v2850 = vand.u32 %v1766, 4294901760
        %2851 = vmatmul.mubr.f32.gmra.mrb[0].mxu0 %v2850
        %v2852 = vpop.f32.mrb[0].mxu0
        %v2853 = vadd.f32 %v2691, %v2852
        %v2854 = vpop.f32.mrb[0].mxu0
        %2855 = vmatprep.mubr.f32.mxu0 0.0
        %v2856 = vand.u32 %v1769, 4294901760
        %2857 = vmatmul.mubr.f32.gmra.mrb[0].mxu0 %v2856
        %v2858 = vpop.f32.mrb[0].mxu0
        %v2859 = vadd.f32 %v2697, %v2858
        %v2860 = vpop.f32.mrb[0].mxu0
        %2861 = vdwg.mxu0
        %2862 = vmatprep.subr.mxu0 0.0
        %v2863 = vand.u32 %v2769, 4294901760
        %2864 = vmatpush1.msra.mxu0 %v2863
        %2865 = vmatprep.subr.mxu0 0.0
        %v2866 = vand.u32 %v2775, 4294901760
        %2867 = vmatpush1.msra.mxu0 %v2866
        %2868 = vmatprep.subr.mxu0 0.0
        %v2869 = vand.u32 %v2781, 4294901760
        %2870 = vmatpush1.msra.mxu0 %v2869
        %2871 = vmatprep.subr.mxu0 0.0
        %v2872 = vand.u32 %v2787, 4294901760
        %2873 = vmatpush1.msra.mxu0 %v2872
        %2874 = vmatprep.subr.mxu0 0.0
        %v2875 = vand.u32 %v2793, 4294901760
        %2876 = vmatpush1.msra.mxu0 %v2875
        %2877 = vmatprep.subr.mxu0 0.0
        %v2878 = vand.u32 %v2799, 4294901760
        %2879 = vmatpush1.msra.mxu0 %v2878
        %2880 = vmatprep.subr.mxu0 0.0
        %v2881 = vand.u32 %v2805, 4294901760
        %2882 = vmatpush1.msra.mxu0 %v2881
        %2883 = vmatprep.subr.mxu0 0.0
        %v2884 = vand.u32 %v2811, 4294901760
        %2885 = vmatpush1.msra.mxu0 %v2884
        %2886 = vmatprep.subr.mxu0 0.0
        %v2887 = vand.u32 %v2817, 4294901760
        %2888 = vmatpush1.msra.mxu0 %v2887
        %2889 = vmatprep.subr.mxu0 0.0
        %v2890 = vand.u32 %v2823, 4294901760
        %2891 = vmatpush1.msra.mxu0 %v2890
        %2892 = vmatprep.subr.mxu0 0.0
        %v2893 = vand.u32 %v2829, 4294901760
        %2894 = vmatpush1.msra.mxu0 %v2893
        %2895 = vmatprep.subr.mxu0 0.0
        %v2896 = vand.u32 %v2835, 4294901760
        %2897 = vmatpush1.msra.mxu0 %v2896
        %2898 = vmatprep.subr.mxu0 0.0
        %v2899 = vand.u32 %v2841, 4294901760
        %2900 = vmatpush1.msra.mxu0 %v2899
        %2901 = vmatprep.subr.mxu0 0.0
        %v2902 = vand.u32 %v2847, 4294901760
        %2903 = vmatpush1.msra.mxu0 %v2902
        %2904 = vmatprep.subr.mxu0 0.0
        %v2905 = vand.u32 %v2853, 4294901760
        %2906 = vmatpush1.msra.mxu0 %v2905
        %2907 = vmatprep.subr.mxu0 0.0
        %v2908 = vand.u32 %v2859, 4294901760
        %2909 = vmatpush1.msra.mxu0 %v2908
        %2910 = vmatprep.subr.mxu0 0.0
        %2911 = vmatpush1.msra.mxu0 0.0
        %2912 = vmatprep.subr.mxu0 0.0
        %2913 = vmatpush1.msra.mxu0 0.0
        %2914 = vmatprep.subr.mxu0 0.0
        %2915 = vmatpush1.msra.mxu0 0.0
        %2916 = vmatprep.subr.mxu0 0.0
        %2917 = vmatpush1.msra.mxu0 0.0
        %2918 = vmatprep.subr.mxu0 0.0
        %2919 = vmatpush1.msra.mxu0 0.0
        %2920 = vmatprep.subr.mxu0 0.0
        %2921 = vmatpush1.msra.mxu0 0.0
        %2922 = vmatprep.subr.mxu0 0.0
        %2923 = vmatpush1.msra.mxu0 0.0
        %2924 = vmatprep.subr.mxu0 0.0
        %2925 = vmatpush1.msra.mxu0 0.0
        %2926 = vmatprep.subr.mxu0 0.0
        %2927 = vmatpush1.msra.mxu0 0.0
        %2928 = vmatprep.subr.mxu0 0.0
        %2929 = vmatpush1.msra.mxu0 0.0
        %2930 = vmatprep.subr.mxu0 0.0
        %2931 = vmatpush1.msra.mxu0 0.0
        %2932 = vmatprep.subr.mxu0 0.0
        %2933 = vmatpush1.msra.mxu0 0.0
        %2934 = vmatprep.subr.mxu0 0.0
        %2935 = vmatpush1.msra.mxu0 0.0
        %2936 = vmatprep.subr.mxu0 0.0
        %2937 = vmatpush1.msra.mxu0 0.0
        %2938 = vmatprep.subr.mxu0 0.0
        %2939 = vmatpush1.msra.mxu0 0.0
        %2940 = vmatprep.subr.mxu0 0.0
        %2941 = vmatpush1.msra.mxu0 0.0
        %2942 = vmatprep.mubr.f32.mxu0 0.0
        %v2943 = vand.u32 %v1200, 4294901760
        %v2944 = vsub.f32 %v1200, %v2943
        %v2945 = vand.u32 %v2944, 4294901760
        %v2946 = vsub.f32 %v2944, %v2945
        %v2947 = vand.u32 %v2946, 4294901760
        %2948 = vmatmul.mubr.f32.gmra.mrb[0].mxu0 %v2947
        %v2949 = vpop.f32.mrb[0].mxu0
        %v2950 = vadd.f32 0.0, %v2949
        %v2951 = vpop.f32.mrb[0].mxu0
        %2952 = vdwg.mxu0
        %2953 = vmatprep.subr.mxu0 0.0
        %v2954 = vand.u32 %v2769, 4294901760
        %v2955 = vsub.f32 %v2769, %v2954
        %v2956 = vand.u32 %v2955, 4294901760
        %v2957 = vsub.f32 %v2955, %v2956
        %v2958 = vand.u32 %v2957, 4294901760
        %2959 = vmatpush1.msra.mxu0 %v2958
        %2960 = vmatprep.subr.mxu0 0.0
        %v2961 = vand.u32 %v2775, 4294901760
        %v2962 = vsub.f32 %v2775, %v2961
        %v2963 = vand.u32 %v2962, 4294901760
        %v2964 = vsub.f32 %v2962, %v2963
        %v2965 = vand.u32 %v2964, 4294901760
        %2966 = vmatpush1.msra.mxu0 %v2965
        %2967 = vmatprep.subr.mxu0 0.0
        %v2968 = vand.u32 %v2781, 4294901760
        %v2969 = vsub.f32 %v2781, %v2968
        %v2970 = vand.u32 %v2969, 4294901760
        %v2971 = vsub.f32 %v2969, %v2970
        %v2972 = vand.u32 %v2971, 4294901760
        %2973 = vmatpush1.msra.mxu0 %v2972
        %2974 = vmatprep.subr.mxu0 0.0
        %v2975 = vand.u32 %v2787, 4294901760
        %v2976 = vsub.f32 %v2787, %v2975
        %v2977 = vand.u32 %v2976, 4294901760
        %v2978 = vsub.f32 %v2976, %v2977
        %v2979 = vand.u32 %v2978, 4294901760
        %2980 = vmatpush1.msra.mxu0 %v2979
        %2981 = vmatprep.subr.mxu0 0.0
        %v2982 = vand.u32 %v2793, 4294901760
        %v2983 = vsub.f32 %v2793, %v2982
        %v2984 = vand.u32 %v2983, 4294901760
        %v2985 = vsub.f32 %v2983, %v2984
        %v2986 = vand.u32 %v2985, 4294901760
        %2987 = vmatpush1.msra.mxu0 %v2986
        %2988 = vmatprep.subr.mxu0 0.0
        %v2989 = vand.u32 %v2799, 4294901760
        %v2990 = vsub.f32 %v2799, %v2989
        %v2991 = vand.u32 %v2990, 4294901760
        %v2992 = vsub.f32 %v2990, %v2991
        %v2993 = vand.u32 %v2992, 4294901760
        %2994 = vmatpush1.msra.mxu0 %v2993
        %2995 = vmatprep.subr.mxu0 0.0
        %v2996 = vand.u32 %v2805, 4294901760
        %v2997 = vsub.f32 %v2805, %v2996
        %v2998 = vand.u32 %v2997, 4294901760
        %v2999 = vsub.f32 %v2997, %v2998
        %v3000 = vand.u32 %v2999, 4294901760
        %3001 = vmatpush1.msra.mxu0 %v3000
        %3002 = vmatprep.subr.mxu0 0.0
        %v3003 = vand.u32 %v2811, 4294901760
        %v3004 = vsub.f32 %v2811, %v3003
        %v3005 = vand.u32 %v3004, 4294901760
        %v3006 = vsub.f32 %v3004, %v3005
        %v3007 = vand.u32 %v3006, 4294901760
        %3008 = vmatpush1.msra.mxu0 %v3007
        %3009 = vmatprep.subr.mxu0 0.0
        %v3010 = vand.u32 %v2817, 4294901760
        %v3011 = vsub.f32 %v2817, %v3010
        %v3012 = vand.u32 %v3011, 4294901760
        %v3013 = vsub.f32 %v3011, %v3012
        %v3014 = vand.u32 %v3013, 4294901760
        %3015 = vmatpush1.msra.mxu0 %v3014
        %3016 = vmatprep.subr.mxu0 0.0
        %v3017 = vand.u32 %v2823, 4294901760
        %v3018 = vsub.f32 %v2823, %v3017
        %v3019 = vand.u32 %v3018, 4294901760
        %v3020 = vsub.f32 %v3018, %v3019
        %v3021 = vand.u32 %v3020, 4294901760
        %3022 = vmatpush1.msra.mxu0 %v3021
        %3023 = vmatprep.subr.mxu0 0.0
        %v3024 = vand.u32 %v2829, 4294901760
        %v3025 = vsub.f32 %v2829, %v3024
        %v3026 = vand.u32 %v3025, 4294901760
        %v3027 = vsub.f32 %v3025, %v3026
        %v3028 = vand.u32 %v3027, 4294901760
        %3029 = vmatpush1.msra.mxu0 %v3028
        %3030 = vmatprep.subr.mxu0 0.0
        %v3031 = vand.u32 %v2835, 4294901760
        %v3032 = vsub.f32 %v2835, %v3031
        %v3033 = vand.u32 %v3032, 4294901760
        %v3034 = vsub.f32 %v3032, %v3033
        %v3035 = vand.u32 %v3034, 4294901760
        %3036 = vmatpush1.msra.mxu0 %v3035
        %3037 = vmatprep.subr.mxu0 0.0
        %v3038 = vand.u32 %v2841, 4294901760
        %v3039 = vsub.f32 %v2841, %v3038
        %v3040 = vand.u32 %v3039, 4294901760
        %v3041 = vsub.f32 %v3039, %v3040
        %v3042 = vand.u32 %v3041, 4294901760
        %3043 = vmatpush1.msra.mxu0 %v3042
        %3044 = vmatprep.subr.mxu0 0.0
        %v3045 = vand.u32 %v2847, 4294901760
        %v3046 = vsub.f32 %v2847, %v3045
        %v3047 = vand.u32 %v3046, 4294901760
        %v3048 = vsub.f32 %v3046, %v3047
        %v3049 = vand.u32 %v3048, 4294901760
        %3050 = vmatpush1.msra.mxu0 %v3049
        %3051 = vmatprep.subr.mxu0 0.0
        %v3052 = vand.u32 %v2853, 4294901760
        %v3053 = vsub.f32 %v2853, %v3052
        %v3054 = vand.u32 %v3053, 4294901760
        %v3055 = vsub.f32 %v3053, %v3054
        %v3056 = vand.u32 %v3055, 4294901760
        %3057 = vmatpush1.msra.mxu0 %v3056
        %3058 = vmatprep.subr.mxu0 0.0
        %v3059 = vand.u32 %v2859, 4294901760
        %v3060 = vsub.f32 %v2859, %v3059
        %v3061 = vand.u32 %v3060, 4294901760
        %v3062 = vsub.f32 %v3060, %v3061
        %v3063 = vand.u32 %v3062, 4294901760
        %3064 = vmatpush1.msra.mxu0 %v3063
        %3065 = vmatprep.subr.mxu0 0.0
        %3066 = vmatpush1.msra.mxu0 0.0
        %3067 = vmatprep.subr.mxu0 0.0
        %3068 = vmatpush1.msra.mxu0 0.0
        %3069 = vmatprep.subr.mxu0 0.0
        %3070 = vmatpush1.msra.mxu0 0.0
        %3071 = vmatprep.subr.mxu0 0.0
        %3072 = vmatpush1.msra.mxu0 0.0
        %3073 = vmatprep.subr.mxu0 0.0
        %3074 = vmatpush1.msra.mxu0 0.0
        %3075 = vmatprep.subr.mxu0 0.0
        %3076 = vmatpush1.msra.mxu0 0.0
        %3077 = vmatprep.subr.mxu0 0.0
        %3078 = vmatpush1.msra.mxu0 0.0
        %3079 = vmatprep.subr.mxu0 0.0
        %3080 = vmatpush1.msra.mxu0 0.0
        %3081 = vmatprep.subr.mxu0 0.0
        %3082 = vmatpush1.msra.mxu0 0.0
        %3083 = vmatprep.subr.mxu0 0.0
        %3084 = vmatpush1.msra.mxu0 0.0
        %3085 = vmatprep.subr.mxu0 0.0
        %3086 = vmatpush1.msra.mxu0 0.0
        %3087 = vmatprep.subr.mxu0 0.0
        %3088 = vmatpush1.msra.mxu0 0.0
        %3089 = vmatprep.subr.mxu0 0.0
        %3090 = vmatpush1.msra.mxu0 0.0
        %3091 = vmatprep.subr.mxu0 0.0
        %3092 = vmatpush1.msra.mxu0 0.0
        %3093 = vmatprep.subr.mxu0 0.0
        %3094 = vmatpush1.msra.mxu0 0.0
        %3095 = vmatprep.subr.mxu0 0.0
        %3096 = vmatpush1.msra.mxu0 0.0
        %3097 = vmatprep.mubr.f32.mxu0 0.0
        %v3098 = vand.u32 %v1200, 4294901760
        %3099 = vmatmul.mubr.f32.gmra.mrb[0].mxu0 %v3098
        %v3100 = vpop.f32.mrb[0].mxu0
        %v3101 = vadd.f32 %v2950, %v3100
        %v3102 = vpop.f32.mrb[0].mxu0
        %3103 = vdwg.mxu0
        %3104 = vmatprep.subr.mxu0 0.0
        %v3105 = vand.u32 %v2769, 4294901760
        %v3106 = vsub.f32 %v2769, %v3105
        %3107 = vmatpush1.msra.mxu0 %v3106
        %3108 = vmatprep.subr.mxu0 0.0
        %v3109 = vand.u32 %v2775, 4294901760
        %v3110 = vsub.f32 %v2775, %v3109
        %3111 = vmatpush1.msra.mxu0 %v3110
        %3112 = vmatprep.subr.mxu0 0.0
        %v3113 = vand.u32 %v2781, 4294901760
        %v3114 = vsub.f32 %v2781, %v3113
        %3115 = vmatpush1.msra.mxu0 %v3114
        %3116 = vmatprep.subr.mxu0 0.0
        %v3117 = vand.u32 %v2787, 4294901760
        %v3118 = vsub.f32 %v2787, %v3117
        %3119 = vmatpush1.msra.mxu0 %v3118
        %3120 = vmatprep.subr.mxu0 0.0
        %v3121 = vand.u32 %v2793, 4294901760
        %v3122 = vsub.f32 %v2793, %v3121
        %3123 = vmatpush1.msra.mxu0 %v3122
        %3124 = vmatprep.subr.mxu0 0.0
        %v3125 = vand.u32 %v2799, 4294901760
        %v3126 = vsub.f32 %v2799, %v3125
        %3127 = vmatpush1.msra.mxu0 %v3126
        %3128 = vmatprep.subr.mxu0 0.0
        %v3129 = vand.u32 %v2805, 4294901760
        %v3130 = vsub.f32 %v2805, %v3129
        %3131 = vmatpush1.msra.mxu0 %v3130
        %3132 = vmatprep.subr.mxu0 0.0
        %v3133 = vand.u32 %v2811, 4294901760
        %v3134 = vsub.f32 %v2811, %v3133
        %3135 = vmatpush1.msra.mxu0 %v3134
        %3136 = vmatprep.subr.mxu0 0.0
        %v3137 = vand.u32 %v2817, 4294901760
        %v3138 = vsub.f32 %v2817, %v3137
        %3139 = vmatpush1.msra.mxu0 %v3138
        %3140 = vmatprep.subr.mxu0 0.0
        %v3141 = vand.u32 %v2823, 4294901760
        %v3142 = vsub.f32 %v2823, %v3141
        %3143 = vmatpush1.msra.mxu0 %v3142
        %3144 = vmatprep.subr.mxu0 0.0
        %v3145 = vand.u32 %v2829, 4294901760
        %v3146 = vsub.f32 %v2829, %v3145
        %3147 = vmatpush1.msra.mxu0 %v3146
        %3148 = vmatprep.subr.mxu0 0.0
        %v3149 = vand.u32 %v2835, 4294901760
        %v3150 = vsub.f32 %v2835, %v3149
        %3151 = vmatpush1.msra.mxu0 %v3150
        %3152 = vmatprep.subr.mxu0 0.0
        %v3153 = vand.u32 %v2841, 4294901760
        %v3154 = vsub.f32 %v2841, %v3153
        %3155 = vmatpush1.msra.mxu0 %v3154
        %3156 = vmatprep.subr.mxu0 0.0
        %v3157 = vand.u32 %v2847, 4294901760
        %v3158 = vsub.f32 %v2847, %v3157
        %3159 = vmatpush1.msra.mxu0 %v3158
        %3160 = vmatprep.subr.mxu0 0.0
        %v3161 = vand.u32 %v2853, 4294901760
        %v3162 = vsub.f32 %v2853, %v3161
        %3163 = vmatpush1.msra.mxu0 %v3162
        %3164 = vmatprep.subr.mxu0 0.0
        %v3165 = vand.u32 %v2859, 4294901760
        %v3166 = vsub.f32 %v2859, %v3165
        %3167 = vmatpush1.msra.mxu0 %v3166
        %3168 = vmatprep.subr.mxu0 0.0
        %3169 = vmatpush1.msra.mxu0 0.0
        %3170 = vmatprep.subr.mxu0 0.0
        %3171 = vmatpush1.msra.mxu0 0.0
        %3172 = vmatprep.subr.mxu0 0.0
        %3173 = vmatpush1.msra.mxu0 0.0
        %3174 = vmatprep.subr.mxu0 0.0
        %3175 = vmatpush1.msra.mxu0 0.0
        %3176 = vmatprep.subr.mxu0 0.0
        %3177 = vmatpush1.msra.mxu0 0.0
        %3178 = vmatprep.subr.mxu0 0.0
        %3179 = vmatpush1.msra.mxu0 0.0
        %3180 = vmatprep.subr.mxu0 0.0
        %3181 = vmatpush1.msra.mxu0 0.0
        %3182 = vmatprep.subr.mxu0 0.0
        %3183 = vmatpush1.msra.mxu0 0.0
        %3184 = vmatprep.subr.mxu0 0.0
        %3185 = vmatpush1.msra.mxu0 0.0
        %3186 = vmatprep.subr.mxu0 0.0
        %3187 = vmatpush1.msra.mxu0 0.0
        %3188 = vmatprep.subr.mxu0 0.0
        %3189 = vmatpush1.msra.mxu0 0.0
        %3190 = vmatprep.subr.mxu0 0.0
        %3191 = vmatpush1.msra.mxu0 0.0
        %3192 = vmatprep.subr.mxu0 0.0
        %3193 = vmatpush1.msra.mxu0 0.0
        %3194 = vmatprep.subr.mxu0 0.0
        %3195 = vmatpush1.msra.mxu0 0.0
        %3196 = vmatprep.subr.mxu0 0.0
        %3197 = vmatpush1.msra.mxu0 0.0
        %3198 = vmatprep.subr.mxu0 0.0
        %3199 = vmatpush1.msra.mxu0 0.0
        %3200 = vmatprep.mubr.f32.mxu0 0.0
        %v3201 = vand.u32 %v1200, 4294901760
        %v3202 = vsub.f32 %v1200, %v3201
        %3203 = vmatmul.mubr.f32.gmra.mrb[0].mxu0 %v3202
        %v3204 = vpop.f32.mrb[0].mxu0
        %v3205 = vadd.f32 %v3101, %v3204
        %v3206 = vpop.f32.mrb[0].mxu0
        %3207 = vdwg.mxu0
        %3208 = vmatprep.subr.mxu0 0.0
        %v3209 = vand.u32 %v2769, 4294901760
        %3210 = vmatpush1.msra.mxu0 %v3209
        %3211 = vmatprep.subr.mxu0 0.0
        %v3212 = vand.u32 %v2775, 4294901760
        %3213 = vmatpush1.msra.mxu0 %v3212
        %3214 = vmatprep.subr.mxu0 0.0
        %v3215 = vand.u32 %v2781, 4294901760
        %3216 = vmatpush1.msra.mxu0 %v3215
        %3217 = vmatprep.subr.mxu0 0.0
        %v3218 = vand.u32 %v2787, 4294901760
        %3219 = vmatpush1.msra.mxu0 %v3218
        %3220 = vmatprep.subr.mxu0 0.0
        %v3221 = vand.u32 %v2793, 4294901760
        %3222 = vmatpush1.msra.mxu0 %v3221
        %3223 = vmatprep.subr.mxu0 0.0
        %v3224 = vand.u32 %v2799, 4294901760
        %3225 = vmatpush1.msra.mxu0 %v3224
        %3226 = vmatprep.subr.mxu0 0.0
        %v3227 = vand.u32 %v2805, 4294901760
        %3228 = vmatpush1.msra.mxu0 %v3227
        %3229 = vmatprep.subr.mxu0 0.0
        %v3230 = vand.u32 %v2811, 4294901760
        %3231 = vmatpush1.msra.mxu0 %v3230
        %3232 = vmatprep.subr.mxu0 0.0
        %v3233 = vand.u32 %v2817, 4294901760
        %3234 = vmatpush1.msra.mxu0 %v3233
        %3235 = vmatprep.subr.mxu0 0.0
        %v3236 = vand.u32 %v2823, 4294901760
        %3237 = vmatpush1.msra.mxu0 %v3236
        %3238 = vmatprep.subr.mxu0 0.0
        %v3239 = vand.u32 %v2829, 4294901760
        %3240 = vmatpush1.msra.mxu0 %v3239
        %3241 = vmatprep.subr.mxu0 0.0
        %v3242 = vand.u32 %v2835, 4294901760
        %3243 = vmatpush1.msra.mxu0 %v3242
        %3244 = vmatprep.subr.mxu0 0.0
        %v3245 = vand.u32 %v2841, 4294901760
        %3246 = vmatpush1.msra.mxu0 %v3245
        %3247 = vmatprep.subr.mxu0 0.0
        %v3248 = vand.u32 %v2847, 4294901760
        %3249 = vmatpush1.msra.mxu0 %v3248
        %3250 = vmatprep.subr.mxu0 0.0
        %v3251 = vand.u32 %v2853, 4294901760
        %3252 = vmatpush1.msra.mxu0 %v3251
        %3253 = vmatprep.subr.mxu0 0.0
        %v3254 = vand.u32 %v2859, 4294901760
        %3255 = vmatpush1.msra.mxu0 %v3254
        %3256 = vmatprep.subr.mxu0 0.0
        %3257 = vmatpush1.msra.mxu0 0.0
        %3258 = vmatprep.subr.mxu0 0.0
        %3259 = vmatpush1.msra.mxu0 0.0
        %3260 = vmatprep.subr.mxu0 0.0
        %3261 = vmatpush1.msra.mxu0 0.0
        %3262 = vmatprep.subr.mxu0 0.0
        %3263 = vmatpush1.msra.mxu0 0.0
        %3264 = vmatprep.subr.mxu0 0.0
        %3265 = vmatpush1.msra.mxu0 0.0
        %3266 = vmatprep.subr.mxu0 0.0
        %3267 = vmatpush1.msra.mxu0 0.0
        %3268 = vmatprep.subr.mxu0 0.0
        %3269 = vmatpush1.msra.mxu0 0.0
        %3270 = vmatprep.subr.mxu0 0.0
        %3271 = vmatpush1.msra.mxu0 0.0
        %3272 = vmatprep.subr.mxu0 0.0
        %3273 = vmatpush1.msra.mxu0 0.0
        %3274 = vmatprep.subr.mxu0 0.0
        %3275 = vmatpush1.msra.mxu0 0.0
        %3276 = vmatprep.subr.mxu0 0.0
        %3277 = vmatpush1.msra.mxu0 0.0
        %3278 = vmatprep.subr.mxu0 0.0
        %3279 = vmatpush1.msra.mxu0 0.0
        %3280 = vmatprep.subr.mxu0 0.0
        %3281 = vmatpush1.msra.mxu0 0.0
        %3282 = vmatprep.subr.mxu0 0.0
        %3283 = vmatpush1.msra.mxu0 0.0
        %3284 = vmatprep.subr.mxu0 0.0
        %3285 = vmatpush1.msra.mxu0 0.0
        %3286 = vmatprep.subr.mxu0 0.0
        %3287 = vmatpush1.msra.mxu0 0.0
        %3288 = vmatprep.mubr.f32.mxu0 0.0
        %v3289 = vand.u32 %v1200, 4294901760
        %v3290 = vsub.f32 %v1200, %v3289
        %v3291 = vand.u32 %v3290, 4294901760
        %3292 = vmatmul.mubr.f32.gmra.mrb[0].mxu0 %v3291
        %v3293 = vpop.f32.mrb[0].mxu0
        %v3294 = vadd.f32 %v3205, %v3293
        %v3295 = vpop.f32.mrb[0].mxu0
        %3296 = vdwg.mxu0
        %3297 = vmatprep.subr.mxu0 0.0
        %v3298 = vand.u32 %v2769, 4294901760
        %v3299 = vsub.f32 %v2769, %v3298
        %v3300 = vand.u32 %v3299, 4294901760
        %3301 = vmatpush1.msra.mxu0 %v3300
        %3302 = vmatprep.subr.mxu0 0.0
        %v3303 = vand.u32 %v2775, 4294901760
        %v3304 = vsub.f32 %v2775, %v3303
        %v3305 = vand.u32 %v3304, 4294901760
        %3306 = vmatpush1.msra.mxu0 %v3305
        %3307 = vmatprep.subr.mxu0 0.0
        %v3308 = vand.u32 %v2781, 4294901760
        %v3309 = vsub.f32 %v2781, %v3308
        %v3310 = vand.u32 %v3309, 4294901760
        %3311 = vmatpush1.msra.mxu0 %v3310
        %3312 = vmatprep.subr.mxu0 0.0
        %v3313 = vand.u32 %v2787, 4294901760
        %v3314 = vsub.f32 %v2787, %v3313
        %v3315 = vand.u32 %v3314, 4294901760
        %3316 = vmatpush1.msra.mxu0 %v3315
        %3317 = vmatprep.subr.mxu0 0.0
        %v3318 = vand.u32 %v2793, 4294901760
        %v3319 = vsub.f32 %v2793, %v3318
        %v3320 = vand.u32 %v3319, 4294901760
        %3321 = vmatpush1.msra.mxu0 %v3320
        %3322 = vmatprep.subr.mxu0 0.0
        %v3323 = vand.u32 %v2799, 4294901760
        %v3324 = vsub.f32 %v2799, %v3323
        %v3325 = vand.u32 %v3324, 4294901760
        %3326 = vmatpush1.msra.mxu0 %v3325
        %3327 = vmatprep.subr.mxu0 0.0
        %v3328 = vand.u32 %v2805, 4294901760
        %v3329 = vsub.f32 %v2805, %v3328
        %v3330 = vand.u32 %v3329, 4294901760
        %3331 = vmatpush1.msra.mxu0 %v3330
        %3332 = vmatprep.subr.mxu0 0.0
        %v3333 = vand.u32 %v2811, 4294901760
        %v3334 = vsub.f32 %v2811, %v3333
        %v3335 = vand.u32 %v3334, 4294901760
        %3336 = vmatpush1.msra.mxu0 %v3335
        %3337 = vmatprep.subr.mxu0 0.0
        %v3338 = vand.u32 %v2817, 4294901760
        %v3339 = vsub.f32 %v2817, %v3338
        %v3340 = vand.u32 %v3339, 4294901760
        %3341 = vmatpush1.msra.mxu0 %v3340
        %3342 = vmatprep.subr.mxu0 0.0
        %v3343 = vand.u32 %v2823, 4294901760
        %v3344 = vsub.f32 %v2823, %v3343
        %v3345 = vand.u32 %v3344, 4294901760
        %3346 = vmatpush1.msra.mxu0 %v3345
        %3347 = vmatprep.subr.mxu0 0.0
        %v3348 = vand.u32 %v2829, 4294901760
        %v3349 = vsub.f32 %v2829, %v3348
        %v3350 = vand.u32 %v3349, 4294901760
        %3351 = vmatpush1.msra.mxu0 %v3350
        %3352 = vmatprep.subr.mxu0 0.0
        %v3353 = vand.u32 %v2835, 4294901760
        %v3354 = vsub.f32 %v2835, %v3353
        %v3355 = vand.u32 %v3354, 4294901760
        %3356 = vmatpush1.msra.mxu0 %v3355
        %3357 = vmatprep.subr.mxu0 0.0
        %v3358 = vand.u32 %v2841, 4294901760
        %v3359 = vsub.f32 %v2841, %v3358
        %v3360 = vand.u32 %v3359, 4294901760
        %3361 = vmatpush1.msra.mxu0 %v3360
        %3362 = vmatprep.subr.mxu0 0.0
        %v3363 = vand.u32 %v2847, 4294901760
        %v3364 = vsub.f32 %v2847, %v3363
        %v3365 = vand.u32 %v3364, 4294901760
        %3366 = vmatpush1.msra.mxu0 %v3365
        %3367 = vmatprep.subr.mxu0 0.0
        %v3368 = vand.u32 %v2853, 4294901760
        %v3369 = vsub.f32 %v2853, %v3368
        %v3370 = vand.u32 %v3369, 4294901760
        %3371 = vmatpush1.msra.mxu0 %v3370
        %3372 = vmatprep.subr.mxu0 0.0
        %v3373 = vand.u32 %v2859, 4294901760
        %v3374 = vsub.f32 %v2859, %v3373
        %v3375 = vand.u32 %v3374, 4294901760
        %3376 = vmatpush1.msra.mxu0 %v3375
        %3377 = vmatprep.subr.mxu0 0.0
        %3378 = vmatpush1.msra.mxu0 0.0
        %3379 = vmatprep.subr.mxu0 0.0
        %3380 = vmatpush1.msra.mxu0 0.0
        %3381 = vmatprep.subr.mxu0 0.0
        %3382 = vmatpush1.msra.mxu0 0.0
        %3383 = vmatprep.subr.mxu0 0.0
        %3384 = vmatpush1.msra.mxu0 0.0
        %3385 = vmatprep.subr.mxu0 0.0
        %3386 = vmatpush1.msra.mxu0 0.0
        %3387 = vmatprep.subr.mxu0 0.0
        %3388 = vmatpush1.msra.mxu0 0.0
        %3389 = vmatprep.subr.mxu0 0.0
        %3390 = vmatpush1.msra.mxu0 0.0
        %3391 = vmatprep.subr.mxu0 0.0
        %3392 = vmatpush1.msra.mxu0 0.0
        %3393 = vmatprep.subr.mxu0 0.0
        %3394 = vmatpush1.msra.mxu0 0.0
        %3395 = vmatprep.subr.mxu0 0.0
        %3396 = vmatpush1.msra.mxu0 0.0
        %3397 = vmatprep.subr.mxu0 0.0
        %3398 = vmatpush1.msra.mxu0 0.0
        %3399 = vmatprep.subr.mxu0 0.0
        %3400 = vmatpush1.msra.mxu0 0.0
        %3401 = vmatprep.subr.mxu0 0.0
        %3402 = vmatpush1.msra.mxu0 0.0
        %3403 = vmatprep.subr.mxu0 0.0
        %3404 = vmatpush1.msra.mxu0 0.0
        %3405 = vmatprep.subr.mxu0 0.0
        %3406 = vmatpush1.msra.mxu0 0.0
        %3407 = vmatprep.subr.mxu0 0.0
        %3408 = vmatpush1.msra.mxu0 0.0
        %3409 = vmatprep.mubr.f32.mxu0 0.0
        %v3410 = vand.u32 %v1200, 4294901760
        %3411 = vmatmul.mubr.f32.gmra.mrb[0].mxu0 %v3410
        %v3412 = vpop.f32.mrb[0].mxu0
        %v3413 = vadd.f32 %v3294, %v3412
        %v3414 = vpop.f32.mrb[0].mxu0
        %3415 = vdwg.mxu0
        %3416 = vmatprep.subr.mxu0 0.0
        %v3417 = vand.u32 %v2769, 4294901760
        %3418 = vmatpush1.msra.mxu0 %v3417
        %3419 = vmatprep.subr.mxu0 0.0
        %v3420 = vand.u32 %v2775, 4294901760
        %3421 = vmatpush1.msra.mxu0 %v3420
        %3422 = vmatprep.subr.mxu0 0.0
        %v3423 = vand.u32 %v2781, 4294901760
        %3424 = vmatpush1.msra.mxu0 %v3423
        %3425 = vmatprep.subr.mxu0 0.0
        %v3426 = vand.u32 %v2787, 4294901760
        %3427 = vmatpush1.msra.mxu0 %v3426
        %3428 = vmatprep.subr.mxu0 0.0
        %v3429 = vand.u32 %v2793, 4294901760
        %3430 = vmatpush1.msra.mxu0 %v3429
        %3431 = vmatprep.subr.mxu0 0.0
        %v3432 = vand.u32 %v2799, 4294901760
        %3433 = vmatpush1.msra.mxu0 %v3432
        %3434 = vmatprep.subr.mxu0 0.0
        %v3435 = vand.u32 %v2805, 4294901760
        %3436 = vmatpush1.msra.mxu0 %v3435
        %3437 = vmatprep.subr.mxu0 0.0
        %v3438 = vand.u32 %v2811, 4294901760
        %3439 = vmatpush1.msra.mxu0 %v3438
        %3440 = vmatprep.subr.mxu0 0.0
        %v3441 = vand.u32 %v2817, 4294901760
        %3442 = vmatpush1.msra.mxu0 %v3441
        %3443 = vmatprep.subr.mxu0 0.0
        %v3444 = vand.u32 %v2823, 4294901760
        %3445 = vmatpush1.msra.mxu0 %v3444
        %3446 = vmatprep.subr.mxu0 0.0
        %v3447 = vand.u32 %v2829, 4294901760
        %3448 = vmatpush1.msra.mxu0 %v3447
        %3449 = vmatprep.subr.mxu0 0.0
        %v3450 = vand.u32 %v2835, 4294901760
        %3451 = vmatpush1.msra.mxu0 %v3450
        %3452 = vmatprep.subr.mxu0 0.0
        %v3453 = vand.u32 %v2841, 4294901760
        %3454 = vmatpush1.msra.mxu0 %v3453
        %3455 = vmatprep.subr.mxu0 0.0
        %v3456 = vand.u32 %v2847, 4294901760
        %3457 = vmatpush1.msra.mxu0 %v3456
        %3458 = vmatprep.subr.mxu0 0.0
        %v3459 = vand.u32 %v2853, 4294901760
        %3460 = vmatpush1.msra.mxu0 %v3459
        %3461 = vmatprep.subr.mxu0 0.0
        %v3462 = vand.u32 %v2859, 4294901760
        %3463 = vmatpush1.msra.mxu0 %v3462
        %3464 = vmatprep.subr.mxu0 0.0
        %3465 = vmatpush1.msra.mxu0 0.0
        %3466 = vmatprep.subr.mxu0 0.0
        %3467 = vmatpush1.msra.mxu0 0.0
        %3468 = vmatprep.subr.mxu0 0.0
        %3469 = vmatpush1.msra.mxu0 0.0
        %3470 = vmatprep.subr.mxu0 0.0
        %3471 = vmatpush1.msra.mxu0 0.0
        %3472 = vmatprep.subr.mxu0 0.0
        %3473 = vmatpush1.msra.mxu0 0.0
        %3474 = vmatprep.subr.mxu0 0.0
        %3475 = vmatpush1.msra.mxu0 0.0
        %3476 = vmatprep.subr.mxu0 0.0
        %3477 = vmatpush1.msra.mxu0 0.0
        %3478 = vmatprep.subr.mxu0 0.0
        %3479 = vmatpush1.msra.mxu0 0.0
        %3480 = vmatprep.subr.mxu0 0.0
        %3481 = vmatpush1.msra.mxu0 0.0
        %3482 = vmatprep.subr.mxu0 0.0
        %3483 = vmatpush1.msra.mxu0 0.0
        %3484 = vmatprep.subr.mxu0 0.0
        %3485 = vmatpush1.msra.mxu0 0.0
        %3486 = vmatprep.subr.mxu0 0.0
        %3487 = vmatpush1.msra.mxu0 0.0
        %3488 = vmatprep.subr.mxu0 0.0
        %3489 = vmatpush1.msra.mxu0 0.0
        %3490 = vmatprep.subr.mxu0 0.0
        %3491 = vmatpush1.msra.mxu0 0.0
        %3492 = vmatprep.subr.mxu0 0.0
        %3493 = vmatpush1.msra.mxu0 0.0
        %3494 = vmatprep.subr.mxu0 0.0
        %3495 = vmatpush1.msra.mxu0 0.0
        %3496 = vmatprep.mubr.f32.mxu0 0.0
        %v3497 = vand.u32 %v1200, 4294901760
        %3498 = vmatmul.mubr.f32.gmra.mrb[0].mxu0 %v3497
        %v3499 = vpop.f32.mrb[0].mxu0
        %v3500 = vadd.f32 %v3413, %v3499
        %v3501 = vpop.f32.mrb[0].mxu0
        %3502 = vdwg.mxu0
        %v3503 = vld [vmem:[%s5] sm:$0xff]
        %v3504 = vld [vmem:[%s5 + $0x8] sm:$0xff]
        %v3505 = vld [vmem:[%s5 + $0x10] sm:$0xff]
        %v3506 = vld [vmem:[%s5 + $0x18] sm:$0xff]
        %v3508 = vsel %vm465, %v3500, 0
        %3510 = vmatprep.subr.mxu0 0.0
        %v3511 = vand.u32 %v3503, 4294901760
        %3512 = vmatpush1.msra.mxu0 %v3511
        %3513 = vmatprep.subr.mxu0 0.0
        %v3514 = vand.u32 %v3504, 4294901760
        %3515 = vmatpush1.msra.mxu0 %v3514
        %3516 = vmatprep.subr.mxu0 0.0
        %v3517 = vand.u32 %v3505, 4294901760
        %3518 = vmatpush1.msra.mxu0 %v3517
        %3519 = vmatprep.subr.mxu0 0.0
        %v3520 = vand.u32 %v3506, 4294901760
        %3521 = vmatpush1.msra.mxu0 %v3520
        %3522 = vmatprep.subr.mxu0 0.0
        %3523 = vmatpush1.msra.mxu0 0.0
        %3524 = vmatprep.subr.mxu0 0.0
        %3525 = vmatpush1.msra.mxu0 0.0
        %3526 = vmatprep.subr.mxu0 0.0
        %3527 = vmatpush1.msra.mxu0 0.0
        %3528 = vmatprep.subr.mxu0 0.0
        %3529 = vmatpush1.msra.mxu0 0.0
        %3530 = vmatprep.subr.mxu0 0.0
        %3531 = vmatpush1.msra.mxu0 0.0
        %3532 = vmatprep.subr.mxu0 0.0
        %3533 = vmatpush1.msra.mxu0 0.0
        %3534 = vmatprep.subr.mxu0 0.0
        %3535 = vmatpush1.msra.mxu0 0.0
        %3536 = vmatprep.subr.mxu0 0.0
        %3537 = vmatpush1.msra.mxu0 0.0
        %3538 = vmatprep.subr.mxu0 0.0
        %3539 = vmatpush1.msra.mxu0 0.0
        %3540 = vmatprep.subr.mxu0 0.0
        %3541 = vmatpush1.msra.mxu0 0.0
        %3542 = vmatprep.subr.mxu0 0.0
        %3543 = vmatpush1.msra.mxu0 0.0
        %3544 = vmatprep.subr.mxu0 0.0
        %3545 = vmatpush1.msra.mxu0 0.0
        %3546 = vmatprep.subr.mxu0 0.0
        %3547 = vmatpush1.msra.mxu0 0.0
        %3548 = vmatprep.subr.mxu0 0.0
        %3549 = vmatpush1.msra.mxu0 0.0
        %3550 = vmatprep.subr.mxu0 0.0
        %3551 = vmatpush1.msra.mxu0 0.0
        %3552 = vmatprep.subr.mxu0 0.0
        %3553 = vmatpush1.msra.mxu0 0.0
        %3554 = vmatprep.subr.mxu0 0.0
        %3555 = vmatpush1.msra.mxu0 0.0
        %3556 = vmatprep.subr.mxu0 0.0
        %3557 = vmatpush1.msra.mxu0 0.0
        %3558 = vmatprep.subr.mxu0 0.0
        %3559 = vmatpush1.msra.mxu0 0.0
        %3560 = vmatprep.subr.mxu0 0.0
        %3561 = vmatpush1.msra.mxu0 0.0
        %3562 = vmatprep.subr.mxu0 0.0
        %3563 = vmatpush1.msra.mxu0 0.0
        %3564 = vmatprep.subr.mxu0 0.0
        %3565 = vmatpush1.msra.mxu0 0.0
        %3566 = vmatprep.subr.mxu0 0.0
        %3567 = vmatpush1.msra.mxu0 0.0
        %3568 = vmatprep.subr.mxu0 0.0
        %3569 = vmatpush1.msra.mxu0 0.0
        %3570 = vmatprep.subr.mxu0 0.0
        %3571 = vmatpush1.msra.mxu0 0.0
        %3572 = vmatprep.subr.mxu0 0.0
        %3573 = vmatpush1.msra.mxu0 0.0
        %3574 = vmatprep.subr.mxu0 0.0
        %3575 = vmatpush1.msra.mxu0 0.0
        %3576 = vmatprep.subr.mxu0 0.0
        %3577 = vmatpush1.msra.mxu0 0.0
        %3578 = vmatprep.mubr.f32.mxu0 0.0
        %v3579 = vand.u32 %v3508, 4294901760
        %v3580 = vsub.f32 %v3508, %v3579
        %v3581 = vand.u32 %v3580, 4294901760
        %v3582 = vsub.f32 %v3580, %v3581
        %v3583 = vand.u32 %v3582, 4294901760
        %3584 = vmatmul.mubr.f32.gmra.mrb[0].mxu0 %v3583
        %v3585 = vpop.f32.mrb[0].mxu0
        %v3586 = vadd.f32 0.0, %v3585
        %v3587 = vpop.f32.mrb[0].mxu0
        %3588 = vdwg.mxu0
        %3589 = vmatprep.subr.mxu0 0.0
        %v3590 = vand.u32 %v3503, 4294901760
        %v3591 = vsub.f32 %v3503, %v3590
        %v3592 = vand.u32 %v3591, 4294901760
        %v3593 = vsub.f32 %v3591, %v3592
        %v3594 = vand.u32 %v3593, 4294901760
        %3595 = vmatpush1.msra.mxu0 %v3594
        %3596 = vmatprep.subr.mxu0 0.0
        %v3597 = vand.u32 %v3504, 4294901760
        %v3598 = vsub.f32 %v3504, %v3597
        %v3599 = vand.u32 %v3598, 4294901760
        %v3600 = vsub.f32 %v3598, %v3599
        %v3601 = vand.u32 %v3600, 4294901760
        %3602 = vmatpush1.msra.mxu0 %v3601
        %3603 = vmatprep.subr.mxu0 0.0
        %v3604 = vand.u32 %v3505, 4294901760
        %v3605 = vsub.f32 %v3505, %v3604
        %v3606 = vand.u32 %v3605, 4294901760
        %v3607 = vsub.f32 %v3605, %v3606
        %v3608 = vand.u32 %v3607, 4294901760
        %3609 = vmatpush1.msra.mxu0 %v3608
        %3610 = vmatprep.subr.mxu0 0.0
        %v3611 = vand.u32 %v3506, 4294901760
        %v3612 = vsub.f32 %v3506, %v3611
        %v3613 = vand.u32 %v3612, 4294901760
        %v3614 = vsub.f32 %v3612, %v3613
        %v3615 = vand.u32 %v3614, 4294901760
        %3616 = vmatpush1.msra.mxu0 %v3615
        %3617 = vmatprep.subr.mxu0 0.0
        %3618 = vmatpush1.msra.mxu0 0.0
        %3619 = vmatprep.subr.mxu0 0.0
        %3620 = vmatpush1.msra.mxu0 0.0
        %3621 = vmatprep.subr.mxu0 0.0
        %3622 = vmatpush1.msra.mxu0 0.0
        %3623 = vmatprep.subr.mxu0 0.0
        %3624 = vmatpush1.msra.mxu0 0.0
        %3625 = vmatprep.subr.mxu0 0.0
        %3626 = vmatpush1.msra.mxu0 0.0
        %3627 = vmatprep.subr.mxu0 0.0
        %3628 = vmatpush1.msra.mxu0 0.0
        %3629 = vmatprep.subr.mxu0 0.0
        %3630 = vmatpush1.msra.mxu0 0.0
        %3631 = vmatprep.subr.mxu0 0.0
        %3632 = vmatpush1.msra.mxu0 0.0
        %3633 = vmatprep.subr.mxu0 0.0
        %3634 = vmatpush1.msra.mxu0 0.0
        %3635 = vmatprep.subr.mxu0 0.0
        %3636 = vmatpush1.msra.mxu0 0.0
        %3637 = vmatprep.subr.mxu0 0.0
        %3638 = vmatpush1.msra.mxu0 0.0
        %3639 = vmatprep.subr.mxu0 0.0
        %3640 = vmatpush1.msra.mxu0 0.0
        %3641 = vmatprep.subr.mxu0 0.0
        %3642 = vmatpush1.msra.mxu0 0.0
        %3643 = vmatprep.subr.mxu0 0.0
        %3644 = vmatpush1.msra.mxu0 0.0
        %3645 = vmatprep.subr.mxu0 0.0
        %3646 = vmatpush1.msra.mxu0 0.0
        %3647 = vmatprep.subr.mxu0 0.0
        %3648 = vmatpush1.msra.mxu0 0.0
        %3649 = vmatprep.subr.mxu0 0.0
        %3650 = vmatpush1.msra.mxu0 0.0
        %3651 = vmatprep.subr.mxu0 0.0
        %3652 = vmatpush1.msra.mxu0 0.0
        %3653 = vmatprep.subr.mxu0 0.0
        %3654 = vmatpush1.msra.mxu0 0.0
        %3655 = vmatprep.subr.mxu0 0.0
        %3656 = vmatpush1.msra.mxu0 0.0
        %3657 = vmatprep.subr.mxu0 0.0
        %3658 = vmatpush1.msra.mxu0 0.0
        %3659 = vmatprep.subr.mxu0 0.0
        %3660 = vmatpush1.msra.mxu0 0.0
        %3661 = vmatprep.subr.mxu0 0.0
        %3662 = vmatpush1.msra.mxu0 0.0
        %3663 = vmatprep.subr.mxu0 0.0
        %3664 = vmatpush1.msra.mxu0 0.0
        %3665 = vmatprep.subr.mxu0 0.0
        %3666 = vmatpush1.msra.mxu0 0.0
        %3667 = vmatprep.subr.mxu0 0.0
        %3668 = vmatpush1.msra.mxu0 0.0
        %3669 = vmatprep.subr.mxu0 0.0
        %3670 = vmatpush1.msra.mxu0 0.0
        %3671 = vmatprep.subr.mxu0 0.0
        %3672 = vmatpush1.msra.mxu0 0.0
        %3673 = vmatprep.mubr.f32.mxu0 0.0
        %v3674 = vand.u32 %v3508, 4294901760
        %3675 = vmatmul.mubr.f32.gmra.mrb[0].mxu0 %v3674
        %v3676 = vpop.f32.mrb[0].mxu0
        %v3677 = vadd.f32 %v3586, %v3676
        %v3678 = vpop.f32.mrb[0].mxu0
        %3679 = vdwg.mxu0
        %3680 = vmatprep.subr.mxu0 0.0
        %v3681 = vand.u32 %v3503, 4294901760
        %v3682 = vsub.f32 %v3503, %v3681
        %3683 = vmatpush1.msra.mxu0 %v3682
        %3684 = vmatprep.subr.mxu0 0.0
        %v3685 = vand.u32 %v3504, 4294901760
        %v3686 = vsub.f32 %v3504, %v3685
        %3687 = vmatpush1.msra.mxu0 %v3686
        %3688 = vmatprep.subr.mxu0 0.0
        %v3689 = vand.u32 %v3505, 4294901760
        %v3690 = vsub.f32 %v3505, %v3689
        %3691 = vmatpush1.msra.mxu0 %v3690
        %3692 = vmatprep.subr.mxu0 0.0
        %v3693 = vand.u32 %v3506, 4294901760
        %v3694 = vsub.f32 %v3506, %v3693
        %3695 = vmatpush1.msra.mxu0 %v3694
        %3696 = vmatprep.subr.mxu0 0.0
        %3697 = vmatpush1.msra.mxu0 0.0
        %3698 = vmatprep.subr.mxu0 0.0
        %3699 = vmatpush1.msra.mxu0 0.0
        %3700 = vmatprep.subr.mxu0 0.0
        %3701 = vmatpush1.msra.mxu0 0.0
        %3702 = vmatprep.subr.mxu0 0.0
        %3703 = vmatpush1.msra.mxu0 0.0
        %3704 = vmatprep.subr.mxu0 0.0
        %3705 = vmatpush1.msra.mxu0 0.0
        %3706 = vmatprep.subr.mxu0 0.0
        %3707 = vmatpush1.msra.mxu0 0.0
        %3708 = vmatprep.subr.mxu0 0.0
        %3709 = vmatpush1.msra.mxu0 0.0
        %3710 = vmatprep.subr.mxu0 0.0
        %3711 = vmatpush1.msra.mxu0 0.0
        %3712 = vmatprep.subr.mxu0 0.0
        %3713 = vmatpush1.msra.mxu0 0.0
        %3714 = vmatprep.subr.mxu0 0.0
        %3715 = vmatpush1.msra.mxu0 0.0
        %3716 = vmatprep.subr.mxu0 0.0
        %3717 = vmatpush1.msra.mxu0 0.0
        %3718 = vmatprep.subr.mxu0 0.0
        %3719 = vmatpush1.msra.mxu0 0.0
        %3720 = vmatprep.subr.mxu0 0.0
        %3721 = vmatpush1.msra.mxu0 0.0
        %3722 = vmatprep.subr.mxu0 0.0
        %3723 = vmatpush1.msra.mxu0 0.0
        %3724 = vmatprep.subr.mxu0 0.0
        %3725 = vmatpush1.msra.mxu0 0.0
        %3726 = vmatprep.subr.mxu0 0.0
        %3727 = vmatpush1.msra.mxu0 0.0
        %3728 = vmatprep.subr.mxu0 0.0
        %3729 = vmatpush1.msra.mxu0 0.0
        %3730 = vmatprep.subr.mxu0 0.0
        %3731 = vmatpush1.msra.mxu0 0.0
        %3732 = vmatprep.subr.mxu0 0.0
        %3733 = vmatpush1.msra.mxu0 0.0
        %3734 = vmatprep.subr.mxu0 0.0
        %3735 = vmatpush1.msra.mxu0 0.0
        %3736 = vmatprep.subr.mxu0 0.0
        %3737 = vmatpush1.msra.mxu0 0.0
        %3738 = vmatprep.subr.mxu0 0.0
        %3739 = vmatpush1.msra.mxu0 0.0
        %3740 = vmatprep.subr.mxu0 0.0
        %3741 = vmatpush1.msra.mxu0 0.0
        %3742 = vmatprep.subr.mxu0 0.0
        %3743 = vmatpush1.msra.mxu0 0.0
        %3744 = vmatprep.subr.mxu0 0.0
        %3745 = vmatpush1.msra.mxu0 0.0
        %3746 = vmatprep.subr.mxu0 0.0
        %3747 = vmatpush1.msra.mxu0 0.0
        %3748 = vmatprep.subr.mxu0 0.0
        %3749 = vmatpush1.msra.mxu0 0.0
        %3750 = vmatprep.subr.mxu0 0.0
        %3751 = vmatpush1.msra.mxu0 0.0
        %3752 = vmatprep.mubr.f32.mxu0 0.0
        %v3753 = vand.u32 %v3508, 4294901760
        %v3754 = vsub.f32 %v3508, %v3753
        %3755 = vmatmul.mubr.f32.gmra.mrb[0].mxu0 %v3754
        %v3756 = vpop.f32.mrb[0].mxu0
        %v3757 = vadd.f32 %v3677, %v3756
        %v3758 = vpop.f32.mrb[0].mxu0
        %3759 = vdwg.mxu0
        %3760 = vmatprep.subr.mxu0 0.0
        %v3761 = vand.u32 %v3503, 4294901760
        %3762 = vmatpush1.msra.mxu0 %v3761
        %3763 = vmatprep.subr.mxu0 0.0
        %v3764 = vand.u32 %v3504, 4294901760
        %3765 = vmatpush1.msra.mxu0 %v3764
        %3766 = vmatprep.subr.mxu0 0.0
        %v3767 = vand.u32 %v3505, 4294901760
        %3768 = vmatpush1.msra.mxu0 %v3767
        %3769 = vmatprep.subr.mxu0 0.0
        %v3770 = vand.u32 %v3506, 4294901760
        %3771 = vmatpush1.msra.mxu0 %v3770
        %3772 = vmatprep.subr.mxu0 0.0
        %3773 = vmatpush1.msra.mxu0 0.0
        %3774 = vmatprep.subr.mxu0 0.0
        %3775 = vmatpush1.msra.mxu0 0.0
        %3776 = vmatprep.subr.mxu0 0.0
        %3777 = vmatpush1.msra.mxu0 0.0
        %3778 = vmatprep.subr.mxu0 0.0
        %3779 = vmatpush1.msra.mxu0 0.0
        %3780 = vmatprep.subr.mxu0 0.0
        %3781 = vmatpush1.msra.mxu0 0.0
        %3782 = vmatprep.subr.mxu0 0.0
        %3783 = vmatpush1.msra.mxu0 0.0
        %3784 = vmatprep.subr.mxu0 0.0
        %3785 = vmatpush1.msra.mxu0 0.0
        %3786 = vmatprep.subr.mxu0 0.0
        %3787 = vmatpush1.msra.mxu0 0.0
        %3788 = vmatprep.subr.mxu0 0.0
        %3789 = vmatpush1.msra.mxu0 0.0
        %3790 = vmatprep.subr.mxu0 0.0
        %3791 = vmatpush1.msra.mxu0 0.0
        %3792 = vmatprep.subr.mxu0 0.0
        %3793 = vmatpush1.msra.mxu0 0.0
        %3794 = vmatprep.subr.mxu0 0.0
        %3795 = vmatpush1.msra.mxu0 0.0
        %3796 = vmatprep.subr.mxu0 0.0
        %3797 = vmatpush1.msra.mxu0 0.0
        %3798 = vmatprep.subr.mxu0 0.0
        %3799 = vmatpush1.msra.mxu0 0.0
        %3800 = vmatprep.subr.mxu0 0.0
        %3801 = vmatpush1.msra.mxu0 0.0
        %3802 = vmatprep.subr.mxu0 0.0
        %3803 = vmatpush1.msra.mxu0 0.0
        %3804 = vmatprep.subr.mxu0 0.0
        %3805 = vmatpush1.msra.mxu0 0.0
        %3806 = vmatprep.subr.mxu0 0.0
        %3807 = vmatpush1.msra.mxu0 0.0
        %3808 = vmatprep.subr.mxu0 0.0
        %3809 = vmatpush1.msra.mxu0 0.0
        %3810 = vmatprep.subr.mxu0 0.0
        %3811 = vmatpush1.msra.mxu0 0.0
        %3812 = vmatprep.subr.mxu0 0.0
        %3813 = vmatpush1.msra.mxu0 0.0
        %3814 = vmatprep.subr.mxu0 0.0
        %3815 = vmatpush1.msra.mxu0 0.0
        %3816 = vmatprep.subr.mxu0 0.0
        %3817 = vmatpush1.msra.mxu0 0.0
        %3818 = vmatprep.subr.mxu0 0.0
        %3819 = vmatpush1.msra.mxu0 0.0
        %3820 = vmatprep.subr.mxu0 0.0
        %3821 = vmatpush1.msra.mxu0 0.0
        %3822 = vmatprep.subr.mxu0 0.0
        %3823 = vmatpush1.msra.mxu0 0.0
        %3824 = vmatprep.subr.mxu0 0.0
        %3825 = vmatpush1.msra.mxu0 0.0
        %3826 = vmatprep.subr.mxu0 0.0
        %3827 = vmatpush1.msra.mxu0 0.0
        %3828 = vmatprep.mubr.f32.mxu0 0.0
        %v3829 = vand.u32 %v3508, 4294901760
        %v3830 = vsub.f32 %v3508, %v3829
        %v3831 = vand.u32 %v3830, 4294901760
        %3832 = vmatmul.mubr.f32.gmra.mrb[0].mxu0 %v3831
        %v3833 = vpop.f32.mrb[0].mxu0
        %v3834 = vadd.f32 %v3757, %v3833
        %v3835 = vpop.f32.mrb[0].mxu0
        %3836 = vdwg.mxu0
        %3837 = vmatprep.subr.mxu0 0.0
        %v3838 = vand.u32 %v3503, 4294901760
        %v3839 = vsub.f32 %v3503, %v3838
        %v3840 = vand.u32 %v3839, 4294901760
        %3841 = vmatpush1.msra.mxu0 %v3840
        %3842 = vmatprep.subr.mxu0 0.0
        %v3843 = vand.u32 %v3504, 4294901760
        %v3844 = vsub.f32 %v3504, %v3843
        %v3845 = vand.u32 %v3844, 4294901760
        %3846 = vmatpush1.msra.mxu0 %v3845
        %3847 = vmatprep.subr.mxu0 0.0
        %v3848 = vand.u32 %v3505, 4294901760
        %v3849 = vsub.f32 %v3505, %v3848
        %v3850 = vand.u32 %v3849, 4294901760
        %3851 = vmatpush1.msra.mxu0 %v3850
        %3852 = vmatprep.subr.mxu0 0.0
        %v3853 = vand.u32 %v3506, 4294901760
        %v3854 = vsub.f32 %v3506, %v3853
        %v3855 = vand.u32 %v3854, 4294901760
        %3856 = vmatpush1.msra.mxu0 %v3855
        %3857 = vmatprep.subr.mxu0 0.0
        %3858 = vmatpush1.msra.mxu0 0.0
        %3859 = vmatprep.subr.mxu0 0.0
        %3860 = vmatpush1.msra.mxu0 0.0
        %3861 = vmatprep.subr.mxu0 0.0
        %3862 = vmatpush1.msra.mxu0 0.0
        %3863 = vmatprep.subr.mxu0 0.0
        %3864 = vmatpush1.msra.mxu0 0.0
        %3865 = vmatprep.subr.mxu0 0.0
        %3866 = vmatpush1.msra.mxu0 0.0
        %3867 = vmatprep.subr.mxu0 0.0
        %3868 = vmatpush1.msra.mxu0 0.0
        %3869 = vmatprep.subr.mxu0 0.0
        %3870 = vmatpush1.msra.mxu0 0.0
        %3871 = vmatprep.subr.mxu0 0.0
        %3872 = vmatpush1.msra.mxu0 0.0
        %3873 = vmatprep.subr.mxu0 0.0
        %3874 = vmatpush1.msra.mxu0 0.0
        %3875 = vmatprep.subr.mxu0 0.0
        %3876 = vmatpush1.msra.mxu0 0.0
        %3877 = vmatprep.subr.mxu0 0.0
        %3878 = vmatpush1.msra.mxu0 0.0
        %3879 = vmatprep.subr.mxu0 0.0
        %3880 = vmatpush1.msra.mxu0 0.0
        %3881 = vmatprep.subr.mxu0 0.0
        %3882 = vmatpush1.msra.mxu0 0.0
        %3883 = vmatprep.subr.mxu0 0.0
        %3884 = vmatpush1.msra.mxu0 0.0
        %3885 = vmatprep.subr.mxu0 0.0
        %3886 = vmatpush1.msra.mxu0 0.0
        %3887 = vmatprep.subr.mxu0 0.0
        %3888 = vmatpush1.msra.mxu0 0.0
        %3889 = vmatprep.subr.mxu0 0.0
        %3890 = vmatpush1.msra.mxu0 0.0
        %3891 = vmatprep.subr.mxu0 0.0
        %3892 = vmatpush1.msra.mxu0 0.0
        %3893 = vmatprep.subr.mxu0 0.0
        %3894 = vmatpush1.msra.mxu0 0.0
        %3895 = vmatprep.subr.mxu0 0.0
        %3896 = vmatpush1.msra.mxu0 0.0
        %3897 = vmatprep.subr.mxu0 0.0
        %3898 = vmatpush1.msra.mxu0 0.0
        %3899 = vmatprep.subr.mxu0 0.0
        %3900 = vmatpush1.msra.mxu0 0.0
        %3901 = vmatprep.subr.mxu0 0.0
        %3902 = vmatpush1.msra.mxu0 0.0
        %3903 = vmatprep.subr.mxu0 0.0
        %3904 = vmatpush1.msra.mxu0 0.0
        %3905 = vmatprep.subr.mxu0 0.0
        %3906 = vmatpush1.msra.mxu0 0.0
        %3907 = vmatprep.subr.mxu0 0.0
        %3908 = vmatpush1.msra.mxu0 0.0
        %3909 = vmatprep.subr.mxu0 0.0
        %3910 = vmatpush1.msra.mxu0 0.0
        %3911 = vmatprep.subr.mxu0 0.0
        %3912 = vmatpush1.msra.mxu0 0.0
        %3913 = vmatprep.mubr.f32.mxu0 0.0
        %v3914 = vand.u32 %v3508, 4294901760
        %3915 = vmatmul.mubr.f32.gmra.mrb[0].mxu0 %v3914
        %v3916 = vpop.f32.mrb[0].mxu0
        %v3917 = vadd.f32 %v3834, %v3916
        %v3918 = vpop.f32.mrb[0].mxu0
        %3919 = vdwg.mxu0
        %3920 = vmatprep.subr.mxu0 0.0
        %v3921 = vand.u32 %v3503, 4294901760
        %3922 = vmatpush1.msra.mxu0 %v3921
        %3923 = vmatprep.subr.mxu0 0.0
        %v3924 = vand.u32 %v3504, 4294901760
        %3925 = vmatpush1.msra.mxu0 %v3924
        %3926 = vmatprep.subr.mxu0 0.0
        %v3927 = vand.u32 %v3505, 4294901760
        %3928 = vmatpush1.msra.mxu0 %v3927
        %3929 = vmatprep.subr.mxu0 0.0
        %v3930 = vand.u32 %v3506, 4294901760
        %3931 = vmatpush1.msra.mxu0 %v3930
        %3932 = vmatprep.subr.mxu0 0.0
        %3933 = vmatpush1.msra.mxu0 0.0
        %3934 = vmatprep.subr.mxu0 0.0
        %3935 = vmatpush1.msra.mxu0 0.0
        %3936 = vmatprep.subr.mxu0 0.0
        %3937 = vmatpush1.msra.mxu0 0.0
        %3938 = vmatprep.subr.mxu0 0.0
        %3939 = vmatpush1.msra.mxu0 0.0
        %3940 = vmatprep.subr.mxu0 0.0
        %3941 = vmatpush1.msra.mxu0 0.0
        %3942 = vmatprep.subr.mxu0 0.0
        %3943 = vmatpush1.msra.mxu0 0.0
        %3944 = vmatprep.subr.mxu0 0.0
        %3945 = vmatpush1.msra.mxu0 0.0
        %3946 = vmatprep.subr.mxu0 0.0
        %3947 = vmatpush1.msra.mxu0 0.0
        %3948 = vmatprep.subr.mxu0 0.0
        %3949 = vmatpush1.msra.mxu0 0.0
        %3950 = vmatprep.subr.mxu0 0.0
        %3951 = vmatpush1.msra.mxu0 0.0
        %3952 = vmatprep.subr.mxu0 0.0
        %3953 = vmatpush1.msra.mxu0 0.0
        %3954 = vmatprep.subr.mxu0 0.0
        %3955 = vmatpush1.msra.mxu0 0.0
        %3956 = vmatprep.subr.mxu0 0.0
        %3957 = vmatpush1.msra.mxu0 0.0
        %3958 = vmatprep.subr.mxu0 0.0
        %3959 = vmatpush1.msra.mxu0 0.0
        %3960 = vmatprep.subr.mxu0 0.0
        %3961 = vmatpush1.msra.mxu0 0.0
        %3962 = vmatprep.subr.mxu0 0.0
        %3963 = vmatpush1.msra.mxu0 0.0
        %3964 = vmatprep.subr.mxu0 0.0
        %3965 = vmatpush1.msra.mxu0 0.0
        %3966 = vmatprep.subr.mxu0 0.0
        %3967 = vmatpush1.msra.mxu0 0.0
        %3968 = vmatprep.subr.mxu0 0.0
        %3969 = vmatpush1.msra.mxu0 0.0
        %3970 = vmatprep.subr.mxu0 0.0
        %3971 = vmatpush1.msra.mxu0 0.0
        %3972 = vmatprep.subr.mxu0 0.0
        %3973 = vmatpush1.msra.mxu0 0.0
        %3974 = vmatprep.subr.mxu0 0.0
        %3975 = vmatpush1.msra.mxu0 0.0
        %3976 = vmatprep.subr.mxu0 0.0
        %3977 = vmatpush1.msra.mxu0 0.0
        %3978 = vmatprep.subr.mxu0 0.0
        %3979 = vmatpush1.msra.mxu0 0.0
        %3980 = vmatprep.subr.mxu0 0.0
        %3981 = vmatpush1.msra.mxu0 0.0
        %3982 = vmatprep.subr.mxu0 0.0
        %3983 = vmatpush1.msra.mxu0 0.0
        %3984 = vmatprep.subr.mxu0 0.0
        %3985 = vmatpush1.msra.mxu0 0.0
        %3986 = vmatprep.subr.mxu0 0.0
        %3987 = vmatpush1.msra.mxu0 0.0
        %3988 = vmatprep.mubr.f32.mxu0 0.0
        %v3989 = vand.u32 %v3508, 4294901760
        %3990 = vmatmul.mubr.f32.gmra.mrb[0].mxu0 %v3989
        %v3991 = vpop.f32.mrb[0].mxu0
        %v3992 = vadd.f32 %v3917, %v3991
        %v3993 = vpop.f32.mrb[0].mxu0
        %3994 = vdwg.mxu0
        %v3995 = vadd.f32 %v463, %v3992
        %v3996 = vsel %vm465, %v3995, 0.0
        %3997 = vadd.xlane.f32.xlu0 %v3996
        %v3998 = vpop.xlane.xlu0 %3997
        %v3999 = vrcp.pop 32.0
        %v4000 = vmul.f32 %v3998, %v3999
        %v4001 = vmul.f32 %v3995, %v3995
        %v4002 = vsel %vm465, %v4001, 0.0
        %4003 = vadd.xlane.f32.xlu0 %v4002
        %v4004 = vpop.xlane.xlu0 %4003
        %v4005 = vmul.f32 %v4004, %v3999
        %v4006 = vmul.f32 %v4000, %v4000
        %v4007 = vsub.f32 %v4005, %v4006
        %v4008 = vmax.f32 %v4007, 0.0
        %v4009 = vsub.f32 %v3995, %v4000
        %v4010 = vadd.f32 %v4008, 1e-05
        %v4011 = vrsqrt.pop %v4010
        %v4012 = vmul.f32 %v4009, %v4011
        %v4013 = vld [vmem:[%s6] sm:$0x1]
        %v4015 = vlaneseq
        %v4016 = vshrl.u32 %v4015, 7
        %v4017 = vsub.s32 0, %v4016
        %v4018 = vrot.slane %v4013, %v4017
        %v4020 = vmul.f32 %v4012, %v4018
        %v4021 = vld [vmem:[%s7] sm:$0x1]
        %v4023 = vlaneseq
        %v4024 = vshrl.u32 %v4023, 7
        %v4025 = vsub.s32 0, %v4024
        %v4026 = vrot.slane %v4021, %v4025
        %v4028 = vadd.f32 %v4020, %v4026
        %v4029 = vld [vmem:[%s8] sm:$0xff]
        %v4030 = vld [vmem:[%s8 + $0x8] sm:$0xff]
        %v4031 = vld [vmem:[%s8 + $0x10] sm:$0xff]
        %v4032 = vld [vmem:[%s8 + $0x18] sm:$0xff]
        %v4033 = vld [vmem:[%s9] sm:$0x1]
        %v4035 = vlaneseq
        %v4036 = vshrl.u32 %v4035, 7
        %v4037 = vsub.s32 0, %v4036
        %v4038 = vrot.slane %v4033, %v4037
        %v4041 = vsel %vm465, %v4028, 0
        %4043 = vmatprep.subr.mxu0 0.0
        %v4044 = vand.u32 %v4029, 4294901760
        %4045 = vmatpush1.msra.mxu0 %v4044
        %4046 = vmatprep.subr.mxu0 0.0
        %v4047 = vand.u32 %v4030, 4294901760
        %4048 = vmatpush1.msra.mxu0 %v4047
        %4049 = vmatprep.subr.mxu0 0.0
        %v4050 = vand.u32 %v4031, 4294901760
        %4051 = vmatpush1.msra.mxu0 %v4050
        %4052 = vmatprep.subr.mxu0 0.0
        %v4053 = vand.u32 %v4032, 4294901760
        %4054 = vmatpush1.msra.mxu0 %v4053
        %4055 = vmatprep.subr.mxu0 0.0
        %4056 = vmatpush1.msra.mxu0 0.0
        %4057 = vmatprep.subr.mxu0 0.0
        %4058 = vmatpush1.msra.mxu0 0.0
        %4059 = vmatprep.subr.mxu0 0.0
        %4060 = vmatpush1.msra.mxu0 0.0
        %4061 = vmatprep.subr.mxu0 0.0
        %4062 = vmatpush1.msra.mxu0 0.0
        %4063 = vmatprep.subr.mxu0 0.0
        %4064 = vmatpush1.msra.mxu0 0.0
        %4065 = vmatprep.subr.mxu0 0.0
        %4066 = vmatpush1.msra.mxu0 0.0
        %4067 = vmatprep.subr.mxu0 0.0
        %4068 = vmatpush1.msra.mxu0 0.0
        %4069 = vmatprep.subr.mxu0 0.0
        %4070 = vmatpush1.msra.mxu0 0.0
        %4071 = vmatprep.subr.mxu0 0.0
        %4072 = vmatpush1.msra.mxu0 0.0
        %4073 = vmatprep.subr.mxu0 0.0
        %4074 = vmatpush1.msra.mxu0 0.0
        %4075 = vmatprep.subr.mxu0 0.0
        %4076 = vmatpush1.msra.mxu0 0.0
        %4077 = vmatprep.subr.mxu0 0.0
        %4078 = vmatpush1.msra.mxu0 0.0
        %4079 = vmatprep.subr.mxu0 0.0
        %4080 = vmatpush1.msra.mxu0 0.0
        %4081 = vmatprep.subr.mxu0 0.0
        %4082 = vmatpush1.msra.mxu0 0.0
        %4083 = vmatprep.subr.mxu0 0.0
        %4084 = vmatpush1.msra.mxu0 0.0
        %4085 = vmatprep.subr.mxu0 0.0
        %4086 = vmatpush1.msra.mxu0 0.0
        %4087 = vmatprep.subr.mxu0 0.0
        %4088 = vmatpush1.msra.mxu0 0.0
        %4089 = vmatprep.subr.mxu0 0.0
        %4090 = vmatpush1.msra.mxu0 0.0
        %4091 = vmatprep.subr.mxu0 0.0
        %4092 = vmatpush1.msra.mxu0 0.0
        %4093 = vmatprep.subr.mxu0 0.0
        %4094 = vmatpush1.msra.mxu0 0.0
        %4095 = vmatprep.subr.mxu0 0.0
        %4096 = vmatpush1.msra.mxu0 0.0
        %4097 = vmatprep.subr.mxu0 0.0
        %4098 = vmatpush1.msra.mxu0 0.0
        %4099 = vmatprep.subr.mxu0 0.0
        %4100 = vmatpush1.msra.mxu0 0.0
        %4101 = vmatprep.subr.mxu0 0.0
        %4102 = vmatpush1.msra.mxu0 0.0
        %4103 = vmatprep.subr.mxu0 0.0
        %4104 = vmatpush1.msra.mxu0 0.0
        %4105 = vmatprep.subr.mxu0 0.0
        %4106 = vmatpush1.msra.mxu0 0.0
        %4107 = vmatprep.subr.mxu0 0.0
        %4108 = vmatpush1.msra.mxu0 0.0
        %4109 = vmatprep.subr.mxu0 0.0
        %4110 = vmatpush1.msra.mxu0 0.0
        %4111 = vmatprep.mubr.f32.mxu0 0.0
        %v4112 = vand.u32 %v4041, 4294901760
        %v4113 = vsub.f32 %v4041, %v4112
        %v4114 = vand.u32 %v4113, 4294901760
        %v4115 = vsub.f32 %v4113, %v4114
        %v4116 = vand.u32 %v4115, 4294901760
        %4117 = vmatmul.mubr.f32.gmra.mrb[0].mxu0 %v4116
        %v4118 = vpop.f32.mrb[0].mxu0
        %v4119 = vadd.f32 %v4038, %v4118
        %v4120 = vpop.f32.mrb[0].mxu0
        %4121 = vdwg.mxu0
        %4122 = vmatprep.subr.mxu0 0.0
        %v4123 = vand.u32 %v4029, 4294901760
        %v4124 = vsub.f32 %v4029, %v4123
        %v4125 = vand.u32 %v4124, 4294901760
        %v4126 = vsub.f32 %v4124, %v4125
        %v4127 = vand.u32 %v4126, 4294901760
        %4128 = vmatpush1.msra.mxu0 %v4127
        %4129 = vmatprep.subr.mxu0 0.0
        %v4130 = vand.u32 %v4030, 4294901760
        %v4131 = vsub.f32 %v4030, %v4130
        %v4132 = vand.u32 %v4131, 4294901760
        %v4133 = vsub.f32 %v4131, %v4132
        %v4134 = vand.u32 %v4133, 4294901760
        %4135 = vmatpush1.msra.mxu0 %v4134
        %4136 = vmatprep.subr.mxu0 0.0
        %v4137 = vand.u32 %v4031, 4294901760
        %v4138 = vsub.f32 %v4031, %v4137
        %v4139 = vand.u32 %v4138, 4294901760
        %v4140 = vsub.f32 %v4138, %v4139
        %v4141 = vand.u32 %v4140, 4294901760
        %4142 = vmatpush1.msra.mxu0 %v4141
        %4143 = vmatprep.subr.mxu0 0.0
        %v4144 = vand.u32 %v4032, 4294901760
        %v4145 = vsub.f32 %v4032, %v4144
        %v4146 = vand.u32 %v4145, 4294901760
        %v4147 = vsub.f32 %v4145, %v4146
        %v4148 = vand.u32 %v4147, 4294901760
        %4149 = vmatpush1.msra.mxu0 %v4148
        %4150 = vmatprep.subr.mxu0 0.0
        %4151 = vmatpush1.msra.mxu0 0.0
        %4152 = vmatprep.subr.mxu0 0.0
        %4153 = vmatpush1.msra.mxu0 0.0
        %4154 = vmatprep.subr.mxu0 0.0
        %4155 = vmatpush1.msra.mxu0 0.0
        %4156 = vmatprep.subr.mxu0 0.0
        %4157 = vmatpush1.msra.mxu0 0.0
        %4158 = vmatprep.subr.mxu0 0.0
        %4159 = vmatpush1.msra.mxu0 0.0
        %4160 = vmatprep.subr.mxu0 0.0
        %4161 = vmatpush1.msra.mxu0 0.0
        %4162 = vmatprep.subr.mxu0 0.0
        %4163 = vmatpush1.msra.mxu0 0.0
        %4164 = vmatprep.subr.mxu0 0.0
        %4165 = vmatpush1.msra.mxu0 0.0
        %4166 = vmatprep.subr.mxu0 0.0
        %4167 = vmatpush1.msra.mxu0 0.0
        %4168 = vmatprep.subr.mxu0 0.0
        %4169 = vmatpush1.msra.mxu0 0.0
        %4170 = vmatprep.subr.mxu0 0.0
        %4171 = vmatpush1.msra.mxu0 0.0
        %4172 = vmatprep.subr.mxu0 0.0
        %4173 = vmatpush1.msra.mxu0 0.0
        %4174 = vmatprep.subr.mxu0 0.0
        %4175 = vmatpush1.msra.mxu0 0.0
        %4176 = vmatprep.subr.mxu0 0.0
        %4177 = vmatpush1.msra.mxu0 0.0
        %4178 = vmatprep.subr.mxu0 0.0
        %4179 = vmatpush1.msra.mxu0 0.0
        %4180 = vmatprep.subr.mxu0 0.0
        %4181 = vmatpush1.msra.mxu0 0.0
        %4182 = vmatprep.subr.mxu0 0.0
        %4183 = vmatpush1.msra.mxu0 0.0
        %4184 = vmatprep.subr.mxu0 0.0
        %4185 = vmatpush1.msra.mxu0 0.0
        %4186 = vmatprep.subr.mxu0 0.0
        %4187 = vmatpush1.msra.mxu0 0.0
        %4188 = vmatprep.subr.mxu0 0.0
        %4189 = vmatpush1.msra.mxu0 0.0
        %4190 = vmatprep.subr.mxu0 0.0
        %4191 = vmatpush1.msra.mxu0 0.0
        %4192 = vmatprep.subr.mxu0 0.0
        %4193 = vmatpush1.msra.mxu0 0.0
        %4194 = vmatprep.subr.mxu0 0.0
        %4195 = vmatpush1.msra.mxu0 0.0
        %4196 = vmatprep.subr.mxu0 0.0
        %4197 = vmatpush1.msra.mxu0 0.0
        %4198 = vmatprep.subr.mxu0 0.0
        %4199 = vmatpush1.msra.mxu0 0.0
        %4200 = vmatprep.subr.mxu0 0.0
        %4201 = vmatpush1.msra.mxu0 0.0
        %4202 = vmatprep.subr.mxu0 0.0
        %4203 = vmatpush1.msra.mxu0 0.0
        %4204 = vmatprep.subr.mxu0 0.0
        %4205 = vmatpush1.msra.mxu0 0.0
        %4206 = vmatprep.mubr.f32.mxu0 0.0
        %v4207 = vand.u32 %v4041, 4294901760
        %4208 = vmatmul.mubr.f32.gmra.mrb[0].mxu0 %v4207
        %v4209 = vpop.f32.mrb[0].mxu0
        %v4210 = vadd.f32 %v4119, %v4209
        %v4211 = vpop.f32.mrb[0].mxu0
        %4212 = vdwg.mxu0
        %4213 = vmatprep.subr.mxu0 0.0
        %v4214 = vand.u32 %v4029, 4294901760
        %v4215 = vsub.f32 %v4029, %v4214
        %4216 = vmatpush1.msra.mxu0 %v4215
        %4217 = vmatprep.subr.mxu0 0.0
        %v4218 = vand.u32 %v4030, 4294901760
        %v4219 = vsub.f32 %v4030, %v4218
        %4220 = vmatpush1.msra.mxu0 %v4219
        %4221 = vmatprep.subr.mxu0 0.0
        %v4222 = vand.u32 %v4031, 4294901760
        %v4223 = vsub.f32 %v4031, %v4222
        %4224 = vmatpush1.msra.mxu0 %v4223
        %4225 = vmatprep.subr.mxu0 0.0
        %v4226 = vand.u32 %v4032, 4294901760
        %v4227 = vsub.f32 %v4032, %v4226
        %4228 = vmatpush1.msra.mxu0 %v4227
        %4229 = vmatprep.subr.mxu0 0.0
        %4230 = vmatpush1.msra.mxu0 0.0
        %4231 = vmatprep.subr.mxu0 0.0
        %4232 = vmatpush1.msra.mxu0 0.0
        %4233 = vmatprep.subr.mxu0 0.0
        %4234 = vmatpush1.msra.mxu0 0.0
        %4235 = vmatprep.subr.mxu0 0.0
        %4236 = vmatpush1.msra.mxu0 0.0
        %4237 = vmatprep.subr.mxu0 0.0
        %4238 = vmatpush1.msra.mxu0 0.0
        %4239 = vmatprep.subr.mxu0 0.0
        %4240 = vmatpush1.msra.mxu0 0.0
        %4241 = vmatprep.subr.mxu0 0.0
        %4242 = vmatpush1.msra.mxu0 0.0
        %4243 = vmatprep.subr.mxu0 0.0
        %4244 = vmatpush1.msra.mxu0 0.0
        %4245 = vmatprep.subr.mxu0 0.0
        %4246 = vmatpush1.msra.mxu0 0.0
        %4247 = vmatprep.subr.mxu0 0.0
        %4248 = vmatpush1.msra.mxu0 0.0
        %4249 = vmatprep.subr.mxu0 0.0
        %4250 = vmatpush1.msra.mxu0 0.0
        %4251 = vmatprep.subr.mxu0 0.0
        %4252 = vmatpush1.msra.mxu0 0.0
        %4253 = vmatprep.subr.mxu0 0.0
        %4254 = vmatpush1.msra.mxu0 0.0
        %4255 = vmatprep.subr.mxu0 0.0
        %4256 = vmatpush1.msra.mxu0 0.0
        %4257 = vmatprep.subr.mxu0 0.0
        %4258 = vmatpush1.msra.mxu0 0.0
        %4259 = vmatprep.subr.mxu0 0.0
        %4260 = vmatpush1.msra.mxu0 0.0
        %4261 = vmatprep.subr.mxu0 0.0
        %4262 = vmatpush1.msra.mxu0 0.0
        %4263 = vmatprep.subr.mxu0 0.0
        %4264 = vmatpush1.msra.mxu0 0.0
        %4265 = vmatprep.subr.mxu0 0.0
        %4266 = vmatpush1.msra.mxu0 0.0
        %4267 = vmatprep.subr.mxu0 0.0
        %4268 = vmatpush1.msra.mxu0 0.0
        %4269 = vmatprep.subr.mxu0 0.0
        %4270 = vmatpush1.msra.mxu0 0.0
        %4271 = vmatprep.subr.mxu0 0.0
        %4272 = vmatpush1.msra.mxu0 0.0
        %4273 = vmatprep.subr.mxu0 0.0
        %4274 = vmatpush1.msra.mxu0 0.0
        %4275 = vmatprep.subr.mxu0 0.0
        %4276 = vmatpush1.msra.mxu0 0.0
        %4277 = vmatprep.subr.mxu0 0.0
        %4278 = vmatpush1.msra.mxu0 0.0
        %4279 = vmatprep.subr.mxu0 0.0
        %4280 = vmatpush1.msra.mxu0 0.0
        %4281 = vmatprep.subr.mxu0 0.0
        %4282 = vmatpush1.msra.mxu0 0.0
        %4283 = vmatprep.subr.mxu0 0.0
        %4284 = vmatpush1.msra.mxu0 0.0
        %4285 = vmatprep.mubr.f32.mxu0 0.0
        %v4286 = vand.u32 %v4041, 4294901760
        %v4287 = vsub.f32 %v4041, %v4286
        %4288 = vmatmul.mubr.f32.gmra.mrb[0].mxu0 %v4287
        %v4289 = vpop.f32.mrb[0].mxu0
        %v4290 = vadd.f32 %v4210, %v4289
        %v4291 = vpop.f32.mrb[0].mxu0
        %4292 = vdwg.mxu0
        %4293 = vmatprep.subr.mxu0 0.0
        %v4294 = vand.u32 %v4029, 4294901760
        %4295 = vmatpush1.msra.mxu0 %v4294
        %4296 = vmatprep.subr.mxu0 0.0
        %v4297 = vand.u32 %v4030, 4294901760
        %4298 = vmatpush1.msra.mxu0 %v4297
        %4299 = vmatprep.subr.mxu0 0.0
        %v4300 = vand.u32 %v4031, 4294901760
        %4301 = vmatpush1.msra.mxu0 %v4300
        %4302 = vmatprep.subr.mxu0 0.0
        %v4303 = vand.u32 %v4032, 4294901760
        %4304 = vmatpush1.msra.mxu0 %v4303
        %4305 = vmatprep.subr.mxu0 0.0
        %4306 = vmatpush1.msra.mxu0 0.0
        %4307 = vmatprep.subr.mxu0 0.0
        %4308 = vmatpush1.msra.mxu0 0.0
        %4309 = vmatprep.subr.mxu0 0.0
        %4310 = vmatpush1.msra.mxu0 0.0
        %4311 = vmatprep.subr.mxu0 0.0
        %4312 = vmatpush1.msra.mxu0 0.0
        %4313 = vmatprep.subr.mxu0 0.0
        %4314 = vmatpush1.msra.mxu0 0.0
        %4315 = vmatprep.subr.mxu0 0.0
        %4316 = vmatpush1.msra.mxu0 0.0
        %4317 = vmatprep.subr.mxu0 0.0
        %4318 = vmatpush1.msra.mxu0 0.0
        %4319 = vmatprep.subr.mxu0 0.0
        %4320 = vmatpush1.msra.mxu0 0.0
        %4321 = vmatprep.subr.mxu0 0.0
        %4322 = vmatpush1.msra.mxu0 0.0
        %4323 = vmatprep.subr.mxu0 0.0
        %4324 = vmatpush1.msra.mxu0 0.0
        %4325 = vmatprep.subr.mxu0 0.0
        %4326 = vmatpush1.msra.mxu0 0.0
        %4327 = vmatprep.subr.mxu0 0.0
        %4328 = vmatpush1.msra.mxu0 0.0
        %4329 = vmatprep.subr.mxu0 0.0
        %4330 = vmatpush1.msra.mxu0 0.0
        %4331 = vmatprep.subr.mxu0 0.0
        %4332 = vmatpush1.msra.mxu0 0.0
        %4333 = vmatprep.subr.mxu0 0.0
        %4334 = vmatpush1.msra.mxu0 0.0
        %4335 = vmatprep.subr.mxu0 0.0
        %4336 = vmatpush1.msra.mxu0 0.0
        %4337 = vmatprep.subr.mxu0 0.0
        %4338 = vmatpush1.msra.mxu0 0.0
        %4339 = vmatprep.subr.mxu0 0.0
        %4340 = vmatpush1.msra.mxu0 0.0
        %4341 = vmatprep.subr.mxu0 0.0
        %4342 = vmatpush1.msra.mxu0 0.0
        %4343 = vmatprep.subr.mxu0 0.0
        %4344 = vmatpush1.msra.mxu0 0.0
        %4345 = vmatprep.subr.mxu0 0.0
        %4346 = vmatpush1.msra.mxu0 0.0
        %4347 = vmatprep.subr.mxu0 0.0
        %4348 = vmatpush1.msra.mxu0 0.0
        %4349 = vmatprep.subr.mxu0 0.0
        %4350 = vmatpush1.msra.mxu0 0.0
        %4351 = vmatprep.subr.mxu0 0.0
        %4352 = vmatpush1.msra.mxu0 0.0
        %4353 = vmatprep.subr.mxu0 0.0
        %4354 = vmatpush1.msra.mxu0 0.0
        %4355 = vmatprep.subr.mxu0 0.0
        %4356 = vmatpush1.msra.mxu0 0.0
        %4357 = vmatprep.subr.mxu0 0.0
        %4358 = vmatpush1.msra.mxu0 0.0
        %4359 = vmatprep.subr.mxu0 0.0
        %4360 = vmatpush1.msra.mxu0 0.0
        %4361 = vmatprep.mubr.f32.mxu0 0.0
        %v4362 = vand.u32 %v4041, 4294901760
        %v4363 = vsub.f32 %v4041, %v4362
        %v4364 = vand.u32 %v4363, 4294901760
        %4365 = vmatmul.mubr.f32.gmra.mrb[0].mxu0 %v4364
        %v4366 = vpop.f32.mrb[0].mxu0
        %v4367 = vadd.f32 %v4290, %v4366
        %v4368 = vpop.f32.mrb[0].mxu0
        %4369 = vdwg.mxu0
        %4370 = vmatprep.subr.mxu0 0.0
        %v4371 = vand.u32 %v4029, 4294901760
        %v4372 = vsub.f32 %v4029, %v4371
        %v4373 = vand.u32 %v4372, 4294901760
        %4374 = vmatpush1.msra.mxu0 %v4373
        %4375 = vmatprep.subr.mxu0 0.0
        %v4376 = vand.u32 %v4030, 4294901760
        %v4377 = vsub.f32 %v4030, %v4376
        %v4378 = vand.u32 %v4377, 4294901760
        %4379 = vmatpush1.msra.mxu0 %v4378
        %4380 = vmatprep.subr.mxu0 0.0
        %v4381 = vand.u32 %v4031, 4294901760
        %v4382 = vsub.f32 %v4031, %v4381
        %v4383 = vand.u32 %v4382, 4294901760
        %4384 = vmatpush1.msra.mxu0 %v4383
        %4385 = vmatprep.subr.mxu0 0.0
        %v4386 = vand.u32 %v4032, 4294901760
        %v4387 = vsub.f32 %v4032, %v4386
        %v4388 = vand.u32 %v4387, 4294901760
        %4389 = vmatpush1.msra.mxu0 %v4388
        %4390 = vmatprep.subr.mxu0 0.0
        %4391 = vmatpush1.msra.mxu0 0.0
        %4392 = vmatprep.subr.mxu0 0.0
        %4393 = vmatpush1.msra.mxu0 0.0
        %4394 = vmatprep.subr.mxu0 0.0
        %4395 = vmatpush1.msra.mxu0 0.0
        %4396 = vmatprep.subr.mxu0 0.0
        %4397 = vmatpush1.msra.mxu0 0.0
        %4398 = vmatprep.subr.mxu0 0.0
        %4399 = vmatpush1.msra.mxu0 0.0
        %4400 = vmatprep.subr.mxu0 0.0
        %4401 = vmatpush1.msra.mxu0 0.0
        %4402 = vmatprep.subr.mxu0 0.0
        %4403 = vmatpush1.msra.mxu0 0.0
        %4404 = vmatprep.subr.mxu0 0.0
        %4405 = vmatpush1.msra.mxu0 0.0
        %4406 = vmatprep.subr.mxu0 0.0
        %4407 = vmatpush1.msra.mxu0 0.0
        %4408 = vmatprep.subr.mxu0 0.0
        %4409 = vmatpush1.msra.mxu0 0.0
        %4410 = vmatprep.subr.mxu0 0.0
        %4411 = vmatpush1.msra.mxu0 0.0
        %4412 = vmatprep.subr.mxu0 0.0
        %4413 = vmatpush1.msra.mxu0 0.0
        %4414 = vmatprep.subr.mxu0 0.0
        %4415 = vmatpush1.msra.mxu0 0.0
        %4416 = vmatprep.subr.mxu0 0.0
        %4417 = vmatpush1.msra.mxu0 0.0
        %4418 = vmatprep.subr.mxu0 0.0
        %4419 = vmatpush1.msra.mxu0 0.0
        %4420 = vmatprep.subr.mxu0 0.0
        %4421 = vmatpush1.msra.mxu0 0.0
        %4422 = vmatprep.subr.mxu0 0.0
        %4423 = vmatpush1.msra.mxu0 0.0
        %4424 = vmatprep.subr.mxu0 0.0
        %4425 = vmatpush1.msra.mxu0 0.0
        %4426 = vmatprep.subr.mxu0 0.0
        %4427 = vmatpush1.msra.mxu0 0.0
        %4428 = vmatprep.subr.mxu0 0.0
        %4429 = vmatpush1.msra.mxu0 0.0
        %4430 = vmatprep.subr.mxu0 0.0
        %4431 = vmatpush1.msra.mxu0 0.0
        %4432 = vmatprep.subr.mxu0 0.0
        %4433 = vmatpush1.msra.mxu0 0.0
        %4434 = vmatprep.subr.mxu0 0.0
        %4435 = vmatpush1.msra.mxu0 0.0
        %4436 = vmatprep.subr.mxu0 0.0
        %4437 = vmatpush1.msra.mxu0 0.0
        %4438 = vmatprep.subr.mxu0 0.0
        %4439 = vmatpush1.msra.mxu0 0.0
        %4440 = vmatprep.subr.mxu0 0.0
        %4441 = vmatpush1.msra.mxu0 0.0
        %4442 = vmatprep.subr.mxu0 0.0
        %4443 = vmatpush1.msra.mxu0 0.0
        %4444 = vmatprep.subr.mxu0 0.0
        %4445 = vmatpush1.msra.mxu0 0.0
        %4446 = vmatprep.mubr.f32.mxu0 0.0
        %v4447 = vand.u32 %v4041, 4294901760
        %4448 = vmatmul.mubr.f32.gmra.mrb[0].mxu0 %v4447
        %v4449 = vpop.f32.mrb[0].mxu0
        %v4450 = vadd.f32 %v4367, %v4449
        %v4451 = vpop.f32.mrb[0].mxu0
        %4452 = vdwg.mxu0
        %4453 = vmatprep.subr.mxu0 0.0
        %v4454 = vand.u32 %v4029, 4294901760
        %4455 = vmatpush1.msra.mxu0 %v4454
        %4456 = vmatprep.subr.mxu0 0.0
        %v4457 = vand.u32 %v4030, 4294901760
        %4458 = vmatpush1.msra.mxu0 %v4457
        %4459 = vmatprep.subr.mxu0 0.0
        %v4460 = vand.u32 %v4031, 4294901760
        %4461 = vmatpush1.msra.mxu0 %v4460
        %4462 = vmatprep.subr.mxu0 0.0
        %v4463 = vand.u32 %v4032, 4294901760
        %4464 = vmatpush1.msra.mxu0 %v4463
        %4465 = vmatprep.subr.mxu0 0.0
        %4466 = vmatpush1.msra.mxu0 0.0
        %4467 = vmatprep.subr.mxu0 0.0
        %4468 = vmatpush1.msra.mxu0 0.0
        %4469 = vmatprep.subr.mxu0 0.0
        %4470 = vmatpush1.msra.mxu0 0.0
        %4471 = vmatprep.subr.mxu0 0.0
        %4472 = vmatpush1.msra.mxu0 0.0
        %4473 = vmatprep.subr.mxu0 0.0
        %4474 = vmatpush1.msra.mxu0 0.0
        %4475 = vmatprep.subr.mxu0 0.0
        %4476 = vmatpush1.msra.mxu0 0.0
        %4477 = vmatprep.subr.mxu0 0.0
        %4478 = vmatpush1.msra.mxu0 0.0
        %4479 = vmatprep.subr.mxu0 0.0
        %4480 = vmatpush1.msra.mxu0 0.0
        %4481 = vmatprep.subr.mxu0 0.0
        %4482 = vmatpush1.msra.mxu0 0.0
        %4483 = vmatprep.subr.mxu0 0.0
        %4484 = vmatpush1.msra.mxu0 0.0
        %4485 = vmatprep.subr.mxu0 0.0
        %4486 = vmatpush1.msra.mxu0 0.0
        %4487 = vmatprep.subr.mxu0 0.0
        %4488 = vmatpush1.msra.mxu0 0.0
        %4489 = vmatprep.subr.mxu0 0.0
        %4490 = vmatpush1.msra.mxu0 0.0
        %4491 = vmatprep.subr.mxu0 0.0
        %4492 = vmatpush1.msra.mxu0 0.0
        %4493 = vmatprep.subr.mxu0 0.0
        %4494 = vmatpush1.msra.mxu0 0.0
        %4495 = vmatprep.subr.mxu0 0.0
        %4496 = vmatpush1.msra.mxu0 0.0
        %4497 = vmatprep.subr.mxu0 0.0
        %4498 = vmatpush1.msra.mxu0 0.0
        %4499 = vmatprep.subr.mxu0 0.0
        %4500 = vmatpush1.msra.mxu0 0.0
        %4501 = vmatprep.subr.mxu0 0.0
        %4502 = vmatpush1.msra.mxu0 0.0
        %4503 = vmatprep.subr.mxu0 0.0
        %4504 = vmatpush1.msra.mxu0 0.0
        %4505 = vmatprep.subr.mxu0 0.0
        %4506 = vmatpush1.msra.mxu0 0.0
        %4507 = vmatprep.subr.mxu0 0.0
        %4508 = vmatpush1.msra.mxu0 0.0
        %4509 = vmatprep.subr.mxu0 0.0
        %4510 = vmatpush1.msra.mxu0 0.0
        %4511 = vmatprep.subr.mxu0 0.0
        %4512 = vmatpush1.msra.mxu0 0.0
        %4513 = vmatprep.subr.mxu0 0.0
        %4514 = vmatpush1.msra.mxu0 0.0
        %4515 = vmatprep.subr.mxu0 0.0
        %4516 = vmatpush1.msra.mxu0 0.0
        %4517 = vmatprep.subr.mxu0 0.0
        %4518 = vmatpush1.msra.mxu0 0.0
        %4519 = vmatprep.subr.mxu0 0.0
        %4520 = vmatpush1.msra.mxu0 0.0
        %4521 = vmatprep.mubr.f32.mxu0 0.0
        %v4522 = vand.u32 %v4041, 4294901760
        %4523 = vmatmul.mubr.f32.gmra.mrb[0].mxu0 %v4522
        %v4524 = vpop.f32.mrb[0].mxu0
        %v4525 = vadd.f32 %v4450, %v4524
        %v4526 = vpop.f32.mrb[0].mxu0
        %4527 = vdwg.mxu0
        %v4528 = vmul.f32 %v4525, 0.5
        %v4529 = vmul.f32 %v4525, 0.70710677
        %v4530 = verf.f32.pop %v4529
        %v4531 = vadd.f32 %v4530, 1.0
        %v4532 = vmul.f32 %v4528, %v4531
        %v4533 = vld [vmem:[%s10] sm:$0xff]
        %v4534 = vld [vmem:[%s10 + $0x8] sm:$0xff]
        %v4535 = vld [vmem:[%s10 + $0x10] sm:$0xff]
        %v4536 = vld [vmem:[%s10 + $0x18] sm:$0xff]
        %v4537 = vld [vmem:[%s10 + $0x20] sm:$0xff]
        %v4538 = vld [vmem:[%s10 + $0x28] sm:$0xff]
        %v4539 = vld [vmem:[%s10 + $0x30] sm:$0xff]
        %v4540 = vld [vmem:[%s10 + $0x38] sm:$0xff]
        %v4541 = vld [vmem:[%s10 + $0x40] sm:$0xff]
        %v4542 = vld [vmem:[%s10 + $0x48] sm:$0xff]
        %v4543 = vld [vmem:[%s10 + $0x50] sm:$0xff]
        %v4544 = vld [vmem:[%s10 + $0x58] sm:$0xff]
        %v4545 = vld [vmem:[%s10 + $0x60] sm:$0xff]
        %v4546 = vld [vmem:[%s10 + $0x68] sm:$0xff]
        %v4547 = vld [vmem:[%s10 + $0x70] sm:$0xff]
        %v4548 = vld [vmem:[%s10 + $0x78] sm:$0xff]
        %v4549 = vld [vmem:[%s11] sm:$0x1]
        %v4551 = vlaneseq
        %v4552 = vshrl.u32 %v4551, 7
        %v4553 = vsub.s32 0, %v4552
        %v4554 = vrot.slane %v4549, %v4553
        %4556 = vmatprep.subr.mxu0 0.0
        %v4557 = vand.u32 %v4533, 4294901760
        %4558 = vmatpush1.msra.mxu0 %v4557
        %4559 = vmatprep.subr.mxu0 0.0
        %v4560 = vand.u32 %v4534, 4294901760
        %4561 = vmatpush1.msra.mxu0 %v4560
        %4562 = vmatprep.subr.mxu0 0.0
        %v4563 = vand.u32 %v4535, 4294901760
        %4564 = vmatpush1.msra.mxu0 %v4563
        %4565 = vmatprep.subr.mxu0 0.0
        %v4566 = vand.u32 %v4536, 4294901760
        %4567 = vmatpush1.msra.mxu0 %v4566
        %4568 = vmatprep.subr.mxu0 0.0
        %v4569 = vand.u32 %v4537, 4294901760
        %4570 = vmatpush1.msra.mxu0 %v4569
        %4571 = vmatprep.subr.mxu0 0.0
        %v4572 = vand.u32 %v4538, 4294901760
        %4573 = vmatpush1.msra.mxu0 %v4572
        %4574 = vmatprep.subr.mxu0 0.0
        %v4575 = vand.u32 %v4539, 4294901760
        %4576 = vmatpush1.msra.mxu0 %v4575
        %4577 = vmatprep.subr.mxu0 0.0
        %v4578 = vand.u32 %v4540, 4294901760
        %4579 = vmatpush1.msra.mxu0 %v4578
        %4580 = vmatprep.subr.mxu0 0.0
        %v4581 = vand.u32 %v4541, 4294901760
        %4582 = vmatpush1.msra.mxu0 %v4581
        %4583 = vmatprep.subr.mxu0 0.0
        %v4584 = vand.u32 %v4542, 4294901760
        %4585 = vmatpush1.msra.mxu0 %v4584
        %4586 = vmatprep.subr.mxu0 0.0
        %v4587 = vand.u32 %v4543, 4294901760
        %4588 = vmatpush1.msra.mxu0 %v4587
        %4589 = vmatprep.subr.mxu0 0.0
        %v4590 = vand.u32 %v4544, 4294901760
        %4591 = vmatpush1.msra.mxu0 %v4590
        %4592 = vmatprep.subr.mxu0 0.0
        %v4593 = vand.u32 %v4545, 4294901760
        %4594 = vmatpush1.msra.mxu0 %v4593
        %4595 = vmatprep.subr.mxu0 0.0
        %v4596 = vand.u32 %v4546, 4294901760
        %4597 = vmatpush1.msra.mxu0 %v4596
        %4598 = vmatprep.subr.mxu0 0.0
        %v4599 = vand.u32 %v4547, 4294901760
        %4600 = vmatpush1.msra.mxu0 %v4599
        %4601 = vmatprep.subr.mxu0 0.0
        %v4602 = vand.u32 %v4548, 4294901760
        %4603 = vmatpush1.msra.mxu0 %v4602
        %4604 = vmatprep.subr.mxu0 0.0
        %4605 = vmatpush1.msra.mxu0 0.0
        %4606 = vmatprep.subr.mxu0 0.0
        %4607 = vmatpush1.msra.mxu0 0.0
        %4608 = vmatprep.subr.mxu0 0.0
        %4609 = vmatpush1.msra.mxu0 0.0
        %4610 = vmatprep.subr.mxu0 0.0
        %4611 = vmatpush1.msra.mxu0 0.0
        %4612 = vmatprep.subr.mxu0 0.0
        %4613 = vmatpush1.msra.mxu0 0.0
        %4614 = vmatprep.subr.mxu0 0.0
        %4615 = vmatpush1.msra.mxu0 0.0
        %4616 = vmatprep.subr.mxu0 0.0
        %4617 = vmatpush1.msra.mxu0 0.0
        %4618 = vmatprep.subr.mxu0 0.0
        %4619 = vmatpush1.msra.mxu0 0.0
        %4620 = vmatprep.subr.mxu0 0.0
        %4621 = vmatpush1.msra.mxu0 0.0
        %4622 = vmatprep.subr.mxu0 0.0
        %4623 = vmatpush1.msra.mxu0 0.0
        %4624 = vmatprep.subr.mxu0 0.0
        %4625 = vmatpush1.msra.mxu0 0.0
        %4626 = vmatprep.subr.mxu0 0.0
        %4627 = vmatpush1.msra.mxu0 0.0
        %4628 = vmatprep.subr.mxu0 0.0
        %4629 = vmatpush1.msra.mxu0 0.0
        %4630 = vmatprep.subr.mxu0 0.0
        %4631 = vmatpush1.msra.mxu0 0.0
        %4632 = vmatprep.subr.mxu0 0.0
        %4633 = vmatpush1.msra.mxu0 0.0
        %4634 = vmatprep.subr.mxu0 0.0
        %4635 = vmatpush1.msra.mxu0 0.0
        %4636 = vmatprep.mubr.f32.mxu0 0.0
        %v4637 = vand.u32 %v4532, 4294901760
        %v4638 = vsub.f32 %v4532, %v4637
        %v4639 = vand.u32 %v4638, 4294901760
        %v4640 = vsub.f32 %v4638, %v4639
        %v4641 = vand.u32 %v4640, 4294901760
        %4642 = vmatmul.mubr.f32.gmra.mrb[0].mxu0 %v4641
        %v4643 = vpop.f32.mrb[0].mxu0
        %v4644 = vadd.f32 %v4554, %v4643
        %v4645 = vpop.f32.mrb[0].mxu0
        %4646 = vdwg.mxu0
        %4647 = vmatprep.subr.mxu0 0.0
        %v4648 = vand.u32 %v4533, 4294901760
        %v4649 = vsub.f32 %v4533, %v4648
        %v4650 = vand.u32 %v4649, 4294901760
        %v4651 = vsub.f32 %v4649, %v4650
        %v4652 = vand.u32 %v4651, 4294901760
        %4653 = vmatpush1.msra.mxu0 %v4652
        %4654 = vmatprep.subr.mxu0 0.0
        %v4655 = vand.u32 %v4534, 4294901760
        %v4656 = vsub.f32 %v4534, %v4655
        %v4657 = vand.u32 %v4656, 4294901760
        %v4658 = vsub.f32 %v4656, %v4657
        %v4659 = vand.u32 %v4658, 4294901760
        %4660 = vmatpush1.msra.mxu0 %v4659
        %4661 = vmatprep.subr.mxu0 0.0
        %v4662 = vand.u32 %v4535, 4294901760
        %v4663 = vsub.f32 %v4535, %v4662
        %v4664 = vand.u32 %v4663, 4294901760
        %v4665 = vsub.f32 %v4663, %v4664
        %v4666 = vand.u32 %v4665, 4294901760
        %4667 = vmatpush1.msra.mxu0 %v4666
        %4668 = vmatprep.subr.mxu0 0.0
        %v4669 = vand.u32 %v4536, 4294901760
        %v4670 = vsub.f32 %v4536, %v4669
        %v4671 = vand.u32 %v4670, 4294901760
        %v4672 = vsub.f32 %v4670, %v4671
        %v4673 = vand.u32 %v4672, 4294901760
        %4674 = vmatpush1.msra.mxu0 %v4673
        %4675 = vmatprep.subr.mxu0 0.0
        %v4676 = vand.u32 %v4537, 4294901760
        %v4677 = vsub.f32 %v4537, %v4676
        %v4678 = vand.u32 %v4677, 4294901760
        %v4679 = vsub.f32 %v4677, %v4678
        %v4680 = vand.u32 %v4679, 4294901760
        %4681 = vmatpush1.msra.mxu0 %v4680
        %4682 = vmatprep.subr.mxu0 0.0
        %v4683 = vand.u32 %v4538, 4294901760
        %v4684 = vsub.f32 %v4538, %v4683
        %v4685 = vand.u32 %v4684, 4294901760
        %v4686 = vsub.f32 %v4684, %v4685
        %v4687 = vand.u32 %v4686, 4294901760
        %4688 = vmatpush1.msra.mxu0 %v4687
        %4689 = vmatprep.subr.mxu0 0.0
        %v4690 = vand.u32 %v4539, 4294901760
        %v4691 = vsub.f32 %v4539, %v4690
        %v4692 = vand.u32 %v4691, 4294901760
        %v4693 = vsub.f32 %v4691, %v4692
        %v4694 = vand.u32 %v4693, 4294901760
        %4695 = vmatpush1.msra.mxu0 %v4694
        %4696 = vmatprep.subr.mxu0 0.0
        %v4697 = vand.u32 %v4540, 4294901760
        %v4698 = vsub.f32 %v4540, %v4697
        %v4699 = vand.u32 %v4698, 4294901760
        %v4700 = vsub.f32 %v4698, %v4699
        %v4701 = vand.u32 %v4700, 4294901760
        %4702 = vmatpush1.msra.mxu0 %v4701
        %4703 = vmatprep.subr.mxu0 0.0
        %v4704 = vand.u32 %v4541, 4294901760
        %v4705 = vsub.f32 %v4541, %v4704
        %v4706 = vand.u32 %v4705, 4294901760
        %v4707 = vsub.f32 %v4705, %v4706
        %v4708 = vand.u32 %v4707, 4294901760
        %4709 = vmatpush1.msra.mxu0 %v4708
        %4710 = vmatprep.subr.mxu0 0.0
        %v4711 = vand.u32 %v4542, 4294901760
        %v4712 = vsub.f32 %v4542, %v4711
        %v4713 = vand.u32 %v4712, 4294901760
        %v4714 = vsub.f32 %v4712, %v4713
        %v4715 = vand.u32 %v4714, 4294901760
        %4716 = vmatpush1.msra.mxu0 %v4715
        %4717 = vmatprep.subr.mxu0 0.0
        %v4718 = vand.u32 %v4543, 4294901760
        %v4719 = vsub.f32 %v4543, %v4718
        %v4720 = vand.u32 %v4719, 4294901760
        %v4721 = vsub.f32 %v4719, %v4720
        %v4722 = vand.u32 %v4721, 4294901760
        %4723 = vmatpush1.msra.mxu0 %v4722
        %4724 = vmatprep.subr.mxu0 0.0
        %v4725 = vand.u32 %v4544, 4294901760
        %v4726 = vsub.f32 %v4544, %v4725
        %v4727 = vand.u32 %v4726, 4294901760
        %v4728 = vsub.f32 %v4726, %v4727
        %v4729 = vand.u32 %v4728, 4294901760
        %4730 = vmatpush1.msra.mxu0 %v4729
        %4731 = vmatprep.subr.mxu0 0.0
        %v4732 = vand.u32 %v4545, 4294901760
        %v4733 = vsub.f32 %v4545, %v4732
        %v4734 = vand.u32 %v4733, 4294901760
        %v4735 = vsub.f32 %v4733, %v4734
        %v4736 = vand.u32 %v4735, 4294901760
        %4737 = vmatpush1.msra.mxu0 %v4736
        %4738 = vmatprep.subr.mxu0 0.0
        %v4739 = vand.u32 %v4546, 4294901760
        %v4740 = vsub.f32 %v4546, %v4739
        %v4741 = vand.u32 %v4740, 4294901760
        %v4742 = vsub.f32 %v4740, %v4741
        %v4743 = vand.u32 %v4742, 4294901760
        %4744 = vmatpush1.msra.mxu0 %v4743
        %4745 = vmatprep.subr.mxu0 0.0
        %v4746 = vand.u32 %v4547, 4294901760
        %v4747 = vsub.f32 %v4547, %v4746
        %v4748 = vand.u32 %v4747, 4294901760
        %v4749 = vsub.f32 %v4747, %v4748
        %v4750 = vand.u32 %v4749, 4294901760
        %4751 = vmatpush1.msra.mxu0 %v4750
        %4752 = vmatprep.subr.mxu0 0.0
        %v4753 = vand.u32 %v4548, 4294901760
        %v4754 = vsub.f32 %v4548, %v4753
        %v4755 = vand.u32 %v4754, 4294901760
        %v4756 = vsub.f32 %v4754, %v4755
        %v4757 = vand.u32 %v4756, 4294901760
        %4758 = vmatpush1.msra.mxu0 %v4757
        %4759 = vmatprep.subr.mxu0 0.0
        %4760 = vmatpush1.msra.mxu0 0.0
        %4761 = vmatprep.subr.mxu0 0.0
        %4762 = vmatpush1.msra.mxu0 0.0
        %4763 = vmatprep.subr.mxu0 0.0
        %4764 = vmatpush1.msra.mxu0 0.0
        %4765 = vmatprep.subr.mxu0 0.0
        %4766 = vmatpush1.msra.mxu0 0.0
        %4767 = vmatprep.subr.mxu0 0.0
        %4768 = vmatpush1.msra.mxu0 0.0
        %4769 = vmatprep.subr.mxu0 0.0
        %4770 = vmatpush1.msra.mxu0 0.0
        %4771 = vmatprep.subr.mxu0 0.0
        %4772 = vmatpush1.msra.mxu0 0.0
        %4773 = vmatprep.subr.mxu0 0.0
        %4774 = vmatpush1.msra.mxu0 0.0
        %4775 = vmatprep.subr.mxu0 0.0
        %4776 = vmatpush1.msra.mxu0 0.0
        %4777 = vmatprep.subr.mxu0 0.0
        %4778 = vmatpush1.msra.mxu0 0.0
        %4779 = vmatprep.subr.mxu0 0.0
        %4780 = vmatpush1.msra.mxu0 0.0
        %4781 = vmatprep.subr.mxu0 0.0
        %4782 = vmatpush1.msra.mxu0 0.0
        %4783 = vmatprep.subr.mxu0 0.0
        %4784 = vmatpush1.msra.mxu0 0.0
        %4785 = vmatprep.subr.mxu0 0.0
        %4786 = vmatpush1.msra.mxu0 0.0
        %4787 = vmatprep.subr.mxu0 0.0
        %4788 = vmatpush1.msra.mxu0 0.0
        %4789 = vmatprep.subr.mxu0 0.0
        %4790 = vmatpush1.msra.mxu0 0.0
        %4791 = vmatprep.mubr.f32.mxu0 0.0
        %v4792 = vand.u32 %v4532, 4294901760
        %4793 = vmatmul.mubr.f32.gmra.mrb[0].mxu0 %v4792
        %v4794 = vpop.f32.mrb[0].mxu0
        %v4795 = vadd.f32 %v4644, %v4794
        %v4796 = vpop.f32.mrb[0].mxu0
        %4797 = vdwg.mxu0
        %4798 = vmatprep.subr.mxu0 0.0
        %v4799 = vand.u32 %v4533, 4294901760
        %v4800 = vsub.f32 %v4533, %v4799
        %4801 = vmatpush1.msra.mxu0 %v4800
        %4802 = vmatprep.subr.mxu0 0.0
        %v4803 = vand.u32 %v4534, 4294901760
        %v4804 = vsub.f32 %v4534, %v4803
        %4805 = vmatpush1.msra.mxu0 %v4804
        %4806 = vmatprep.subr.mxu0 0.0
        %v4807 = vand.u32 %v4535, 4294901760
        %v4808 = vsub.f32 %v4535, %v4807
        %4809 = vmatpush1.msra.mxu0 %v4808
        %4810 = vmatprep.subr.mxu0 0.0
        %v4811 = vand.u32 %v4536, 4294901760
        %v4812 = vsub.f32 %v4536, %v4811
        %4813 = vmatpush1.msra.mxu0 %v4812
        %4814 = vmatprep.subr.mxu0 0.0
        %v4815 = vand.u32 %v4537, 4294901760
        %v4816 = vsub.f32 %v4537, %v4815
        %4817 = vmatpush1.msra.mxu0 %v4816
        %4818 = vmatprep.subr.mxu0 0.0
        %v4819 = vand.u32 %v4538, 4294901760
        %v4820 = vsub.f32 %v4538, %v4819
        %4821 = vmatpush1.msra.mxu0 %v4820
        %4822 = vmatprep.subr.mxu0 0.0
        %v4823 = vand.u32 %v4539, 4294901760
        %v4824 = vsub.f32 %v4539, %v4823
        %4825 = vmatpush1.msra.mxu0 %v4824
        %4826 = vmatprep.subr.mxu0 0.0
        %v4827 = vand.u32 %v4540, 4294901760
        %v4828 = vsub.f32 %v4540, %v4827
        %4829 = vmatpush1.msra.mxu0 %v4828
        %4830 = vmatprep.subr.mxu0 0.0
        %v4831 = vand.u32 %v4541, 4294901760
        %v4832 = vsub.f32 %v4541, %v4831
        %4833 = vmatpush1.msra.mxu0 %v4832
        %4834 = vmatprep.subr.mxu0 0.0
        %v4835 = vand.u32 %v4542, 4294901760
        %v4836 = vsub.f32 %v4542, %v4835
        %4837 = vmatpush1.msra.mxu0 %v4836
        %4838 = vmatprep.subr.mxu0 0.0
        %v4839 = vand.u32 %v4543, 4294901760
        %v4840 = vsub.f32 %v4543, %v4839
        %4841 = vmatpush1.msra.mxu0 %v4840
        %4842 = vmatprep.subr.mxu0 0.0
        %v4843 = vand.u32 %v4544, 4294901760
        %v4844 = vsub.f32 %v4544, %v4843
        %4845 = vmatpush1.msra.mxu0 %v4844
        %4846 = vmatprep.subr.mxu0 0.0
        %v4847 = vand.u32 %v4545, 4294901760
        %v4848 = vsub.f32 %v4545, %v4847
        %4849 = vmatpush1.msra.mxu0 %v4848
        %4850 = vmatprep.subr.mxu0 0.0
        %v4851 = vand.u32 %v4546, 4294901760
        %v4852 = vsub.f32 %v4546, %v4851
        %4853 = vmatpush1.msra.mxu0 %v4852
        %4854 = vmatprep.subr.mxu0 0.0
        %v4855 = vand.u32 %v4547, 4294901760
        %v4856 = vsub.f32 %v4547, %v4855
        %4857 = vmatpush1.msra.mxu0 %v4856
        %4858 = vmatprep.subr.mxu0 0.0
        %v4859 = vand.u32 %v4548, 4294901760
        %v4860 = vsub.f32 %v4548, %v4859
        %4861 = vmatpush1.msra.mxu0 %v4860
        %4862 = vmatprep.subr.mxu0 0.0
        %4863 = vmatpush1.msra.mxu0 0.0
        %4864 = vmatprep.subr.mxu0 0.0
        %4865 = vmatpush1.msra.mxu0 0.0
        %4866 = vmatprep.subr.mxu0 0.0
        %4867 = vmatpush1.msra.mxu0 0.0
        %4868 = vmatprep.subr.mxu0 0.0
        %4869 = vmatpush1.msra.mxu0 0.0
        %4870 = vmatprep.subr.mxu0 0.0
        %4871 = vmatpush1.msra.mxu0 0.0
        %4872 = vmatprep.subr.mxu0 0.0
        %4873 = vmatpush1.msra.mxu0 0.0
        %4874 = vmatprep.subr.mxu0 0.0
        %4875 = vmatpush1.msra.mxu0 0.0
        %4876 = vmatprep.subr.mxu0 0.0
        %4877 = vmatpush1.msra.mxu0 0.0
        %4878 = vmatprep.subr.mxu0 0.0
        %4879 = vmatpush1.msra.mxu0 0.0
        %4880 = vmatprep.subr.mxu0 0.0
        %4881 = vmatpush1.msra.mxu0 0.0
        %4882 = vmatprep.subr.mxu0 0.0
        %4883 = vmatpush1.msra.mxu0 0.0
        %4884 = vmatprep.subr.mxu0 0.0
        %4885 = vmatpush1.msra.mxu0 0.0
        %4886 = vmatprep.subr.mxu0 0.0
        %4887 = vmatpush1.msra.mxu0 0.0
        %4888 = vmatprep.subr.mxu0 0.0
        %4889 = vmatpush1.msra.mxu0 0.0
        %4890 = vmatprep.subr.mxu0 0.0
        %4891 = vmatpush1.msra.mxu0 0.0
        %4892 = vmatprep.subr.mxu0 0.0
        %4893 = vmatpush1.msra.mxu0 0.0
        %4894 = vmatprep.mubr.f32.mxu0 0.0
        %v4895 = vand.u32 %v4532, 4294901760
        %v4896 = vsub.f32 %v4532, %v4895
        %4897 = vmatmul.mubr.f32.gmra.mrb[0].mxu0 %v4896
        %v4898 = vpop.f32.mrb[0].mxu0
        %v4899 = vadd.f32 %v4795, %v4898
        %v4900 = vpop.f32.mrb[0].mxu0
        %4901 = vdwg.mxu0
        %4902 = vmatprep.subr.mxu0 0.0
        %v4903 = vand.u32 %v4533, 4294901760
        %4904 = vmatpush1.msra.mxu0 %v4903
        %4905 = vmatprep.subr.mxu0 0.0
        %v4906 = vand.u32 %v4534, 4294901760
        %4907 = vmatpush1.msra.mxu0 %v4906
        %4908 = vmatprep.subr.mxu0 0.0
        %v4909 = vand.u32 %v4535, 4294901760
        %4910 = vmatpush1.msra.mxu0 %v4909
        %4911 = vmatprep.subr.mxu0 0.0
        %v4912 = vand.u32 %v4536, 4294901760
        %4913 = vmatpush1.msra.mxu0 %v4912
        %4914 = vmatprep.subr.mxu0 0.0
        %v4915 = vand.u32 %v4537, 4294901760
        %4916 = vmatpush1.msra.mxu0 %v4915
        %4917 = vmatprep.subr.mxu0 0.0
        %v4918 = vand.u32 %v4538, 4294901760
        %4919 = vmatpush1.msra.mxu0 %v4918
        %4920 = vmatprep.subr.mxu0 0.0
        %v4921 = vand.u32 %v4539, 4294901760
        %4922 = vmatpush1.msra.mxu0 %v4921
        %4923 = vmatprep.subr.mxu0 0.0
        %v4924 = vand.u32 %v4540, 4294901760
        %4925 = vmatpush1.msra.mxu0 %v4924
        %4926 = vmatprep.subr.mxu0 0.0
        %v4927 = vand.u32 %v4541, 4294901760
        %4928 = vmatpush1.msra.mxu0 %v4927
        %4929 = vmatprep.subr.mxu0 0.0
        %v4930 = vand.u32 %v4542, 4294901760
        %4931 = vmatpush1.msra.mxu0 %v4930
        %4932 = vmatprep.subr.mxu0 0.0
        %v4933 = vand.u32 %v4543, 4294901760
        %4934 = vmatpush1.msra.mxu0 %v4933
        %4935 = vmatprep.subr.mxu0 0.0
        %v4936 = vand.u32 %v4544, 4294901760
        %4937 = vmatpush1.msra.mxu0 %v4936
        %4938 = vmatprep.subr.mxu0 0.0
        %v4939 = vand.u32 %v4545, 4294901760
        %4940 = vmatpush1.msra.mxu0 %v4939
        %4941 = vmatprep.subr.mxu0 0.0
        %v4942 = vand.u32 %v4546, 4294901760
        %4943 = vmatpush1.msra.mxu0 %v4942
        %4944 = vmatprep.subr.mxu0 0.0
        %v4945 = vand.u32 %v4547, 4294901760
        %4946 = vmatpush1.msra.mxu0 %v4945
        %4947 = vmatprep.subr.mxu0 0.0
        %v4948 = vand.u32 %v4548, 4294901760
        %4949 = vmatpush1.msra.mxu0 %v4948
        %4950 = vmatprep.subr.mxu0 0.0
        %4951 = vmatpush1.msra.mxu0 0.0
        %4952 = vmatprep.subr.mxu0 0.0
        %4953 = vmatpush1.msra.mxu0 0.0
        %4954 = vmatprep.subr.mxu0 0.0
        %4955 = vmatpush1.msra.mxu0 0.0
        %4956 = vmatprep.subr.mxu0 0.0
        %4957 = vmatpush1.msra.mxu0 0.0
        %4958 = vmatprep.subr.mxu0 0.0
        %4959 = vmatpush1.msra.mxu0 0.0
        %4960 = vmatprep.subr.mxu0 0.0
        %4961 = vmatpush1.msra.mxu0 0.0
        %4962 = vmatprep.subr.mxu0 0.0
        %4963 = vmatpush1.msra.mxu0 0.0
        %4964 = vmatprep.subr.mxu0 0.0
        %4965 = vmatpush1.msra.mxu0 0.0
        %4966 = vmatprep.subr.mxu0 0.0
        %4967 = vmatpush1.msra.mxu0 0.0
        %4968 = vmatprep.subr.mxu0 0.0
        %4969 = vmatpush1.msra.mxu0 0.0
        %4970 = vmatprep.subr.mxu0 0.0
        %4971 = vmatpush1.msra.mxu0 0.0
        %4972 = vmatprep.subr.mxu0 0.0
        %4973 = vmatpush1.msra.mxu0 0.0
        %4974 = vmatprep.subr.mxu0 0.0
        %4975 = vmatpush1.msra.mxu0 0.0
        %4976 = vmatprep.subr.mxu0 0.0
        %4977 = vmatpush1.msra.mxu0 0.0
        %4978 = vmatprep.subr.mxu0 0.0
        %4979 = vmatpush1.msra.mxu0 0.0
        %4980 = vmatprep.subr.mxu0 0.0
        %4981 = vmatpush1.msra.mxu0 0.0
        %4982 = vmatprep.mubr.f32.mxu0 0.0
        %v4983 = vand.u32 %v4532, 4294901760
        %v4984 = vsub.f32 %v4532, %v4983
        %v4985 = vand.u32 %v4984, 4294901760
        %4986 = vmatmul.mubr.f32.gmra.mrb[0].mxu0 %v4985
        %v4987 = vpop.f32.mrb[0].mxu0
        %v4988 = vadd.f32 %v4899, %v4987
        %v4989 = vpop.f32.mrb[0].mxu0
        %4990 = vdwg.mxu0
        %4991 = vmatprep.subr.mxu0 0.0
        %v4992 = vand.u32 %v4533, 4294901760
        %v4993 = vsub.f32 %v4533, %v4992
        %v4994 = vand.u32 %v4993, 4294901760
        %4995 = vmatpush1.msra.mxu0 %v4994
        %4996 = vmatprep.subr.mxu0 0.0
        %v4997 = vand.u32 %v4534, 4294901760
        %v4998 = vsub.f32 %v4534, %v4997
        %v4999 = vand.u32 %v4998, 4294901760
        %5000 = vmatpush1.msra.mxu0 %v4999
        %5001 = vmatprep.subr.mxu0 0.0
        %v5002 = vand.u32 %v4535, 4294901760
        %v5003 = vsub.f32 %v4535, %v5002
        %v5004 = vand.u32 %v5003, 4294901760
        %5005 = vmatpush1.msra.mxu0 %v5004
        %5006 = vmatprep.subr.mxu0 0.0
        %v5007 = vand.u32 %v4536, 4294901760
        %v5008 = vsub.f32 %v4536, %v5007
        %v5009 = vand.u32 %v5008, 4294901760
        %5010 = vmatpush1.msra.mxu0 %v5009
        %5011 = vmatprep.subr.mxu0 0.0
        %v5012 = vand.u32 %v4537, 4294901760
        %v5013 = vsub.f32 %v4537, %v5012
        %v5014 = vand.u32 %v5013, 4294901760
        %5015 = vmatpush1.msra.mxu0 %v5014
        %5016 = vmatprep.subr.mxu0 0.0
        %v5017 = vand.u32 %v4538, 4294901760
        %v5018 = vsub.f32 %v4538, %v5017
        %v5019 = vand.u32 %v5018, 4294901760
        %5020 = vmatpush1.msra.mxu0 %v5019
        %5021 = vmatprep.subr.mxu0 0.0
        %v5022 = vand.u32 %v4539, 4294901760
        %v5023 = vsub.f32 %v4539, %v5022
        %v5024 = vand.u32 %v5023, 4294901760
        %5025 = vmatpush1.msra.mxu0 %v5024
        %5026 = vmatprep.subr.mxu0 0.0
        %v5027 = vand.u32 %v4540, 4294901760
        %v5028 = vsub.f32 %v4540, %v5027
        %v5029 = vand.u32 %v5028, 4294901760
        %5030 = vmatpush1.msra.mxu0 %v5029
        %5031 = vmatprep.subr.mxu0 0.0
        %v5032 = vand.u32 %v4541, 4294901760
        %v5033 = vsub.f32 %v4541, %v5032
        %v5034 = vand.u32 %v5033, 4294901760
        %5035 = vmatpush1.msra.mxu0 %v5034
        %5036 = vmatprep.subr.mxu0 0.0
        %v5037 = vand.u32 %v4542, 4294901760
        %v5038 = vsub.f32 %v4542, %v5037
        %v5039 = vand.u32 %v5038, 4294901760
        %5040 = vmatpush1.msra.mxu0 %v5039
        %5041 = vmatprep.subr.mxu0 0.0
        %v5042 = vand.u32 %v4543, 4294901760
        %v5043 = vsub.f32 %v4543, %v5042
        %v5044 = vand.u32 %v5043, 4294901760
        %5045 = vmatpush1.msra.mxu0 %v5044
        %5046 = vmatprep.subr.mxu0 0.0
        %v5047 = vand.u32 %v4544, 4294901760
        %v5048 = vsub.f32 %v4544, %v5047
        %v5049 = vand.u32 %v5048, 4294901760
        %5050 = vmatpush1.msra.mxu0 %v5049
        %5051 = vmatprep.subr.mxu0 0.0
        %v5052 = vand.u32 %v4545, 4294901760
        %v5053 = vsub.f32 %v4545, %v5052
        %v5054 = vand.u32 %v5053, 4294901760
        %5055 = vmatpush1.msra.mxu0 %v5054
        %5056 = vmatprep.subr.mxu0 0.0
        %v5057 = vand.u32 %v4546, 4294901760
        %v5058 = vsub.f32 %v4546, %v5057
        %v5059 = vand.u32 %v5058, 4294901760
        %5060 = vmatpush1.msra.mxu0 %v5059
        %5061 = vmatprep.subr.mxu0 0.0
        %v5062 = vand.u32 %v4547, 4294901760
        %v5063 = vsub.f32 %v4547, %v5062
        %v5064 = vand.u32 %v5063, 4294901760
        %5065 = vmatpush1.msra.mxu0 %v5064
        %5066 = vmatprep.subr.mxu0 0.0
        %v5067 = vand.u32 %v4548, 4294901760
        %v5068 = vsub.f32 %v4548, %v5067
        %v5069 = vand.u32 %v5068, 4294901760
        %5070 = vmatpush1.msra.mxu0 %v5069
        %5071 = vmatprep.subr.mxu0 0.0
        %5072 = vmatpush1.msra.mxu0 0.0
        %5073 = vmatprep.subr.mxu0 0.0
        %5074 = vmatpush1.msra.mxu0 0.0
        %5075 = vmatprep.subr.mxu0 0.0
        %5076 = vmatpush1.msra.mxu0 0.0
        %5077 = vmatprep.subr.mxu0 0.0
        %5078 = vmatpush1.msra.mxu0 0.0
        %5079 = vmatprep.subr.mxu0 0.0
        %5080 = vmatpush1.msra.mxu0 0.0
        %5081 = vmatprep.subr.mxu0 0.0
        %5082 = vmatpush1.msra.mxu0 0.0
        %5083 = vmatprep.subr.mxu0 0.0
        %5084 = vmatpush1.msra.mxu0 0.0
        %5085 = vmatprep.subr.mxu0 0.0
        %5086 = vmatpush1.msra.mxu0 0.0
        %5087 = vmatprep.subr.mxu0 0.0
        %5088 = vmatpush1.msra.mxu0 0.0
        %5089 = vmatprep.subr.mxu0 0.0
        %5090 = vmatpush1.msra.mxu0 0.0
        %5091 = vmatprep.subr.mxu0 0.0
        %5092 = vmatpush1.msra.mxu0 0.0
        %5093 = vmatprep.subr.mxu0 0.0
        %5094 = vmatpush1.msra.mxu0 0.0
        %5095 = vmatprep.subr.mxu0 0.0
        %5096 = vmatpush1.msra.mxu0 0.0
        %5097 = vmatprep.subr.mxu0 0.0
        %5098 = vmatpush1.msra.mxu0 0.0
        %5099 = vmatprep.subr.mxu0 0.0
        %5100 = vmatpush1.msra.mxu0 0.0
        %5101 = vmatprep.subr.mxu0 0.0
        %5102 = vmatpush1.msra.mxu0 0.0
        %5103 = vmatprep.mubr.f32.mxu0 0.0
        %v5104 = vand.u32 %v4532, 4294901760
        %5105 = vmatmul.mubr.f32.gmra.mrb[0].mxu0 %v5104
        %v5106 = vpop.f32.mrb[0].mxu0
        %v5107 = vadd.f32 %v4988, %v5106
        %v5108 = vpop.f32.mrb[0].mxu0
        %5109 = vdwg.mxu0
        %5110 = vmatprep.subr.mxu0 0.0
        %v5111 = vand.u32 %v4533, 4294901760
        %5112 = vmatpush1.msra.mxu0 %v5111
        %5113 = vmatprep.subr.mxu0 0.0
        %v5114 = vand.u32 %v4534, 4294901760
        %5115 = vmatpush1.msra.mxu0 %v5114
        %5116 = vmatprep.subr.mxu0 0.0
        %v5117 = vand.u32 %v4535, 4294901760
        %5118 = vmatpush1.msra.mxu0 %v5117
        %5119 = vmatprep.subr.mxu0 0.0
        %v5120 = vand.u32 %v4536, 4294901760
        %5121 = vmatpush1.msra.mxu0 %v5120
        %5122 = vmatprep.subr.mxu0 0.0
        %v5123 = vand.u32 %v4537, 4294901760
        %5124 = vmatpush1.msra.mxu0 %v5123
        %5125 = vmatprep.subr.mxu0 0.0
        %v5126 = vand.u32 %v4538, 4294901760
        %5127 = vmatpush1.msra.mxu0 %v5126
        %5128 = vmatprep.subr.mxu0 0.0
        %v5129 = vand.u32 %v4539, 4294901760
        %5130 = vmatpush1.msra.mxu0 %v5129
        %5131 = vmatprep.subr.mxu0 0.0
        %v5132 = vand.u32 %v4540, 4294901760
        %5133 = vmatpush1.msra.mxu0 %v5132
        %5134 = vmatprep.subr.mxu0 0.0
        %v5135 = vand.u32 %v4541, 4294901760
        %5136 = vmatpush1.msra.mxu0 %v5135
        %5137 = vmatprep.subr.mxu0 0.0
        %v5138 = vand.u32 %v4542, 4294901760
        %5139 = vmatpush1.msra.mxu0 %v5138
        %5140 = vmatprep.subr.mxu0 0.0
        %v5141 = vand.u32 %v4543, 4294901760
        %5142 = vmatpush1.msra.mxu0 %v5141
        %5143 = vmatprep.subr.mxu0 0.0
        %v5144 = vand.u32 %v4544, 4294901760
        %5145 = vmatpush1.msra.mxu0 %v5144
        %5146 = vmatprep.subr.mxu0 0.0
        %v5147 = vand.u32 %v4545, 4294901760
        %5148 = vmatpush1.msra.mxu0 %v5147
        %5149 = vmatprep.subr.mxu0 0.0
        %v5150 = vand.u32 %v4546, 4294901760
        %5151 = vmatpush1.msra.mxu0 %v5150
        %5152 = vmatprep.subr.mxu0 0.0
        %v5153 = vand.u32 %v4547, 4294901760
        %5154 = vmatpush1.msra.mxu0 %v5153
        %5155 = vmatprep.subr.mxu0 0.0
        %v5156 = vand.u32 %v4548, 4294901760
        %5157 = vmatpush1.msra.mxu0 %v5156
        %5158 = vmatprep.subr.mxu0 0.0
        %5159 = vmatpush1.msra.mxu0 0.0
        %5160 = vmatprep.subr.mxu0 0.0
        %5161 = vmatpush1.msra.mxu0 0.0
        %5162 = vmatprep.subr.mxu0 0.0
        %5163 = vmatpush1.msra.mxu0 0.0
        %5164 = vmatprep.subr.mxu0 0.0
        %5165 = vmatpush1.msra.mxu0 0.0
        %5166 = vmatprep.subr.mxu0 0.0
        %5167 = vmatpush1.msra.mxu0 0.0
        %5168 = vmatprep.subr.mxu0 0.0
        %5169 = vmatpush1.msra.mxu0 0.0
        %5170 = vmatprep.subr.mxu0 0.0
        %5171 = vmatpush1.msra.mxu0 0.0
        %5172 = vmatprep.subr.mxu0 0.0
        %5173 = vmatpush1.msra.mxu0 0.0
        %5174 = vmatprep.subr.mxu0 0.0
        %5175 = vmatpush1.msra.mxu0 0.0
        %5176 = vmatprep.subr.mxu0 0.0
        %5177 = vmatpush1.msra.mxu0 0.0
        %5178 = vmatprep.subr.mxu0 0.0
        %5179 = vmatpush1.msra.mxu0 0.0
        %5180 = vmatprep.subr.mxu0 0.0
        %5181 = vmatpush1.msra.mxu0 0.0
        %5182 = vmatprep.subr.mxu0 0.0
        %5183 = vmatpush1.msra.mxu0 0.0
        %5184 = vmatprep.subr.mxu0 0.0
        %5185 = vmatpush1.msra.mxu0 0.0
        %5186 = vmatprep.subr.mxu0 0.0
        %5187 = vmatpush1.msra.mxu0 0.0
        %5188 = vmatprep.subr.mxu0 0.0
        %5189 = vmatpush1.msra.mxu0 0.0
        %5190 = vmatprep.mubr.f32.mxu0 0.0
        %v5191 = vand.u32 %v4532, 4294901760
        %5192 = vmatmul.mubr.f32.gmra.mrb[0].mxu0 %v5191
        %v5193 = vpop.f32.mrb[0].mxu0
        %v5194 = vadd.f32 %v5107, %v5193
        %v5195 = vpop.f32.mrb[0].mxu0
        %5196 = vdwg.mxu0
        %v5197 = vadd.f32 %v4028, %v5194
        %v5198 = vsel %vm465, %v5197, 0.0
        %5199 = vadd.xlane.f32.xlu0 %v5198
        %v5200 = vpop.xlane.xlu0 %5199
        %v5201 = vmul.f32 %v5200, %v3999
        %v5202 = vmul.f32 %v5197, %v5197
        %v5203 = vsel %vm465, %v5202, 0.0
        %5204 = vadd.xlane.f32.xlu0 %v5203
        %v5205 = vpop.xlane.xlu0 %5204
        %v5206 = vmul.f32 %v5205, %v3999
        %v5207 = vmul.f32 %v5201, %v5201
        %v5208 = vsub.f32 %v5206, %v5207
        %v5209 = vmax.f32 %v5208, 0.0
        %v5210 = vsub.f32 %v5197, %v5201
        %v5211 = vadd.f32 %v5209, 1e-05
        %v5212 = vrsqrt.pop %v5211
        %v5213 = vmul.f32 %v5210, %v5212
        %v5214 = vld [vmem:[%s12] sm:$0x1]
        %v5216 = vlaneseq
        %v5217 = vshrl.u32 %v5216, 7
        %v5218 = vsub.s32 0, %v5217
        %v5219 = vrot.slane %v5214, %v5218
        %v5221 = vmul.f32 %v5213, %v5219
        %v5222 = vld [vmem:[%s13] sm:$0x1]
        %v5224 = vlaneseq
        %v5225 = vshrl.u32 %v5224, 7
        %v5226 = vsub.s32 0, %v5225
        %v5227 = vrot.slane %v5222, %v5226
        %v5229 = vadd.f32 %v5221, %v5227
        %5230 = vst.msk [vmem:[%s458] sm:$0xff] %vm465, %v5229
        %s5231 = sand.u32 %s335, 1
        %s5232 = scalar_lea.sflag [#allocation3], %s5231
        %s5233 = sand.u32 %s335, 1
        %s5234 = smul.addr %s5233, 8
        %s5235 = scalar_lea.vmem [#allocation2], %s5234
        // Predicated region
        $region77: #{tpu_custom_call.1} parent=75 // pred_check
          %p5236 = pneg %p345
        $region78: #{tpu_custom_call.1} parent=75 // pred_check_branch
          %5238 = sbr.rel (%p5236) target = $region80
        $region79: #{tpu_custom_call.1} parent=75 // pred_region
          %s5240 = ssub.s32 128, 128
          %5241 = vsyncadd %s5232, %s5240
          %s5242 = smul.addr %s28, 128
          %s5243 = scalar_lea.hbm %s14, %s5242
          %s5245 = sshll.u32 %s5235, 4
          %s5246 = int_to_ptr.vmem [resolvable:$true] %s5245
          %5248 = dma.vmem_to_hbm [thread:$0]  %s5246, 128, %s5243, %s5232
        $region80: #{tpu_custom_call.1} parent=75 // pred_fallthru
          _
      $region76: #{tpu_custom_call.1} parent=5 // pred_fallthru
        _
      %p5249 = scmp.le.s32.totalorder 2, %s23
      // Predicated region
      $region81: #{tpu_custom_call.1} parent=5 // pred_check
        %p5250 = pneg %p5249
      $region82: #{tpu_custom_call.1} parent=5 // pred_check_branch
        %5252 = sbr.rel (%p5250) target = $region84
      $region83: #{tpu_custom_call.1} parent=5 // pred_region
        %s5253 = ssub.s32 %s23, 2
        // Predicated region
        $region85: #{tpu_custom_call.1} parent=83 // pred_check
          %p5254 = pneg %p351
        $region86: #{tpu_custom_call.1} parent=83 // pred_check_branch
          %5256 = sbr.rel (%p5254) target = $region88
        $region87: #{tpu_custom_call.1} parent=83 // pred_region
          %s5257 = sand.u32 %s336, 1
          %s5258 = scalar_lea.sflag [#allocation3], %s5257
          %s5259 = sand.u32 %s336, 1
          %s5260 = smul.addr %s5259, 8
          %s5261 = scalar_lea.vmem [#allocation2], %s5260
          %5262 = dma.done %s5258, 128
        $region88: #{tpu_custom_call.1} parent=83 // pred_fallthru
          _
      $region84: #{tpu_custom_call.1} parent=5 // pred_fallthru
        _
    $region6: #{tpu_custom_call.1} parent=1 // loop_footer
      %s27 = sadd.s32 1, %s23
    $region7: #{tpu_custom_call.1} parent=1 // loop_footer_branch
      %22 = sbr.rel target = $region3
    $region8: #{tpu_custom_call.1} parent=1 // loop_exit
      _
    %5263 = vsyncpa [#allocation3], 1
    %s5264 = scalar_lea.sflag [#allocation3], 1
    %5265 = vsyncpa %s5264, 1

// kernel: tpu_custom_call.1
$region0: #{tpu_custom_call.1}
  #allocation0 [shape = 'u32[]', space=smem, size = 0x4, offset = 0x4, fixed_abs, tag = 'smem constant byte address 0x4 - core index']
  #allocation1 [shape = 'u32[144,128]{1,0:T(1,128)}', space=vmem, size = 0x12000, scoped, tag = 'internal scratch']
  %s0 = inlined_call_operand.vmem [shape: f32[16,32], index: 0, kind: input, shape index: {}]
  %s1 = inlined_call_operand.vmem [shape: f32[128,32], index: 1, kind: input, shape index: {}]
  %s2 = inlined_call_operand.vmem [shape: f32[1,128], index: 2, kind: input, shape index: {}]
  %s3 = inlined_call_operand.vmem [shape: f32[1,128], index: 3, kind: input, shape index: {}]
  %s4 = inlined_call_operand.vmem [shape: f32[32,32], index: 4, kind: input, shape index: {}]
  %s5 = inlined_call_operand.vmem [shape: f32[32,32], index: 5, kind: input, shape index: {}]
  %s6 = inlined_call_operand.vmem [shape: f32[1,32], index: 6, kind: input, shape index: {}]
  %s7 = inlined_call_operand.vmem [shape: f32[1,32], index: 7, kind: input, shape index: {}]
  %s8 = inlined_call_operand.vmem [shape: f32[32,128], index: 8, kind: input, shape index: {}]
  %s9 = inlined_call_operand.vmem [shape: f32[1,128], index: 9, kind: input, shape index: {}]
  %s10 = inlined_call_operand.vmem [shape: f32[128,32], index: 10, kind: input, shape index: {}]
  %s11 = inlined_call_operand.vmem [shape: f32[1,32], index: 11, kind: input, shape index: {}]
  %s12 = inlined_call_operand.vmem [shape: f32[1,32], index: 12, kind: input, shape index: {}]
  %s13 = inlined_call_operand.vmem [shape: f32[1,32], index: 13, kind: input, shape index: {}]
  %s14 = inlined_call_operand.hbm [shape: f32[16,32], index: 14, kind: output, shape index: {}]
  %s15 = sld [smem:[#allocation0]]
  $region89: #{tpu_custom_call.1} parent=0
    _
  %s17 = ssub.s32 1, %s15
  %s18 = scalar_select 0, %s17, %s15
  $region1: #{tpu_custom_call.1} parent=0
    #allocation2 [shape = 'u8[8192]{0}', space=vmem, size = 0x2000, scoped, tag = 'output window, operand 0']
    #allocation3 [shape = 's32[2]{0}', space=sflag, size = 0x8, scoped, tag = 'scoped memory for tpu_custom_call.1']
    %19 = vsyncpa [#allocation3], 0
    %s20 = scalar_lea.sflag [#allocation3], 1
    %21 = vsyncpa %s20, 0
    loop: start=0, step=1, limit=4
    $region2: #{tpu_custom_call.1} parent=1 // loop_pre_header
      _
    $region3: #{tpu_custom_call.1} parent=1 // loop_header
      %s23 = sphi 0, %s27
      %p24 = scmp.ge.s32.totalorder %s23, 4
      %s33 = sphi 0, %s35
      %s36 = sphi 0, %s33
      %s37 = sphi 0, %s36
      %s53 = sphi 0, %s37
      %s57 = sphi 0, %s57
      %s59 = sphi 0, %s57
      %s60 = sphi 0, %s59
      %s74 = sphi 0, %s60
      %s78 = sphi 0, %s78
      %s80 = sphi 0, %s78
      %s81 = sphi 0, %s80
      %s95 = sphi 0, %s81
      %s99 = sphi 0, %s99
      %s101 = sphi 0, %s99
      %s102 = sphi 0, %s101
      %s116 = sphi 0, %s102
      %s120 = sphi 0, %s120
      %s122 = sphi 0, %s120
      %s123 = sphi 0, %s122
      %s137 = sphi 0, %s123
      %s141 = sphi 0, %s141
      %s143 = sphi 0, %s141
      %s144 = sphi 0, %s143
      %s158 = sphi 0, %s144
      %s162 = sphi 0, %s162
      %s164 = sphi 0, %s162
      %s165 = sphi 0, %s164
      %s179 = sphi 0, %s165
      %s183 = sphi 0, %s183
      %s185 = sphi 0, %s183
      %s186 = sphi 0, %s185
      %s200 = sphi 0, %s186
      %s204 = sphi 0, %s204
      %s206 = sphi 0, %s204
      %s207 = sphi 0, %s206
      %s221 = sphi 0, %s207
      %s225 = sphi 0, %s225
      %s227 = sphi 0, %s225
      %s228 = sphi 0, %s227
      %s242 = sphi 0, %s228
      %s246 = sphi 0, %s246
      %s248 = sphi 0, %s246
      %s249 = sphi 0, %s248
      %s263 = sphi 0, %s249
      %s267 = sphi 0, %s267
      %s269 = sphi 0, %s267
      %s270 = sphi 0, %s269
      %s284 = sphi 0, %s270
      %s288 = sphi 0, %s288
      %s290 = sphi 0, %s288
      %s291 = sphi 0, %s290
      %s305 = sphi 0, %s291
      %s309 = sphi 0, %s309
      %s311 = sphi 0, %s309
      %s312 = sphi 0, %s311
      %s326 = sphi 0, %s312
      %s332 = sphi 0, %s334
      %s335 = sphi 0, %s332
      %s336 = sphi 0, %s335
      %s352 = sphi 0, %s336
    $region4: #{tpu_custom_call.1} parent=1 // loop_header_branch
      %26 = sbr.rel (%p24) target = $region8
    $region5: #{tpu_custom_call.1} parent=1 // loop_body
      %s28 = ssub.s32 %s23, 1
      %s29 = ssub.s32 %s23, 2
      %s30 = sadd.s32 %s23, 1
      %s31 = ssub.s32 %s23, %s30
      %p32 = scmp.eq.s32.totalorder %s31, 0
      %s34 = sadd.s32 %s33, 1
      %s35 = scalar_select %p32, %s33, %s34
      %p38 = pneg %p32
      %p39 = scmp.eq.s32.totalorder %s23, 1
      %p40 = por %p38, %p39
      %p41 = scmp.ne.s32.totalorder %s33, %s36
      %p42 = scmp.eq.s32.totalorder %s23, 0
      %p43 = por %p41, %p42
      %p44 = scmp.ne.s32.totalorder %s33, %s36
      %p45 = scmp.eq.s32.totalorder %s28, 1
      %p46 = por %p44, %p45
      %p47 = scmp.ne.s32.totalorder %s36, %s37
      %p48 = scmp.eq.s32.totalorder %s28, 0
      %p49 = por %p47, %p48
      %p50 = scmp.ne.s32.totalorder %s36, %s37
      %p51 = scmp.eq.s32.totalorder %s29, 1
      %p52 = por %p50, %p51
      %p54 = scmp.ne.s32.totalorder %s37, %s53
      %p55 = scmp.eq.s32.totalorder %s29, 0
      %p56 = por %p54, %p55
      %s58 = sadd.s32 %s57, 1
      %p61 = scmp.eq.s32.totalorder %s23, 1
      %p62 = scmp.ne.s32.totalorder %s57, %s59
      %p63 = scmp.eq.s32.totalorder %s23, 0
      %p64 = por %p62, %p63
      %p65 = scmp.ne.s32.totalorder %s57, %s59
      %p66 = scmp.eq.s32.totalorder %s28, 1
      %p67 = por %p65, %p66
      %p68 = scmp.ne.s32.totalorder %s59, %s60
      %p69 = scmp.eq.s32.totalorder %s28, 0
      %p70 = por %p68, %p69
      %p71 = scmp.ne.s32.totalorder %s59, %s60
      %p72 = scmp.eq.s32.totalorder %s29, 1
      %p73 = por %p71, %p72
      %p75 = scmp.ne.s32.totalorder %s60, %s74
      %p76 = scmp.eq.s32.totalorder %s29, 0
      %p77 = por %p75, %p76
      %s79 = sadd.s32 %s78, 1
      %p82 = scmp.eq.s32.totalorder %s23, 1
      %p83 = scmp.ne.s32.totalorder %s78, %s80
      %p84 = scmp.eq.s32.totalorder %s23, 0
      %p85 = por %p83, %p84
      %p86 = scmp.ne.s32.totalorder %s78, %s80
      %p87 = scmp.eq.s32.totalorder %s28, 1
      %p88 = por %p86, %p87
      %p89 = scmp.ne.s32.totalorder %s80, %s81
      %p90 = scmp.eq.s32.totalorder %s28, 0
      %p91 = por %p89, %p90
      %p92 = scmp.ne.s32.totalorder %s80, %s81
      %p93 = scmp.eq.s32.totalorder %s29, 1
      %p94 = por %p92, %p93
      %p96 = scmp.ne.s32.totalorder %s81, %s95
      %p97 = scmp.eq.s32.totalorder %s29, 0
      %p98 = por %p96, %p97
      %s100 = sadd.s32 %s99, 1
      %p103 = scmp.eq.s32.totalorder %s23, 1
      %p104 = scmp.ne.s32.totalorder %s99, %s101
      %p105 = scmp.eq.s32.totalorder %s23, 0
      %p106 = por %p104, %p105
      %p107 = scmp.ne.s32.totalorder %s99, %s101
      %p108 = scmp.eq.s32.totalorder %s28, 1
      %p109 = por %p107, %p108
      %p110 = scmp.ne.s32.totalorder %s101, %s102
      %p111 = scmp.eq.s32.totalorder %s28, 0
      %p112 = por %p110, %p111
      %p113 = scmp.ne.s32.totalorder %s101, %s102
      %p114 = scmp.eq.s32.totalorder %s29, 1
      %p115 = por %p113, %p114
      %p117 = scmp.ne.s32.totalorder %s102, %s116
      %p118 = scmp.eq.s32.totalorder %s29, 0
      %p119 = por %p117, %p118
      %s121 = sadd.s32 %s120, 1
      %p124 = scmp.eq.s32.totalorder %s23, 1
      %p125 = scmp.ne.s32.totalorder %s120, %s122
      %p126 = scmp.eq.s32.totalorder %s23, 0
      %p127 = por %p125, %p126
      %p128 = scmp.ne.s32.totalorder %s120, %s122
      %p129 = scmp.eq.s32.totalorder %s28, 1
      %p130 = por %p128, %p129
      %p131 = scmp.ne.s32.totalorder %s122, %s123
      %p132 = scmp.eq.s32.totalorder %s28, 0
      %p133 = por %p131, %p132
      %p134 = scmp.ne.s32.totalorder %s122, %s123
      %p135 = scmp.eq.s32.totalorder %s29, 1
      %p136 = por %p134, %p135
      %p138 = scmp.ne.s32.totalorder %s123, %s137
      %p139 = scmp.eq.s32.totalorder %s29, 0
      %p140 = por %p138, %p139
      %s142 = sadd.s32 %s141, 1
      %p145 = scmp.eq.s32.totalorder %s23, 1
      %p146 = scmp.ne.s32.totalorder %s141, %s143
      %p147 = scmp.eq.s32.totalorder %s23, 0
      %p148 = por %p146, %p147
      %p149 = scmp.ne.s32.totalorder %s141, %s143
      %p150 = scmp.eq.s32.totalorder %s28, 1
      %p151 = por %p149, %p150
      %p152 = scmp.ne.s32.totalorder %s143, %s144
      %p153 = scmp.eq.s32.totalorder %s28, 0
      %p154 = por %p152, %p153
      %p155 = scmp.ne.s32.totalorder %s143, %s144
      %p156 = scmp.eq.s32.totalorder %s29, 1
      %p157 = por %p155, %p156
      %p159 = scmp.ne.s32.totalorder %s144, %s158
      %p160 = scmp.eq.s32.totalorder %s29, 0
      %p161 = por %p159, %p160
      %s163 = sadd.s32 %s162, 1
      %p166 = scmp.eq.s32.totalorder %s23, 1
      %p167 = scmp.ne.s32.totalorder %s162, %s164
      %p168 = scmp.eq.s32.totalorder %s23, 0
      %p169 = por %p167, %p168
      %p170 = scmp.ne.s32.totalorder %s162, %s164
      %p171 = scmp.eq.s32.totalorder %s28, 1
      %p172 = por %p170, %p171
      %p173 = scmp.ne.s32.totalorder %s164, %s165
      %p174 = scmp.eq.s32.totalorder %s28, 0
      %p175 = por %p173, %p174
      %p176 = scmp.ne.s32.totalorder %s164, %s165
      %p177 = scmp.eq.s32.totalorder %s29, 1
      %p178 = por %p176, %p177
      %p180 = scmp.ne.s32.totalorder %s165, %s179
      %p181 = scmp.eq.s32.totalorder %s29, 0
      %p182 = por %p180, %p181
      %s184 = sadd.s32 %s183, 1
      %p187 = scmp.eq.s32.totalorder %s23, 1
      %p188 = scmp.ne.s32.totalorder %s183, %s185
      %p189 = scmp.eq.s32.totalorder %s23, 0
      %p190 = por %p188, %p189
      %p191 = scmp.ne.s32.totalorder %s183, %s185
      %p192 = scmp.eq.s32.totalorder %s28, 1
      %p193 = por %p191, %p192
      %p194 = scmp.ne.s32.totalorder %s185, %s186
      %p195 = scmp.eq.s32.totalorder %s28, 0
      %p196 = por %p194, %p195
      %p197 = scmp.ne.s32.totalorder %s185, %s186
      %p198 = scmp.eq.s32.totalorder %s29, 1
      %p199 = por %p197, %p198
      %p201 = scmp.ne.s32.totalorder %s186, %s200
      %p202 = scmp.eq.s32.totalorder %s29, 0
      %p203 = por %p201, %p202
      %s205 = sadd.s32 %s204, 1
      %p208 = scmp.eq.s32.totalorder %s23, 1
      %p209 = scmp.ne.s32.totalorder %s204, %s206
      %p210 = scmp.eq.s32.totalorder %s23, 0
      %p211 = por %p209, %p210
      %p212 = scmp.ne.s32.totalorder %s204, %s206
      %p213 = scmp.eq.s32.totalorder %s28, 1
      %p214 = por %p212, %p213
      %p215 = scmp.ne.s32.totalorder %s206, %s207
      %p216 = scmp.eq.s32.totalorder %s28, 0
      %p217 = por %p215, %p216
      %p218 = scmp.ne.s32.totalorder %s206, %s207
      %p219 = scmp.eq.s32.totalorder %s29, 1
      %p220 = por %p218, %p219
      %p222 = scmp.ne.s32.totalorder %s207, %s221
      %p223 = scmp.eq.s32.totalorder %s29, 0
      %p224 = por %p222, %p223
      %s226 = sadd.s32 %s225, 1
      %p229 = scmp.eq.s32.totalorder %s23, 1
      %p230 = scmp.ne.s32.totalorder %s225, %s227
      %p231 = scmp.eq.s32.totalorder %s23, 0
      %p232 = por %p230, %p231
      %p233 = scmp.ne.s32.totalorder %s225, %s227
      %p234 = scmp.eq.s32.totalorder %s28, 1
      %p235 = por %p233, %p234
      %p236 = scmp.ne.s32.totalorder %s227, %s228
      %p237 = scmp.eq.s32.totalorder %s28, 0
      %p238 = por %p236, %p237
      %p239 = scmp.ne.s32.totalorder %s227, %s228
      %p240 = scmp.eq.s32.totalorder %s29, 1
      %p241 = por %p239, %p240
      %p243 = scmp.ne.s32.totalorder %s228, %s242
      %p244 = scmp.eq.s32.totalorder %s29, 0
      %p245 = por %p243, %p244
      %s247 = sadd.s32 %s246, 1
      %p250 = scmp.eq.s32.totalorder %s23, 1
      %p251 = scmp.ne.s32.totalorder %s246, %s248
      %p252 = scmp.eq.s32.totalorder %s23, 0
      %p253 = por %p251, %p252
      %p254 = scmp.ne.s32.totalorder %s246, %s248
      %p255 = scmp.eq.s32.totalorder %s28, 1
      %p256 = por %p254, %p255
      %p257 = scmp.ne.s32.totalorder %s248, %s249
      %p258 = scmp.eq.s32.totalorder %s28, 0
      %p259 = por %p257, %p258
      %p260 = scmp.ne.s32.totalorder %s248, %s249
      %p261 = scmp.eq.s32.totalorder %s29, 1
      %p262 = por %p260, %p261
      %p264 = scmp.ne.s32.totalorder %s249, %s263
      %p265 = scmp.eq.s32.totalorder %s29, 0
      %p266 = por %p264, %p265
      %s268 = sadd.s32 %s267, 1
      %p271 = scmp.eq.s32.totalorder %s23, 1
      %p272 = scmp.ne.s32.totalorder %s267, %s269
      %p273 = scmp.eq.s32.totalorder %s23, 0
      %p274 = por %p272, %p273
      %p275 = scmp.ne.s32.totalorder %s267, %s269
      %p276 = scmp.eq.s32.totalorder %s28, 1
      %p277 = por %p275, %p276
      %p278 = scmp.ne.s32.totalorder %s269, %s270
      %p279 = scmp.eq.s32.totalorder %s28, 0
      %p280 = por %p278, %p279
      %p281 = scmp.ne.s32.totalorder %s269, %s270
      %p282 = scmp.eq.s32.totalorder %s29, 1
      %p283 = por %p281, %p282
      %p285 = scmp.ne.s32.totalorder %s270, %s284
      %p286 = scmp.eq.s32.totalorder %s29, 0
      %p287 = por %p285, %p286
      %s289 = sadd.s32 %s288, 1
      %p292 = scmp.eq.s32.totalorder %s23, 1
      %p293 = scmp.ne.s32.totalorder %s288, %s290
      %p294 = scmp.eq.s32.totalorder %s23, 0
      %p295 = por %p293, %p294
      %p296 = scmp.ne.s32.totalorder %s288, %s290
      %p297 = scmp.eq.s32.totalorder %s28, 1
      %p298 = por %p296, %p297
      %p299 = scmp.ne.s32.totalorder %s290, %s291
      %p300 = scmp.eq.s32.totalorder %s28, 0
      %p301 = por %p299, %p300
      %p302 = scmp.ne.s32.totalorder %s290, %s291
      %p303 = scmp.eq.s32.totalorder %s29, 1
      %p304 = por %p302, %p303
      %p306 = scmp.ne.s32.totalorder %s291, %s305
      %p307 = scmp.eq.s32.totalorder %s29, 0
      %p308 = por %p306, %p307
      %s310 = sadd.s32 %s309, 1
      %p313 = scmp.eq.s32.totalorder %s23, 1
      %p314 = scmp.ne.s32.totalorder %s309, %s311
      %p315 = scmp.eq.s32.totalorder %s23, 0
      %p316 = por %p314, %p315
      %p317 = scmp.ne.s32.totalorder %s309, %s311
      %p318 = scmp.eq.s32.totalorder %s28, 1
      %p319 = por %p317, %p318
      %p320 = scmp.ne.s32.totalorder %s311, %s312
      %p321 = scmp.eq.s32.totalorder %s28, 0
      %p322 = por %p320, %p321
      %p323 = scmp.ne.s32.totalorder %s311, %s312
      %p324 = scmp.eq.s32.totalorder %s29, 1
      %p325 = por %p323, %p324
      %p327 = scmp.ne.s32.totalorder %s312, %s326
      %p328 = scmp.eq.s32.totalorder %s29, 0
      %p329 = por %p327, %p328
      %s330 = ssub.s32 %s23, %s30
      %p331 = scmp.eq.s32.totalorder %s330, 0
      %s333 = sadd.s32 %s332, 1
      %s334 = scalar_select %p331, %s332, %s333
      %p337 = pneg %p331
      %p338 = scmp.eq.s32.totalorder %s23, 1
      %p339 = por %p337, %p338
      %p340 = scmp.ne.s32.totalorder %s332, %s335
      %p341 = scmp.eq.s32.totalorder %s23, 0
      %p342 = por %p340, %p341
      %p343 = scmp.ne.s32.totalorder %s332, %s335
      %p344 = scmp.eq.s32.totalorder %s28, 1
      %p345 = por %p343, %p344
      %p346 = scmp.ne.s32.totalorder %s335, %s336
      %p347 = scmp.eq.s32.totalorder %s28, 0
      %p348 = por %p346, %p347
      %p349 = scmp.ne.s32.totalorder %s335, %s336
      %p350 = scmp.eq.s32.totalorder %s29, 1
      %p351 = por %p349, %p350
      %p353 = scmp.ne.s32.totalorder %s336, %s352
      %p354 = scmp.eq.s32.totalorder %s29, 0
      %p355 = por %p353, %p354
      %p356 = scmp.le.s32.totalorder 1, %s23
      %p357 = scmp.lt.s32.totalorder %s23, 3
      %p358 = pnand %p356, %p357
      %p359 = pneg %p358
      // Predicated region
      $region9: #{tpu_custom_call.1} parent=5 // pred_check
        _
      $region10: #{tpu_custom_call.1} parent=5 // pred_check_branch
        %361 = sbr.rel (%p358) target = $region12
      $region11: #{tpu_custom_call.1} parent=5 // pred_region
        %s362 = ssub.s32 %s23, 1
        // Predicated region
        $region13: #{tpu_custom_call.1} parent=11 // pred_check
          %p363 = pneg %p70
        $region14: #{tpu_custom_call.1} parent=11 // pred_check_branch
          %365 = sbr.rel (%p363) target = $region16
        $region15: #{tpu_custom_call.1} parent=11 // pred_region
          _
        $region16: #{tpu_custom_call.1} parent=11 // pred_fallthru
          _
        // Predicated region
        $region17: #{tpu_custom_call.1} parent=11 // pred_check
          %p366 = pneg %p91
        $region18: #{tpu_custom_call.1} parent=11 // pred_check_branch
          %368 = sbr.rel (%p366) target = $region20
        $region19: #{tpu_custom_call.1} parent=11 // pred_region
          _
        $region20: #{tpu_custom_call.1} parent=11 // pred_fallthru
          _
        // Predicated region
        $region21: #{tpu_custom_call.1} parent=11 // pred_check
          %p369 = pneg %p112
        $region22: #{tpu_custom_call.1} parent=11 // pred_check_branch
          %371 = sbr.rel (%p369) target = $region24
        $region23: #{tpu_custom_call.1} parent=11 // pred_region
          _
        $region24: #{tpu_custom_call.1} parent=11 // pred_fallthru
          _
        // Predicated region
        $region25: #{tpu_custom_call.1} parent=11 // pred_check
          %p372 = pneg %p133
        $region26: #{tpu_custom_call.1} parent=11 // pred_check_branch
          %374 = sbr.rel (%p372) target = $region28
        $region27: #{tpu_custom_call.1} parent=11 // pred_region
          _
        $region28: #{tpu_custom_call.1} parent=11 // pred_fallthru
          _
        // Predicated region
        $region29: #{tpu_custom_call.1} parent=11 // pred_check
          %p375 = pneg %p154
        $region30: #{tpu_custom_call.1} parent=11 // pred_check_branch
          %377 = sbr.rel (%p375) target = $region32
        $region31: #{tpu_custom_call.1} parent=11 // pred_region
          _
        $region32: #{tpu_custom_call.1} parent=11 // pred_fallthru
          _
        // Predicated region
        $region33: #{tpu_custom_call.1} parent=11 // pred_check
          %p378 = pneg %p175
        $region34: #{tpu_custom_call.1} parent=11 // pred_check_branch
          %380 = sbr.rel (%p378) target = $region36
        $region35: #{tpu_custom_call.1} parent=11 // pred_region
          _
        $region36: #{tpu_custom_call.1} parent=11 // pred_fallthru
          _
        // Predicated region
        $region37: #{tpu_custom_call.1} parent=11 // pred_check
          %p381 = pneg %p196
        $region38: #{tpu_custom_call.1} parent=11 // pred_check_branch
          %383 = sbr.rel (%p381) target = $region40
        $region39: #{tpu_custom_call.1} parent=11 // pred_region
          _
        $region40: #{tpu_custom_call.1} parent=11 // pred_fallthru
          _
        // Predicated region
        $region41: #{tpu_custom_call.1} parent=11 // pred_check
          %p384 = pneg %p217
        $region42: #{tpu_custom_call.1} parent=11 // pred_check_branch
          %386 = sbr.rel (%p384) target = $region44
        $region43: #{tpu_custom_call.1} parent=11 // pred_region
          _
        $region44: #{tpu_custom_call.1} parent=11 // pred_fallthru
          _
        // Predicated region
        $region45: #{tpu_custom_call.1} parent=11 // pred_check
          %p387 = pneg %p238
        $region46: #{tpu_custom_call.1} parent=11 // pred_check_branch
          %389 = sbr.rel (%p387) target = $region48
        $region47: #{tpu_custom_call.1} parent=11 // pred_region
          _
        $region48: #{tpu_custom_call.1} parent=11 // pred_fallthru
          _
        // Predicated region
        $region49: #{tpu_custom_call.1} parent=11 // pred_check
          %p390 = pneg %p259
        $region50: #{tpu_custom_call.1} parent=11 // pred_check_branch
          %392 = sbr.rel (%p390) target = $region52
        $region51: #{tpu_custom_call.1} parent=11 // pred_region
          _
        $region52: #{tpu_custom_call.1} parent=11 // pred_fallthru
          _
        // Predicated region
        $region53: #{tpu_custom_call.1} parent=11 // pred_check
          %p393 = pneg %p280
        $region54: #{tpu_custom_call.1} parent=11 // pred_check_branch
          %395 = sbr.rel (%p393) target = $region56
        $region55: #{tpu_custom_call.1} parent=11 // pred_region
          _
        $region56: #{tpu_custom_call.1} parent=11 // pred_fallthru
          _
        // Predicated region
        $region57: #{tpu_custom_call.1} parent=11 // pred_check
          %p396 = pneg %p301
        $region58: #{tpu_custom_call.1} parent=11 // pred_check_branch
          %398 = sbr.rel (%p396) target = $region60
        $region59: #{tpu_custom_call.1} parent=11 // pred_region
          _
        $region60: #{tpu_custom_call.1} parent=11 // pred_fallthru
          _
        // Predicated region
        $region61: #{tpu_custom_call.1} parent=11 // pred_check
          %p399 = pneg %p322
        $region62: #{tpu_custom_call.1} parent=11 // pred_check_branch
          %401 = sbr.rel (%p399) target = $region64
        $region63: #{tpu_custom_call.1} parent=11 // pred_region
          _
        $region64: #{tpu_custom_call.1} parent=11 // pred_fallthru
          _
      $region12: #{tpu_custom_call.1} parent=5 // pred_fallthru
        _
      %p402 = scmp.lt.s32.totalorder %s23, 2
      // Predicated region
      $region65: #{tpu_custom_call.1} parent=5 // pred_check
        %p403 = pneg %p402
      $region66: #{tpu_custom_call.1} parent=5 // pred_check_branch
        %405 = sbr.rel (%p403) target = $region68
      $region67: #{tpu_custom_call.1} parent=5 // pred_region
        // Predicated region
        $region69: #{tpu_custom_call.1} parent=67 // pred_check
          %p406 = pneg %p43
        $region70: #{tpu_custom_call.1} parent=67 // pred_check_branch
          %408 = sbr.rel (%p406) target = $region72
        $region71: #{tpu_custom_call.1} parent=67 // pred_region
          %p409 = scmp.lt.s32.totalorder %s23, 1
          %s410 = scalar_select %p409, %s23, 1
          %s411 = smul.addr %s410, 8
          %s412 = scalar_lea.vmem %s0, %s411
        $region72: #{tpu_custom_call.1} parent=67 // pred_fallthru
          _
      $region68: #{tpu_custom_call.1} parent=5 // pred_fallthru
        _
      %p413 = scmp.le.s32.totalorder 1, %s23
      %p414 = scmp.lt.s32.totalorder %s23, 3
      %p415 = pnand %p413, %p414
      %p416 = pneg %p415
      // Predicated region
      $region73: #{tpu_custom_call.1} parent=5 // pred_check
        _
      $region74: #{tpu_custom_call.1} parent=5 // pred_check_branch
        %418 = sbr.rel (%p415) target = $region76
      $region75: #{tpu_custom_call.1} parent=5 // pred_region
        %s419 = ssub.s32 %s23, 1
        %p420 = scmp.lt.s32.totalorder %s28, 1
        %s421 = scalar_select %p420, %s28, 1
        %s422 = smul.addr %s421, 8
        %s423 = scalar_lea.vmem %s0, %s422
        %p424 = pneg %p49
        %p425 = pneg %p46
        %p426 = pneg %p70
        %p427 = pneg %p67
        %p428 = pneg %p91
        %p429 = pneg %p88
        %p430 = pneg %p112
        %p431 = pneg %p109
        %p432 = pneg %p133
        %p433 = pneg %p130
        %p434 = pneg %p154
        %p435 = pneg %p151
        %p436 = pneg %p175
        %p437 = pneg %p172
        %p438 = pneg %p196
        %p439 = pneg %p193
        %p440 = pneg %p217
        %p441 = pneg %p214
        %p442 = pneg %p238
        %p443 = pneg %p235
        %p444 = pneg %p259
        %p445 = pneg %p256
        %p446 = pneg %p280
        %p447 = pneg %p277
        %p448 = pneg %p301
        %p449 = pneg %p298
        %p450 = pneg %p322
        %p451 = pneg %p319
        %p452 = pneg %p348
        %p453 = pneg %p345
        %s454 = sand.u32 %s335, 1
        %s455 = scalar_lea.sflag [#allocation3], %s454
        %s456 = sand.u32 %s335, 1
        %s457 = smul.addr %s456, 8
        %s458 = scalar_lea.vmem [#allocation2], %s457
        %p459 = scmp.lt.s32.totalorder %s28, 1
        %s460 = scalar_select %p459, %s28, 1
        %s461 = smul.addr %s460, 8
        %s462 = scalar_lea.vmem %s0, %s461
        %v463 = vld [vmem:[%s462] sm:$0xff]
        %v464 = vmul.f32 %v463, %v463
        %vm465 = vcmask 261120
        %v466 = vsel %vm465, %v464, 0.0
        %467 = vadd.xlane.f32.xlu0 %v466
        %v468 = vpop.xlane.xlu0 %467
        %v469 = vld [vmem:[%s1] sm:$0xff]
        %v470 = vld [vmem:[%s1 + $0x8] sm:$0xff]
        %v471 = vld [vmem:[%s1 + $0x10] sm:$0xff]
        %v472 = vld [vmem:[%s1 + $0x18] sm:$0xff]
        %v473 = vld [vmem:[%s1 + $0x20] sm:$0xff]
        %v474 = vld [vmem:[%s1 + $0x28] sm:$0xff]
        %v475 = vld [vmem:[%s1 + $0x30] sm:$0xff]
        %v476 = vld [vmem:[%s1 + $0x38] sm:$0xff]
        %v477 = vld [vmem:[%s1 + $0x40] sm:$0xff]
        %v478 = vld [vmem:[%s1 + $0x48] sm:$0xff]
        %v479 = vld [vmem:[%s1 + $0x50] sm:$0xff]
        %v480 = vld [vmem:[%s1 + $0x58] sm:$0xff]
        %v481 = vld [vmem:[%s1 + $0x60] sm:$0xff]
        %v482 = vld [vmem:[%s1 + $0x68] sm:$0xff]
        %v483 = vld [vmem:[%s1 + $0x70] sm:$0xff]
        %v484 = vld [vmem:[%s1 + $0x78] sm:$0xff]
        %v486 = vsel %vm465, %v463, 0
        %v489 = vsel %vm465, %v469, 0
        %v492 = vsel %vm465, %v470, 0
        %v495 = vsel %vm465, %v471, 0
        %v498 = vsel %vm465, %v472, 0
        %v501 = vsel %vm465, %v473, 0
        %v504 = vsel %vm465, %v474, 0
        %v507 = vsel %vm465, %v475, 0
        %v510 = vsel %vm465, %v476, 0
        %v513 = vsel %vm465, %v477, 0
        %v516 = vsel %vm465, %v478, 0
        %v519 = vsel %vm465, %v479, 0
        %v522 = vsel %vm465, %v480, 0
        %v525 = vsel %vm465, %v481, 0
        %v528 = vsel %vm465, %v482, 0
        %v531 = vsel %vm465, %v483, 0
        %v534 = vsel %vm465, %v484, 0
        %536 = vmatprep.subr.mxu0 0.0
        %v537 = vand.u32 %v489, 4294901760
        %538 = vmatpush1.xpose.msra.mxu0 %v537
        %539 = vmatprep.subr.mxu0 0.0
        %v540 = vand.u32 %v492, 4294901760
        %541 = vmatpush1.xpose.msra.mxu0 %v540
        %542 = vmatprep.subr.mxu0 0.0
        %v543 = vand.u32 %v495, 4294901760
        %544 = vmatpush1.xpose.msra.mxu0 %v543
        %545 = vmatprep.subr.mxu0 0.0
        %v546 = vand.u32 %v498, 4294901760
        %547 = vmatpush1.xpose.msra.mxu0 %v546
        %548 = vmatprep.subr.mxu0 0.0
        %v549 = vand.u32 %v501, 4294901760
        %550 = vmatpush1.xpose.msra.mxu0 %v549
        %551 = vmatprep.subr.mxu0 0.0
        %v552 = vand.u32 %v504, 4294901760
        %553 = vmatpush1.xpose.msra.mxu0 %v552
        %554 = vmatprep.subr.mxu0 0.0
        %v555 = vand.u32 %v507, 4294901760
        %556 = vmatpush1.xpose.msra.mxu0 %v555
        %557 = vmatprep.subr.mxu0 0.0
        %v558 = vand.u32 %v510, 4294901760
        %559 = vmatpush1.xpose.msra.mxu0 %v558
        %560 = vmatprep.subr.mxu0 0.0
        %v561 = vand.u32 %v513, 4294901760
        %562 = vmatpush1.xpose.msra.mxu0 %v561
        %563 = vmatprep.subr.mxu0 0.0
        %v564 = vand.u32 %v516, 4294901760
        %565 = vmatpush1.xpose.msra.mxu0 %v564
        %566 = vmatprep.subr.mxu0 0.0
        %v567 = vand.u32 %v519, 4294901760
        %568 = vmatpush1.xpose.msra.mxu0 %v567
        %569 = vmatprep.subr.mxu0 0.0
        %v570 = vand.u32 %v522, 4294901760
        %571 = vmatpush1.xpose.msra.mxu0 %v570
        %572 = vmatprep.subr.mxu0 0.0
        %v573 = vand.u32 %v525, 4294901760
        %574 = vmatpush1.xpose.msra.mxu0 %v573
        %575 = vmatprep.subr.mxu0 0.0
        %v576 = vand.u32 %v528, 4294901760
        %577 = vmatpush1.xpose.msra.mxu0 %v576
        %578 = vmatprep.subr.mxu0 0.0
        %v579 = vand.u32 %v531, 4294901760
        %580 = vmatpush1.xpose.msra.mxu0 %v579
        %581 = vmatprep.subr.mxu0 0.0
        %v582 = vand.u32 %v534, 4294901760
        %583 = vmatpush1.xpose.msra.mxu0 %v582
        %584 = vmatprep.subr.mxu0 0.0
        %585 = vmatpush1.xpose.msra.mxu0 0.0
        %586 = vmatprep.subr.mxu0 0.0
        %587 = vmatpush1.xpose.msra.mxu0 0.0
        %588 = vmatprep.subr.mxu0 0.0
        %589 = vmatpush1.xpose.msra.mxu0 0.0
        %590 = vmatprep.subr.mxu0 0.0
        %591 = vmatpush1.xpose.msra.mxu0 0.0
        %592 = vmatprep.subr.mxu0 0.0
        %593 = vmatpush1.xpose.msra.mxu0 0.0
        %594 = vmatprep.subr.mxu0 0.0
        %595 = vmatpush1.xpose.msra.mxu0 0.0
        %596 = vmatprep.subr.mxu0 0.0
        %597 = vmatpush1.xpose.msra.mxu0 0.0
        %598 = vmatprep.subr.mxu0 0.0
        %599 = vmatpush1.xpose.msra.mxu0 0.0
        %600 = vmatprep.subr.mxu0 0.0
        %601 = vmatpush1.xpose.msra.mxu0 0.0
        %602 = vmatprep.subr.mxu0 0.0
        %603 = vmatpush1.xpose.msra.mxu0 0.0
        %604 = vmatprep.subr.mxu0 0.0
        %605 = vmatpush1.xpose.msra.mxu0 0.0
        %606 = vmatprep.subr.mxu0 0.0
        %607 = vmatpush1.xpose.msra.mxu0 0.0
        %608 = vmatprep.subr.mxu0 0.0
        %609 = vmatpush1.xpose.msra.mxu0 0.0
        %610 = vmatprep.subr.mxu0 0.0
        %611 = vmatpush1.xpose.msra.mxu0 0.0
        %612 = vmatprep.subr.mxu0 0.0
        %613 = vmatpush1.xpose.msra.mxu0 0.0
        %614 = vmatprep.subr.mxu0 0.0
        %615 = vmatpush1.xpose.msra.mxu0 0.0
        %616 = vmatprep.mubr.f32.mxu0 0.0
        %v617 = vand.u32 %v486, 4294901760
        %v618 = vsub.f32 %v486, %v617
        %v619 = vand.u32 %v618, 4294901760
        %v620 = vsub.f32 %v618, %v619
        %v621 = vand.u32 %v620, 4294901760
        %622 = vmatmul.mubr.f32.gmra.mrb[0].mxu0 %v621
        %v623 = vpop.f32.mrb[0].mxu0
        %v624 = vadd.f32 0.0, %v623
        %v625 = vpop.f32.mrb[0].mxu0
        %626 = vdwg.mxu0
        %627 = vmatprep.subr.mxu0 0.0
        %v628 = vand.u32 %v489, 4294901760
        %v629 = vsub.f32 %v489, %v628
        %v630 = vand.u32 %v629, 4294901760
        %v631 = vsub.f32 %v629, %v630
        %v632 = vand.u32 %v631, 4294901760
        %633 = vmatpush1.xpose.msra.mxu0 %v632
        %634 = vmatprep.subr.mxu0 0.0
        %v635 = vand.u32 %v492, 4294901760
        %v636 = vsub.f32 %v492, %v635
        %v637 = vand.u32 %v636, 4294901760
        %v638 = vsub.f32 %v636, %v637
        %v639 = vand.u32 %v638, 4294901760
        %640 = vmatpush1.xpose.msra.mxu0 %v639
        %641 = vmatprep.subr.mxu0 0.0
        %v642 = vand.u32 %v495, 4294901760
        %v643 = vsub.f32 %v495, %v642
        %v644 = vand.u32 %v643, 4294901760
        %v645 = vsub.f32 %v643, %v644
        %v646 = vand.u32 %v645, 4294901760
        %647 = vmatpush1.xpose.msra.mxu0 %v646
        %648 = vmatprep.subr.mxu0 0.0
        %v649 = vand.u32 %v498, 4294901760
        %v650 = vsub.f32 %v498, %v649
        %v651 = vand.u32 %v650, 4294901760
        %v652 = vsub.f32 %v650, %v651
        %v653 = vand.u32 %v652, 4294901760
        %654 = vmatpush1.xpose.msra.mxu0 %v653
        %655 = vmatprep.subr.mxu0 0.0
        %v656 = vand.u32 %v501, 4294901760
        %v657 = vsub.f32 %v501, %v656
        %v658 = vand.u32 %v657, 4294901760
        %v659 = vsub.f32 %v657, %v658
        %v660 = vand.u32 %v659, 4294901760
        %661 = vmatpush1.xpose.msra.mxu0 %v660
        %662 = vmatprep.subr.mxu0 0.0
        %v663 = vand.u32 %v504, 4294901760
        %v664 = vsub.f32 %v504, %v663
        %v665 = vand.u32 %v664, 4294901760
        %v666 = vsub.f32 %v664, %v665
        %v667 = vand.u32 %v666, 4294901760
        %668 = vmatpush1.xpose.msra.mxu0 %v667
        %669 = vmatprep.subr.mxu0 0.0
        %v670 = vand.u32 %v507, 4294901760
        %v671 = vsub.f32 %v507, %v670
        %v672 = vand.u32 %v671, 4294901760
        %v673 = vsub.f32 %v671, %v672
        %v674 = vand.u32 %v673, 4294901760
        %675 = vmatpush1.xpose.msra.mxu0 %v674
        %676 = vmatprep.subr.mxu0 0.0
        %v677 = vand.u32 %v510, 4294901760
        %v678 = vsub.f32 %v510, %v677
        %v679 = vand.u32 %v678, 4294901760
        %v680 = vsub.f32 %v678, %v679
        %v681 = vand.u32 %v680, 4294901760
        %682 = vmatpush1.xpose.msra.mxu0 %v681
        %683 = vmatprep.subr.mxu0 0.0
        %v684 = vand.u32 %v513, 4294901760
        %v685 = vsub.f32 %v513, %v684
        %v686 = vand.u32 %v685, 4294901760
        %v687 = vsub.f32 %v685, %v686
        %v688 = vand.u32 %v687, 4294901760
        %689 = vmatpush1.xpose.msra.mxu0 %v688
        %690 = vmatprep.subr.mxu0 0.0
        %v691 = vand.u32 %v516, 4294901760
        %v692 = vsub.f32 %v516, %v691
        %v693 = vand.u32 %v692, 4294901760
        %v694 = vsub.f32 %v692, %v693
        %v695 = vand.u32 %v694, 4294901760
        %696 = vmatpush1.xpose.msra.mxu0 %v695
        %697 = vmatprep.subr.mxu0 0.0
        %v698 = vand.u32 %v519, 4294901760
        %v699 = vsub.f32 %v519, %v698
        %v700 = vand.u32 %v699, 4294901760
        %v701 = vsub.f32 %v699, %v700
        %v702 = vand.u32 %v701, 4294901760
        %703 = vmatpush1.xpose.msra.mxu0 %v702
        %704 = vmatprep.subr.mxu0 0.0
        %v705 = vand.u32 %v522, 4294901760
        %v706 = vsub.f32 %v522, %v705
        %v707 = vand.u32 %v706, 4294901760
        %v708 = vsub.f32 %v706, %v707
        %v709 = vand.u32 %v708, 4294901760
        %710 = vmatpush1.xpose.msra.mxu0 %v709
        %711 = vmatprep.subr.mxu0 0.0
        %v712 = vand.u32 %v525, 4294901760
        %v713 = vsub.f32 %v525, %v712
        %v714 = vand.u32 %v713, 4294901760
        %v715 = vsub.f32 %v713, %v714
        %v716 = vand.u32 %v715, 4294901760
        %717 = vmatpush1.xpose.msra.mxu0 %v716
        %718 = vmatprep.subr.mxu0 0.0
        %v719 = vand.u32 %v528, 4294901760
        %v720 = vsub.f32 %v528, %v719
        %v721 = vand.u32 %v720, 4294901760
        %v722 = vsub.f32 %v720, %v721
        %v723 = vand.u32 %v722, 4294901760
        %724 = vmatpush1.xpose.msra.mxu0 %v723
        %725 = vmatprep.subr.mxu0 0.0
        %v726 = vand.u32 %v531, 4294901760
        %v727 = vsub.f32 %v531, %v726
        %v728 = vand.u32 %v727, 4294901760
        %v729 = vsub.f32 %v727, %v728
        %v730 = vand.u32 %v729, 4294901760
        %731 = vmatpush1.xpose.msra.mxu0 %v730
        %732 = vmatprep.subr.mxu0 0.0
        %v733 = vand.u32 %v534, 4294901760
        %v734 = vsub.f32 %v534, %v733
        %v735 = vand.u32 %v734, 4294901760
        %v736 = vsub.f32 %v734, %v735
        %v737 = vand.u32 %v736, 4294901760
        %738 = vmatpush1.xpose.msra.mxu0 %v737
        %739 = vmatprep.subr.mxu0 0.0
        %740 = vmatpush1.xpose.msra.mxu0 0.0
        %741 = vmatprep.subr.mxu0 0.0
        %742 = vmatpush1.xpose.msra.mxu0 0.0
        %743 = vmatprep.subr.mxu0 0.0
        %744 = vmatpush1.xpose.msra.mxu0 0.0
        %745 = vmatprep.subr.mxu0 0.0
        %746 = vmatpush1.xpose.msra.mxu0 0.0
        %747 = vmatprep.subr.mxu0 0.0
        %748 = vmatpush1.xpose.msra.mxu0 0.0
        %749 = vmatprep.subr.mxu0 0.0
        %750 = vmatpush1.xpose.msra.mxu0 0.0
        %751 = vmatprep.subr.mxu0 0.0
        %752 = vmatpush1.xpose.msra.mxu0 0.0
        %753 = vmatprep.subr.mxu0 0.0
        %754 = vmatpush1.xpose.msra.mxu0 0.0
        %755 = vmatprep.subr.mxu0 0.0
        %756 = vmatpush1.xpose.msra.mxu0 0.0
        %757 = vmatprep.subr.mxu0 0.0
        %758 = vmatpush1.xpose.msra.mxu0 0.0
        %759 = vmatprep.subr.mxu0 0.0
        %760 = vmatpush1.xpose.msra.mxu0 0.0
        %761 = vmatprep.subr.mxu0 0.0
        %762 = vmatpush1.xpose.msra.mxu0 0.0
        %763 = vmatprep.subr.mxu0 0.0
        %764 = vmatpush1.xpose.msra.mxu0 0.0
        %765 = vmatprep.subr.mxu0 0.0
        %766 = vmatpush1.xpose.msra.mxu0 0.0
        %767 = vmatprep.subr.mxu0 0.0
        %768 = vmatpush1.xpose.msra.mxu0 0.0
        %769 = vmatprep.subr.mxu0 0.0
        %770 = vmatpush1.xpose.msra.mxu0 0.0
        %771 = vmatprep.mubr.f32.mxu0 0.0
        %v772 = vand.u32 %v486, 4294901760
        %773 = vmatmul.mubr.f32.gmra.mrb[0].mxu0 %v772
        %v774 = vpop.f32.mrb[0].mxu0
        %v775 = vadd.f32 %v624, %v774
        %v776 = vpop.f32.mrb[0].mxu0
        %777 = vdwg.mxu0
        %778 = vmatprep.subr.mxu0 0.0
        %v779 = vand.u32 %v489, 4294901760
        %v780 = vsub.f32 %v489, %v779
        %781 = vmatpush1.xpose.msra.mxu0 %v780
        %782 = vmatprep.subr.mxu0 0.0
        %v783 = vand.u32 %v492, 4294901760
        %v784 = vsub.f32 %v492, %v783
        %785 = vmatpush1.xpose.msra.mxu0 %v784
        %786 = vmatprep.subr.mxu0 0.0
        %v787 = vand.u32 %v495, 4294901760
        %v788 = vsub.f32 %v495, %v787
        %789 = vmatpush1.xpose.msra.mxu0 %v788
        %790 = vmatprep.subr.mxu0 0.0
        %v791 = vand.u32 %v498, 4294901760
        %v792 = vsub.f32 %v498, %v791
        %793 = vmatpush1.xpose.msra.mxu0 %v792
        %794 = vmatprep.subr.mxu0 0.0
        %v795 = vand.u32 %v501, 4294901760
        %v796 = vsub.f32 %v501, %v795
        %797 = vmatpush1.xpose.msra.mxu0 %v796
        %798 = vmatprep.subr.mxu0 0.0
        %v799 = vand.u32 %v504, 4294901760
        %v800 = vsub.f32 %v504, %v799
        %801 = vmatpush1.xpose.msra.mxu0 %v800
        %802 = vmatprep.subr.mxu0 0.0
        %v803 = vand.u32 %v507, 4294901760
        %v804 = vsub.f32 %v507, %v803
        %805 = vmatpush1.xpose.msra.mxu0 %v804
        %806 = vmatprep.subr.mxu0 0.0
        %v807 = vand.u32 %v510, 4294901760
        %v808 = vsub.f32 %v510, %v807
        %809 = vmatpush1.xpose.msra.mxu0 %v808
        %810 = vmatprep.subr.mxu0 0.0
        %v811 = vand.u32 %v513, 4294901760
        %v812 = vsub.f32 %v513, %v811
        %813 = vmatpush1.xpose.msra.mxu0 %v812
        %814 = vmatprep.subr.mxu0 0.0
        %v815 = vand.u32 %v516, 4294901760
        %v816 = vsub.f32 %v516, %v815
        %817 = vmatpush1.xpose.msra.mxu0 %v816
        %818 = vmatprep.subr.mxu0 0.0
        %v819 = vand.u32 %v519, 4294901760
        %v820 = vsub.f32 %v519, %v819
        %821 = vmatpush1.xpose.msra.mxu0 %v820
        %822 = vmatprep.subr.mxu0 0.0
        %v823 = vand.u32 %v522, 4294901760
        %v824 = vsub.f32 %v522, %v823
        %825 = vmatpush1.xpose.msra.mxu0 %v824
        %826 = vmatprep.subr.mxu0 0.0
        %v827 = vand.u32 %v525, 4294901760
        %v828 = vsub.f32 %v525, %v827
        %829 = vmatpush1.xpose.msra.mxu0 %v828
        %830 = vmatprep.subr.mxu0 0.0
        %v831 = vand.u32 %v528, 4294901760
        %v832 = vsub.f32 %v528, %v831
        %833 = vmatpush1.xpose.msra.mxu0 %v832
        %834 = vmatprep.subr.mxu0 0.0
        %v835 = vand.u32 %v531, 4294901760
        %v836 = vsub.f32 %v531, %v835
        %837 = vmatpush1.xpose.msra.mxu0 %v836
        %838 = vmatprep.subr.mxu0 0.0
        %v839 = vand.u32 %v534, 4294901760
        %v840 = vsub.f32 %v534, %v839
        %841 = vmatpush1.xpose.msra.mxu0 %v840
        %842 = vmatprep.subr.mxu0 0.0
        %843 = vmatpush1.xpose.msra.mxu0 0.0
        %844 = vmatprep.subr.mxu0 0.0
        %845 = vmatpush1.xpose.msra.mxu0 0.0
        %846 = vmatprep.subr.mxu0 0.0
        %847 = vmatpush1.xpose.msra.mxu0 0.0
        %848 = vmatprep.subr.mxu0 0.0
        %849 = vmatpush1.xpose.msra.mxu0 0.0
        %850 = vmatprep.subr.mxu0 0.0
        %851 = vmatpush1.xpose.msra.mxu0 0.0
        %852 = vmatprep.subr.mxu0 0.0
        %853 = vmatpush1.xpose.msra.mxu0 0.0
        %854 = vmatprep.subr.mxu0 0.0
        %855 = vmatpush1.xpose.msra.mxu0 0.0
        %856 = vmatprep.subr.mxu0 0.0
        %857 = vmatpush1.xpose.msra.mxu0 0.0
        %858 = vmatprep.subr.mxu0 0.0
        %859 = vmatpush1.xpose.msra.mxu0 0.0
        %860 = vmatprep.subr.mxu0 0.0
        %861 = vmatpush1.xpose.msra.mxu0 0.0
        %862 = vmatprep.subr.mxu0 0.0
        %863 = vmatpush1.xpose.msra.mxu0 0.0
        %864 = vmatprep.subr.mxu0 0.0
        %865 = vmatpush1.xpose.msra.mxu0 0.0
        %866 = vmatprep.subr.mxu0 0.0
        %867 = vmatpush1.xpose.msra.mxu0 0.0
        %868 = vmatprep.subr.mxu0 0.0
        %869 = vmatpush1.xpose.msra.mxu0 0.0
        %870 = vmatprep.subr.mxu0 0.0
        %871 = vmatpush1.xpose.msra.mxu0 0.0
        %872 = vmatprep.subr.mxu0 0.0
        %873 = vmatpush1.xpose.msra.mxu0 0.0
        %874 = vmatprep.mubr.f32.mxu0 0.0
        %v875 = vand.u32 %v486, 4294901760
        %v876 = vsub.f32 %v486, %v875
        %877 = vmatmul.mubr.f32.gmra.mrb[0].mxu0 %v876
        %v878 = vpop.f32.mrb[0].mxu0
        %v879 = vadd.f32 %v775, %v878
        %v880 = vpop.f32.mrb[0].mxu0
        %881 = vdwg.mxu0
        %882 = vmatprep.subr.mxu0 0.0
        %v883 = vand.u32 %v489, 4294901760
        %884 = vmatpush1.xpose.msra.mxu0 %v883
        %885 = vmatprep.subr.mxu0 0.0
        %v886 = vand.u32 %v492, 4294901760
        %887 = vmatpush1.xpose.msra.mxu0 %v886
        %888 = vmatprep.subr.mxu0 0.0
        %v889 = vand.u32 %v495, 4294901760
        %890 = vmatpush1.xpose.msra.mxu0 %v889
        %891 = vmatprep.subr.mxu0 0.0
        %v892 = vand.u32 %v498, 4294901760
        %893 = vmatpush1.xpose.msra.mxu0 %v892
        %894 = vmatprep.subr.mxu0 0.0
        %v895 = vand.u32 %v501, 4294901760
        %896 = vmatpush1.xpose.msra.mxu0 %v895
        %897 = vmatprep.subr.mxu0 0.0
        %v898 = vand.u32 %v504, 4294901760
        %899 = vmatpush1.xpose.msra.mxu0 %v898
        %900 = vmatprep.subr.mxu0 0.0
        %v901 = vand.u32 %v507, 4294901760
        %902 = vmatpush1.xpose.msra.mxu0 %v901
        %903 = vmatprep.subr.mxu0 0.0
        %v904 = vand.u32 %v510, 4294901760
        %905 = vmatpush1.xpose.msra.mxu0 %v904
        %906 = vmatprep.subr.mxu0 0.0
        %v907 = vand.u32 %v513, 4294901760
        %908 = vmatpush1.xpose.msra.mxu0 %v907
        %909 = vmatprep.subr.mxu0 0.0
        %v910 = vand.u32 %v516, 4294901760
        %911 = vmatpush1.xpose.msra.mxu0 %v910
        %912 = vmatprep.subr.mxu0 0.0
        %v913 = vand.u32 %v519, 4294901760
        %914 = vmatpush1.xpose.msra.mxu0 %v913
        %915 = vmatprep.subr.mxu0 0.0
        %v916 = vand.u32 %v522, 4294901760
        %917 = vmatpush1.xpose.msra.mxu0 %v916
        %918 = vmatprep.subr.mxu0 0.0
        %v919 = vand.u32 %v525, 4294901760
        %920 = vmatpush1.xpose.msra.mxu0 %v919
        %921 = vmatprep.subr.mxu0 0.0
        %v922 = vand.u32 %v528, 4294901760
        %923 = vmatpush1.xpose.msra.mxu0 %v922
        %924 = vmatprep.subr.mxu0 0.0
        %v925 = vand.u32 %v531, 4294901760
        %926 = vmatpush1.xpose.msra.mxu0 %v925
        %927 = vmatprep.subr.mxu0 0.0
        %v928 = vand.u32 %v534, 4294901760
        %929 = vmatpush1.xpose.msra.mxu0 %v928
        %930 = vmatprep.subr.mxu0 0.0
        %931 = vmatpush1.xpose.msra.mxu0 0.0
        %932 = vmatprep.subr.mxu0 0.0
        %933 = vmatpush1.xpose.msra.mxu0 0.0
        %934 = vmatprep.subr.mxu0 0.0
        %935 = vmatpush1.xpose.msra.mxu0 0.0
        %936 = vmatprep.subr.mxu0 0.0
        %937 = vmatpush1.xpose.msra.mxu0 0.0
        %938 = vmatprep.subr.mxu0 0.0
        %939 = vmatpush1.xpose.msra.mxu0 0.0
        %940 = vmatprep.subr.mxu0 0.0
        %941 = vmatpush1.xpose.msra.mxu0 0.0
        %942 = vmatprep.subr.mxu0 0.0
        %943 = vmatpush1.xpose.msra.mxu0 0.0
        %944 = vmatprep.subr.mxu0 0.0
        %945 = vmatpush1.xpose.msra.mxu0 0.0
        %946 = vmatprep.subr.mxu0 0.0
        %947 = vmatpush1.xpose.msra.mxu0 0.0
        %948 = vmatprep.subr.mxu0 0.0
        %949 = vmatpush1.xpose.msra.mxu0 0.0
        %950 = vmatprep.subr.mxu0 0.0
        %951 = vmatpush1.xpose.msra.mxu0 0.0
        %952 = vmatprep.subr.mxu0 0.0
        %953 = vmatpush1.xpose.msra.mxu0 0.0
        %954 = vmatprep.subr.mxu0 0.0
        %955 = vmatpush1.xpose.msra.mxu0 0.0
        %956 = vmatprep.subr.mxu0 0.0
        %957 = vmatpush1.xpose.msra.mxu0 0.0
        %958 = vmatprep.subr.mxu0 0.0
        %959 = vmatpush1.xpose.msra.mxu0 0.0
        %960 = vmatprep.subr.mxu0 0.0
        %961 = vmatpush1.xpose.msra.mxu0 0.0
        %962 = vmatprep.mubr.f32.mxu0 0.0
        %v963 = vand.u32 %v486, 4294901760
        %v964 = vsub.f32 %v486, %v963
        %v965 = vand.u32 %v964, 4294901760
        %966 = vmatmul.mubr.f32.gmra.mrb[0].mxu0 %v965
        %v967 = vpop.f32.mrb[0].mxu0
        %v968 = vadd.f32 %v879, %v967
        %v969 = vpop.f32.mrb[0].mxu0
        %970 = vdwg.mxu0
        %971 = vmatprep.subr.mxu0 0.0
        %v972 = vand.u32 %v489, 4294901760
        %v973 = vsub.f32 %v489, %v972
        %v974 = vand.u32 %v973, 4294901760
        %975 = vmatpush1.xpose.msra.mxu0 %v974
        %976 = vmatprep.subr.mxu0 0.0
        %v977 = vand.u32 %v492, 4294901760
        %v978 = vsub.f32 %v492, %v977
        %v979 = vand.u32 %v978, 4294901760
        %980 = vmatpush1.xpose.msra.mxu0 %v979
        %981 = vmatprep.subr.mxu0 0.0
        %v982 = vand.u32 %v495, 4294901760
        %v983 = vsub.f32 %v495, %v982
        %v984 = vand.u32 %v983, 4294901760
        %985 = vmatpush1.xpose.msra.mxu0 %v984
        %986 = vmatprep.subr.mxu0 0.0
        %v987 = vand.u32 %v498, 4294901760
        %v988 = vsub.f32 %v498, %v987
        %v989 = vand.u32 %v988, 4294901760
        %990 = vmatpush1.xpose.msra.mxu0 %v989
        %991 = vmatprep.subr.mxu0 0.0
        %v992 = vand.u32 %v501, 4294901760
        %v993 = vsub.f32 %v501, %v992
        %v994 = vand.u32 %v993, 4294901760
        %995 = vmatpush1.xpose.msra.mxu0 %v994
        %996 = vmatprep.subr.mxu0 0.0
        %v997 = vand.u32 %v504, 4294901760
        %v998 = vsub.f32 %v504, %v997
        %v999 = vand.u32 %v998, 4294901760
        %1000 = vmatpush1.xpose.msra.mxu0 %v999
        %1001 = vmatprep.subr.mxu0 0.0
        %v1002 = vand.u32 %v507, 4294901760
        %v1003 = vsub.f32 %v507, %v1002
        %v1004 = vand.u32 %v1003, 4294901760
        %1005 = vmatpush1.xpose.msra.mxu0 %v1004
        %1006 = vmatprep.subr.mxu0 0.0
        %v1007 = vand.u32 %v510, 4294901760
        %v1008 = vsub.f32 %v510, %v1007
        %v1009 = vand.u32 %v1008, 4294901760
        %1010 = vmatpush1.xpose.msra.mxu0 %v1009
        %1011 = vmatprep.subr.mxu0 0.0
        %v1012 = vand.u32 %v513, 4294901760
        %v1013 = vsub.f32 %v513, %v1012
        %v1014 = vand.u32 %v1013, 4294901760
        %1015 = vmatpush1.xpose.msra.mxu0 %v1014
        %1016 = vmatprep.subr.mxu0 0.0
        %v1017 = vand.u32 %v516, 4294901760
        %v1018 = vsub.f32 %v516, %v1017
        %v1019 = vand.u32 %v1018, 4294901760
        %1020 = vmatpush1.xpose.msra.mxu0 %v1019
        %1021 = vmatprep.subr.mxu0 0.0
        %v1022 = vand.u32 %v519, 4294901760
        %v1023 = vsub.f32 %v519, %v1022
        %v1024 = vand.u32 %v1023, 4294901760
        %1025 = vmatpush1.xpose.msra.mxu0 %v1024
        %1026 = vmatprep.subr.mxu0 0.0
        %v1027 = vand.u32 %v522, 4294901760
        %v1028 = vsub.f32 %v522, %v1027
        %v1029 = vand.u32 %v1028, 4294901760
        %1030 = vmatpush1.xpose.msra.mxu0 %v1029
        %1031 = vmatprep.subr.mxu0 0.0
        %v1032 = vand.u32 %v525, 4294901760
        %v1033 = vsub.f32 %v525, %v1032
        %v1034 = vand.u32 %v1033, 4294901760
        %1035 = vmatpush1.xpose.msra.mxu0 %v1034
        %1036 = vmatprep.subr.mxu0 0.0
        %v1037 = vand.u32 %v528, 4294901760
        %v1038 = vsub.f32 %v528, %v1037
        %v1039 = vand.u32 %v1038, 4294901760
        %1040 = vmatpush1.xpose.msra.mxu0 %v1039
        %1041 = vmatprep.subr.mxu0 0.0
        %v1042 = vand.u32 %v531, 4294901760
        %v1043 = vsub.f32 %v531, %v1042
        %v1044 = vand.u32 %v1043, 4294901760
        %1045 = vmatpush1.xpose.msra.mxu0 %v1044
        %1046 = vmatprep.subr.mxu0 0.0
        %v1047 = vand.u32 %v534, 4294901760
        %v1048 = vsub.f32 %v534, %v1047
        %v1049 = vand.u32 %v1048, 4294901760
        %1050 = vmatpush1.xpose.msra.mxu0 %v1049
        %1051 = vmatprep.subr.mxu0 0.0
        %1052 = vmatpush1.xpose.msra.mxu0 0.0
        %1053 = vmatprep.subr.mxu0 0.0
        %1054 = vmatpush1.xpose.msra.mxu0 0.0
        %1055 = vmatprep.subr.mxu0 0.0
        %1056 = vmatpush1.xpose.msra.mxu0 0.0
        %1057 = vmatprep.subr.mxu0 0.0
        %1058 = vmatpush1.xpose.msra.mxu0 0.0
        %1059 = vmatprep.subr.mxu0 0.0
        %1060 = vmatpush1.xpose.msra.mxu0 0.0
        %1061 = vmatprep.subr.mxu0 0.0
        %1062 = vmatpush1.xpose.msra.mxu0 0.0
        %1063 = vmatprep.subr.mxu0 0.0
        %1064 = vmatpush1.xpose.msra.mxu0 0.0
        %1065 = vmatprep.subr.mxu0 0.0
        %1066 = vmatpush1.xpose.msra.mxu0 0.0
        %1067 = vmatprep.subr.mxu0 0.0
        %1068 = vmatpush1.xpose.msra.mxu0 0.0
        %1069 = vmatprep.subr.mxu0 0.0
        %1070 = vmatpush1.xpose.msra.mxu0 0.0
        %1071 = vmatprep.subr.mxu0 0.0
        %1072 = vmatpush1.xpose.msra.mxu0 0.0
        %1073 = vmatprep.subr.mxu0 0.0
        %1074 = vmatpush1.xpose.msra.mxu0 0.0
        %1075 = vmatprep.subr.mxu0 0.0
        %1076 = vmatpush1.xpose.msra.mxu0 0.0
        %1077 = vmatprep.subr.mxu0 0.0
        %1078 = vmatpush1.xpose.msra.mxu0 0.0
        %1079 = vmatprep.subr.mxu0 0.0
        %1080 = vmatpush1.xpose.msra.mxu0 0.0
        %1081 = vmatprep.subr.mxu0 0.0
        %1082 = vmatpush1.xpose.msra.mxu0 0.0
        %1083 = vmatprep.mubr.f32.mxu0 0.0
        %v1084 = vand.u32 %v486, 4294901760
        %1085 = vmatmul.mubr.f32.gmra.mrb[0].mxu0 %v1084
        %v1086 = vpop.f32.mrb[0].mxu0
        %v1087 = vadd.f32 %v968, %v1086
        %v1088 = vpop.f32.mrb[0].mxu0
        %1089 = vdwg.mxu0
        %1090 = vmatprep.subr.mxu0 0.0
        %v1091 = vand.u32 %v489, 4294901760
        %1092 = vmatpush1.xpose.msra.mxu0 %v1091
        %1093 = vmatprep.subr.mxu0 0.0
        %v1094 = vand.u32 %v492, 4294901760
        %1095 = vmatpush1.xpose.msra.mxu0 %v1094
        %1096 = vmatprep.subr.mxu0 0.0
        %v1097 = vand.u32 %v495, 4294901760
        %1098 = vmatpush1.xpose.msra.mxu0 %v1097
        %1099 = vmatprep.subr.mxu0 0.0
        %v1100 = vand.u32 %v498, 4294901760
        %1101 = vmatpush1.xpose.msra.mxu0 %v1100
        %1102 = vmatprep.subr.mxu0 0.0
        %v1103 = vand.u32 %v501, 4294901760
        %1104 = vmatpush1.xpose.msra.mxu0 %v1103
        %1105 = vmatprep.subr.mxu0 0.0
        %v1106 = vand.u32 %v504, 4294901760
        %1107 = vmatpush1.xpose.msra.mxu0 %v1106
        %1108 = vmatprep.subr.mxu0 0.0
        %v1109 = vand.u32 %v507, 4294901760
        %1110 = vmatpush1.xpose.msra.mxu0 %v1109
        %1111 = vmatprep.subr.mxu0 0.0
        %v1112 = vand.u32 %v510, 4294901760
        %1113 = vmatpush1.xpose.msra.mxu0 %v1112
        %1114 = vmatprep.subr.mxu0 0.0
        %v1115 = vand.u32 %v513, 4294901760
        %1116 = vmatpush1.xpose.msra.mxu0 %v1115
        %1117 = vmatprep.subr.mxu0 0.0
        %v1118 = vand.u32 %v516, 4294901760
        %1119 = vmatpush1.xpose.msra.mxu0 %v1118
        %1120 = vmatprep.subr.mxu0 0.0
        %v1121 = vand.u32 %v519, 4294901760
        %1122 = vmatpush1.xpose.msra.mxu0 %v1121
        %1123 = vmatprep.subr.mxu0 0.0
        %v1124 = vand.u32 %v522, 4294901760
        %1125 = vmatpush1.xpose.msra.mxu0 %v1124
        %1126 = vmatprep.subr.mxu0 0.0
        %v1127 = vand.u32 %v525, 4294901760
        %1128 = vmatpush1.xpose.msra.mxu0 %v1127
        %1129 = vmatprep.subr.mxu0 0.0
        %v1130 = vand.u32 %v528, 4294901760
        %1131 = vmatpush1.xpose.msra.mxu0 %v1130
        %1132 = vmatprep.subr.mxu0 0.0
        %v1133 = vand.u32 %v531, 4294901760
        %1134 = vmatpush1.xpose.msra.mxu0 %v1133
        %1135 = vmatprep.subr.mxu0 0.0
        %v1136 = vand.u32 %v534, 4294901760
        %1137 = vmatpush1.xpose.msra.mxu0 %v1136
        %1138 = vmatprep.subr.mxu0 0.0
        %1139 = vmatpush1.xpose.msra.mxu0 0.0
        %1140 = vmatprep.subr.mxu0 0.0
        %1141 = vmatpush1.xpose.msra.mxu0 0.0
        %1142 = vmatprep.subr.mxu0 0.0
        %1143 = vmatpush1.xpose.msra.mxu0 0.0
        %1144 = vmatprep.subr.mxu0 0.0
        %1145 = vmatpush1.xpose.msra.mxu0 0.0
        %1146 = vmatprep.subr.mxu0 0.0
        %1147 = vmatpush1.xpose.msra.mxu0 0.0
        %1148 = vmatprep.subr.mxu0 0.0
        %1149 = vmatpush1.xpose.msra.mxu0 0.0
        %1150 = vmatprep.subr.mxu0 0.0
        %1151 = vmatpush1.xpose.msra.mxu0 0.0
        %1152 = vmatprep.subr.mxu0 0.0
        %1153 = vmatpush1.xpose.msra.mxu0 0.0
        %1154 = vmatprep.subr.mxu0 0.0
        %1155 = vmatpush1.xpose.msra.mxu0 0.0
        %1156 = vmatprep.subr.mxu0 0.0
        %1157 = vmatpush1.xpose.msra.mxu0 0.0
        %1158 = vmatprep.subr.mxu0 0.0
        %1159 = vmatpush1.xpose.msra.mxu0 0.0
        %1160 = vmatprep.subr.mxu0 0.0
        %1161 = vmatpush1.xpose.msra.mxu0 0.0
        %1162 = vmatprep.subr.mxu0 0.0
        %1163 = vmatpush1.xpose.msra.mxu0 0.0
        %1164 = vmatprep.subr.mxu0 0.0
        %1165 = vmatpush1.xpose.msra.mxu0 0.0
        %1166 = vmatprep.subr.mxu0 0.0
        %1167 = vmatpush1.xpose.msra.mxu0 0.0
        %1168 = vmatprep.subr.mxu0 0.0
        %1169 = vmatpush1.xpose.msra.mxu0 0.0
        %1170 = vmatprep.mubr.f32.mxu0 0.0
        %v1171 = vand.u32 %v486, 4294901760
        %1172 = vmatmul.mubr.f32.gmra.mrb[0].mxu0 %v1171
        %v1173 = vpop.f32.mrb[0].mxu0
        %v1174 = vadd.f32 %v1087, %v1173
        %v1175 = vpop.f32.mrb[0].mxu0
        %1176 = vdwg.mxu0
        %v1177 = vld [vmem:[%s2] sm:$0x1]
        %v1179 = vlaneseq
        %v1180 = vshrl.u32 %v1179, 7
        %v1181 = vsub.s32 0, %v1180
        %v1182 = vrot.slane %v1177, %v1181
        %v1184 = vmul.f32 %v468, %v1182
        %v1185 = vsub.f32 %v1174, %v1184
        %v1186 = vld [vmem:[%s3] sm:$0x1]
        %v1188 = vlaneseq
        %v1189 = vshrl.u32 %v1188, 7
        %v1190 = vsub.s32 0, %v1189
        %v1191 = vrot.slane %v1186, %v1190
        %v1193 = vadd.f32 %v1185, %v1191
        %v1194 = vmul.f32 %v1193, 1.442695
        %v1195 = vpow.pop %v1194
        %1196 = vadd.xlane.f32.xlu0 %v1195
        %v1197 = vpop.xlane.xlu0 %1196
        %v1198 = vmax.f32 %v1197, 1e-08
        %v1199 = vrcp.pop %v1198
        %v1200 = vmul.f32 %v1195, %v1199
        %v1201 = vld [vmem:[%s4] sm:$0xff]
        %v1202 = vld [vmem:[%s4 + $0x8] sm:$0xff]
        %v1203 = vld [vmem:[%s4 + $0x10] sm:$0xff]
        %v1204 = vld [vmem:[%s4 + $0x18] sm:$0xff]
        %1205 = vmatprep.subr.mxu0 0.0
        %v1206 = vand.u32 %v1201, 4294901760
        %1207 = vmatpush1.msra.mxu0 %v1206
        %1208 = vmatprep.subr.mxu0 0.0
        %v1209 = vand.u32 %v1202, 4294901760
        %1210 = vmatpush1.msra.mxu0 %v1209
        %1211 = vmatprep.subr.mxu0 0.0
        %v1212 = vand.u32 %v1203, 4294901760
        %1213 = vmatpush1.msra.mxu0 %v1212
        %1214 = vmatprep.subr.mxu0 0.0
        %v1215 = vand.u32 %v1204, 4294901760
        %1216 = vmatpush1.msra.mxu0 %v1215
        %1217 = vmatprep.subr.mxu0 0.0
        %1218 = vmatpush1.msra.mxu0 0.0
        %1219 = vmatprep.subr.mxu0 0.0
        %1220 = vmatpush1.msra.mxu0 0.0
        %1221 = vmatprep.subr.mxu0 0.0
        %1222 = vmatpush1.msra.mxu0 0.0
        %1223 = vmatprep.subr.mxu0 0.0
        %1224 = vmatpush1.msra.mxu0 0.0
        %1225 = vmatprep.subr.mxu0 0.0
        %1226 = vmatpush1.msra.mxu0 0.0
        %1227 = vmatprep.subr.mxu0 0.0
        %1228 = vmatpush1.msra.mxu0 0.0
        %1229 = vmatprep.subr.mxu0 0.0
        %1230 = vmatpush1.msra.mxu0 0.0
        %1231 = vmatprep.subr.mxu0 0.0
        %1232 = vmatpush1.msra.mxu0 0.0
        %1233 = vmatprep.subr.mxu0 0.0
        %1234 = vmatpush1.msra.mxu0 0.0
        %1235 = vmatprep.subr.mxu0 0.0
        %1236 = vmatpush1.msra.mxu0 0.0
        %1237 = vmatprep.subr.mxu0 0.0
        %1238 = vmatpush1.msra.mxu0 0.0
        %1239 = vmatprep.subr.mxu0 0.0
        %1240 = vmatpush1.msra.mxu0 0.0
        %1241 = vmatprep.subr.mxu0 0.0
        %1242 = vmatpush1.msra.mxu0 0.0
        %1243 = vmatprep.subr.mxu0 0.0
        %1244 = vmatpush1.msra.mxu0 0.0
        %1245 = vmatprep.subr.mxu0 0.0
        %1246 = vmatpush1.msra.mxu0 0.0
        %1247 = vmatprep.subr.mxu0 0.0
        %1248 = vmatpush1.msra.mxu0 0.0
        %1249 = vmatprep.subr.mxu0 0.0
        %1250 = vmatpush1.msra.mxu0 0.0
        %1251 = vmatprep.subr.mxu0 0.0
        %1252 = vmatpush1.msra.mxu0 0.0
        %1253 = vmatprep.subr.mxu0 0.0
        %1254 = vmatpush1.msra.mxu0 0.0
        %1255 = vmatprep.subr.mxu0 0.0
        %1256 = vmatpush1.msra.mxu0 0.0
        %1257 = vmatprep.subr.mxu0 0.0
        %1258 = vmatpush1.msra.mxu0 0.0
        %1259 = vmatprep.subr.mxu0 0.0
        %1260 = vmatpush1.msra.mxu0 0.0
        %1261 = vmatprep.subr.mxu0 0.0
        %1262 = vmatpush1.msra.mxu0 0.0
        %1263 = vmatprep.subr.mxu0 0.0
        %1264 = vmatpush1.msra.mxu0 0.0
        %1265 = vmatprep.subr.mxu0 0.0
        %1266 = vmatpush1.msra.mxu0 0.0
        %1267 = vmatprep.subr.mxu0 0.0
        %1268 = vmatpush1.msra.mxu0 0.0
        %1269 = vmatprep.subr.mxu0 0.0
        %1270 = vmatpush1.msra.mxu0 0.0
        %1271 = vmatprep.subr.mxu0 0.0
        %1272 = vmatpush1.msra.mxu0 0.0
        %1273 = vmatprep.mubr.f32.mxu0 0.0
        %v1274 = vand.u32 %v486, 4294901760
        %v1275 = vsub.f32 %v486, %v1274
        %v1276 = vand.u32 %v1275, 4294901760
        %v1277 = vsub.f32 %v1275, %v1276
        %v1278 = vand.u32 %v1277, 4294901760
        %1279 = vmatmul.mubr.f32.gmra.mrb[0].mxu0 %v1278
        %v1280 = vpop.f32.mrb[0].mxu0
        %v1281 = vadd.f32 0.0, %v1280
        %v1282 = vpop.f32.mrb[0].mxu0
        %1283 = vdwg.mxu0
        %1284 = vmatprep.subr.mxu0 0.0
        %v1285 = vand.u32 %v1201, 4294901760
        %v1286 = vsub.f32 %v1201, %v1285
        %v1287 = vand.u32 %v1286, 4294901760
        %v1288 = vsub.f32 %v1286, %v1287
        %v1289 = vand.u32 %v1288, 4294901760
        %1290 = vmatpush1.msra.mxu0 %v1289
        %1291 = vmatprep.subr.mxu0 0.0
        %v1292 = vand.u32 %v1202, 4294901760
        %v1293 = vsub.f32 %v1202, %v1292
        %v1294 = vand.u32 %v1293, 4294901760
        %v1295 = vsub.f32 %v1293, %v1294
        %v1296 = vand.u32 %v1295, 4294901760
        %1297 = vmatpush1.msra.mxu0 %v1296
        %1298 = vmatprep.subr.mxu0 0.0
        %v1299 = vand.u32 %v1203, 4294901760
        %v1300 = vsub.f32 %v1203, %v1299
        %v1301 = vand.u32 %v1300, 4294901760
        %v1302 = vsub.f32 %v1300, %v1301
        %v1303 = vand.u32 %v1302, 4294901760
        %1304 = vmatpush1.msra.mxu0 %v1303
        %1305 = vmatprep.subr.mxu0 0.0
        %v1306 = vand.u32 %v1204, 4294901760
        %v1307 = vsub.f32 %v1204, %v1306
        %v1308 = vand.u32 %v1307, 4294901760
        %v1309 = vsub.f32 %v1307, %v1308
        %v1310 = vand.u32 %v1309, 4294901760
        %1311 = vmatpush1.msra.mxu0 %v1310
        %1312 = vmatprep.subr.mxu0 0.0
        %1313 = vmatpush1.msra.mxu0 0.0
        %1314 = vmatprep.subr.mxu0 0.0
        %1315 = vmatpush1.msra.mxu0 0.0
        %1316 = vmatprep.subr.mxu0 0.0
        %1317 = vmatpush1.msra.mxu0 0.0
        %1318 = vmatprep.subr.mxu0 0.0
        %1319 = vmatpush1.msra.mxu0 0.0
        %1320 = vmatprep.subr.mxu0 0.0
        %1321 = vmatpush1.msra.mxu0 0.0
        %1322 = vmatprep.subr.mxu0 0.0
        %1323 = vmatpush1.msra.mxu0 0.0
        %1324 = vmatprep.subr.mxu0 0.0
        %1325 = vmatpush1.msra.mxu0 0.0
        %1326 = vmatprep.subr.mxu0 0.0
        %1327 = vmatpush1.msra.mxu0 0.0
        %1328 = vmatprep.subr.mxu0 0.0
        %1329 = vmatpush1.msra.mxu0 0.0
        %1330 = vmatprep.subr.mxu0 0.0
        %1331 = vmatpush1.msra.mxu0 0.0
        %1332 = vmatprep.subr.mxu0 0.0
        %1333 = vmatpush1.msra.mxu0 0.0
        %1334 = vmatprep.subr.mxu0 0.0
        %1335 = vmatpush1.msra.mxu0 0.0
        %1336 = vmatprep.subr.mxu0 0.0
        %1337 = vmatpush1.msra.mxu0 0.0
        %1338 = vmatprep.subr.mxu0 0.0
        %1339 = vmatpush1.msra.mxu0 0.0
        %1340 = vmatprep.subr.mxu0 0.0
        %1341 = vmatpush1.msra.mxu0 0.0
        %1342 = vmatprep.subr.mxu0 0.0
        %1343 = vmatpush1.msra.mxu0 0.0
        %1344 = vmatprep.subr.mxu0 0.0
        %1345 = vmatpush1.msra.mxu0 0.0
        %1346 = vmatprep.subr.mxu0 0.0
        %1347 = vmatpush1.msra.mxu0 0.0
        %1348 = vmatprep.subr.mxu0 0.0
        %1349 = vmatpush1.msra.mxu0 0.0
        %1350 = vmatprep.subr.mxu0 0.0
        %1351 = vmatpush1.msra.mxu0 0.0
        %1352 = vmatprep.subr.mxu0 0.0
        %1353 = vmatpush1.msra.mxu0 0.0
        %1354 = vmatprep.subr.mxu0 0.0
        %1355 = vmatpush1.msra.mxu0 0.0
        %1356 = vmatprep.subr.mxu0 0.0
        %1357 = vmatpush1.msra.mxu0 0.0
        %1358 = vmatprep.subr.mxu0 0.0
        %1359 = vmatpush1.msra.mxu0 0.0
        %1360 = vmatprep.subr.mxu0 0.0
        %1361 = vmatpush1.msra.mxu0 0.0
        %1362 = vmatprep.subr.mxu0 0.0
        %1363 = vmatpush1.msra.mxu0 0.0
        %1364 = vmatprep.subr.mxu0 0.0
        %1365 = vmatpush1.msra.mxu0 0.0
        %1366 = vmatprep.subr.mxu0 0.0
        %1367 = vmatpush1.msra.mxu0 0.0
        %1368 = vmatprep.mubr.f32.mxu0 0.0
        %v1369 = vand.u32 %v486, 4294901760
        %1370 = vmatmul.mubr.f32.gmra.mrb[0].mxu0 %v1369
        %v1371 = vpop.f32.mrb[0].mxu0
        %v1372 = vadd.f32 %v1281, %v1371
        %v1373 = vpop.f32.mrb[0].mxu0
        %1374 = vdwg.mxu0
        %1375 = vmatprep.subr.mxu0 0.0
        %v1376 = vand.u32 %v1201, 4294901760
        %v1377 = vsub.f32 %v1201, %v1376
        %1378 = vmatpush1.msra.mxu0 %v1377
        %1379 = vmatprep.subr.mxu0 0.0
        %v1380 = vand.u32 %v1202, 4294901760
        %v1381 = vsub.f32 %v1202, %v1380
        %1382 = vmatpush1.msra.mxu0 %v1381
        %1383 = vmatprep.subr.mxu0 0.0
        %v1384 = vand.u32 %v1203, 4294901760
        %v1385 = vsub.f32 %v1203, %v1384
        %1386 = vmatpush1.msra.mxu0 %v1385
        %1387 = vmatprep.subr.mxu0 0.0
        %v1388 = vand.u32 %v1204, 4294901760
        %v1389 = vsub.f32 %v1204, %v1388
        %1390 = vmatpush1.msra.mxu0 %v1389
        %1391 = vmatprep.subr.mxu0 0.0
        %1392 = vmatpush1.msra.mxu0 0.0
        %1393 = vmatprep.subr.mxu0 0.0
        %1394 = vmatpush1.msra.mxu0 0.0
        %1395 = vmatprep.subr.mxu0 0.0
        %1396 = vmatpush1.msra.mxu0 0.0
        %1397 = vmatprep.subr.mxu0 0.0
        %1398 = vmatpush1.msra.mxu0 0.0
        %1399 = vmatprep.subr.mxu0 0.0
        %1400 = vmatpush1.msra.mxu0 0.0
        %1401 = vmatprep.subr.mxu0 0.0
        %1402 = vmatpush1.msra.mxu0 0.0
        %1403 = vmatprep.subr.mxu0 0.0
        %1404 = vmatpush1.msra.mxu0 0.0
        %1405 = vmatprep.subr.mxu0 0.0
        %1406 = vmatpush1.msra.mxu0 0.0
        %1407 = vmatprep.subr.mxu0 0.0
        %1408 = vmatpush1.msra.mxu0 0.0
        %1409 = vmatprep.subr.mxu0 0.0
        %1410 = vmatpush1.msra.mxu0 0.0
        %1411 = vmatprep.subr.mxu0 0.0
        %1412 = vmatpush1.msra.mxu0 0.0
        %1413 = vmatprep.subr.mxu0 0.0
        %1414 = vmatpush1.msra.mxu0 0.0
        %1415 = vmatprep.subr.mxu0 0.0
        %1416 = vmatpush1.msra.mxu0 0.0
        %1417 = vmatprep.subr.mxu0 0.0
        %1418 = vmatpush1.msra.mxu0 0.0
        %1419 = vmatprep.subr.mxu0 0.0
        %1420 = vmatpush1.msra.mxu0 0.0
        %1421 = vmatprep.subr.mxu0 0.0
        %1422 = vmatpush1.msra.mxu0 0.0
        %1423 = vmatprep.subr.mxu0 0.0
        %1424 = vmatpush1.msra.mxu0 0.0
        %1425 = vmatprep.subr.mxu0 0.0
        %1426 = vmatpush1.msra.mxu0 0.0
        %1427 = vmatprep.subr.mxu0 0.0
        %1428 = vmatpush1.msra.mxu0 0.0
        %1429 = vmatprep.subr.mxu0 0.0
        %1430 = vmatpush1.msra.mxu0 0.0
        %1431 = vmatprep.subr.mxu0 0.0
        %1432 = vmatpush1.msra.mxu0 0.0
        %1433 = vmatprep.subr.mxu0 0.0
        %1434 = vmatpush1.msra.mxu0 0.0
        %1435 = vmatprep.subr.mxu0 0.0
        %1436 = vmatpush1.msra.mxu0 0.0
        %1437 = vmatprep.subr.mxu0 0.0
        %1438 = vmatpush1.msra.mxu0 0.0
        %1439 = vmatprep.subr.mxu0 0.0
        %1440 = vmatpush1.msra.mxu0 0.0
        %1441 = vmatprep.subr.mxu0 0.0
        %1442 = vmatpush1.msra.mxu0 0.0
        %1443 = vmatprep.subr.mxu0 0.0
        %1444 = vmatpush1.msra.mxu0 0.0
        %1445 = vmatprep.subr.mxu0 0.0
        %1446 = vmatpush1.msra.mxu0 0.0
        %1447 = vmatprep.mubr.f32.mxu0 0.0
        %v1448 = vand.u32 %v486, 4294901760
        %v1449 = vsub.f32 %v486, %v1448
        %1450 = vmatmul.mubr.f32.gmra.mrb[0].mxu0 %v1449
        %v1451 = vpop.f32.mrb[0].mxu0
        %v1452 = vadd.f32 %v1372, %v1451
        %v1453 = vpop.f32.mrb[0].mxu0
        %1454 = vdwg.mxu0
        %1455 = vmatprep.subr.mxu0 0.0
        %v1456 = vand.u32 %v1201, 4294901760
        %1457 = vmatpush1.msra.mxu0 %v1456
        %1458 = vmatprep.subr.mxu0 0.0
        %v1459 = vand.u32 %v1202, 4294901760
        %1460 = vmatpush1.msra.mxu0 %v1459
        %1461 = vmatprep.subr.mxu0 0.0
        %v1462 = vand.u32 %v1203, 4294901760
        %1463 = vmatpush1.msra.mxu0 %v1462
        %1464 = vmatprep.subr.mxu0 0.0
        %v1465 = vand.u32 %v1204, 4294901760
        %1466 = vmatpush1.msra.mxu0 %v1465
        %1467 = vmatprep.subr.mxu0 0.0
        %1468 = vmatpush1.msra.mxu0 0.0
        %1469 = vmatprep.subr.mxu0 0.0
        %1470 = vmatpush1.msra.mxu0 0.0
        %1471 = vmatprep.subr.mxu0 0.0
        %1472 = vmatpush1.msra.mxu0 0.0
        %1473 = vmatprep.subr.mxu0 0.0
        %1474 = vmatpush1.msra.mxu0 0.0
        %1475 = vmatprep.subr.mxu0 0.0
        %1476 = vmatpush1.msra.mxu0 0.0
        %1477 = vmatprep.subr.mxu0 0.0
        %1478 = vmatpush1.msra.mxu0 0.0
        %1479 = vmatprep.subr.mxu0 0.0
        %1480 = vmatpush1.msra.mxu0 0.0
        %1481 = vmatprep.subr.mxu0 0.0
        %1482 = vmatpush1.msra.mxu0 0.0
        %1483 = vmatprep.subr.mxu0 0.0
        %1484 = vmatpush1.msra.mxu0 0.0
        %1485 = vmatprep.subr.mxu0 0.0
        %1486 = vmatpush1.msra.mxu0 0.0
        %1487 = vmatprep.subr.mxu0 0.0
        %1488 = vmatpush1.msra.mxu0 0.0
        %1489 = vmatprep.subr.mxu0 0.0
        %1490 = vmatpush1.msra.mxu0 0.0
        %1491 = vmatprep.subr.mxu0 0.0
        %1492 = vmatpush1.msra.mxu0 0.0
        %1493 = vmatprep.subr.mxu0 0.0
        %1494 = vmatpush1.msra.mxu0 0.0
        %1495 = vmatprep.subr.mxu0 0.0
        %1496 = vmatpush1.msra.mxu0 0.0
        %1497 = vmatprep.subr.mxu0 0.0
        %1498 = vmatpush1.msra.mxu0 0.0
        %1499 = vmatprep.subr.mxu0 0.0
        %1500 = vmatpush1.msra.mxu0 0.0
        %1501 = vmatprep.subr.mxu0 0.0
        %1502 = vmatpush1.msra.mxu0 0.0
        %1503 = vmatprep.subr.mxu0 0.0
        %1504 = vmatpush1.msra.mxu0 0.0
        %1505 = vmatprep.subr.mxu0 0.0
        %1506 = vmatpush1.msra.mxu0 0.0
        %1507 = vmatprep.subr.mxu0 0.0
        %1508 = vmatpush1.msra.mxu0 0.0
        %1509 = vmatprep.subr.mxu0 0.0
        %1510 = vmatpush1.msra.mxu0 0.0
        %1511 = vmatprep.subr.mxu0 0.0
        %1512 = vmatpush1.msra.mxu0 0.0
        %1513 = vmatprep.subr.mxu0 0.0
        %1514 = vmatpush1.msra.mxu0 0.0
        %1515 = vmatprep.subr.mxu0 0.0
        %1516 = vmatpush1.msra.mxu0 0.0
        %1517 = vmatprep.subr.mxu0 0.0
        %1518 = vmatpush1.msra.mxu0 0.0
        %1519 = vmatprep.subr.mxu0 0.0
        %1520 = vmatpush1.msra.mxu0 0.0
        %1521 = vmatprep.subr.mxu0 0.0
        %1522 = vmatpush1.msra.mxu0 0.0
        %1523 = vmatprep.mubr.f32.mxu0 0.0
        %v1524 = vand.u32 %v486, 4294901760
        %v1525 = vsub.f32 %v486, %v1524
        %v1526 = vand.u32 %v1525, 4294901760
        %1527 = vmatmul.mubr.f32.gmra.mrb[0].mxu0 %v1526
        %v1528 = vpop.f32.mrb[0].mxu0
        %v1529 = vadd.f32 %v1452, %v1528
        %v1530 = vpop.f32.mrb[0].mxu0
        %1531 = vdwg.mxu0
        %1532 = vmatprep.subr.mxu0 0.0
        %v1533 = vand.u32 %v1201, 4294901760
        %v1534 = vsub.f32 %v1201, %v1533
        %v1535 = vand.u32 %v1534, 4294901760
        %1536 = vmatpush1.msra.mxu0 %v1535
        %1537 = vmatprep.subr.mxu0 0.0
        %v1538 = vand.u32 %v1202, 4294901760
        %v1539 = vsub.f32 %v1202, %v1538
        %v1540 = vand.u32 %v1539, 4294901760
        %1541 = vmatpush1.msra.mxu0 %v1540
        %1542 = vmatprep.subr.mxu0 0.0
        %v1543 = vand.u32 %v1203, 4294901760
        %v1544 = vsub.f32 %v1203, %v1543
        %v1545 = vand.u32 %v1544, 4294901760
        %1546 = vmatpush1.msra.mxu0 %v1545
        %1547 = vmatprep.subr.mxu0 0.0
        %v1548 = vand.u32 %v1204, 4294901760
        %v1549 = vsub.f32 %v1204, %v1548
        %v1550 = vand.u32 %v1549, 4294901760
        %1551 = vmatpush1.msra.mxu0 %v1550
        %1552 = vmatprep.subr.mxu0 0.0
        %1553 = vmatpush1.msra.mxu0 0.0
        %1554 = vmatprep.subr.mxu0 0.0
        %1555 = vmatpush1.msra.mxu0 0.0
        %1556 = vmatprep.subr.mxu0 0.0
        %1557 = vmatpush1.msra.mxu0 0.0
        %1558 = vmatprep.subr.mxu0 0.0
        %1559 = vmatpush1.msra.mxu0 0.0
        %1560 = vmatprep.subr.mxu0 0.0
        %1561 = vmatpush1.msra.mxu0 0.0
        %1562 = vmatprep.subr.mxu0 0.0
        %1563 = vmatpush1.msra.mxu0 0.0
        %1564 = vmatprep.subr.mxu0 0.0
        %1565 = vmatpush1.msra.mxu0 0.0
        %1566 = vmatprep.subr.mxu0 0.0
        %1567 = vmatpush1.msra.mxu0 0.0
        %1568 = vmatprep.subr.mxu0 0.0
        %1569 = vmatpush1.msra.mxu0 0.0
        %1570 = vmatprep.subr.mxu0 0.0
        %1571 = vmatpush1.msra.mxu0 0.0
        %1572 = vmatprep.subr.mxu0 0.0
        %1573 = vmatpush1.msra.mxu0 0.0
        %1574 = vmatprep.subr.mxu0 0.0
        %1575 = vmatpush1.msra.mxu0 0.0
        %1576 = vmatprep.subr.mxu0 0.0
        %1577 = vmatpush1.msra.mxu0 0.0
        %1578 = vmatprep.subr.mxu0 0.0
        %1579 = vmatpush1.msra.mxu0 0.0
        %1580 = vmatprep.subr.mxu0 0.0
        %1581 = vmatpush1.msra.mxu0 0.0
        %1582 = vmatprep.subr.mxu0 0.0
        %1583 = vmatpush1.msra.mxu0 0.0
        %1584 = vmatprep.subr.mxu0 0.0
        %1585 = vmatpush1.msra.mxu0 0.0
        %1586 = vmatprep.subr.mxu0 0.0
        %1587 = vmatpush1.msra.mxu0 0.0
        %1588 = vmatprep.subr.mxu0 0.0
        %1589 = vmatpush1.msra.mxu0 0.0
        %1590 = vmatprep.subr.mxu0 0.0
        %1591 = vmatpush1.msra.mxu0 0.0
        %1592 = vmatprep.subr.mxu0 0.0
        %1593 = vmatpush1.msra.mxu0 0.0
        %1594 = vmatprep.subr.mxu0 0.0
        %1595 = vmatpush1.msra.mxu0 0.0
        %1596 = vmatprep.subr.mxu0 0.0
        %1597 = vmatpush1.msra.mxu0 0.0
        %1598 = vmatprep.subr.mxu0 0.0
        %1599 = vmatpush1.msra.mxu0 0.0
        %1600 = vmatprep.subr.mxu0 0.0
        %1601 = vmatpush1.msra.mxu0 0.0
        %1602 = vmatprep.subr.mxu0 0.0
        %1603 = vmatpush1.msra.mxu0 0.0
        %1604 = vmatprep.subr.mxu0 0.0
        %1605 = vmatpush1.msra.mxu0 0.0
        %1606 = vmatprep.subr.mxu0 0.0
        %1607 = vmatpush1.msra.mxu0 0.0
        %1608 = vmatprep.mubr.f32.mxu0 0.0
        %v1609 = vand.u32 %v486, 4294901760
        %1610 = vmatmul.mubr.f32.gmra.mrb[0].mxu0 %v1609
        %v1611 = vpop.f32.mrb[0].mxu0
        %v1612 = vadd.f32 %v1529, %v1611
        %v1613 = vpop.f32.mrb[0].mxu0
        %1614 = vdwg.mxu0
        %1615 = vmatprep.subr.mxu0 0.0
        %v1616 = vand.u32 %v1201, 4294901760
        %1617 = vmatpush1.msra.mxu0 %v1616
        %1618 = vmatprep.subr.mxu0 0.0
        %v1619 = vand.u32 %v1202, 4294901760
        %1620 = vmatpush1.msra.mxu0 %v1619
        %1621 = vmatprep.subr.mxu0 0.0
        %v1622 = vand.u32 %v1203, 4294901760
        %1623 = vmatpush1.msra.mxu0 %v1622
        %1624 = vmatprep.subr.mxu0 0.0
        %v1625 = vand.u32 %v1204, 4294901760
        %1626 = vmatpush1.msra.mxu0 %v1625
        %1627 = vmatprep.subr.mxu0 0.0
        %1628 = vmatpush1.msra.mxu0 0.0
        %1629 = vmatprep.subr.mxu0 0.0
        %1630 = vmatpush1.msra.mxu0 0.0
        %1631 = vmatprep.subr.mxu0 0.0
        %1632 = vmatpush1.msra.mxu0 0.0
        %1633 = vmatprep.subr.mxu0 0.0
        %1634 = vmatpush1.msra.mxu0 0.0
        %1635 = vmatprep.subr.mxu0 0.0
        %1636 = vmatpush1.msra.mxu0 0.0
        %1637 = vmatprep.subr.mxu0 0.0
        %1638 = vmatpush1.msra.mxu0 0.0
        %1639 = vmatprep.subr.mxu0 0.0
        %1640 = vmatpush1.msra.mxu0 0.0
        %1641 = vmatprep.subr.mxu0 0.0
        %1642 = vmatpush1.msra.mxu0 0.0
        %1643 = vmatprep.subr.mxu0 0.0
        %1644 = vmatpush1.msra.mxu0 0.0
        %1645 = vmatprep.subr.mxu0 0.0
        %1646 = vmatpush1.msra.mxu0 0.0
        %1647 = vmatprep.subr.mxu0 0.0
        %1648 = vmatpush1.msra.mxu0 0.0
        %1649 = vmatprep.subr.mxu0 0.0
        %1650 = vmatpush1.msra.mxu0 0.0
        %1651 = vmatprep.subr.mxu0 0.0
        %1652 = vmatpush1.msra.mxu0 0.0
        %1653 = vmatprep.subr.mxu0 0.0
        %1654 = vmatpush1.msra.mxu0 0.0
        %1655 = vmatprep.subr.mxu0 0.0
        %1656 = vmatpush1.msra.mxu0 0.0
        %1657 = vmatprep.subr.mxu0 0.0
        %1658 = vmatpush1.msra.mxu0 0.0
        %1659 = vmatprep.subr.mxu0 0.0
        %1660 = vmatpush1.msra.mxu0 0.0
        %1661 = vmatprep.subr.mxu0 0.0
        %1662 = vmatpush1.msra.mxu0 0.0
        %1663 = vmatprep.subr.mxu0 0.0
        %1664 = vmatpush1.msra.mxu0 0.0
        %1665 = vmatprep.subr.mxu0 0.0
        %1666 = vmatpush1.msra.mxu0 0.0
        %1667 = vmatprep.subr.mxu0 0.0
        %1668 = vmatpush1.msra.mxu0 0.0
        %1669 = vmatprep.subr.mxu0 0.0
        %1670 = vmatpush1.msra.mxu0 0.0
        %1671 = vmatprep.subr.mxu0 0.0
        %1672 = vmatpush1.msra.mxu0 0.0
        %1673 = vmatprep.subr.mxu0 0.0
        %1674 = vmatpush1.msra.mxu0 0.0
        %1675 = vmatprep.subr.mxu0 0.0
        %1676 = vmatpush1.msra.mxu0 0.0
        %1677 = vmatprep.subr.mxu0 0.0
        %1678 = vmatpush1.msra.mxu0 0.0
        %1679 = vmatprep.subr.mxu0 0.0
        %1680 = vmatpush1.msra.mxu0 0.0
        %1681 = vmatprep.subr.mxu0 0.0
        %1682 = vmatpush1.msra.mxu0 0.0
        %1683 = vmatprep.mubr.f32.mxu0 0.0
        %v1684 = vand.u32 %v486, 4294901760
        %1685 = vmatmul.mubr.f32.gmra.mrb[0].mxu0 %v1684
        %v1686 = vpop.f32.mrb[0].mxu0
        %v1687 = vadd.f32 %v1612, %v1686
        %v1688 = vpop.f32.mrb[0].mxu0
        %1689 = vdwg.mxu0
        %1690 = vxpose.xlu0.b32.start [1/16] %v1200, 128
        %1691 = vxpose.xlu0.b32.cont [2/16] 0.0, 128
        %1692 = vxpose.xlu0.b32.cont [3/16] 0.0, 128
        %1693 = vxpose.xlu0.b32.cont [4/16] 0.0, 128
        %1694 = vxpose.xlu0.b32.cont [5/16] 0.0, 128
        %1695 = vxpose.xlu0.b32.cont [6/16] 0.0, 128
        %1696 = vxpose.xlu0.b32.cont [7/16] 0.0, 128
        %1697 = vxpose.xlu0.b32.cont [8/16] 0.0, 128
        %1698 = vxpose.xlu0.b32.cont [9/16] 0.0, 128
        %1699 = vxpose.xlu0.b32.cont [10/16] 0.0, 128
        %1700 = vxpose.xlu0.b32.cont [11/16] 0.0, 128
        %1701 = vxpose.xlu0.b32.cont [12/16] 0.0, 128
        %1702 = vxpose.xlu0.b32.cont [13/16] 0.0, 128
        %1703 = vxpose.xlu0.b32.cont [14/16] 0.0, 128
        %1704 = vxpose.xlu0.b32.cont [15/16] 0.0, 128
        %1705 = vxpose.xlu0.b32.end [16/16] 0.0, 128
        %v1706 = vpop.trf.xlu0
        %v1707 = vpop.trf.xlu0
        %v1708 = vpop.trf.xlu0
        %v1709 = vpop.trf.xlu0
        %v1710 = vpop.trf.xlu0
        %v1711 = vpop.trf.xlu0
        %v1712 = vpop.trf.xlu0
        %v1713 = vpop.trf.xlu0
        %v1714 = vpop.trf.xlu0
        %v1715 = vpop.trf.xlu0
        %v1716 = vpop.trf.xlu0
        %v1717 = vpop.trf.xlu0
        %v1718 = vpop.trf.xlu0
        %v1719 = vpop.trf.xlu0
        %v1720 = vpop.trf.xlu0
        %v1721 = vpop.trf.xlu0
        %vm1722 = vcmask 64512
        %v1724 = vsel %vm1722, %v1706, 0
        %v1727 = vsel %vm1722, %v1707, 0
        %v1730 = vsel %vm1722, %v1708, 0
        %v1733 = vsel %vm1722, %v1709, 0
        %v1736 = vsel %vm1722, %v1710, 0
        %v1739 = vsel %vm1722, %v1711, 0
        %v1742 = vsel %vm1722, %v1712, 0
        %v1745 = vsel %vm1722, %v1713, 0
        %v1748 = vsel %vm1722, %v1714, 0
        %v1751 = vsel %vm1722, %v1715, 0
        %v1754 = vsel %vm1722, %v1716, 0
        %v1757 = vsel %vm1722, %v1717, 0
        %v1760 = vsel %vm1722, %v1718, 0
        %v1763 = vsel %vm1722, %v1719, 0
        %v1766 = vsel %vm1722, %v1720, 0
        %v1769 = vsel %vm1722, %v1721, 0
        %1771 = vmatprep.subr.mxu0 0.0
        %v1772 = vand.u32 %v1687, 4294901760
        %1773 = vmatpush1.msra.mxu0 %v1772
        %1774 = vmatprep.subr.mxu0 0.0
        %1775 = vmatpush1.msra.mxu0 0.0
        %1776 = vmatprep.subr.mxu0 0.0
        %1777 = vmatpush1.msra.mxu0 0.0
        %1778 = vmatprep.subr.mxu0 0.0
        %1779 = vmatpush1.msra.mxu0 0.0
        %1780 = vmatprep.subr.mxu0 0.0
        %1781 = vmatpush1.msra.mxu0 0.0
        %1782 = vmatprep.subr.mxu0 0.0
        %1783 = vmatpush1.msra.mxu0 0.0
        %1784 = vmatprep.subr.mxu0 0.0
        %1785 = vmatpush1.msra.mxu0 0.0
        %1786 = vmatprep.subr.mxu0 0.0
        %1787 = vmatpush1.msra.mxu0 0.0
        %1788 = vmatprep.subr.mxu0 0.0
        %1789 = vmatpush1.msra.mxu0 0.0
        %1790 = vmatprep.subr.mxu0 0.0
        %1791 = vmatpush1.msra.mxu0 0.0
        %1792 = vmatprep.subr.mxu0 0.0
        %1793 = vmatpush1.msra.mxu0 0.0
        %1794 = vmatprep.subr.mxu0 0.0
        %1795 = vmatpush1.msra.mxu0 0.0
        %1796 = vmatprep.subr.mxu0 0.0
        %1797 = vmatpush1.msra.mxu0 0.0
        %1798 = vmatprep.subr.mxu0 0.0
        %1799 = vmatpush1.msra.mxu0 0.0
        %1800 = vmatprep.subr.mxu0 0.0
        %1801 = vmatpush1.msra.mxu0 0.0
        %1802 = vmatprep.subr.mxu0 0.0
        %1803 = vmatpush1.msra.mxu0 0.0
        %1804 = vmatprep.subr.mxu0 0.0
        %1805 = vmatpush1.msra.mxu0 0.0
        %1806 = vmatprep.subr.mxu0 0.0
        %1807 = vmatpush1.msra.mxu0 0.0
        %1808 = vmatprep.subr.mxu0 0.0
        %1809 = vmatpush1.msra.mxu0 0.0
        %1810 = vmatprep.subr.mxu0 0.0
        %1811 = vmatpush1.msra.mxu0 0.0
        %1812 = vmatprep.subr.mxu0 0.0
        %1813 = vmatpush1.msra.mxu0 0.0
        %1814 = vmatprep.subr.mxu0 0.0
        %1815 = vmatpush1.msra.mxu0 0.0
        %1816 = vmatprep.subr.mxu0 0.0
        %1817 = vmatpush1.msra.mxu0 0.0
        %1818 = vmatprep.subr.mxu0 0.0
        %1819 = vmatpush1.msra.mxu0 0.0
        %1820 = vmatprep.subr.mxu0 0.0
        %1821 = vmatpush1.msra.mxu0 0.0
        %1822 = vmatprep.subr.mxu0 0.0
        %1823 = vmatpush1.msra.mxu0 0.0
        %1824 = vmatprep.subr.mxu0 0.0
        %1825 = vmatpush1.msra.mxu0 0.0
        %1826 = vmatprep.subr.mxu0 0.0
        %1827 = vmatpush1.msra.mxu0 0.0
        %1828 = vmatprep.subr.mxu0 0.0
        %1829 = vmatpush1.msra.mxu0 0.0
        %1830 = vmatprep.subr.mxu0 0.0
        %1831 = vmatpush1.msra.mxu0 0.0
        %1832 = vmatprep.subr.mxu0 0.0
        %1833 = vmatpush1.msra.mxu0 0.0
        %1834 = vmatprep.subr.mxu0 0.0
        %1835 = vmatpush1.msra.mxu0 0.0
        %1836 = vmatprep.mubr.f32.mxu0 0.0
        %v1837 = vand.u32 %v1724, 4294901760
        %v1838 = vsub.f32 %v1724, %v1837
        %v1839 = vand.u32 %v1838, 4294901760
        %v1840 = vsub.f32 %v1838, %v1839
        %v1841 = vand.u32 %v1840, 4294901760
        %1842 = vmatmul.mubr.f32.gmra.mrb[0].mxu0 %v1841
        %v1843 = vpop.f32.mrb[0].mxu0
        %v1844 = vadd.f32 0.0, %v1843
        %v1845 = vpop.f32.mrb[0].mxu0
        %1846 = vmatprep.mubr.f32.mxu0 0.0
        %v1847 = vand.u32 %v1727, 4294901760
        %v1848 = vsub.f32 %v1727, %v1847
        %v1849 = vand.u32 %v1848, 4294901760
        %v1850 = vsub.f32 %v1848, %v1849
        %v1851 = vand.u32 %v1850, 4294901760
        %1852 = vmatmul.mubr.f32.gmra.mrb[0].mxu0 %v1851
        %v1853 = vpop.f32.mrb[0].mxu0
        %v1854 = vadd.f32 0.0, %v1853
        %v1855 = vpop.f32.mrb[0].mxu0
        %1856 = vmatprep.mubr.f32.mxu0 0.0
        %v1857 = vand.u32 %v1730, 4294901760
        %v1858 = vsub.f32 %v1730, %v1857
        %v1859 = vand.u32 %v1858, 4294901760
        %v1860 = vsub.f32 %v1858, %v1859
        %v1861 = vand.u32 %v1860, 4294901760
        %1862 = vmatmul.mubr.f32.gmra.mrb[0].mxu0 %v1861
        %v1863 = vpop.f32.mrb[0].mxu0
        %v1864 = vadd.f32 0.0, %v1863
        %v1865 = vpop.f32.mrb[0].mxu0
        %1866 = vmatprep.mubr.f32.mxu0 0.0
        %v1867 = vand.u32 %v1733, 4294901760
        %v1868 = vsub.f32 %v1733, %v1867
        %v1869 = vand.u32 %v1868, 4294901760
        %v1870 = vsub.f32 %v1868, %v1869
        %v1871 = vand.u32 %v1870, 4294901760
        %1872 = vmatmul.mubr.f32.gmra.mrb[0].mxu0 %v1871
        %v1873 = vpop.f32.mrb[0].mxu0
        %v1874 = vadd.f32 0.0, %v1873
        %v1875 = vpop.f32.mrb[0].mxu0
        %1876 = vmatprep.mubr.f32.mxu0 0.0
        %v1877 = vand.u32 %v1736, 4294901760
        %v1878 = vsub.f32 %v1736, %v1877
        %v1879 = vand.u32 %v1878, 4294901760
        %v1880 = vsub.f32 %v1878, %v1879
        %v1881 = vand.u32 %v1880, 4294901760
        %1882 = vmatmul.mubr.f32.gmra.mrb[0].mxu0 %v1881
        %v1883 = vpop.f32.mrb[0].mxu0
        %v1884 = vadd.f32 0.0, %v1883
        %v1885 = vpop.f32.mrb[0].mxu0
        %1886 = vmatprep.mubr.f32.mxu0 0.0
        %v1887 = vand.u32 %v1739, 4294901760
        %v1888 = vsub.f32 %v1739, %v1887
        %v1889 = vand.u32 %v1888, 4294901760
        %v1890 = vsub.f32 %v1888, %v1889
        %v1891 = vand.u32 %v1890, 4294901760
        %1892 = vmatmul.mubr.f32.gmra.mrb[0].mxu0 %v1891
        %v1893 = vpop.f32.mrb[0].mxu0
        %v1894 = vadd.f32 0.0, %v1893
        %v1895 = vpop.f32.mrb[0].mxu0
        %1896 = vmatprep.mubr.f32.mxu0 0.0
        %v1897 = vand.u32 %v1742, 4294901760
        %v1898 = vsub.f32 %v1742, %v1897
        %v1899 = vand.u32 %v1898, 4294901760
        %v1900 = vsub.f32 %v1898, %v1899
        %v1901 = vand.u32 %v1900, 4294901760
        %1902 = vmatmul.mubr.f32.gmra.mrb[0].mxu0 %v1901
        %v1903 = vpop.f32.mrb[0].mxu0
        %v1904 = vadd.f32 0.0, %v1903
        %v1905 = vpop.f32.mrb[0].mxu0
        %1906 = vmatprep.mubr.f32.mxu0 0.0
        %v1907 = vand.u32 %v1745, 4294901760
        %v1908 = vsub.f32 %v1745, %v1907
        %v1909 = vand.u32 %v1908, 4294901760
        %v1910 = vsub.f32 %v1908, %v1909
        %v1911 = vand.u32 %v1910, 4294901760
        %1912 = vmatmul.mubr.f32.gmra.mrb[0].mxu0 %v1911
        %v1913 = vpop.f32.mrb[0].mxu0
        %v1914 = vadd.f32 0.0, %v1913
        %v1915 = vpop.f32.mrb[0].mxu0
        %1916 = vmatprep.mubr.f32.mxu0 0.0
        %v1917 = vand.u32 %v1748, 4294901760
        %v1918 = vsub.f32 %v1748, %v1917
        %v1919 = vand.u32 %v1918, 4294901760
        %v1920 = vsub.f32 %v1918, %v1919
        %v1921 = vand.u32 %v1920, 4294901760
        %1922 = vmatmul.mubr.f32.gmra.mrb[0].mxu0 %v1921
        %v1923 = vpop.f32.mrb[0].mxu0
        %v1924 = vadd.f32 0.0, %v1923
        %v1925 = vpop.f32.mrb[0].mxu0
        %1926 = vmatprep.mubr.f32.mxu0 0.0
        %v1927 = vand.u32 %v1751, 4294901760
        %v1928 = vsub.f32 %v1751, %v1927
        %v1929 = vand.u32 %v1928, 4294901760
        %v1930 = vsub.f32 %v1928, %v1929
        %v1931 = vand.u32 %v1930, 4294901760
        %1932 = vmatmul.mubr.f32.gmra.mrb[0].mxu0 %v1931
        %v1933 = vpop.f32.mrb[0].mxu0
        %v1934 = vadd.f32 0.0, %v1933
        %v1935 = vpop.f32.mrb[0].mxu0
        %1936 = vmatprep.mubr.f32.mxu0 0.0
        %v1937 = vand.u32 %v1754, 4294901760
        %v1938 = vsub.f32 %v1754, %v1937
        %v1939 = vand.u32 %v1938, 4294901760
        %v1940 = vsub.f32 %v1938, %v1939
        %v1941 = vand.u32 %v1940, 4294901760
        %1942 = vmatmul.mubr.f32.gmra.mrb[0].mxu0 %v1941
        %v1943 = vpop.f32.mrb[0].mxu0
        %v1944 = vadd.f32 0.0, %v1943
        %v1945 = vpop.f32.mrb[0].mxu0
        %1946 = vmatprep.mubr.f32.mxu0 0.0
        %v1947 = vand.u32 %v1757, 4294901760
        %v1948 = vsub.f32 %v1757, %v1947
        %v1949 = vand.u32 %v1948, 4294901760
        %v1950 = vsub.f32 %v1948, %v1949
        %v1951 = vand.u32 %v1950, 4294901760
        %1952 = vmatmul.mubr.f32.gmra.mrb[0].mxu0 %v1951
        %v1953 = vpop.f32.mrb[0].mxu0
        %v1954 = vadd.f32 0.0, %v1953
        %v1955 = vpop.f32.mrb[0].mxu0
        %1956 = vmatprep.mubr.f32.mxu0 0.0
        %v1957 = vand.u32 %v1760, 4294901760
        %v1958 = vsub.f32 %v1760, %v1957
        %v1959 = vand.u32 %v1958, 4294901760
        %v1960 = vsub.f32 %v1958, %v1959
        %v1961 = vand.u32 %v1960, 4294901760
        %1962 = vmatmul.mubr.f32.gmra.mrb[0].mxu0 %v1961
        %v1963 = vpop.f32.mrb[0].mxu0
        %v1964 = vadd.f32 0.0, %v1963
        %v1965 = vpop.f32.mrb[0].mxu0
        %1966 = vmatprep.mubr.f32.mxu0 0.0
        %v1967 = vand.u32 %v1763, 4294901760
        %v1968 = vsub.f32 %v1763, %v1967
        %v1969 = vand.u32 %v1968, 4294901760
        %v1970 = vsub.f32 %v1968, %v1969
        %v1971 = vand.u32 %v1970, 4294901760
        %1972 = vmatmul.mubr.f32.gmra.mrb[0].mxu0 %v1971
        %v1973 = vpop.f32.mrb[0].mxu0
        %v1974 = vadd.f32 0.0, %v1973
        %v1975 = vpop.f32.mrb[0].mxu0
        %1976 = vmatprep.mubr.f32.mxu0 0.0
        %v1977 = vand.u32 %v1766, 4294901760
        %v1978 = vsub.f32 %v1766, %v1977
        %v1979 = vand.u32 %v1978, 4294901760
        %v1980 = vsub.f32 %v1978, %v1979
        %v1981 = vand.u32 %v1980, 4294901760
        %1982 = vmatmul.mubr.f32.gmra.mrb[0].mxu0 %v1981
        %v1983 = vpop.f32.mrb[0].mxu0
        %v1984 = vadd.f32 0.0, %v1983
        %v1985 = vpop.f32.mrb[0].mxu0
        %1986 = vmatprep.mubr.f32.mxu0 0.0
        %v1987 = vand.u32 %v1769, 4294901760
        %v1988 = vsub.f32 %v1769, %v1987
        %v1989 = vand.u32 %v1988, 4294901760
        %v1990 = vsub.f32 %v1988, %v1989
        %v1991 = vand.u32 %v1990, 4294901760
        %1992 = vmatmul.mubr.f32.gmra.mrb[0].mxu0 %v1991
        %v1993 = vpop.f32.mrb[0].mxu0
        %v1994 = vadd.f32 0.0, %v1993
        %v1995 = vpop.f32.mrb[0].mxu0
        %1996 = vdwg.mxu0
        %1997 = vmatprep.subr.mxu0 0.0
        %v1998 = vand.u32 %v1687, 4294901760
        %v1999 = vsub.f32 %v1687, %v1998
        %v2000 = vand.u32 %v1999, 4294901760
        %v2001 = vsub.f32 %v1999, %v2000
        %v2002 = vand.u32 %v2001, 4294901760
        %2003 = vmatpush1.msra.mxu0 %v2002
        %2004 = vmatprep.subr.mxu0 0.0
        %2005 = vmatpush1.msra.mxu0 0.0
        %2006 = vmatprep.subr.mxu0 0.0
        %2007 = vmatpush1.msra.mxu0 0.0
        %2008 = vmatprep.subr.mxu0 0.0
        %2009 = vmatpush1.msra.mxu0 0.0
        %2010 = vmatprep.subr.mxu0 0.0
        %2011 = vmatpush1.msra.mxu0 0.0
        %2012 = vmatprep.subr.mxu0 0.0
        %2013 = vmatpush1.msra.mxu0 0.0
        %2014 = vmatprep.subr.mxu0 0.0
        %2015 = vmatpush1.msra.mxu0 0.0
        %2016 = vmatprep.subr.mxu0 0.0
        %2017 = vmatpush1.msra.mxu0 0.0
        %2018 = vmatprep.subr.mxu0 0.0
        %2019 = vmatpush1.msra.mxu0 0.0
        %2020 = vmatprep.subr.mxu0 0.0
        %2021 = vmatpush1.msra.mxu0 0.0
        %2022 = vmatprep.subr.mxu0 0.0
        %2023 = vmatpush1.msra.mxu0 0.0
        %2024 = vmatprep.subr.mxu0 0.0
        %2025 = vmatpush1.msra.mxu0 0.0
        %2026 = vmatprep.subr.mxu0 0.0
        %2027 = vmatpush1.msra.mxu0 0.0
        %2028 = vmatprep.subr.mxu0 0.0
        %2029 = vmatpush1.msra.mxu0 0.0
        %2030 = vmatprep.subr.mxu0 0.0
        %2031 = vmatpush1.msra.mxu0 0.0
        %2032 = vmatprep.subr.mxu0 0.0
        %2033 = vmatpush1.msra.mxu0 0.0
        %2034 = vmatprep.subr.mxu0 0.0
        %2035 = vmatpush1.msra.mxu0 0.0
        %2036 = vmatprep.subr.mxu0 0.0
        %2037 = vmatpush1.msra.mxu0 0.0
        %2038 = vmatprep.subr.mxu0 0.0
        %2039 = vmatpush1.msra.mxu0 0.0
        %2040 = vmatprep.subr.mxu0 0.0
        %2041 = vmatpush1.msra.mxu0 0.0
        %2042 = vmatprep.subr.mxu0 0.0
        %2043 = vmatpush1.msra.mxu0 0.0
        %2044 = vmatprep.subr.mxu0 0.0
        %2045 = vmatpush1.msra.mxu0 0.0
        %2046 = vmatprep.subr.mxu0 0.0
        %2047 = vmatpush1.msra.mxu0 0.0
        %2048 = vmatprep.subr.mxu0 0.0
        %2049 = vmatpush1.msra.mxu0 0.0
        %2050 = vmatprep.subr.mxu0 0.0
        %2051 = vmatpush1.msra.mxu0 0.0
        %2052 = vmatprep.subr.mxu0 0.0
        %2053 = vmatpush1.msra.mxu0 0.0
        %2054 = vmatprep.subr.mxu0 0.0
        %2055 = vmatpush1.msra.mxu0 0.0
        %2056 = vmatprep.subr.mxu0 0.0
        %2057 = vmatpush1.msra.mxu0 0.0
        %2058 = vmatprep.subr.mxu0 0.0
        %2059 = vmatpush1.msra.mxu0 0.0
        %2060 = vmatprep.subr.mxu0 0.0
        %2061 = vmatpush1.msra.mxu0 0.0
        %2062 = vmatprep.subr.mxu0 0.0
        %2063 = vmatpush1.msra.mxu0 0.0
        %2064 = vmatprep.subr.mxu0 0.0
        %2065 = vmatpush1.msra.mxu0 0.0
        %2066 = vmatprep.mubr.f32.mxu0 0.0
        %v2067 = vand.u32 %v1724, 4294901760
        %2068 = vmatmul.mubr.f32.gmra.mrb[0].mxu0 %v2067
        %v2069 = vpop.f32.mrb[0].mxu0
        %v2070 = vadd.f32 %v1844, %v2069
        %v2071 = vpop.f32.mrb[0].mxu0
        %2072 = vmatprep.mubr.f32.mxu0 0.0
        %v2073 = vand.u32 %v1727, 4294901760
        %2074 = vmatmul.mubr.f32.gmra.mrb[0].mxu0 %v2073
        %v2075 = vpop.f32.mrb[0].mxu0
        %v2076 = vadd.f32 %v1854, %v2075
        %v2077 = vpop.f32.mrb[0].mxu0
        %2078 = vmatprep.mubr.f32.mxu0 0.0
        %v2079 = vand.u32 %v1730, 4294901760
        %2080 = vmatmul.mubr.f32.gmra.mrb[0].mxu0 %v2079
        %v2081 = vpop.f32.mrb[0].mxu0
        %v2082 = vadd.f32 %v1864, %v2081
        %v2083 = vpop.f32.mrb[0].mxu0
        %2084 = vmatprep.mubr.f32.mxu0 0.0
        %v2085 = vand.u32 %v1733, 4294901760
        %2086 = vmatmul.mubr.f32.gmra.mrb[0].mxu0 %v2085
        %v2087 = vpop.f32.mrb[0].mxu0
        %v2088 = vadd.f32 %v1874, %v2087
        %v2089 = vpop.f32.mrb[0].mxu0
        %2090 = vmatprep.mubr.f32.mxu0 0.0
        %v2091 = vand.u32 %v1736, 4294901760
        %2092 = vmatmul.mubr.f32.gmra.mrb[0].mxu0 %v2091
        %v2093 = vpop.f32.mrb[0].mxu0
        %v2094 = vadd.f32 %v1884, %v2093
        %v2095 = vpop.f32.mrb[0].mxu0
        %2096 = vmatprep.mubr.f32.mxu0 0.0
        %v2097 = vand.u32 %v1739, 4294901760
        %2098 = vmatmul.mubr.f32.gmra.mrb[0].mxu0 %v2097
        %v2099 = vpop.f32.mrb[0].mxu0
        %v2100 = vadd.f32 %v1894, %v2099
        %v2101 = vpop.f32.mrb[0].mxu0
        %2102 = vmatprep.mubr.f32.mxu0 0.0
        %v2103 = vand.u32 %v1742, 4294901760
        %2104 = vmatmul.mubr.f32.gmra.mrb[0].mxu0 %v2103
        %v2105 = vpop.f32.mrb[0].mxu0
        %v2106 = vadd.f32 %v1904, %v2105
        %v2107 = vpop.f32.mrb[0].mxu0
        %2108 = vmatprep.mubr.f32.mxu0 0.0
        %v2109 = vand.u32 %v1745, 4294901760
        %2110 = vmatmul.mubr.f32.gmra.mrb[0].mxu0 %v2109
        %v2111 = vpop.f32.mrb[0].mxu0
        %v2112 = vadd.f32 %v1914, %v2111
        %v2113 = vpop.f32.mrb[0].mxu0
        %2114 = vmatprep.mubr.f32.mxu0 0.0
        %v2115 = vand.u32 %v1748, 4294901760
        %2116 = vmatmul.mubr.f32.gmra.mrb[0].mxu0 %v2115
        %v2117 = vpop.f32.mrb[0].mxu0
        %v2118 = vadd.f32 %v1924, %v2117
        %v2119 = vpop.f32.mrb[0].mxu0
        %2120 = vmatprep.mubr.f32.mxu0 0.0
        %v2121 = vand.u32 %v1751, 4294901760
        %2122 = vmatmul.mubr.f32.gmra.mrb[0].mxu0 %v2121
        %v2123 = vpop.f32.mrb[0].mxu0
        %v2124 = vadd.f32 %v1934, %v2123
        %v2125 = vpop.f32.mrb[0].mxu0
        %2126 = vmatprep.mubr.f32.mxu0 0.0
        %v2127 = vand.u32 %v1754, 4294901760
        %2128 = vmatmul.mubr.f32.gmra.mrb[0].mxu0 %v2127
        %v2129 = vpop.f32.mrb[0].mxu0
        %v2130 = vadd.f32 %v1944, %v2129
        %v2131 = vpop.f32.mrb[0].mxu0
        %2132 = vmatprep.mubr.f32.mxu0 0.0
        %v2133 = vand.u32 %v1757, 4294901760
        %2134 = vmatmul.mubr.f32.gmra.mrb[0].mxu0 %v2133
        %v2135 = vpop.f32.mrb[0].mxu0
        %v2136 = vadd.f32 %v1954, %v2135
        %v2137 = vpop.f32.mrb[0].mxu0
        %2138 = vmatprep.mubr.f32.mxu0 0.0
        %v2139 = vand.u32 %v1760, 4294901760
        %2140 = vmatmul.mubr.f32.gmra.mrb[0].mxu0 %v2139
        %v2141 = vpop.f32.mrb[0].mxu0
        %v2142 = vadd.f32 %v1964, %v2141
        %v2143 = vpop.f32.mrb[0].mxu0
        %2144 = vmatprep.mubr.f32.mxu0 0.0
        %v2145 = vand.u32 %v1763, 4294901760
        %2146 = vmatmul.mubr.f32.gmra.mrb[0].mxu0 %v2145
        %v2147 = vpop.f32.mrb[0].mxu0
        %v2148 = vadd.f32 %v1974, %v2147
        %v2149 = vpop.f32.mrb[0].mxu0
        %2150 = vmatprep.mubr.f32.mxu0 0.0
        %v2151 = vand.u32 %v1766, 4294901760
        %2152 = vmatmul.mubr.f32.gmra.mrb[0].mxu0 %v2151
        %v2153 = vpop.f32.mrb[0].mxu0
        %v2154 = vadd.f32 %v1984, %v2153
        %v2155 = vpop.f32.mrb[0].mxu0
        %2156 = vmatprep.mubr.f32.mxu0 0.0
        %v2157 = vand.u32 %v1769, 4294901760
        %2158 = vmatmul.mubr.f32.gmra.mrb[0].mxu0 %v2157
        %v2159 = vpop.f32.mrb[0].mxu0
        %v2160 = vadd.f32 %v1994, %v2159
        %v2161 = vpop.f32.mrb[0].mxu0
        %2162 = vdwg.mxu0
        %2163 = vmatprep.subr.mxu0 0.0
        %v2164 = vand.u32 %v1687, 4294901760
        %v2165 = vsub.f32 %v1687, %v2164
        %2166 = vmatpush1.msra.mxu0 %v2165
        %2167 = vmatprep.subr.mxu0 0.0
        %2168 = vmatpush1.msra.mxu0 0.0
        %2169 = vmatprep.subr.mxu0 0.0
        %2170 = vmatpush1.msra.mxu0 0.0
        %2171 = vmatprep.subr.mxu0 0.0
        %2172 = vmatpush1.msra.mxu0 0.0
        %2173 = vmatprep.subr.mxu0 0.0
        %2174 = vmatpush1.msra.mxu0 0.0
        %2175 = vmatprep.subr.mxu0 0.0
        %2176 = vmatpush1.msra.mxu0 0.0
        %2177 = vmatprep.subr.mxu0 0.0
        %2178 = vmatpush1.msra.mxu0 0.0
        %2179 = vmatprep.subr.mxu0 0.0
        %2180 = vmatpush1.msra.mxu0 0.0
        %2181 = vmatprep.subr.mxu0 0.0
        %2182 = vmatpush1.msra.mxu0 0.0
        %2183 = vmatprep.subr.mxu0 0.0
        %2184 = vmatpush1.msra.mxu0 0.0
        %2185 = vmatprep.subr.mxu0 0.0
        %2186 = vmatpush1.msra.mxu0 0.0
        %2187 = vmatprep.subr.mxu0 0.0
        %2188 = vmatpush1.msra.mxu0 0.0
        %2189 = vmatprep.subr.mxu0 0.0
        %2190 = vmatpush1.msra.mxu0 0.0
        %2191 = vmatprep.subr.mxu0 0.0
        %2192 = vmatpush1.msra.mxu0 0.0
        %2193 = vmatprep.subr.mxu0 0.0
        %2194 = vmatpush1.msra.mxu0 0.0
        %2195 = vmatprep.subr.mxu0 0.0
        %2196 = vmatpush1.msra.mxu0 0.0
        %2197 = vmatprep.subr.mxu0 0.0
        %2198 = vmatpush1.msra.mxu0 0.0
        %2199 = vmatprep.subr.mxu0 0.0
        %2200 = vmatpush1.msra.mxu0 0.0
        %2201 = vmatprep.subr.mxu0 0.0
        %2202 = vmatpush1.msra.mxu0 0.0
        %2203 = vmatprep.subr.mxu0 0.0
        %2204 = vmatpush1.msra.mxu0 0.0
        %2205 = vmatprep.subr.mxu0 0.0
        %2206 = vmatpush1.msra.mxu0 0.0
        %2207 = vmatprep.subr.mxu0 0.0
        %2208 = vmatpush1.msra.mxu0 0.0
        %2209 = vmatprep.subr.mxu0 0.0
        %2210 = vmatpush1.msra.mxu0 0.0
        %2211 = vmatprep.subr.mxu0 0.0
        %2212 = vmatpush1.msra.mxu0 0.0
        %2213 = vmatprep.subr.mxu0 0.0
        %2214 = vmatpush1.msra.mxu0 0.0
        %2215 = vmatprep.subr.mxu0 0.0
        %2216 = vmatpush1.msra.mxu0 0.0
        %2217 = vmatprep.subr.mxu0 0.0
        %2218 = vmatpush1.msra.mxu0 0.0
        %2219 = vmatprep.subr.mxu0 0.0
        %2220 = vmatpush1.msra.mxu0 0.0
        %2221 = vmatprep.subr.mxu0 0.0
        %2222 = vmatpush1.msra.mxu0 0.0
        %2223 = vmatprep.subr.mxu0 0.0
        %2224 = vmatpush1.msra.mxu0 0.0
        %2225 = vmatprep.subr.mxu0 0.0
        %2226 = vmatpush1.msra.mxu0 0.0
        %2227 = vmatprep.subr.mxu0 0.0
        %2228 = vmatpush1.msra.mxu0 0.0
        %2229 = vmatprep.mubr.f32.mxu0 0.0
        %v2230 = vand.u32 %v1724, 4294901760
        %v2231 = vsub.f32 %v1724, %v2230
        %2232 = vmatmul.mubr.f32.gmra.mrb[0].mxu0 %v2231
        %v2233 = vpop.f32.mrb[0].mxu0
        %v2234 = vadd.f32 %v2070, %v2233
        %v2235 = vpop.f32.mrb[0].mxu0
        %2236 = vmatprep.mubr.f32.mxu0 0.0
        %v2237 = vand.u32 %v1727, 4294901760
        %v2238 = vsub.f32 %v1727, %v2237
        %2239 = vmatmul.mubr.f32.gmra.mrb[0].mxu0 %v2238
        %v2240 = vpop.f32.mrb[0].mxu0
        %v2241 = vadd.f32 %v2076, %v2240
        %v2242 = vpop.f32.mrb[0].mxu0
        %2243 = vmatprep.mubr.f32.mxu0 0.0
        %v2244 = vand.u32 %v1730, 4294901760
        %v2245 = vsub.f32 %v1730, %v2244
        %2246 = vmatmul.mubr.f32.gmra.mrb[0].mxu0 %v2245
        %v2247 = vpop.f32.mrb[0].mxu0
        %v2248 = vadd.f32 %v2082, %v2247
        %v2249 = vpop.f32.mrb[0].mxu0
        %2250 = vmatprep.mubr.f32.mxu0 0.0
        %v2251 = vand.u32 %v1733, 4294901760
        %v2252 = vsub.f32 %v1733, %v2251
        %2253 = vmatmul.mubr.f32.gmra.mrb[0].mxu0 %v2252
        %v2254 = vpop.f32.mrb[0].mxu0
        %v2255 = vadd.f32 %v2088, %v2254
        %v2256 = vpop.f32.mrb[0].mxu0
        %2257 = vmatprep.mubr.f32.mxu0 0.0
        %v2258 = vand.u32 %v1736, 4294901760
        %v2259 = vsub.f32 %v1736, %v2258
        %2260 = vmatmul.mubr.f32.gmra.mrb[0].mxu0 %v2259
        %v2261 = vpop.f32.mrb[0].mxu0
        %v2262 = vadd.f32 %v2094, %v2261
        %v2263 = vpop.f32.mrb[0].mxu0
        %2264 = vmatprep.mubr.f32.mxu0 0.0
        %v2265 = vand.u32 %v1739, 4294901760
        %v2266 = vsub.f32 %v1739, %v2265
        %2267 = vmatmul.mubr.f32.gmra.mrb[0].mxu0 %v2266
        %v2268 = vpop.f32.mrb[0].mxu0
        %v2269 = vadd.f32 %v2100, %v2268
        %v2270 = vpop.f32.mrb[0].mxu0
        %2271 = vmatprep.mubr.f32.mxu0 0.0
        %v2272 = vand.u32 %v1742, 4294901760
        %v2273 = vsub.f32 %v1742, %v2272
        %2274 = vmatmul.mubr.f32.gmra.mrb[0].mxu0 %v2273
        %v2275 = vpop.f32.mrb[0].mxu0
        %v2276 = vadd.f32 %v2106, %v2275
        %v2277 = vpop.f32.mrb[0].mxu0
        %2278 = vmatprep.mubr.f32.mxu0 0.0
        %v2279 = vand.u32 %v1745, 4294901760
        %v2280 = vsub.f32 %v1745, %v2279
        %2281 = vmatmul.mubr.f32.gmra.mrb[0].mxu0 %v2280
        %v2282 = vpop.f32.mrb[0].mxu0
        %v2283 = vadd.f32 %v2112, %v2282
        %v2284 = vpop.f32.mrb[0].mxu0
        %2285 = vmatprep.mubr.f32.mxu0 0.0
        %v2286 = vand.u32 %v1748, 4294901760
        %v2287 = vsub.f32 %v1748, %v2286
        %2288 = vmatmul.mubr.f32.gmra.mrb[0].mxu0 %v2287
        %v2289 = vpop.f32.mrb[0].mxu0
        %v2290 = vadd.f32 %v2118, %v2289
        %v2291 = vpop.f32.mrb[0].mxu0
        %2292 = vmatprep.mubr.f32.mxu0 0.0
        %v2293 = vand.u32 %v1751, 4294901760
        %v2294 = vsub.f32 %v1751, %v2293
        %2295 = vmatmul.mubr.f32.gmra.mrb[0].mxu0 %v2294
        %v2296 = vpop.f32.mrb[0].mxu0
        %v2297 = vadd.f32 %v2124, %v2296
        %v2298 = vpop.f32.mrb[0].mxu0
        %2299 = vmatprep.mubr.f32.mxu0 0.0
        %v2300 = vand.u32 %v1754, 4294901760
        %v2301 = vsub.f32 %v1754, %v2300
        %2302 = vmatmul.mubr.f32.gmra.mrb[0].mxu0 %v2301
        %v2303 = vpop.f32.mrb[0].mxu0
        %v2304 = vadd.f32 %v2130, %v2303
        %v2305 = vpop.f32.mrb[0].mxu0
        %2306 = vmatprep.mubr.f32.mxu0 0.0
        %v2307 = vand.u32 %v1757, 4294901760
        %v2308 = vsub.f32 %v1757, %v2307
        %2309 = vmatmul.mubr.f32.gmra.mrb[0].mxu0 %v2308
        %v2310 = vpop.f32.mrb[0].mxu0
        %v2311 = vadd.f32 %v2136, %v2310
        %v2312 = vpop.f32.mrb[0].mxu0
        %2313 = vmatprep.mubr.f32.mxu0 0.0
        %v2314 = vand.u32 %v1760, 4294901760
        %v2315 = vsub.f32 %v1760, %v2314
        %2316 = vmatmul.mubr.f32.gmra.mrb[0].mxu0 %v2315
        %v2317 = vpop.f32.mrb[0].mxu0
        %v2318 = vadd.f32 %v2142, %v2317
        %v2319 = vpop.f32.mrb[0].mxu0
        %2320 = vmatprep.mubr.f32.mxu0 0.0
        %v2321 = vand.u32 %v1763, 4294901760
        %v2322 = vsub.f32 %v1763, %v2321
        %2323 = vmatmul.mubr.f32.gmra.mrb[0].mxu0 %v2322
        %v2324 = vpop.f32.mrb[0].mxu0
        %v2325 = vadd.f32 %v2148, %v2324
        %v2326 = vpop.f32.mrb[0].mxu0
        %2327 = vmatprep.mubr.f32.mxu0 0.0
        %v2328 = vand.u32 %v1766, 4294901760
        %v2329 = vsub.f32 %v1766, %v2328
        %2330 = vmatmul.mubr.f32.gmra.mrb[0].mxu0 %v2329
        %v2331 = vpop.f32.mrb[0].mxu0
        %v2332 = vadd.f32 %v2154, %v2331
        %v2333 = vpop.f32.mrb[0].mxu0
        %2334 = vmatprep.mubr.f32.mxu0 0.0
        %v2335 = vand.u32 %v1769, 4294901760
        %v2336 = vsub.f32 %v1769, %v2335
        %2337 = vmatmul.mubr.f32.gmra.mrb[0].mxu0 %v2336
        %v2338 = vpop.f32.mrb[0].mxu0
        %v2339 = vadd.f32 %v2160, %v2338
        %v2340 = vpop.f32.mrb[0].mxu0
        %2341 = vdwg.mxu0
        %2342 = vmatprep.subr.mxu0 0.0
        %v2343 = vand.u32 %v1687, 4294901760
        %2344 = vmatpush1.msra.mxu0 %v2343
        %2345 = vmatprep.subr.mxu0 0.0
        %2346 = vmatpush1.msra.mxu0 0.0
        %2347 = vmatprep.subr.mxu0 0.0
        %2348 = vmatpush1.msra.mxu0 0.0
        %2349 = vmatprep.subr.mxu0 0.0
        %2350 = vmatpush1.msra.mxu0 0.0
        %2351 = vmatprep.subr.mxu0 0.0
        %2352 = vmatpush1.msra.mxu0 0.0
        %2353 = vmatprep.subr.mxu0 0.0
        %2354 = vmatpush1.msra.mxu0 0.0
        %2355 = vmatprep.subr.mxu0 0.0
        %2356 = vmatpush1.msra.mxu0 0.0
        %2357 = vmatprep.subr.mxu0 0.0
        %2358 = vmatpush1.msra.mxu0 0.0
        %2359 = vmatprep.subr.mxu0 0.0
        %2360 = vmatpush1.msra.mxu0 0.0
        %2361 = vmatprep.subr.mxu0 0.0
        %2362 = vmatpush1.msra.mxu0 0.0
        %2363 = vmatprep.subr.mxu0 0.0
        %2364 = vmatpush1.msra.mxu0 0.0
        %2365 = vmatprep.subr.mxu0 0.0
        %2366 = vmatpush1.msra.mxu0 0.0
        %2367 = vmatprep.subr.mxu0 0.0
        %2368 = vmatpush1.msra.mxu0 0.0
        %2369 = vmatprep.subr.mxu0 0.0
        %2370 = vmatpush1.msra.mxu0 0.0
        %2371 = vmatprep.subr.mxu0 0.0
        %2372 = vmatpush1.msra.mxu0 0.0
        %2373 = vmatprep.subr.mxu0 0.0
        %2374 = vmatpush1.msra.mxu0 0.0
        %2375 = vmatprep.subr.mxu0 0.0
        %2376 = vmatpush1.msra.mxu0 0.0
        %2377 = vmatprep.subr.mxu0 0.0
        %2378 = vmatpush1.msra.mxu0 0.0
        %2379 = vmatprep.subr.mxu0 0.0
        %2380 = vmatpush1.msra.mxu0 0.0
        %2381 = vmatprep.subr.mxu0 0.0
        %2382 = vmatpush1.msra.mxu0 0.0
        %2383 = vmatprep.subr.mxu0 0.0
        %2384 = vmatpush1.msra.mxu0 0.0
        %2385 = vmatprep.subr.mxu0 0.0
        %2386 = vmatpush1.msra.mxu0 0.0
        %2387 = vmatprep.subr.mxu0 0.0
        %2388 = vmatpush1.msra.mxu0 0.0
        %2389 = vmatprep.subr.mxu0 0.0
        %2390 = vmatpush1.msra.mxu0 0.0
        %2391 = vmatprep.subr.mxu0 0.0
        %2392 = vmatpush1.msra.mxu0 0.0
        %2393 = vmatprep.subr.mxu0 0.0
        %2394 = vmatpush1.msra.mxu0 0.0
        %2395 = vmatprep.subr.mxu0 0.0
        %2396 = vmatpush1.msra.mxu0 0.0
        %2397 = vmatprep.subr.mxu0 0.0
        %2398 = vmatpush1.msra.mxu0 0.0
        %2399 = vmatprep.subr.mxu0 0.0
        %2400 = vmatpush1.msra.mxu0 0.0
        %2401 = vmatprep.subr.mxu0 0.0
        %2402 = vmatpush1.msra.mxu0 0.0
        %2403 = vmatprep.subr.mxu0 0.0
        %2404 = vmatpush1.msra.mxu0 0.0
        %2405 = vmatprep.subr.mxu0 0.0
        %2406 = vmatpush1.msra.mxu0 0.0
        %2407 = vmatprep.mubr.f32.mxu0 0.0
        %v2408 = vand.u32 %v1724, 4294901760
        %v2409 = vsub.f32 %v1724, %v2408
        %v2410 = vand.u32 %v2409, 4294901760
        %2411 = vmatmul.mubr.f32.gmra.mrb[0].mxu0 %v2410
        %v2412 = vpop.f32.mrb[0].mxu0
        %v2413 = vadd.f32 %v2234, %v2412
        %v2414 = vpop.f32.mrb[0].mxu0
        %2415 = vmatprep.mubr.f32.mxu0 0.0
        %v2416 = vand.u32 %v1727, 4294901760
        %v2417 = vsub.f32 %v1727, %v2416
        %v2418 = vand.u32 %v2417, 4294901760
        %2419 = vmatmul.mubr.f32.gmra.mrb[0].mxu0 %v2418
        %v2420 = vpop.f32.mrb[0].mxu0
        %v2421 = vadd.f32 %v2241, %v2420
        %v2422 = vpop.f32.mrb[0].mxu0
        %2423 = vmatprep.mubr.f32.mxu0 0.0
        %v2424 = vand.u32 %v1730, 4294901760
        %v2425 = vsub.f32 %v1730, %v2424
        %v2426 = vand.u32 %v2425, 4294901760
        %2427 = vmatmul.mubr.f32.gmra.mrb[0].mxu0 %v2426
        %v2428 = vpop.f32.mrb[0].mxu0
        %v2429 = vadd.f32 %v2248, %v2428
        %v2430 = vpop.f32.mrb[0].mxu0
        %2431 = vmatprep.mubr.f32.mxu0 0.0
        %v2432 = vand.u32 %v1733, 4294901760
        %v2433 = vsub.f32 %v1733, %v2432
        %v2434 = vand.u32 %v2433, 4294901760
        %2435 = vmatmul.mubr.f32.gmra.mrb[0].mxu0 %v2434
        %v2436 = vpop.f32.mrb[0].mxu0
        %v2437 = vadd.f32 %v2255, %v2436
        %v2438 = vpop.f32.mrb[0].mxu0
        %2439 = vmatprep.mubr.f32.mxu0 0.0
        %v2440 = vand.u32 %v1736, 4294901760
        %v2441 = vsub.f32 %v1736, %v2440
        %v2442 = vand.u32 %v2441, 4294901760
        %2443 = vmatmul.mubr.f32.gmra.mrb[0].mxu0 %v2442
        %v2444 = vpop.f32.mrb[0].mxu0
        %v2445 = vadd.f32 %v2262, %v2444
        %v2446 = vpop.f32.mrb[0].mxu0
        %2447 = vmatprep.mubr.f32.mxu0 0.0
        %v2448 = vand.u32 %v1739, 4294901760
        %v2449 = vsub.f32 %v1739, %v2448
        %v2450 = vand.u32 %v2449, 4294901760
        %2451 = vmatmul.mubr.f32.gmra.mrb[0].mxu0 %v2450
        %v2452 = vpop.f32.mrb[0].mxu0
        %v2453 = vadd.f32 %v2269, %v2452
        %v2454 = vpop.f32.mrb[0].mxu0
        %2455 = vmatprep.mubr.f32.mxu0 0.0
        %v2456 = vand.u32 %v1742, 4294901760
        %v2457 = vsub.f32 %v1742, %v2456
        %v2458 = vand.u32 %v2457, 4294901760
        %2459 = vmatmul.mubr.f32.gmra.mrb[0].mxu0 %v2458
        %v2460 = vpop.f32.mrb[0].mxu0
        %v2461 = vadd.f32 %v2276, %v2460
        %v2462 = vpop.f32.mrb[0].mxu0
        %2463 = vmatprep.mubr.f32.mxu0 0.0
        %v2464 = vand.u32 %v1745, 4294901760
        %v2465 = vsub.f32 %v1745, %v2464
        %v2466 = vand.u32 %v2465, 4294901760
        %2467 = vmatmul.mubr.f32.gmra.mrb[0].mxu0 %v2466
        %v2468 = vpop.f32.mrb[0].mxu0
        %v2469 = vadd.f32 %v2283, %v2468
        %v2470 = vpop.f32.mrb[0].mxu0
        %2471 = vmatprep.mubr.f32.mxu0 0.0
        %v2472 = vand.u32 %v1748, 4294901760
        %v2473 = vsub.f32 %v1748, %v2472
        %v2474 = vand.u32 %v2473, 4294901760
        %2475 = vmatmul.mubr.f32.gmra.mrb[0].mxu0 %v2474
        %v2476 = vpop.f32.mrb[0].mxu0
        %v2477 = vadd.f32 %v2290, %v2476
        %v2478 = vpop.f32.mrb[0].mxu0
        %2479 = vmatprep.mubr.f32.mxu0 0.0
        %v2480 = vand.u32 %v1751, 4294901760
        %v2481 = vsub.f32 %v1751, %v2480
        %v2482 = vand.u32 %v2481, 4294901760
        %2483 = vmatmul.mubr.f32.gmra.mrb[0].mxu0 %v2482
        %v2484 = vpop.f32.mrb[0].mxu0
        %v2485 = vadd.f32 %v2297, %v2484
        %v2486 = vpop.f32.mrb[0].mxu0
        %2487 = vmatprep.mubr.f32.mxu0 0.0
        %v2488 = vand.u32 %v1754, 4294901760
        %v2489 = vsub.f32 %v1754, %v2488
        %v2490 = vand.u32 %v2489, 4294901760
        %2491 = vmatmul.mubr.f32.gmra.mrb[0].mxu0 %v2490
        %v2492 = vpop.f32.mrb[0].mxu0
        %v2493 = vadd.f32 %v2304, %v2492
        %v2494 = vpop.f32.mrb[0].mxu0
        %2495 = vmatprep.mubr.f32.mxu0 0.0
        %v2496 = vand.u32 %v1757, 4294901760
        %v2497 = vsub.f32 %v1757, %v2496
        %v2498 = vand.u32 %v2497, 4294901760
        %2499 = vmatmul.mubr.f32.gmra.mrb[0].mxu0 %v2498
        %v2500 = vpop.f32.mrb[0].mxu0
        %v2501 = vadd.f32 %v2311, %v2500
        %v2502 = vpop.f32.mrb[0].mxu0
        %2503 = vmatprep.mubr.f32.mxu0 0.0
        %v2504 = vand.u32 %v1760, 4294901760
        %v2505 = vsub.f32 %v1760, %v2504
        %v2506 = vand.u32 %v2505, 4294901760
        %2507 = vmatmul.mubr.f32.gmra.mrb[0].mxu0 %v2506
        %v2508 = vpop.f32.mrb[0].mxu0
        %v2509 = vadd.f32 %v2318, %v2508
        %v2510 = vpop.f32.mrb[0].mxu0
        %2511 = vmatprep.mubr.f32.mxu0 0.0
        %v2512 = vand.u32 %v1763, 4294901760
        %v2513 = vsub.f32 %v1763, %v2512
        %v2514 = vand.u32 %v2513, 4294901760
        %2515 = vmatmul.mubr.f32.gmra.mrb[0].mxu0 %v2514
        %v2516 = vpop.f32.mrb[0].mxu0
        %v2517 = vadd.f32 %v2325, %v2516
        %v2518 = vpop.f32.mrb[0].mxu0
        %2519 = vmatprep.mubr.f32.mxu0 0.0
        %v2520 = vand.u32 %v1766, 4294901760
        %v2521 = vsub.f32 %v1766, %v2520
        %v2522 = vand.u32 %v2521, 4294901760
        %2523 = vmatmul.mubr.f32.gmra.mrb[0].mxu0 %v2522
        %v2524 = vpop.f32.mrb[0].mxu0
        %v2525 = vadd.f32 %v2332, %v2524
        %v2526 = vpop.f32.mrb[0].mxu0
        %2527 = vmatprep.mubr.f32.mxu0 0.0
        %v2528 = vand.u32 %v1769, 4294901760
        %v2529 = vsub.f32 %v1769, %v2528
        %v2530 = vand.u32 %v2529, 4294901760
        %2531 = vmatmul.mubr.f32.gmra.mrb[0].mxu0 %v2530
        %v2532 = vpop.f32.mrb[0].mxu0
        %v2533 = vadd.f32 %v2339, %v2532
        %v2534 = vpop.f32.mrb[0].mxu0
        %2535 = vdwg.mxu0
        %2536 = vmatprep.subr.mxu0 0.0
        %v2537 = vand.u32 %v1687, 4294901760
        %v2538 = vsub.f32 %v1687, %v2537
        %v2539 = vand.u32 %v2538, 4294901760
        %2540 = vmatpush1.msra.mxu0 %v2539
        %2541 = vmatprep.subr.mxu0 0.0
        %2542 = vmatpush1.msra.mxu0 0.0
        %2543 = vmatprep.subr.mxu0 0.0
        %2544 = vmatpush1.msra.mxu0 0.0
        %2545 = vmatprep.subr.mxu0 0.0
        %2546 = vmatpush1.msra.mxu0 0.0
        %2547 = vmatprep.subr.mxu0 0.0
        %2548 = vmatpush1.msra.mxu0 0.0
        %2549 = vmatprep.subr.mxu0 0.0
        %2550 = vmatpush1.msra.mxu0 0.0
        %2551 = vmatprep.subr.mxu0 0.0
        %2552 = vmatpush1.msra.mxu0 0.0
        %2553 = vmatprep.subr.mxu0 0.0
        %2554 = vmatpush1.msra.mxu0 0.0
        %2555 = vmatprep.subr.mxu0 0.0
        %2556 = vmatpush1.msra.mxu0 0.0
        %2557 = vmatprep.subr.mxu0 0.0
        %2558 = vmatpush1.msra.mxu0 0.0
        %2559 = vmatprep.subr.mxu0 0.0
        %2560 = vmatpush1.msra.mxu0 0.0
        %2561 = vmatprep.subr.mxu0 0.0
        %2562 = vmatpush1.msra.mxu0 0.0
        %2563 = vmatprep.subr.mxu0 0.0
        %2564 = vmatpush1.msra.mxu0 0.0
        %2565 = vmatprep.subr.mxu0 0.0
        %2566 = vmatpush1.msra.mxu0 0.0
        %2567 = vmatprep.subr.mxu0 0.0
        %2568 = vmatpush1.msra.mxu0 0.0
        %2569 = vmatprep.subr.mxu0 0.0
        %2570 = vmatpush1.msra.mxu0 0.0
        %2571 = vmatprep.subr.mxu0 0.0
        %2572 = vmatpush1.msra.mxu0 0.0
        %2573 = vmatprep.subr.mxu0 0.0
        %2574 = vmatpush1.msra.mxu0 0.0
        %2575 = vmatprep.subr.mxu0 0.0
        %2576 = vmatpush1.msra.mxu0 0.0
        %2577 = vmatprep.subr.mxu0 0.0
        %2578 = vmatpush1.msra.mxu0 0.0
        %2579 = vmatprep.subr.mxu0 0.0
        %2580 = vmatpush1.msra.mxu0 0.0
        %2581 = vmatprep.subr.mxu0 0.0
        %2582 = vmatpush1.msra.mxu0 0.0
        %2583 = vmatprep.subr.mxu0 0.0
        %2584 = vmatpush1.msra.mxu0 0.0
        %2585 = vmatprep.subr.mxu0 0.0
        %2586 = vmatpush1.msra.mxu0 0.0
        %2587 = vmatprep.subr.mxu0 0.0
        %2588 = vmatpush1.msra.mxu0 0.0
        %2589 = vmatprep.subr.mxu0 0.0
        %2590 = vmatpush1.msra.mxu0 0.0
        %2591 = vmatprep.subr.mxu0 0.0
        %2592 = vmatpush1.msra.mxu0 0.0
        %2593 = vmatprep.subr.mxu0 0.0
        %2594 = vmatpush1.msra.mxu0 0.0
        %2595 = vmatprep.subr.mxu0 0.0
        %2596 = vmatpush1.msra.mxu0 0.0
        %2597 = vmatprep.subr.mxu0 0.0
        %2598 = vmatpush1.msra.mxu0 0.0
        %2599 = vmatprep.subr.mxu0 0.0
        %2600 = vmatpush1.msra.mxu0 0.0
        %2601 = vmatprep.subr.mxu0 0.0
        %2602 = vmatpush1.msra.mxu0 0.0
        %2603 = vmatprep.mubr.f32.mxu0 0.0
        %v2604 = vand.u32 %v1724, 4294901760
        %2605 = vmatmul.mubr.f32.gmra.mrb[0].mxu0 %v2604
        %v2606 = vpop.f32.mrb[0].mxu0
        %v2607 = vadd.f32 %v2413, %v2606
        %v2608 = vpop.f32.mrb[0].mxu0
        %2609 = vmatprep.mubr.f32.mxu0 0.0
        %v2610 = vand.u32 %v1727, 4294901760
        %2611 = vmatmul.mubr.f32.gmra.mrb[0].mxu0 %v2610
        %v2612 = vpop.f32.mrb[0].mxu0
        %v2613 = vadd.f32 %v2421, %v2612
        %v2614 = vpop.f32.mrb[0].mxu0
        %2615 = vmatprep.mubr.f32.mxu0 0.0
        %v2616 = vand.u32 %v1730, 4294901760
        %2617 = vmatmul.mubr.f32.gmra.mrb[0].mxu0 %v2616
        %v2618 = vpop.f32.mrb[0].mxu0
        %v2619 = vadd.f32 %v2429, %v2618
        %v2620 = vpop.f32.mrb[0].mxu0
        %2621 = vmatprep.mubr.f32.mxu0 0.0
        %v2622 = vand.u32 %v1733, 4294901760
        %2623 = vmatmul.mubr.f32.gmra.mrb[0].mxu0 %v2622
        %v2624 = vpop.f32.mrb[0].mxu0
        %v2625 = vadd.f32 %v2437, %v2624
        %v2626 = vpop.f32.mrb[0].mxu0
        %2627 = vmatprep.mubr.f32.mxu0 0.0
        %v2628 = vand.u32 %v1736, 4294901760
        %2629 = vmatmul.mubr.f32.gmra.mrb[0].mxu0 %v2628
        %v2630 = vpop.f32.mrb[0].mxu0
        %v2631 = vadd.f32 %v2445, %v2630
        %v2632 = vpop.f32.mrb[0].mxu0
        %2633 = vmatprep.mubr.f32.mxu0 0.0
        %v2634 = vand.u32 %v1739, 4294901760
        %2635 = vmatmul.mubr.f32.gmra.mrb[0].mxu0 %v2634
        %v2636 = vpop.f32.mrb[0].mxu0
        %v2637 = vadd.f32 %v2453, %v2636
        %v2638 = vpop.f32.mrb[0].mxu0
        %2639 = vmatprep.mubr.f32.mxu0 0.0
        %v2640 = vand.u32 %v1742, 4294901760
        %2641 = vmatmul.mubr.f32.gmra.mrb[0].mxu0 %v2640
        %v2642 = vpop.f32.mrb[0].mxu0
        %v2643 = vadd.f32 %v2461, %v2642
        %v2644 = vpop.f32.mrb[0].mxu0
        %2645 = vmatprep.mubr.f32.mxu0 0.0
        %v2646 = vand.u32 %v1745, 4294901760
        %2647 = vmatmul.mubr.f32.gmra.mrb[0].mxu0 %v2646
        %v2648 = vpop.f32.mrb[0].mxu0
        %v2649 = vadd.f32 %v2469, %v2648
        %v2650 = vpop.f32.mrb[0].mxu0
        %2651 = vmatprep.mubr.f32.mxu0 0.0
        %v2652 = vand.u32 %v1748, 4294901760
        %2653 = vmatmul.mubr.f32.gmra.mrb[0].mxu0 %v2652
        %v2654 = vpop.f32.mrb[0].mxu0
        %v2655 = vadd.f32 %v2477, %v2654
        %v2656 = vpop.f32.mrb[0].mxu0
        %2657 = vmatprep.mubr.f32.mxu0 0.0
        %v2658 = vand.u32 %v1751, 4294901760
        %2659 = vmatmul.mubr.f32.gmra.mrb[0].mxu0 %v2658
        %v2660 = vpop.f32.mrb[0].mxu0
        %v2661 = vadd.f32 %v2485, %v2660
        %v2662 = vpop.f32.mrb[0].mxu0
        %2663 = vmatprep.mubr.f32.mxu0 0.0
        %v2664 = vand.u32 %v1754, 4294901760
        %2665 = vmatmul.mubr.f32.gmra.mrb[0].mxu0 %v2664
        %v2666 = vpop.f32.mrb[0].mxu0
        %v2667 = vadd.f32 %v2493, %v2666
        %v2668 = vpop.f32.mrb[0].mxu0
        %2669 = vmatprep.mubr.f32.mxu0 0.0
        %v2670 = vand.u32 %v1757, 4294901760
        %2671 = vmatmul.mubr.f32.gmra.mrb[0].mxu0 %v2670
        %v2672 = vpop.f32.mrb[0].mxu0
        %v2673 = vadd.f32 %v2501, %v2672
        %v2674 = vpop.f32.mrb[0].mxu0
        %2675 = vmatprep.mubr.f32.mxu0 0.0
        %v2676 = vand.u32 %v1760, 4294901760
        %2677 = vmatmul.mubr.f32.gmra.mrb[0].mxu0 %v2676
        %v2678 = vpop.f32.mrb[0].mxu0
        %v2679 = vadd.f32 %v2509, %v2678
        %v2680 = vpop.f32.mrb[0].mxu0
        %2681 = vmatprep.mubr.f32.mxu0 0.0
        %v2682 = vand.u32 %v1763, 4294901760
        %2683 = vmatmul.mubr.f32.gmra.mrb[0].mxu0 %v2682
        %v2684 = vpop.f32.mrb[0].mxu0
        %v2685 = vadd.f32 %v2517, %v2684
        %v2686 = vpop.f32.mrb[0].mxu0
        %2687 = vmatprep.mubr.f32.mxu0 0.0
        %v2688 = vand.u32 %v1766, 4294901760
        %2689 = vmatmul.mubr.f32.gmra.mrb[0].mxu0 %v2688
        %v2690 = vpop.f32.mrb[0].mxu0
        %v2691 = vadd.f32 %v2525, %v2690
        %v2692 = vpop.f32.mrb[0].mxu0
        %2693 = vmatprep.mubr.f32.mxu0 0.0
        %v2694 = vand.u32 %v1769, 4294901760
        %2695 = vmatmul.mubr.f32.gmra.mrb[0].mxu0 %v2694
        %v2696 = vpop.f32.mrb[0].mxu0
        %v2697 = vadd.f32 %v2533, %v2696
        %v2698 = vpop.f32.mrb[0].mxu0
        %2699 = vdwg.mxu0
        %2700 = vmatprep.subr.mxu0 0.0
        %v2701 = vand.u32 %v1687, 4294901760
        %2702 = vmatpush1.msra.mxu0 %v2701
        %2703 = vmatprep.subr.mxu0 0.0
        %2704 = vmatpush1.msra.mxu0 0.0
        %2705 = vmatprep.subr.mxu0 0.0
        %2706 = vmatpush1.msra.mxu0 0.0
        %2707 = vmatprep.subr.mxu0 0.0
        %2708 = vmatpush1.msra.mxu0 0.0
        %2709 = vmatprep.subr.mxu0 0.0
        %2710 = vmatpush1.msra.mxu0 0.0
        %2711 = vmatprep.subr.mxu0 0.0
        %2712 = vmatpush1.msra.mxu0 0.0
        %2713 = vmatprep.subr.mxu0 0.0
        %2714 = vmatpush1.msra.mxu0 0.0
        %2715 = vmatprep.subr.mxu0 0.0
        %2716 = vmatpush1.msra.mxu0 0.0
        %2717 = vmatprep.subr.mxu0 0.0
        %2718 = vmatpush1.msra.mxu0 0.0
        %2719 = vmatprep.subr.mxu0 0.0
        %2720 = vmatpush1.msra.mxu0 0.0
        %2721 = vmatprep.subr.mxu0 0.0
        %2722 = vmatpush1.msra.mxu0 0.0
        %2723 = vmatprep.subr.mxu0 0.0
        %2724 = vmatpush1.msra.mxu0 0.0
        %2725 = vmatprep.subr.mxu0 0.0
        %2726 = vmatpush1.msra.mxu0 0.0
        %2727 = vmatprep.subr.mxu0 0.0
        %2728 = vmatpush1.msra.mxu0 0.0
        %2729 = vmatprep.subr.mxu0 0.0
        %2730 = vmatpush1.msra.mxu0 0.0
        %2731 = vmatprep.subr.mxu0 0.0
        %2732 = vmatpush1.msra.mxu0 0.0
        %2733 = vmatprep.subr.mxu0 0.0
        %2734 = vmatpush1.msra.mxu0 0.0
        %2735 = vmatprep.subr.mxu0 0.0
        %2736 = vmatpush1.msra.mxu0 0.0
        %2737 = vmatprep.subr.mxu0 0.0
        %2738 = vmatpush1.msra.mxu0 0.0
        %2739 = vmatprep.subr.mxu0 0.0
        %2740 = vmatpush1.msra.mxu0 0.0
        %2741 = vmatprep.subr.mxu0 0.0
        %2742 = vmatpush1.msra.mxu0 0.0
        %2743 = vmatprep.subr.mxu0 0.0
        %2744 = vmatpush1.msra.mxu0 0.0
        %2745 = vmatprep.subr.mxu0 0.0
        %2746 = vmatpush1.msra.mxu0 0.0
        %2747 = vmatprep.subr.mxu0 0.0
        %2748 = vmatpush1.msra.mxu0 0.0
        %2749 = vmatprep.subr.mxu0 0.0
        %2750 = vmatpush1.msra.mxu0 0.0
        %2751 = vmatprep.subr.mxu0 0.0
        %2752 = vmatpush1.msra.mxu0 0.0
        %2753 = vmatprep.subr.mxu0 0.0
        %2754 = vmatpush1.msra.mxu0 0.0
        %2755 = vmatprep.subr.mxu0 0.0
        %2756 = vmatpush1.msra.mxu0 0.0
        %2757 = vmatprep.subr.mxu0 0.0
        %2758 = vmatpush1.msra.mxu0 0.0
        %2759 = vmatprep.subr.mxu0 0.0
        %2760 = vmatpush1.msra.mxu0 0.0
        %2761 = vmatprep.subr.mxu0 0.0
        %2762 = vmatpush1.msra.mxu0 0.0
        %2763 = vmatprep.subr.mxu0 0.0
        %2764 = vmatpush1.msra.mxu0 0.0
        %2765 = vmatprep.mubr.f32.mxu0 0.0
        %v2766 = vand.u32 %v1724, 4294901760
        %2767 = vmatmul.mubr.f32.gmra.mrb[0].mxu0 %v2766
        %v2768 = vpop.f32.mrb[0].mxu0
        %v2769 = vadd.f32 %v2607, %v2768
        %v2770 = vpop.f32.mrb[0].mxu0
        %2771 = vmatprep.mubr.f32.mxu0 0.0
        %v2772 = vand.u32 %v1727, 4294901760
        %2773 = vmatmul.mubr.f32.gmra.mrb[0].mxu0 %v2772
        %v2774 = vpop.f32.mrb[0].mxu0
        %v2775 = vadd.f32 %v2613, %v2774
        %v2776 = vpop.f32.mrb[0].mxu0
        %2777 = vmatprep.mubr.f32.mxu0 0.0
        %v2778 = vand.u32 %v1730, 4294901760
        %2779 = vmatmul.mubr.f32.gmra.mrb[0].mxu0 %v2778
        %v2780 = vpop.f32.mrb[0].mxu0
        %v2781 = vadd.f32 %v2619, %v2780
        %v2782 = vpop.f32.mrb[0].mxu0
        %2783 = vmatprep.mubr.f32.mxu0 0.0
        %v2784 = vand.u32 %v1733, 4294901760
        %2785 = vmatmul.mubr.f32.gmra.mrb[0].mxu0 %v2784
        %v2786 = vpop.f32.mrb[0].mxu0
        %v2787 = vadd.f32 %v2625, %v2786
        %v2788 = vpop.f32.mrb[0].mxu0
        %2789 = vmatprep.mubr.f32.mxu0 0.0
        %v2790 = vand.u32 %v1736, 4294901760
        %2791 = vmatmul.mubr.f32.gmra.mrb[0].mxu0 %v2790
        %v2792 = vpop.f32.mrb[0].mxu0
        %v2793 = vadd.f32 %v2631, %v2792
        %v2794 = vpop.f32.mrb[0].mxu0
        %2795 = vmatprep.mubr.f32.mxu0 0.0
        %v2796 = vand.u32 %v1739, 4294901760
        %2797 = vmatmul.mubr.f32.gmra.mrb[0].mxu0 %v2796
        %v2798 = vpop.f32.mrb[0].mxu0
        %v2799 = vadd.f32 %v2637, %v2798
        %v2800 = vpop.f32.mrb[0].mxu0
        %2801 = vmatprep.mubr.f32.mxu0 0.0
        %v2802 = vand.u32 %v1742, 4294901760
        %2803 = vmatmul.mubr.f32.gmra.mrb[0].mxu0 %v2802
        %v2804 = vpop.f32.mrb[0].mxu0
        %v2805 = vadd.f32 %v2643, %v2804
        %v2806 = vpop.f32.mrb[0].mxu0
        %2807 = vmatprep.mubr.f32.mxu0 0.0
        %v2808 = vand.u32 %v1745, 4294901760
        %2809 = vmatmul.mubr.f32.gmra.mrb[0].mxu0 %v2808
        %v2810 = vpop.f32.mrb[0].mxu0
        %v2811 = vadd.f32 %v2649, %v2810
        %v2812 = vpop.f32.mrb[0].mxu0
        %2813 = vmatprep.mubr.f32.mxu0 0.0
        %v2814 = vand.u32 %v1748, 4294901760
        %2815 = vmatmul.mubr.f32.gmra.mrb[0].mxu0 %v2814
        %v2816 = vpop.f32.mrb[0].mxu0
        %v2817 = vadd.f32 %v2655, %v2816
        %v2818 = vpop.f32.mrb[0].mxu0
        %2819 = vmatprep.mubr.f32.mxu0 0.0
        %v2820 = vand.u32 %v1751, 4294901760
        %2821 = vmatmul.mubr.f32.gmra.mrb[0].mxu0 %v2820
        %v2822 = vpop.f32.mrb[0].mxu0
        %v2823 = vadd.f32 %v2661, %v2822
        %v2824 = vpop.f32.mrb[0].mxu0
        %2825 = vmatprep.mubr.f32.mxu0 0.0
        %v2826 = vand.u32 %v1754, 4294901760
        %2827 = vmatmul.mubr.f32.gmra.mrb[0].mxu0 %v2826
        %v2828 = vpop.f32.mrb[0].mxu0
        %v2829 = vadd.f32 %v2667, %v2828
        %v2830 = vpop.f32.mrb[0].mxu0
        %2831 = vmatprep.mubr.f32.mxu0 0.0
        %v2832 = vand.u32 %v1757, 4294901760
        %2833 = vmatmul.mubr.f32.gmra.mrb[0].mxu0 %v2832
        %v2834 = vpop.f32.mrb[0].mxu0
        %v2835 = vadd.f32 %v2673, %v2834
        %v2836 = vpop.f32.mrb[0].mxu0
        %2837 = vmatprep.mubr.f32.mxu0 0.0
        %v2838 = vand.u32 %v1760, 4294901760
        %2839 = vmatmul.mubr.f32.gmra.mrb[0].mxu0 %v2838
        %v2840 = vpop.f32.mrb[0].mxu0
        %v2841 = vadd.f32 %v2679, %v2840
        %v2842 = vpop.f32.mrb[0].mxu0
        %2843 = vmatprep.mubr.f32.mxu0 0.0
        %v2844 = vand.u32 %v1763, 4294901760
        %2845 = vmatmul.mubr.f32.gmra.mrb[0].mxu0 %v2844
        %v2846 = vpop.f32.mrb[0].mxu0
        %v2847 = vadd.f32 %v2685, %v2846
        %v2848 = vpop.f32.mrb[0].mxu0
        %2849 = vmatprep.mubr.f32.mxu0 0.0
        %v2850 = vand.u32 %v1766, 4294901760
        %2851 = vmatmul.mubr.f32.gmra.mrb[0].mxu0 %v2850
        %v2852 = vpop.f32.mrb[0].mxu0
        %v2853 = vadd.f32 %v2691, %v2852
        %v2854 = vpop.f32.mrb[0].mxu0
        %2855 = vmatprep.mubr.f32.mxu0 0.0
        %v2856 = vand.u32 %v1769, 4294901760
        %2857 = vmatmul.mubr.f32.gmra.mrb[0].mxu0 %v2856
        %v2858 = vpop.f32.mrb[0].mxu0
        %v2859 = vadd.f32 %v2697, %v2858
        %v2860 = vpop.f32.mrb[0].mxu0
        %2861 = vdwg.mxu0
        %2862 = vmatprep.subr.mxu0 0.0
        %v2863 = vand.u32 %v2769, 4294901760
        %2864 = vmatpush1.msra.mxu0 %v2863
        %2865 = vmatprep.subr.mxu0 0.0
        %v2866 = vand.u32 %v2775, 4294901760
        %2867 = vmatpush1.msra.mxu0 %v2866
        %2868 = vmatprep.subr.mxu0 0.0
        %v2869 = vand.u32 %v2781, 4294901760
        %2870 = vmatpush1.msra.mxu0 %v2869
        %2871 = vmatprep.subr.mxu0 0.0
        %v2872 = vand.u32 %v2787, 4294901760
        %2873 = vmatpush1.msra.mxu0 %v2872
        %2874 = vmatprep.subr.mxu0 0.0
        %v2875 = vand.u32 %v2793, 4294901760
        %2876 = vmatpush1.msra.mxu0 %v2875
        %2877 = vmatprep.subr.mxu0 0.0
        %v2878 = vand.u32 %v2799, 4294901760
        %2879 = vmatpush1.msra.mxu0 %v2878
        %2880 = vmatprep.subr.mxu0 0.0
        %v2881 = vand.u32 %v2805, 4294901760
        %2882 = vmatpush1.msra.mxu0 %v2881
        %2883 = vmatprep.subr.mxu0 0.0
        %v2884 = vand.u32 %v2811, 4294901760
        %2885 = vmatpush1.msra.mxu0 %v2884
        %2886 = vmatprep.subr.mxu0 0.0
        %v2887 = vand.u32 %v2817, 4294901760
        %2888 = vmatpush1.msra.mxu0 %v2887
        %2889 = vmatprep.subr.mxu0 0.0
        %v2890 = vand.u32 %v2823, 4294901760
        %2891 = vmatpush1.msra.mxu0 %v2890
        %2892 = vmatprep.subr.mxu0 0.0
        %v2893 = vand.u32 %v2829, 4294901760
        %2894 = vmatpush1.msra.mxu0 %v2893
        %2895 = vmatprep.subr.mxu0 0.0
        %v2896 = vand.u32 %v2835, 4294901760
        %2897 = vmatpush1.msra.mxu0 %v2896
        %2898 = vmatprep.subr.mxu0 0.0
        %v2899 = vand.u32 %v2841, 4294901760
        %2900 = vmatpush1.msra.mxu0 %v2899
        %2901 = vmatprep.subr.mxu0 0.0
        %v2902 = vand.u32 %v2847, 4294901760
        %2903 = vmatpush1.msra.mxu0 %v2902
        %2904 = vmatprep.subr.mxu0 0.0
        %v2905 = vand.u32 %v2853, 4294901760
        %2906 = vmatpush1.msra.mxu0 %v2905
        %2907 = vmatprep.subr.mxu0 0.0
        %v2908 = vand.u32 %v2859, 4294901760
        %2909 = vmatpush1.msra.mxu0 %v2908
        %2910 = vmatprep.subr.mxu0 0.0
        %2911 = vmatpush1.msra.mxu0 0.0
        %2912 = vmatprep.subr.mxu0 0.0
        %2913 = vmatpush1.msra.mxu0 0.0
        %2914 = vmatprep.subr.mxu0 0.0
        %2915 = vmatpush1.msra.mxu0 0.0
        %2916 = vmatprep.subr.mxu0 0.0
        %2917 = vmatpush1.msra.mxu0 0.0
        %2918 = vmatprep.subr.mxu0 0.0
        %2919 = vmatpush1.msra.mxu0 0.0
        %2920 = vmatprep.subr.mxu0 0.0
        %2921 = vmatpush1.msra.mxu0 0.0
        %2922 = vmatprep.subr.mxu0 0.0
        %2923 = vmatpush1.msra.mxu0 0.0
        %2924 = vmatprep.subr.mxu0 0.0
        %2925 = vmatpush1.msra.mxu0 0.0
        %2926 = vmatprep.subr.mxu0 0.0
        %2927 = vmatpush1.msra.mxu0 0.0
        %2928 = vmatprep.subr.mxu0 0.0
        %2929 = vmatpush1.msra.mxu0 0.0
        %2930 = vmatprep.subr.mxu0 0.0
        %2931 = vmatpush1.msra.mxu0 0.0
        %2932 = vmatprep.subr.mxu0 0.0
        %2933 = vmatpush1.msra.mxu0 0.0
        %2934 = vmatprep.subr.mxu0 0.0
        %2935 = vmatpush1.msra.mxu0 0.0
        %2936 = vmatprep.subr.mxu0 0.0
        %2937 = vmatpush1.msra.mxu0 0.0
        %2938 = vmatprep.subr.mxu0 0.0
        %2939 = vmatpush1.msra.mxu0 0.0
        %2940 = vmatprep.subr.mxu0 0.0
        %2941 = vmatpush1.msra.mxu0 0.0
        %2942 = vmatprep.mubr.f32.mxu0 0.0
        %v2943 = vand.u32 %v1200, 4294901760
        %v2944 = vsub.f32 %v1200, %v2943
        %v2945 = vand.u32 %v2944, 4294901760
        %v2946 = vsub.f32 %v2944, %v2945
        %v2947 = vand.u32 %v2946, 4294901760
        %2948 = vmatmul.mubr.f32.gmra.mrb[0].mxu0 %v2947
        %v2949 = vpop.f32.mrb[0].mxu0
        %v2950 = vadd.f32 0.0, %v2949
        %v2951 = vpop.f32.mrb[0].mxu0
        %2952 = vdwg.mxu0
        %2953 = vmatprep.subr.mxu0 0.0
        %v2954 = vand.u32 %v2769, 4294901760
        %v2955 = vsub.f32 %v2769, %v2954
        %v2956 = vand.u32 %v2955, 4294901760
        %v2957 = vsub.f32 %v2955, %v2956
        %v2958 = vand.u32 %v2957, 4294901760
        %2959 = vmatpush1.msra.mxu0 %v2958
        %2960 = vmatprep.subr.mxu0 0.0
        %v2961 = vand.u32 %v2775, 4294901760
        %v2962 = vsub.f32 %v2775, %v2961
        %v2963 = vand.u32 %v2962, 4294901760
        %v2964 = vsub.f32 %v2962, %v2963
        %v2965 = vand.u32 %v2964, 4294901760
        %2966 = vmatpush1.msra.mxu0 %v2965
        %2967 = vmatprep.subr.mxu0 0.0
        %v2968 = vand.u32 %v2781, 4294901760
        %v2969 = vsub.f32 %v2781, %v2968
        %v2970 = vand.u32 %v2969, 4294901760
        %v2971 = vsub.f32 %v2969, %v2970
        %v2972 = vand.u32 %v2971, 4294901760
        %2973 = vmatpush1.msra.mxu0 %v2972
        %2974 = vmatprep.subr.mxu0 0.0
        %v2975 = vand.u32 %v2787, 4294901760
        %v2976 = vsub.f32 %v2787, %v2975
        %v2977 = vand.u32 %v2976, 4294901760
        %v2978 = vsub.f32 %v2976, %v2977
        %v2979 = vand.u32 %v2978, 4294901760
        %2980 = vmatpush1.msra.mxu0 %v2979
        %2981 = vmatprep.subr.mxu0 0.0
        %v2982 = vand.u32 %v2793, 4294901760
        %v2983 = vsub.f32 %v2793, %v2982
        %v2984 = vand.u32 %v2983, 4294901760
        %v2985 = vsub.f32 %v2983, %v2984
        %v2986 = vand.u32 %v2985, 4294901760
        %2987 = vmatpush1.msra.mxu0 %v2986
        %2988 = vmatprep.subr.mxu0 0.0
        %v2989 = vand.u32 %v2799, 4294901760
        %v2990 = vsub.f32 %v2799, %v2989
        %v2991 = vand.u32 %v2990, 4294901760
        %v2992 = vsub.f32 %v2990, %v2991
        %v2993 = vand.u32 %v2992, 4294901760
        %2994 = vmatpush1.msra.mxu0 %v2993
        %2995 = vmatprep.subr.mxu0 0.0
        %v2996 = vand.u32 %v2805, 4294901760
        %v2997 = vsub.f32 %v2805, %v2996
        %v2998 = vand.u32 %v2997, 4294901760
        %v2999 = vsub.f32 %v2997, %v2998
        %v3000 = vand.u32 %v2999, 4294901760
        %3001 = vmatpush1.msra.mxu0 %v3000
        %3002 = vmatprep.subr.mxu0 0.0
        %v3003 = vand.u32 %v2811, 4294901760
        %v3004 = vsub.f32 %v2811, %v3003
        %v3005 = vand.u32 %v3004, 4294901760
        %v3006 = vsub.f32 %v3004, %v3005
        %v3007 = vand.u32 %v3006, 4294901760
        %3008 = vmatpush1.msra.mxu0 %v3007
        %3009 = vmatprep.subr.mxu0 0.0
        %v3010 = vand.u32 %v2817, 4294901760
        %v3011 = vsub.f32 %v2817, %v3010
        %v3012 = vand.u32 %v3011, 4294901760
        %v3013 = vsub.f32 %v3011, %v3012
        %v3014 = vand.u32 %v3013, 4294901760
        %3015 = vmatpush1.msra.mxu0 %v3014
        %3016 = vmatprep.subr.mxu0 0.0
        %v3017 = vand.u32 %v2823, 4294901760
        %v3018 = vsub.f32 %v2823, %v3017
        %v3019 = vand.u32 %v3018, 4294901760
        %v3020 = vsub.f32 %v3018, %v3019
        %v3021 = vand.u32 %v3020, 4294901760
        %3022 = vmatpush1.msra.mxu0 %v3021
        %3023 = vmatprep.subr.mxu0 0.0
        %v3024 = vand.u32 %v2829, 4294901760
        %v3025 = vsub.f32 %v2829, %v3024
        %v3026 = vand.u32 %v3025, 4294901760
        %v3027 = vsub.f32 %v3025, %v3026
        %v3028 = vand.u32 %v3027, 4294901760
        %3029 = vmatpush1.msra.mxu0 %v3028
        %3030 = vmatprep.subr.mxu0 0.0
        %v3031 = vand.u32 %v2835, 4294901760
        %v3032 = vsub.f32 %v2835, %v3031
        %v3033 = vand.u32 %v3032, 4294901760
        %v3034 = vsub.f32 %v3032, %v3033
        %v3035 = vand.u32 %v3034, 4294901760
        %3036 = vmatpush1.msra.mxu0 %v3035
        %3037 = vmatprep.subr.mxu0 0.0
        %v3038 = vand.u32 %v2841, 4294901760
        %v3039 = vsub.f32 %v2841, %v3038
        %v3040 = vand.u32 %v3039, 4294901760
        %v3041 = vsub.f32 %v3039, %v3040
        %v3042 = vand.u32 %v3041, 4294901760
        %3043 = vmatpush1.msra.mxu0 %v3042
        %3044 = vmatprep.subr.mxu0 0.0
        %v3045 = vand.u32 %v2847, 4294901760
        %v3046 = vsub.f32 %v2847, %v3045
        %v3047 = vand.u32 %v3046, 4294901760
        %v3048 = vsub.f32 %v3046, %v3047
        %v3049 = vand.u32 %v3048, 4294901760
        %3050 = vmatpush1.msra.mxu0 %v3049
        %3051 = vmatprep.subr.mxu0 0.0
        %v3052 = vand.u32 %v2853, 4294901760
        %v3053 = vsub.f32 %v2853, %v3052
        %v3054 = vand.u32 %v3053, 4294901760
        %v3055 = vsub.f32 %v3053, %v3054
        %v3056 = vand.u32 %v3055, 4294901760
        %3057 = vmatpush1.msra.mxu0 %v3056
        %3058 = vmatprep.subr.mxu0 0.0
        %v3059 = vand.u32 %v2859, 4294901760
        %v3060 = vsub.f32 %v2859, %v3059
        %v3061 = vand.u32 %v3060, 4294901760
        %v3062 = vsub.f32 %v3060, %v3061
        %v3063 = vand.u32 %v3062, 4294901760
        %3064 = vmatpush1.msra.mxu0 %v3063
        %3065 = vmatprep.subr.mxu0 0.0
        %3066 = vmatpush1.msra.mxu0 0.0
        %3067 = vmatprep.subr.mxu0 0.0
        %3068 = vmatpush1.msra.mxu0 0.0
        %3069 = vmatprep.subr.mxu0 0.0
        %3070 = vmatpush1.msra.mxu0 0.0
        %3071 = vmatprep.subr.mxu0 0.0
        %3072 = vmatpush1.msra.mxu0 0.0
        %3073 = vmatprep.subr.mxu0 0.0
        %3074 = vmatpush1.msra.mxu0 0.0
        %3075 = vmatprep.subr.mxu0 0.0
        %3076 = vmatpush1.msra.mxu0 0.0
        %3077 = vmatprep.subr.mxu0 0.0
        %3078 = vmatpush1.msra.mxu0 0.0
        %3079 = vmatprep.subr.mxu0 0.0
        %3080 = vmatpush1.msra.mxu0 0.0
        %3081 = vmatprep.subr.mxu0 0.0
        %3082 = vmatpush1.msra.mxu0 0.0
        %3083 = vmatprep.subr.mxu0 0.0
        %3084 = vmatpush1.msra.mxu0 0.0
        %3085 = vmatprep.subr.mxu0 0.0
        %3086 = vmatpush1.msra.mxu0 0.0
        %3087 = vmatprep.subr.mxu0 0.0
        %3088 = vmatpush1.msra.mxu0 0.0
        %3089 = vmatprep.subr.mxu0 0.0
        %3090 = vmatpush1.msra.mxu0 0.0
        %3091 = vmatprep.subr.mxu0 0.0
        %3092 = vmatpush1.msra.mxu0 0.0
        %3093 = vmatprep.subr.mxu0 0.0
        %3094 = vmatpush1.msra.mxu0 0.0
        %3095 = vmatprep.subr.mxu0 0.0
        %3096 = vmatpush1.msra.mxu0 0.0
        %3097 = vmatprep.mubr.f32.mxu0 0.0
        %v3098 = vand.u32 %v1200, 4294901760
        %3099 = vmatmul.mubr.f32.gmra.mrb[0].mxu0 %v3098
        %v3100 = vpop.f32.mrb[0].mxu0
        %v3101 = vadd.f32 %v2950, %v3100
        %v3102 = vpop.f32.mrb[0].mxu0
        %3103 = vdwg.mxu0
        %3104 = vmatprep.subr.mxu0 0.0
        %v3105 = vand.u32 %v2769, 4294901760
        %v3106 = vsub.f32 %v2769, %v3105
        %3107 = vmatpush1.msra.mxu0 %v3106
        %3108 = vmatprep.subr.mxu0 0.0
        %v3109 = vand.u32 %v2775, 4294901760
        %v3110 = vsub.f32 %v2775, %v3109
        %3111 = vmatpush1.msra.mxu0 %v3110
        %3112 = vmatprep.subr.mxu0 0.0
        %v3113 = vand.u32 %v2781, 4294901760
        %v3114 = vsub.f32 %v2781, %v3113
        %3115 = vmatpush1.msra.mxu0 %v3114
        %3116 = vmatprep.subr.mxu0 0.0
        %v3117 = vand.u32 %v2787, 4294901760
        %v3118 = vsub.f32 %v2787, %v3117
        %3119 = vmatpush1.msra.mxu0 %v3118
        %3120 = vmatprep.subr.mxu0 0.0
        %v3121 = vand.u32 %v2793, 4294901760
        %v3122 = vsub.f32 %v2793, %v3121
        %3123 = vmatpush1.msra.mxu0 %v3122
        %3124 = vmatprep.subr.mxu0 0.0
        %v3125 = vand.u32 %v2799, 4294901760
        %v3126 = vsub.f32 %v2799, %v3125
        %3127 = vmatpush1.msra.mxu0 %v3126
        %3128 = vmatprep.subr.mxu0 0.0
        %v3129 = vand.u32 %v2805, 4294901760
        %v3130 = vsub.f32 %v2805, %v3129
        %3131 = vmatpush1.msra.mxu0 %v3130
        %3132 = vmatprep.subr.mxu0 0.0
        %v3133 = vand.u32 %v2811, 4294901760
        %v3134 = vsub.f32 %v2811, %v3133
        %3135 = vmatpush1.msra.mxu0 %v3134
        %3136 = vmatprep.subr.mxu0 0.0
        %v3137 = vand.u32 %v2817, 4294901760
        %v3138 = vsub.f32 %v2817, %v3137
        %3139 = vmatpush1.msra.mxu0 %v3138
        %3140 = vmatprep.subr.mxu0 0.0
        %v3141 = vand.u32 %v2823, 4294901760
        %v3142 = vsub.f32 %v2823, %v3141
        %3143 = vmatpush1.msra.mxu0 %v3142
        %3144 = vmatprep.subr.mxu0 0.0
        %v3145 = vand.u32 %v2829, 4294901760
        %v3146 = vsub.f32 %v2829, %v3145
        %3147 = vmatpush1.msra.mxu0 %v3146
        %3148 = vmatprep.subr.mxu0 0.0
        %v3149 = vand.u32 %v2835, 4294901760
        %v3150 = vsub.f32 %v2835, %v3149
        %3151 = vmatpush1.msra.mxu0 %v3150
        %3152 = vmatprep.subr.mxu0 0.0
        %v3153 = vand.u32 %v2841, 4294901760
        %v3154 = vsub.f32 %v2841, %v3153
        %3155 = vmatpush1.msra.mxu0 %v3154
        %3156 = vmatprep.subr.mxu0 0.0
        %v3157 = vand.u32 %v2847, 4294901760
        %v3158 = vsub.f32 %v2847, %v3157
        %3159 = vmatpush1.msra.mxu0 %v3158
        %3160 = vmatprep.subr.mxu0 0.0
        %v3161 = vand.u32 %v2853, 4294901760
        %v3162 = vsub.f32 %v2853, %v3161
        %3163 = vmatpush1.msra.mxu0 %v3162
        %3164 = vmatprep.subr.mxu0 0.0
        %v3165 = vand.u32 %v2859, 4294901760
        %v3166 = vsub.f32 %v2859, %v3165
        %3167 = vmatpush1.msra.mxu0 %v3166
        %3168 = vmatprep.subr.mxu0 0.0
        %3169 = vmatpush1.msra.mxu0 0.0
        %3170 = vmatprep.subr.mxu0 0.0
        %3171 = vmatpush1.msra.mxu0 0.0
        %3172 = vmatprep.subr.mxu0 0.0
        %3173 = vmatpush1.msra.mxu0 0.0
        %3174 = vmatprep.subr.mxu0 0.0
        %3175 = vmatpush1.msra.mxu0 0.0
        %3176 = vmatprep.subr.mxu0 0.0
        %3177 = vmatpush1.msra.mxu0 0.0
        %3178 = vmatprep.subr.mxu0 0.0
        %3179 = vmatpush1.msra.mxu0 0.0
        %3180 = vmatprep.subr.mxu0 0.0
        %3181 = vmatpush1.msra.mxu0 0.0
        %3182 = vmatprep.subr.mxu0 0.0
        %3183 = vmatpush1.msra.mxu0 0.0
        %3184 = vmatprep.subr.mxu0 0.0
        %3185 = vmatpush1.msra.mxu0 0.0
        %3186 = vmatprep.subr.mxu0 0.0
        %3187 = vmatpush1.msra.mxu0 0.0
        %3188 = vmatprep.subr.mxu0 0.0
        %3189 = vmatpush1.msra.mxu0 0.0
        %3190 = vmatprep.subr.mxu0 0.0
        %3191 = vmatpush1.msra.mxu0 0.0
        %3192 = vmatprep.subr.mxu0 0.0
        %3193 = vmatpush1.msra.mxu0 0.0
        %3194 = vmatprep.subr.mxu0 0.0
        %3195 = vmatpush1.msra.mxu0 0.0
        %3196 = vmatprep.subr.mxu0 0.0
        %3197 = vmatpush1.msra.mxu0 0.0
        %3198 = vmatprep.subr.mxu0 0.0
        %3199 = vmatpush1.msra.mxu0 0.0
        %3200 = vmatprep.mubr.f32.mxu0 0.0
        %v3201 = vand.u32 %v1200, 4294901760
        %v3202 = vsub.f32 %v1200, %v3201
        %3203 = vmatmul.mubr.f32.gmra.mrb[0].mxu0 %v3202
        %v3204 = vpop.f32.mrb[0].mxu0
        %v3205 = vadd.f32 %v3101, %v3204
        %v3206 = vpop.f32.mrb[0].mxu0
        %3207 = vdwg.mxu0
        %3208 = vmatprep.subr.mxu0 0.0
        %v3209 = vand.u32 %v2769, 4294901760
        %3210 = vmatpush1.msra.mxu0 %v3209
        %3211 = vmatprep.subr.mxu0 0.0
        %v3212 = vand.u32 %v2775, 4294901760
        %3213 = vmatpush1.msra.mxu0 %v3212
        %3214 = vmatprep.subr.mxu0 0.0
        %v3215 = vand.u32 %v2781, 4294901760
        %3216 = vmatpush1.msra.mxu0 %v3215
        %3217 = vmatprep.subr.mxu0 0.0
        %v3218 = vand.u32 %v2787, 4294901760
        %3219 = vmatpush1.msra.mxu0 %v3218
        %3220 = vmatprep.subr.mxu0 0.0
        %v3221 = vand.u32 %v2793, 4294901760
        %3222 = vmatpush1.msra.mxu0 %v3221
        %3223 = vmatprep.subr.mxu0 0.0
        %v3224 = vand.u32 %v2799, 4294901760
        %3225 = vmatpush1.msra.mxu0 %v3224
        %3226 = vmatprep.subr.mxu0 0.0
        %v3227 = vand.u32 %v2805, 4294901760
        %3228 = vmatpush1.msra.mxu0 %v3227
        %3229 = vmatprep.subr.mxu0 0.0
        %v3230 = vand.u32 %v2811, 4294901760
        %3231 = vmatpush1.msra.mxu0 %v3230
        %3232 = vmatprep.subr.mxu0 0.0
        %v3233 = vand.u32 %v2817, 4294901760
        %3234 = vmatpush1.msra.mxu0 %v3233
        %3235 = vmatprep.subr.mxu0 0.0
        %v3236 = vand.u32 %v2823, 4294901760
        %3237 = vmatpush1.msra.mxu0 %v3236
        %3238 = vmatprep.subr.mxu0 0.0
        %v3239 = vand.u32 %v2829, 4294901760
        %3240 = vmatpush1.msra.mxu0 %v3239
        %3241 = vmatprep.subr.mxu0 0.0
        %v3242 = vand.u32 %v2835, 4294901760
        %3243 = vmatpush1.msra.mxu0 %v3242
        %3244 = vmatprep.subr.mxu0 0.0
        %v3245 = vand.u32 %v2841, 4294901760
        %3246 = vmatpush1.msra.mxu0 %v3245
        %3247 = vmatprep.subr.mxu0 0.0
        %v3248 = vand.u32 %v2847, 4294901760
        %3249 = vmatpush1.msra.mxu0 %v3248
        %3250 = vmatprep.subr.mxu0 0.0
        %v3251 = vand.u32 %v2853, 4294901760
        %3252 = vmatpush1.msra.mxu0 %v3251
        %3253 = vmatprep.subr.mxu0 0.0
        %v3254 = vand.u32 %v2859, 4294901760
        %3255 = vmatpush1.msra.mxu0 %v3254
        %3256 = vmatprep.subr.mxu0 0.0
        %3257 = vmatpush1.msra.mxu0 0.0
        %3258 = vmatprep.subr.mxu0 0.0
        %3259 = vmatpush1.msra.mxu0 0.0
        %3260 = vmatprep.subr.mxu0 0.0
        %3261 = vmatpush1.msra.mxu0 0.0
        %3262 = vmatprep.subr.mxu0 0.0
        %3263 = vmatpush1.msra.mxu0 0.0
        %3264 = vmatprep.subr.mxu0 0.0
        %3265 = vmatpush1.msra.mxu0 0.0
        %3266 = vmatprep.subr.mxu0 0.0
        %3267 = vmatpush1.msra.mxu0 0.0
        %3268 = vmatprep.subr.mxu0 0.0
        %3269 = vmatpush1.msra.mxu0 0.0
        %3270 = vmatprep.subr.mxu0 0.0
        %3271 = vmatpush1.msra.mxu0 0.0
        %3272 = vmatprep.subr.mxu0 0.0
        %3273 = vmatpush1.msra.mxu0 0.0
        %3274 = vmatprep.subr.mxu0 0.0
        %3275 = vmatpush1.msra.mxu0 0.0
        %3276 = vmatprep.subr.mxu0 0.0
        %3277 = vmatpush1.msra.mxu0 0.0
        %3278 = vmatprep.subr.mxu0 0.0
        %3279 = vmatpush1.msra.mxu0 0.0
        %3280 = vmatprep.subr.mxu0 0.0
        %3281 = vmatpush1.msra.mxu0 0.0
        %3282 = vmatprep.subr.mxu0 0.0
        %3283 = vmatpush1.msra.mxu0 0.0
        %3284 = vmatprep.subr.mxu0 0.0
        %3285 = vmatpush1.msra.mxu0 0.0
        %3286 = vmatprep.subr.mxu0 0.0
        %3287 = vmatpush1.msra.mxu0 0.0
        %3288 = vmatprep.mubr.f32.mxu0 0.0
        %v3289 = vand.u32 %v1200, 4294901760
        %v3290 = vsub.f32 %v1200, %v3289
        %v3291 = vand.u32 %v3290, 4294901760
        %3292 = vmatmul.mubr.f32.gmra.mrb[0].mxu0 %v3291
        %v3293 = vpop.f32.mrb[0].mxu0
        %v3294 = vadd.f32 %v3205, %v3293
        %v3295 = vpop.f32.mrb[0].mxu0
        %3296 = vdwg.mxu0
        %3297 = vmatprep.subr.mxu0 0.0
        %v3298 = vand.u32 %v2769, 4294901760
        %v3299 = vsub.f32 %v2769, %v3298
        %v3300 = vand.u32 %v3299, 4294901760
        %3301 = vmatpush1.msra.mxu0 %v3300
        %3302 = vmatprep.subr.mxu0 0.0
        %v3303 = vand.u32 %v2775, 4294901760
        %v3304 = vsub.f32 %v2775, %v3303
        %v3305 = vand.u32 %v3304, 4294901760
        %3306 = vmatpush1.msra.mxu0 %v3305
        %3307 = vmatprep.subr.mxu0 0.0
        %v3308 = vand.u32 %v2781, 4294901760
        %v3309 = vsub.f32 %v2781, %v3308
        %v3310 = vand.u32 %v3309, 4294901760
        %3311 = vmatpush1.msra.mxu0 %v3310
        %3312 = vmatprep.subr.mxu0 0.0
        %v3313 = vand.u32 %v2787, 4294901760
        %v3314 = vsub.f32 %v2787, %v3313
        %v3315 = vand.u32 %v3314, 4294901760
        %3316 = vmatpush1.msra.mxu0 %v3315
        %3317 = vmatprep.subr.mxu0 0.0
        %v3318 = vand.u32 %v2793, 4294901760
        %v3319 = vsub.f32 %v2793, %v3318
        %v3320 = vand.u32 %v3319, 4294901760
        %3321 = vmatpush1.msra.mxu0 %v3320
        %3322 = vmatprep.subr.mxu0 0.0
        %v3323 = vand.u32 %v2799, 4294901760
        %v3324 = vsub.f32 %v2799, %v3323
        %v3325 = vand.u32 %v3324, 4294901760
        %3326 = vmatpush1.msra.mxu0 %v3325
        %3327 = vmatprep.subr.mxu0 0.0
        %v3328 = vand.u32 %v2805, 4294901760
        %v3329 = vsub.f32 %v2805, %v3328
        %v3330 = vand.u32 %v3329, 4294901760
        %3331 = vmatpush1.msra.mxu0 %v3330
        %3332 = vmatprep.subr.mxu0 0.0
        %v3333 = vand.u32 %v2811, 4294901760
        %v3334 = vsub.f32 %v2811, %v3333
        %v3335 = vand.u32 %v3334, 4294901760
        %3336 = vmatpush1.msra.mxu0 %v3335
        %3337 = vmatprep.subr.mxu0 0.0
        %v3338 = vand.u32 %v2817, 4294901760
        %v3339 = vsub.f32 %v2817, %v3338
        %v3340 = vand.u32 %v3339, 4294901760
        %3341 = vmatpush1.msra.mxu0 %v3340
        %3342 = vmatprep.subr.mxu0 0.0
        %v3343 = vand.u32 %v2823, 4294901760
        %v3344 = vsub.f32 %v2823, %v3343
        %v3345 = vand.u32 %v3344, 4294901760
        %3346 = vmatpush1.msra.mxu0 %v3345
        %3347 = vmatprep.subr.mxu0 0.0
        %v3348 = vand.u32 %v2829, 4294901760
        %v3349 = vsub.f32 %v2829, %v3348
        %v3350 = vand.u32 %v3349, 4294901760
        %3351 = vmatpush1.msra.mxu0 %v3350
        %3352 = vmatprep.subr.mxu0 0.0
        %v3353 = vand.u32 %v2835, 4294901760
        %v3354 = vsub.f32 %v2835, %v3353
        %v3355 = vand.u32 %v3354, 4294901760
        %3356 = vmatpush1.msra.mxu0 %v3355
        %3357 = vmatprep.subr.mxu0 0.0
        %v3358 = vand.u32 %v2841, 4294901760
        %v3359 = vsub.f32 %v2841, %v3358
        %v3360 = vand.u32 %v3359, 4294901760
        %3361 = vmatpush1.msra.mxu0 %v3360
        %3362 = vmatprep.subr.mxu0 0.0
        %v3363 = vand.u32 %v2847, 4294901760
        %v3364 = vsub.f32 %v2847, %v3363
        %v3365 = vand.u32 %v3364, 4294901760
        %3366 = vmatpush1.msra.mxu0 %v3365
        %3367 = vmatprep.subr.mxu0 0.0
        %v3368 = vand.u32 %v2853, 4294901760
        %v3369 = vsub.f32 %v2853, %v3368
        %v3370 = vand.u32 %v3369, 4294901760
        %3371 = vmatpush1.msra.mxu0 %v3370
        %3372 = vmatprep.subr.mxu0 0.0
        %v3373 = vand.u32 %v2859, 4294901760
        %v3374 = vsub.f32 %v2859, %v3373
        %v3375 = vand.u32 %v3374, 4294901760
        %3376 = vmatpush1.msra.mxu0 %v3375
        %3377 = vmatprep.subr.mxu0 0.0
        %3378 = vmatpush1.msra.mxu0 0.0
        %3379 = vmatprep.subr.mxu0 0.0
        %3380 = vmatpush1.msra.mxu0 0.0
        %3381 = vmatprep.subr.mxu0 0.0
        %3382 = vmatpush1.msra.mxu0 0.0
        %3383 = vmatprep.subr.mxu0 0.0
        %3384 = vmatpush1.msra.mxu0 0.0
        %3385 = vmatprep.subr.mxu0 0.0
        %3386 = vmatpush1.msra.mxu0 0.0
        %3387 = vmatprep.subr.mxu0 0.0
        %3388 = vmatpush1.msra.mxu0 0.0
        %3389 = vmatprep.subr.mxu0 0.0
        %3390 = vmatpush1.msra.mxu0 0.0
        %3391 = vmatprep.subr.mxu0 0.0
        %3392 = vmatpush1.msra.mxu0 0.0
        %3393 = vmatprep.subr.mxu0 0.0
        %3394 = vmatpush1.msra.mxu0 0.0
        %3395 = vmatprep.subr.mxu0 0.0
        %3396 = vmatpush1.msra.mxu0 0.0
        %3397 = vmatprep.subr.mxu0 0.0
        %3398 = vmatpush1.msra.mxu0 0.0
        %3399 = vmatprep.subr.mxu0 0.0
        %3400 = vmatpush1.msra.mxu0 0.0
        %3401 = vmatprep.subr.mxu0 0.0
        %3402 = vmatpush1.msra.mxu0 0.0
        %3403 = vmatprep.subr.mxu0 0.0
        %3404 = vmatpush1.msra.mxu0 0.0
        %3405 = vmatprep.subr.mxu0 0.0
        %3406 = vmatpush1.msra.mxu0 0.0
        %3407 = vmatprep.subr.mxu0 0.0
        %3408 = vmatpush1.msra.mxu0 0.0
        %3409 = vmatprep.mubr.f32.mxu0 0.0
        %v3410 = vand.u32 %v1200, 4294901760
        %3411 = vmatmul.mubr.f32.gmra.mrb[0].mxu0 %v3410
        %v3412 = vpop.f32.mrb[0].mxu0
        %v3413 = vadd.f32 %v3294, %v3412
        %v3414 = vpop.f32.mrb[0].mxu0
        %3415 = vdwg.mxu0
        %3416 = vmatprep.subr.mxu0 0.0
        %v3417 = vand.u32 %v2769, 4294901760
        %3418 = vmatpush1.msra.mxu0 %v3417
        %3419 = vmatprep.subr.mxu0 0.0
        %v3420 = vand.u32 %v2775, 4294901760
        %3421 = vmatpush1.msra.mxu0 %v3420
        %3422 = vmatprep.subr.mxu0 0.0
        %v3423 = vand.u32 %v2781, 4294901760
        %3424 = vmatpush1.msra.mxu0 %v3423
        %3425 = vmatprep.subr.mxu0 0.0
        %v3426 = vand.u32 %v2787, 4294901760
        %3427 = vmatpush1.msra.mxu0 %v3426
        %3428 = vmatprep.subr.mxu0 0.0
        %v3429 = vand.u32 %v2793, 4294901760
        %3430 = vmatpush1.msra.mxu0 %v3429
        %3431 = vmatprep.subr.mxu0 0.0
        %v3432 = vand.u32 %v2799, 4294901760
        %3433 = vmatpush1.msra.mxu0 %v3432
        %3434 = vmatprep.subr.mxu0 0.0
        %v3435 = vand.u32 %v2805, 4294901760
        %3436 = vmatpush1.msra.mxu0 %v3435
        %3437 = vmatprep.subr.mxu0 0.0
        %v3438 = vand.u32 %v2811, 4294901760
        %3439 = vmatpush1.msra.mxu0 %v3438
        %3440 = vmatprep.subr.mxu0 0.0
        %v3441 = vand.u32 %v2817, 4294901760
        %3442 = vmatpush1.msra.mxu0 %v3441
        %3443 = vmatprep.subr.mxu0 0.0
        %v3444 = vand.u32 %v2823, 4294901760
        %3445 = vmatpush1.msra.mxu0 %v3444
        %3446 = vmatprep.subr.mxu0 0.0
        %v3447 = vand.u32 %v2829, 4294901760
        %3448 = vmatpush1.msra.mxu0 %v3447
        %3449 = vmatprep.subr.mxu0 0.0
        %v3450 = vand.u32 %v2835, 4294901760
        %3451 = vmatpush1.msra.mxu0 %v3450
        %3452 = vmatprep.subr.mxu0 0.0
        %v3453 = vand.u32 %v2841, 4294901760
        %3454 = vmatpush1.msra.mxu0 %v3453
        %3455 = vmatprep.subr.mxu0 0.0
        %v3456 = vand.u32 %v2847, 4294901760
        %3457 = vmatpush1.msra.mxu0 %v3456
        %3458 = vmatprep.subr.mxu0 0.0
        %v3459 = vand.u32 %v2853, 4294901760
        %3460 = vmatpush1.msra.mxu0 %v3459
        %3461 = vmatprep.subr.mxu0 0.0
        %v3462 = vand.u32 %v2859, 4294901760
        %3463 = vmatpush1.msra.mxu0 %v3462
        %3464 = vmatprep.subr.mxu0 0.0
        %3465 = vmatpush1.msra.mxu0 0.0
        %3466 = vmatprep.subr.mxu0 0.0
        %3467 = vmatpush1.msra.mxu0 0.0
        %3468 = vmatprep.subr.mxu0 0.0
        %3469 = vmatpush1.msra.mxu0 0.0
        %3470 = vmatprep.subr.mxu0 0.0
        %3471 = vmatpush1.msra.mxu0 0.0
        %3472 = vmatprep.subr.mxu0 0.0
        %3473 = vmatpush1.msra.mxu0 0.0
        %3474 = vmatprep.subr.mxu0 0.0
        %3475 = vmatpush1.msra.mxu0 0.0
        %3476 = vmatprep.subr.mxu0 0.0
        %3477 = vmatpush1.msra.mxu0 0.0
        %3478 = vmatprep.subr.mxu0 0.0
        %3479 = vmatpush1.msra.mxu0 0.0
        %3480 = vmatprep.subr.mxu0 0.0
        %3481 = vmatpush1.msra.mxu0 0.0
        %3482 = vmatprep.subr.mxu0 0.0
        %3483 = vmatpush1.msra.mxu0 0.0
        %3484 = vmatprep.subr.mxu0 0.0
        %3485 = vmatpush1.msra.mxu0 0.0
        %3486 = vmatprep.subr.mxu0 0.0
        %3487 = vmatpush1.msra.mxu0 0.0
        %3488 = vmatprep.subr.mxu0 0.0
        %3489 = vmatpush1.msra.mxu0 0.0
        %3490 = vmatprep.subr.mxu0 0.0
        %3491 = vmatpush1.msra.mxu0 0.0
        %3492 = vmatprep.subr.mxu0 0.0
        %3493 = vmatpush1.msra.mxu0 0.0
        %3494 = vmatprep.subr.mxu0 0.0
        %3495 = vmatpush1.msra.mxu0 0.0
        %3496 = vmatprep.mubr.f32.mxu0 0.0
        %v3497 = vand.u32 %v1200, 4294901760
        %3498 = vmatmul.mubr.f32.gmra.mrb[0].mxu0 %v3497
        %v3499 = vpop.f32.mrb[0].mxu0
        %v3500 = vadd.f32 %v3413, %v3499
        %v3501 = vpop.f32.mrb[0].mxu0
        %3502 = vdwg.mxu0
        %v3503 = vld [vmem:[%s5] sm:$0xff]
        %v3504 = vld [vmem:[%s5 + $0x8] sm:$0xff]
        %v3505 = vld [vmem:[%s5 + $0x10] sm:$0xff]
        %v3506 = vld [vmem:[%s5 + $0x18] sm:$0xff]
        %v3508 = vsel %vm465, %v3500, 0
        %3510 = vmatprep.subr.mxu0 0.0
        %v3511 = vand.u32 %v3503, 4294901760
        %3512 = vmatpush1.msra.mxu0 %v3511
        %3513 = vmatprep.subr.mxu0 0.0
        %v3514 = vand.u32 %v3504, 4294901760
        %3515 = vmatpush1.msra.mxu0 %v3514
        %3516 = vmatprep.subr.mxu0 0.0
        %v3517 = vand.u32 %v3505, 4294901760
        %3518 = vmatpush1.msra.mxu0 %v3517
        %3519 = vmatprep.subr.mxu0 0.0
        %v3520 = vand.u32 %v3506, 4294901760
        %3521 = vmatpush1.msra.mxu0 %v3520
        %3522 = vmatprep.subr.mxu0 0.0
        %3523 = vmatpush1.msra.mxu0 0.0
        %3524 = vmatprep.subr.mxu0 0.0
        %3525 = vmatpush1.msra.mxu0 0.0
        %3526 = vmatprep.subr.mxu0 0.0
        %3527 = vmatpush1.msra.mxu0 0.0
        %3528 = vmatprep.subr.mxu0 0.0
        %3529 = vmatpush1.msra.mxu0 0.0
        %3530 = vmatprep.subr.mxu0 0.0
        %3531 = vmatpush1.msra.mxu0 0.0
        %3532 = vmatprep.subr.mxu0 0.0
        %3533 = vmatpush1.msra.mxu0 0.0
        %3534 = vmatprep.subr.mxu0 0.0
        %3535 = vmatpush1.msra.mxu0 0.0
        %3536 = vmatprep.subr.mxu0 0.0
        %3537 = vmatpush1.msra.mxu0 0.0
        %3538 = vmatprep.subr.mxu0 0.0
        %3539 = vmatpush1.msra.mxu0 0.0
        %3540 = vmatprep.subr.mxu0 0.0
        %3541 = vmatpush1.msra.mxu0 0.0
        %3542 = vmatprep.subr.mxu0 0.0
        %3543 = vmatpush1.msra.mxu0 0.0
        %3544 = vmatprep.subr.mxu0 0.0
        %3545 = vmatpush1.msra.mxu0 0.0
        %3546 = vmatprep.subr.mxu0 0.0
        %3547 = vmatpush1.msra.mxu0 0.0
        %3548 = vmatprep.subr.mxu0 0.0
        %3549 = vmatpush1.msra.mxu0 0.0
        %3550 = vmatprep.subr.mxu0 0.0
        %3551 = vmatpush1.msra.mxu0 0.0
        %3552 = vmatprep.subr.mxu0 0.0
        %3553 = vmatpush1.msra.mxu0 0.0
        %3554 = vmatprep.subr.mxu0 0.0
        %3555 = vmatpush1.msra.mxu0 0.0
        %3556 = vmatprep.subr.mxu0 0.0
        %3557 = vmatpush1.msra.mxu0 0.0
        %3558 = vmatprep.subr.mxu0 0.0
        %3559 = vmatpush1.msra.mxu0 0.0
        %3560 = vmatprep.subr.mxu0 0.0
        %3561 = vmatpush1.msra.mxu0 0.0
        %3562 = vmatprep.subr.mxu0 0.0
        %3563 = vmatpush1.msra.mxu0 0.0
        %3564 = vmatprep.subr.mxu0 0.0
        %3565 = vmatpush1.msra.mxu0 0.0
        %3566 = vmatprep.subr.mxu0 0.0
        %3567 = vmatpush1.msra.mxu0 0.0
        %3568 = vmatprep.subr.mxu0 0.0
        %3569 = vmatpush1.msra.mxu0 0.0
        %3570 = vmatprep.subr.mxu0 0.0
        %3571 = vmatpush1.msra.mxu0 0.0
        %3572 = vmatprep.subr.mxu0 0.0
        %3573 = vmatpush1.msra.mxu0 0.0
        %3574 = vmatprep.subr.mxu0 0.0
        %3575 = vmatpush1.msra.mxu0 0.0
        %3576 = vmatprep.subr.mxu0 0.0
        %3577 = vmatpush1.msra.mxu0 0.0
        %3578 = vmatprep.mubr.f32.mxu0 0.0
        %v3579 = vand.u32 %v3508, 4294901760
        %v3580 = vsub.f32 %v3508, %v3579
        %v3581 = vand.u32 %v3580, 4294901760
        %v3582 = vsub.f32 %v3580, %v3581
        %v3583 = vand.u32 %v3582, 4294901760
        %3584 = vmatmul.mubr.f32.gmra.mrb[0].mxu0 %v3583
        %v3585 = vpop.f32.mrb[0].mxu0
        %v3586 = vadd.f32 0.0, %v3585
        %v3587 = vpop.f32.mrb[0].mxu0
        %3588 = vdwg.mxu0
        %3589 = vmatprep.subr.mxu0 0.0
        %v3590 = vand.u32 %v3503, 4294901760
        %v3591 = vsub.f32 %v3503, %v3590
        %v3592 = vand.u32 %v3591, 4294901760
        %v3593 = vsub.f32 %v3591, %v3592
        %v3594 = vand.u32 %v3593, 4294901760
        %3595 = vmatpush1.msra.mxu0 %v3594
        %3596 = vmatprep.subr.mxu0 0.0
        %v3597 = vand.u32 %v3504, 4294901760
        %v3598 = vsub.f32 %v3504, %v3597
        %v3599 = vand.u32 %v3598, 4294901760
        %v3600 = vsub.f32 %v3598, %v3599
        %v3601 = vand.u32 %v3600, 4294901760
        %3602 = vmatpush1.msra.mxu0 %v3601
        %3603 = vmatprep.subr.mxu0 0.0
        %v3604 = vand.u32 %v3505, 4294901760
        %v3605 = vsub.f32 %v3505, %v3604
        %v3606 = vand.u32 %v3605, 4294901760
        %v3607 = vsub.f32 %v3605, %v3606
        %v3608 = vand.u32 %v3607, 4294901760
        %3609 = vmatpush1.msra.mxu0 %v3608
        %3610 = vmatprep.subr.mxu0 0.0
        %v3611 = vand.u32 %v3506, 4294901760
        %v3612 = vsub.f32 %v3506, %v3611
        %v3613 = vand.u32 %v3612, 4294901760
        %v3614 = vsub.f32 %v3612, %v3613
        %v3615 = vand.u32 %v3614, 4294901760
        %3616 = vmatpush1.msra.mxu0 %v3615
        %3617 = vmatprep.subr.mxu0 0.0
        %3618 = vmatpush1.msra.mxu0 0.0
        %3619 = vmatprep.subr.mxu0 0.0
        %3620 = vmatpush1.msra.mxu0 0.0
        %3621 = vmatprep.subr.mxu0 0.0
        %3622 = vmatpush1.msra.mxu0 0.0
        %3623 = vmatprep.subr.mxu0 0.0
        %3624 = vmatpush1.msra.mxu0 0.0
        %3625 = vmatprep.subr.mxu0 0.0
        %3626 = vmatpush1.msra.mxu0 0.0
        %3627 = vmatprep.subr.mxu0 0.0
        %3628 = vmatpush1.msra.mxu0 0.0
        %3629 = vmatprep.subr.mxu0 0.0
        %3630 = vmatpush1.msra.mxu0 0.0
        %3631 = vmatprep.subr.mxu0 0.0
        %3632 = vmatpush1.msra.mxu0 0.0
        %3633 = vmatprep.subr.mxu0 0.0
        %3634 = vmatpush1.msra.mxu0 0.0
        %3635 = vmatprep.subr.mxu0 0.0
        %3636 = vmatpush1.msra.mxu0 0.0
        %3637 = vmatprep.subr.mxu0 0.0
        %3638 = vmatpush1.msra.mxu0 0.0
        %3639 = vmatprep.subr.mxu0 0.0
        %3640 = vmatpush1.msra.mxu0 0.0
        %3641 = vmatprep.subr.mxu0 0.0
        %3642 = vmatpush1.msra.mxu0 0.0
        %3643 = vmatprep.subr.mxu0 0.0
        %3644 = vmatpush1.msra.mxu0 0.0
        %3645 = vmatprep.subr.mxu0 0.0
        %3646 = vmatpush1.msra.mxu0 0.0
        %3647 = vmatprep.subr.mxu0 0.0
        %3648 = vmatpush1.msra.mxu0 0.0
        %3649 = vmatprep.subr.mxu0 0.0
        %3650 = vmatpush1.msra.mxu0 0.0
        %3651 = vmatprep.subr.mxu0 0.0
        %3652 = vmatpush1.msra.mxu0 0.0
        %3653 = vmatprep.subr.mxu0 0.0
        %3654 = vmatpush1.msra.mxu0 0.0
        %3655 = vmatprep.subr.mxu0 0.0
        %3656 = vmatpush1.msra.mxu0 0.0
        %3657 = vmatprep.subr.mxu0 0.0
        %3658 = vmatpush1.msra.mxu0 0.0
        %3659 = vmatprep.subr.mxu0 0.0
        %3660 = vmatpush1.msra.mxu0 0.0
        %3661 = vmatprep.subr.mxu0 0.0
        %3662 = vmatpush1.msra.mxu0 0.0
        %3663 = vmatprep.subr.mxu0 0.0
        %3664 = vmatpush1.msra.mxu0 0.0
        %3665 = vmatprep.subr.mxu0 0.0
        %3666 = vmatpush1.msra.mxu0 0.0
        %3667 = vmatprep.subr.mxu0 0.0
        %3668 = vmatpush1.msra.mxu0 0.0
        %3669 = vmatprep.subr.mxu0 0.0
        %3670 = vmatpush1.msra.mxu0 0.0
        %3671 = vmatprep.subr.mxu0 0.0
        %3672 = vmatpush1.msra.mxu0 0.0
        %3673 = vmatprep.mubr.f32.mxu0 0.0
        %v3674 = vand.u32 %v3508, 4294901760
        %3675 = vmatmul.mubr.f32.gmra.mrb[0].mxu0 %v3674
        %v3676 = vpop.f32.mrb[0].mxu0
        %v3677 = vadd.f32 %v3586, %v3676
        %v3678 = vpop.f32.mrb[0].mxu0
        %3679 = vdwg.mxu0
        %3680 = vmatprep.subr.mxu0 0.0
        %v3681 = vand.u32 %v3503, 4294901760
        %v3682 = vsub.f32 %v3503, %v3681
        %3683 = vmatpush1.msra.mxu0 %v3682
        %3684 = vmatprep.subr.mxu0 0.0
        %v3685 = vand.u32 %v3504, 4294901760
        %v3686 = vsub.f32 %v3504, %v3685
        %3687 = vmatpush1.msra.mxu0 %v3686
        %3688 = vmatprep.subr.mxu0 0.0
        %v3689 = vand.u32 %v3505, 4294901760
        %v3690 = vsub.f32 %v3505, %v3689
        %3691 = vmatpush1.msra.mxu0 %v3690
        %3692 = vmatprep.subr.mxu0 0.0
        %v3693 = vand.u32 %v3506, 4294901760
        %v3694 = vsub.f32 %v3506, %v3693
        %3695 = vmatpush1.msra.mxu0 %v3694
        %3696 = vmatprep.subr.mxu0 0.0
        %3697 = vmatpush1.msra.mxu0 0.0
        %3698 = vmatprep.subr.mxu0 0.0
        %3699 = vmatpush1.msra.mxu0 0.0
        %3700 = vmatprep.subr.mxu0 0.0
        %3701 = vmatpush1.msra.mxu0 0.0
        %3702 = vmatprep.subr.mxu0 0.0
        %3703 = vmatpush1.msra.mxu0 0.0
        %3704 = vmatprep.subr.mxu0 0.0
        %3705 = vmatpush1.msra.mxu0 0.0
        %3706 = vmatprep.subr.mxu0 0.0
        %3707 = vmatpush1.msra.mxu0 0.0
        %3708 = vmatprep.subr.mxu0 0.0
        %3709 = vmatpush1.msra.mxu0 0.0
        %3710 = vmatprep.subr.mxu0 0.0
        %3711 = vmatpush1.msra.mxu0 0.0
        %3712 = vmatprep.subr.mxu0 0.0
        %3713 = vmatpush1.msra.mxu0 0.0
        %3714 = vmatprep.subr.mxu0 0.0
        %3715 = vmatpush1.msra.mxu0 0.0
        %3716 = vmatprep.subr.mxu0 0.0
        %3717 = vmatpush1.msra.mxu0 0.0
        %3718 = vmatprep.subr.mxu0 0.0
        %3719 = vmatpush1.msra.mxu0 0.0
        %3720 = vmatprep.subr.mxu0 0.0
        %3721 = vmatpush1.msra.mxu0 0.0
        %3722 = vmatprep.subr.mxu0 0.0
        %3723 = vmatpush1.msra.mxu0 0.0
        %3724 = vmatprep.subr.mxu0 0.0
        %3725 = vmatpush1.msra.mxu0 0.0
        %3726 = vmatprep.subr.mxu0 0.0
        %3727 = vmatpush1.msra.mxu0 0.0
        %3728 = vmatprep.subr.mxu0 0.0
        %3729 = vmatpush1.msra.mxu0 0.0
        %3730 = vmatprep.subr.mxu0 0.0
        %3731 = vmatpush1.msra.mxu0 0.0
        %3732 = vmatprep.subr.mxu0 0.0
        %3733 = vmatpush1.msra.mxu0 0.0
        %3734 = vmatprep.subr.mxu0 0.0
        %3735 = vmatpush1.msra.mxu0 0.0
        %3736 = vmatprep.subr.mxu0 0.0
        %3737 = vmatpush1.msra.mxu0 0.0
        %3738 = vmatprep.subr.mxu0 0.0
        %3739 = vmatpush1.msra.mxu0 0.0
        %3740 = vmatprep.subr.mxu0 0.0
        %3741 = vmatpush1.msra.mxu0 0.0
        %3742 = vmatprep.subr.mxu0 0.0
        %3743 = vmatpush1.msra.mxu0 0.0
        %3744 = vmatprep.subr.mxu0 0.0
        %3745 = vmatpush1.msra.mxu0 0.0
        %3746 = vmatprep.subr.mxu0 0.0
        %3747 = vmatpush1.msra.mxu0 0.0
        %3748 = vmatprep.subr.mxu0 0.0
        %3749 = vmatpush1.msra.mxu0 0.0
        %3750 = vmatprep.subr.mxu0 0.0
        %3751 = vmatpush1.msra.mxu0 0.0
        %3752 = vmatprep.mubr.f32.mxu0 0.0
        %v3753 = vand.u32 %v3508, 4294901760
        %v3754 = vsub.f32 %v3508, %v3753
        %3755 = vmatmul.mubr.f32.gmra.mrb[0].mxu0 %v3754
        %v3756 = vpop.f32.mrb[0].mxu0
        %v3757 = vadd.f32 %v3677, %v3756
        %v3758 = vpop.f32.mrb[0].mxu0
        %3759 = vdwg.mxu0
        %3760 = vmatprep.subr.mxu0 0.0
        %v3761 = vand.u32 %v3503, 4294901760
        %3762 = vmatpush1.msra.mxu0 %v3761
        %3763 = vmatprep.subr.mxu0 0.0
        %v3764 = vand.u32 %v3504, 4294901760
        %3765 = vmatpush1.msra.mxu0 %v3764
        %3766 = vmatprep.subr.mxu0 0.0
        %v3767 = vand.u32 %v3505, 4294901760
        %3768 = vmatpush1.msra.mxu0 %v3767
        %3769 = vmatprep.subr.mxu0 0.0
        %v3770 = vand.u32 %v3506, 4294901760
        %3771 = vmatpush1.msra.mxu0 %v3770
        %3772 = vmatprep.subr.mxu0 0.0
        %3773 = vmatpush1.msra.mxu0 0.0
        %3774 = vmatprep.subr.mxu0 0.0
        %3775 = vmatpush1.msra.mxu0 0.0
        %3776 = vmatprep.subr.mxu0 0.0
        %3777 = vmatpush1.msra.mxu0 0.0
        %3778 = vmatprep.subr.mxu0 0.0
        %3779 = vmatpush1.msra.mxu0 0.0
        %3780 = vmatprep.subr.mxu0 0.0
        %3781 = vmatpush1.msra.mxu0 0.0
        %3782 = vmatprep.subr.mxu0 0.0
        %3783 = vmatpush1.msra.mxu0 0.0
        %3784 = vmatprep.subr.mxu0 0.0
        %3785 = vmatpush1.msra.mxu0 0.0
        %3786 = vmatprep.subr.mxu0 0.0
        %3787 = vmatpush1.msra.mxu0 0.0
        %3788 = vmatprep.subr.mxu0 0.0
        %3789 = vmatpush1.msra.mxu0 0.0
        %3790 = vmatprep.subr.mxu0 0.0
        %3791 = vmatpush1.msra.mxu0 0.0
        %3792 = vmatprep.subr.mxu0 0.0
        %3793 = vmatpush1.msra.mxu0 0.0
        %3794 = vmatprep.subr.mxu0 0.0
        %3795 = vmatpush1.msra.mxu0 0.0
        %3796 = vmatprep.subr.mxu0 0.0
        %3797 = vmatpush1.msra.mxu0 0.0
        %3798 = vmatprep.subr.mxu0 0.0
        %3799 = vmatpush1.msra.mxu0 0.0
        %3800 = vmatprep.subr.mxu0 0.0
        %3801 = vmatpush1.msra.mxu0 0.0
        %3802 = vmatprep.subr.mxu0 0.0
        %3803 = vmatpush1.msra.mxu0 0.0
        %3804 = vmatprep.subr.mxu0 0.0
        %3805 = vmatpush1.msra.mxu0 0.0
        %3806 = vmatprep.subr.mxu0 0.0
        %3807 = vmatpush1.msra.mxu0 0.0
        %3808 = vmatprep.subr.mxu0 0.0
        %3809 = vmatpush1.msra.mxu0 0.0
        %3810 = vmatprep.subr.mxu0 0.0
        %3811 = vmatpush1.msra.mxu0 0.0
        %3812 = vmatprep.subr.mxu0 0.0
        %3813 = vmatpush1.msra.mxu0 0.0
        %3814 = vmatprep.subr.mxu0 0.0
        %3815 = vmatpush1.msra.mxu0 0.0
        %3816 = vmatprep.subr.mxu0 0.0
        %3817 = vmatpush1.msra.mxu0 0.0
        %3818 = vmatprep.subr.mxu0 0.0
        %3819 = vmatpush1.msra.mxu0 0.0
        %3820 = vmatprep.subr.mxu0 0.0
        %3821 = vmatpush1.msra.mxu0 0.0
        %3822 = vmatprep.subr.mxu0 0.0
        %3823 = vmatpush1.msra.mxu0 0.0
        %3824 = vmatprep.subr.mxu0 0.0
        %3825 = vmatpush1.msra.mxu0 0.0
        %3826 = vmatprep.subr.mxu0 0.0
        %3827 = vmatpush1.msra.mxu0 0.0
        %3828 = vmatprep.mubr.f32.mxu0 0.0
        %v3829 = vand.u32 %v3508, 4294901760
        %v3830 = vsub.f32 %v3508, %v3829
        %v3831 = vand.u32 %v3830, 4294901760
        %3832 = vmatmul.mubr.f32.gmra.mrb[0].mxu0 %v3831
        %v3833 = vpop.f32.mrb[0].mxu0
        %v3834 = vadd.f32 %v3757, %v3833
        %v3835 = vpop.f32.mrb[0].mxu0
        %3836 = vdwg.mxu0
        %3837 = vmatprep.subr.mxu0 0.0
        %v3838 = vand.u32 %v3503, 4294901760
        %v3839 = vsub.f32 %v3503, %v3838
        %v3840 = vand.u32 %v3839, 4294901760
        %3841 = vmatpush1.msra.mxu0 %v3840
        %3842 = vmatprep.subr.mxu0 0.0
        %v3843 = vand.u32 %v3504, 4294901760
        %v3844 = vsub.f32 %v3504, %v3843
        %v3845 = vand.u32 %v3844, 4294901760
        %3846 = vmatpush1.msra.mxu0 %v3845
        %3847 = vmatprep.subr.mxu0 0.0
        %v3848 = vand.u32 %v3505, 4294901760
        %v3849 = vsub.f32 %v3505, %v3848
        %v3850 = vand.u32 %v3849, 4294901760
        %3851 = vmatpush1.msra.mxu0 %v3850
        %3852 = vmatprep.subr.mxu0 0.0
        %v3853 = vand.u32 %v3506, 4294901760
        %v3854 = vsub.f32 %v3506, %v3853
        %v3855 = vand.u32 %v3854, 4294901760
        %3856 = vmatpush1.msra.mxu0 %v3855
        %3857 = vmatprep.subr.mxu0 0.0
        %3858 = vmatpush1.msra.mxu0 0.0
        %3859 = vmatprep.subr.mxu0 0.0
        %3860 = vmatpush1.msra.mxu0 0.0
        %3861 = vmatprep.subr.mxu0 0.0
        %3862 = vmatpush1.msra.mxu0 0.0
        %3863 = vmatprep.subr.mxu0 0.0
        %3864 = vmatpush1.msra.mxu0 0.0
        %3865 = vmatprep.subr.mxu0 0.0
        %3866 = vmatpush1.msra.mxu0 0.0
        %3867 = vmatprep.subr.mxu0 0.0
        %3868 = vmatpush1.msra.mxu0 0.0
        %3869 = vmatprep.subr.mxu0 0.0
        %3870 = vmatpush1.msra.mxu0 0.0
        %3871 = vmatprep.subr.mxu0 0.0
        %3872 = vmatpush1.msra.mxu0 0.0
        %3873 = vmatprep.subr.mxu0 0.0
        %3874 = vmatpush1.msra.mxu0 0.0
        %3875 = vmatprep.subr.mxu0 0.0
        %3876 = vmatpush1.msra.mxu0 0.0
        %3877 = vmatprep.subr.mxu0 0.0
        %3878 = vmatpush1.msra.mxu0 0.0
        %3879 = vmatprep.subr.mxu0 0.0
        %3880 = vmatpush1.msra.mxu0 0.0
        %3881 = vmatprep.subr.mxu0 0.0
        %3882 = vmatpush1.msra.mxu0 0.0
        %3883 = vmatprep.subr.mxu0 0.0
        %3884 = vmatpush1.msra.mxu0 0.0
        %3885 = vmatprep.subr.mxu0 0.0
        %3886 = vmatpush1.msra.mxu0 0.0
        %3887 = vmatprep.subr.mxu0 0.0
        %3888 = vmatpush1.msra.mxu0 0.0
        %3889 = vmatprep.subr.mxu0 0.0
        %3890 = vmatpush1.msra.mxu0 0.0
        %3891 = vmatprep.subr.mxu0 0.0
        %3892 = vmatpush1.msra.mxu0 0.0
        %3893 = vmatprep.subr.mxu0 0.0
        %3894 = vmatpush1.msra.mxu0 0.0
        %3895 = vmatprep.subr.mxu0 0.0
        %3896 = vmatpush1.msra.mxu0 0.0
        %3897 = vmatprep.subr.mxu0 0.0
        %3898 = vmatpush1.msra.mxu0 0.0
        %3899 = vmatprep.subr.mxu0 0.0
        %3900 = vmatpush1.msra.mxu0 0.0
        %3901 = vmatprep.subr.mxu0 0.0
        %3902 = vmatpush1.msra.mxu0 0.0
        %3903 = vmatprep.subr.mxu0 0.0
        %3904 = vmatpush1.msra.mxu0 0.0
        %3905 = vmatprep.subr.mxu0 0.0
        %3906 = vmatpush1.msra.mxu0 0.0
        %3907 = vmatprep.subr.mxu0 0.0
        %3908 = vmatpush1.msra.mxu0 0.0
        %3909 = vmatprep.subr.mxu0 0.0
        %3910 = vmatpush1.msra.mxu0 0.0
        %3911 = vmatprep.subr.mxu0 0.0
        %3912 = vmatpush1.msra.mxu0 0.0
        %3913 = vmatprep.mubr.f32.mxu0 0.0
        %v3914 = vand.u32 %v3508, 4294901760
        %3915 = vmatmul.mubr.f32.gmra.mrb[0].mxu0 %v3914
        %v3916 = vpop.f32.mrb[0].mxu0
        %v3917 = vadd.f32 %v3834, %v3916
        %v3918 = vpop.f32.mrb[0].mxu0
        %3919 = vdwg.mxu0
        %3920 = vmatprep.subr.mxu0 0.0
        %v3921 = vand.u32 %v3503, 4294901760
        %3922 = vmatpush1.msra.mxu0 %v3921
        %3923 = vmatprep.subr.mxu0 0.0
        %v3924 = vand.u32 %v3504, 4294901760
        %3925 = vmatpush1.msra.mxu0 %v3924
        %3926 = vmatprep.subr.mxu0 0.0
        %v3927 = vand.u32 %v3505, 4294901760
        %3928 = vmatpush1.msra.mxu0 %v3927
        %3929 = vmatprep.subr.mxu0 0.0
        %v3930 = vand.u32 %v3506, 4294901760
        %3931 = vmatpush1.msra.mxu0 %v3930
        %3932 = vmatprep.subr.mxu0 0.0
        %3933 = vmatpush1.msra.mxu0 0.0
        %3934 = vmatprep.subr.mxu0 0.0
        %3935 = vmatpush1.msra.mxu0 0.0
        %3936 = vmatprep.subr.mxu0 0.0
        %3937 = vmatpush1.msra.mxu0 0.0
        %3938 = vmatprep.subr.mxu0 0.0
        %3939 = vmatpush1.msra.mxu0 0.0
        %3940 = vmatprep.subr.mxu0 0.0
        %3941 = vmatpush1.msra.mxu0 0.0
        %3942 = vmatprep.subr.mxu0 0.0
        %3943 = vmatpush1.msra.mxu0 0.0
        %3944 = vmatprep.subr.mxu0 0.0
        %3945 = vmatpush1.msra.mxu0 0.0
        %3946 = vmatprep.subr.mxu0 0.0
        %3947 = vmatpush1.msra.mxu0 0.0
        %3948 = vmatprep.subr.mxu0 0.0
        %3949 = vmatpush1.msra.mxu0 0.0
        %3950 = vmatprep.subr.mxu0 0.0
        %3951 = vmatpush1.msra.mxu0 0.0
        %3952 = vmatprep.subr.mxu0 0.0
        %3953 = vmatpush1.msra.mxu0 0.0
        %3954 = vmatprep.subr.mxu0 0.0
        %3955 = vmatpush1.msra.mxu0 0.0
        %3956 = vmatprep.subr.mxu0 0.0
        %3957 = vmatpush1.msra.mxu0 0.0
        %3958 = vmatprep.subr.mxu0 0.0
        %3959 = vmatpush1.msra.mxu0 0.0
        %3960 = vmatprep.subr.mxu0 0.0
        %3961 = vmatpush1.msra.mxu0 0.0
        %3962 = vmatprep.subr.mxu0 0.0
        %3963 = vmatpush1.msra.mxu0 0.0
        %3964 = vmatprep.subr.mxu0 0.0
        %3965 = vmatpush1.msra.mxu0 0.0
        %3966 = vmatprep.subr.mxu0 0.0
        %3967 = vmatpush1.msra.mxu0 0.0
        %3968 = vmatprep.subr.mxu0 0.0
        %3969 = vmatpush1.msra.mxu0 0.0
        %3970 = vmatprep.subr.mxu0 0.0
        %3971 = vmatpush1.msra.mxu0 0.0
        %3972 = vmatprep.subr.mxu0 0.0
        %3973 = vmatpush1.msra.mxu0 0.0
        %3974 = vmatprep.subr.mxu0 0.0
        %3975 = vmatpush1.msra.mxu0 0.0
        %3976 = vmatprep.subr.mxu0 0.0
        %3977 = vmatpush1.msra.mxu0 0.0
        %3978 = vmatprep.subr.mxu0 0.0
        %3979 = vmatpush1.msra.mxu0 0.0
        %3980 = vmatprep.subr.mxu0 0.0
        %3981 = vmatpush1.msra.mxu0 0.0
        %3982 = vmatprep.subr.mxu0 0.0
        %3983 = vmatpush1.msra.mxu0 0.0
        %3984 = vmatprep.subr.mxu0 0.0
        %3985 = vmatpush1.msra.mxu0 0.0
        %3986 = vmatprep.subr.mxu0 0.0
        %3987 = vmatpush1.msra.mxu0 0.0
        %3988 = vmatprep.mubr.f32.mxu0 0.0
        %v3989 = vand.u32 %v3508, 4294901760
        %3990 = vmatmul.mubr.f32.gmra.mrb[0].mxu0 %v3989
        %v3991 = vpop.f32.mrb[0].mxu0
        %v3992 = vadd.f32 %v3917, %v3991
        %v3993 = vpop.f32.mrb[0].mxu0
        %3994 = vdwg.mxu0
        %v3995 = vadd.f32 %v463, %v3992
        %v3996 = vsel %vm465, %v3995, 0.0
        %3997 = vadd.xlane.f32.xlu0 %v3996
        %v3998 = vpop.xlane.xlu0 %3997
        %v3999 = vrcp.pop 32.0
        %v4000 = vmul.f32 %v3998, %v3999
        %v4001 = vmul.f32 %v3995, %v3995
        %v4002 = vsel %vm465, %v4001, 0.0
        %4003 = vadd.xlane.f32.xlu0 %v4002
        %v4004 = vpop.xlane.xlu0 %4003
        %v4005 = vmul.f32 %v4004, %v3999
        %v4006 = vmul.f32 %v4000, %v4000
        %v4007 = vsub.f32 %v4005, %v4006
        %v4008 = vmax.f32 %v4007, 0.0
        %v4009 = vsub.f32 %v3995, %v4000
        %v4010 = vadd.f32 %v4008, 1e-05
        %v4011 = vrsqrt.pop %v4010
        %v4012 = vmul.f32 %v4009, %v4011
        %v4013 = vld [vmem:[%s6] sm:$0x1]
        %v4015 = vlaneseq
        %v4016 = vshrl.u32 %v4015, 7
        %v4017 = vsub.s32 0, %v4016
        %v4018 = vrot.slane %v4013, %v4017
        %v4020 = vmul.f32 %v4012, %v4018
        %v4021 = vld [vmem:[%s7] sm:$0x1]
        %v4023 = vlaneseq
        %v4024 = vshrl.u32 %v4023, 7
        %v4025 = vsub.s32 0, %v4024
        %v4026 = vrot.slane %v4021, %v4025
        %v4028 = vadd.f32 %v4020, %v4026
        %v4029 = vld [vmem:[%s8] sm:$0xff]
        %v4030 = vld [vmem:[%s8 + $0x8] sm:$0xff]
        %v4031 = vld [vmem:[%s8 + $0x10] sm:$0xff]
        %v4032 = vld [vmem:[%s8 + $0x18] sm:$0xff]
        %v4033 = vld [vmem:[%s9] sm:$0x1]
        %v4035 = vlaneseq
        %v4036 = vshrl.u32 %v4035, 7
        %v4037 = vsub.s32 0, %v4036
        %v4038 = vrot.slane %v4033, %v4037
        %v4041 = vsel %vm465, %v4028, 0
        %4043 = vmatprep.subr.mxu0 0.0
        %v4044 = vand.u32 %v4029, 4294901760
        %4045 = vmatpush1.msra.mxu0 %v4044
        %4046 = vmatprep.subr.mxu0 0.0
        %v4047 = vand.u32 %v4030, 4294901760
        %4048 = vmatpush1.msra.mxu0 %v4047
        %4049 = vmatprep.subr.mxu0 0.0
        %v4050 = vand.u32 %v4031, 4294901760
        %4051 = vmatpush1.msra.mxu0 %v4050
        %4052 = vmatprep.subr.mxu0 0.0
        %v4053 = vand.u32 %v4032, 4294901760
        %4054 = vmatpush1.msra.mxu0 %v4053
        %4055 = vmatprep.subr.mxu0 0.0
        %4056 = vmatpush1.msra.mxu0 0.0
        %4057 = vmatprep.subr.mxu0 0.0
        %4058 = vmatpush1.msra.mxu0 0.0
        %4059 = vmatprep.subr.mxu0 0.0
        %4060 = vmatpush1.msra.mxu0 0.0
        %4061 = vmatprep.subr.mxu0 0.0
        %4062 = vmatpush1.msra.mxu0 0.0
        %4063 = vmatprep.subr.mxu0 0.0
        %4064 = vmatpush1.msra.mxu0 0.0
        %4065 = vmatprep.subr.mxu0 0.0
        %4066 = vmatpush1.msra.mxu0 0.0
        %4067 = vmatprep.subr.mxu0 0.0
        %4068 = vmatpush1.msra.mxu0 0.0
        %4069 = vmatprep.subr.mxu0 0.0
        %4070 = vmatpush1.msra.mxu0 0.0
        %4071 = vmatprep.subr.mxu0 0.0
        %4072 = vmatpush1.msra.mxu0 0.0
        %4073 = vmatprep.subr.mxu0 0.0
        %4074 = vmatpush1.msra.mxu0 0.0
        %4075 = vmatprep.subr.mxu0 0.0
        %4076 = vmatpush1.msra.mxu0 0.0
        %4077 = vmatprep.subr.mxu0 0.0
        %4078 = vmatpush1.msra.mxu0 0.0
        %4079 = vmatprep.subr.mxu0 0.0
        %4080 = vmatpush1.msra.mxu0 0.0
        %4081 = vmatprep.subr.mxu0 0.0
        %4082 = vmatpush1.msra.mxu0 0.0
        %4083 = vmatprep.subr.mxu0 0.0
        %4084 = vmatpush1.msra.mxu0 0.0
        %4085 = vmatprep.subr.mxu0 0.0
        %4086 = vmatpush1.msra.mxu0 0.0
        %4087 = vmatprep.subr.mxu0 0.0
        %4088 = vmatpush1.msra.mxu0 0.0
        %4089 = vmatprep.subr.mxu0 0.0
        %4090 = vmatpush1.msra.mxu0 0.0
        %4091 = vmatprep.subr.mxu0 0.0
        %4092 = vmatpush1.msra.mxu0 0.0
        %4093 = vmatprep.subr.mxu0 0.0
        %4094 = vmatpush1.msra.mxu0 0.0
        %4095 = vmatprep.subr.mxu0 0.0
        %4096 = vmatpush1.msra.mxu0 0.0
        %4097 = vmatprep.subr.mxu0 0.0
        %4098 = vmatpush1.msra.mxu0 0.0
        %4099 = vmatprep.subr.mxu0 0.0
        %4100 = vmatpush1.msra.mxu0 0.0
        %4101 = vmatprep.subr.mxu0 0.0
        %4102 = vmatpush1.msra.mxu0 0.0
        %4103 = vmatprep.subr.mxu0 0.0
        %4104 = vmatpush1.msra.mxu0 0.0
        %4105 = vmatprep.subr.mxu0 0.0
        %4106 = vmatpush1.msra.mxu0 0.0
        %4107 = vmatprep.subr.mxu0 0.0
        %4108 = vmatpush1.msra.mxu0 0.0
        %4109 = vmatprep.subr.mxu0 0.0
        %4110 = vmatpush1.msra.mxu0 0.0
        %4111 = vmatprep.mubr.f32.mxu0 0.0
        %v4112 = vand.u32 %v4041, 4294901760
        %v4113 = vsub.f32 %v4041, %v4112
        %v4114 = vand.u32 %v4113, 4294901760
        %v4115 = vsub.f32 %v4113, %v4114
        %v4116 = vand.u32 %v4115, 4294901760
        %4117 = vmatmul.mubr.f32.gmra.mrb[0].mxu0 %v4116
        %v4118 = vpop.f32.mrb[0].mxu0
        %v4119 = vadd.f32 %v4038, %v4118
        %v4120 = vpop.f32.mrb[0].mxu0
        %4121 = vdwg.mxu0
        %4122 = vmatprep.subr.mxu0 0.0
        %v4123 = vand.u32 %v4029, 4294901760
        %v4124 = vsub.f32 %v4029, %v4123
        %v4125 = vand.u32 %v4124, 4294901760
        %v4126 = vsub.f32 %v4124, %v4125
        %v4127 = vand.u32 %v4126, 4294901760
        %4128 = vmatpush1.msra.mxu0 %v4127
        %4129 = vmatprep.subr.mxu0 0.0
        %v4130 = vand.u32 %v4030, 4294901760
        %v4131 = vsub.f32 %v4030, %v4130
        %v4132 = vand.u32 %v4131, 4294901760
        %v4133 = vsub.f32 %v4131, %v4132
        %v4134 = vand.u32 %v4133, 4294901760
        %4135 = vmatpush1.msra.mxu0 %v4134
        %4136 = vmatprep.subr.mxu0 0.0
        %v4137 = vand.u32 %v4031, 4294901760
        %v4138 = vsub.f32 %v4031, %v4137
        %v4139 = vand.u32 %v4138, 4294901760
        %v4140 = vsub.f32 %v4138, %v4139
        %v4141 = vand.u32 %v4140, 4294901760
        %4142 = vmatpush1.msra.mxu0 %v4141
        %4143 = vmatprep.subr.mxu0 0.0
        %v4144 = vand.u32 %v4032, 4294901760
        %v4145 = vsub.f32 %v4032, %v4144
        %v4146 = vand.u32 %v4145, 4294901760
        %v4147 = vsub.f32 %v4145, %v4146
        %v4148 = vand.u32 %v4147, 4294901760
        %4149 = vmatpush1.msra.mxu0 %v4148
        %4150 = vmatprep.subr.mxu0 0.0
        %4151 = vmatpush1.msra.mxu0 0.0
        %4152 = vmatprep.subr.mxu0 0.0
        %4153 = vmatpush1.msra.mxu0 0.0
        %4154 = vmatprep.subr.mxu0 0.0
        %4155 = vmatpush1.msra.mxu0 0.0
        %4156 = vmatprep.subr.mxu0 0.0
        %4157 = vmatpush1.msra.mxu0 0.0
        %4158 = vmatprep.subr.mxu0 0.0
        %4159 = vmatpush1.msra.mxu0 0.0
        %4160 = vmatprep.subr.mxu0 0.0
        %4161 = vmatpush1.msra.mxu0 0.0
        %4162 = vmatprep.subr.mxu0 0.0
        %4163 = vmatpush1.msra.mxu0 0.0
        %4164 = vmatprep.subr.mxu0 0.0
        %4165 = vmatpush1.msra.mxu0 0.0
        %4166 = vmatprep.subr.mxu0 0.0
        %4167 = vmatpush1.msra.mxu0 0.0
        %4168 = vmatprep.subr.mxu0 0.0
        %4169 = vmatpush1.msra.mxu0 0.0
        %4170 = vmatprep.subr.mxu0 0.0
        %4171 = vmatpush1.msra.mxu0 0.0
        %4172 = vmatprep.subr.mxu0 0.0
        %4173 = vmatpush1.msra.mxu0 0.0
        %4174 = vmatprep.subr.mxu0 0.0
        %4175 = vmatpush1.msra.mxu0 0.0
        %4176 = vmatprep.subr.mxu0 0.0
        %4177 = vmatpush1.msra.mxu0 0.0
        %4178 = vmatprep.subr.mxu0 0.0
        %4179 = vmatpush1.msra.mxu0 0.0
        %4180 = vmatprep.subr.mxu0 0.0
        %4181 = vmatpush1.msra.mxu0 0.0
        %4182 = vmatprep.subr.mxu0 0.0
        %4183 = vmatpush1.msra.mxu0 0.0
        %4184 = vmatprep.subr.mxu0 0.0
        %4185 = vmatpush1.msra.mxu0 0.0
        %4186 = vmatprep.subr.mxu0 0.0
        %4187 = vmatpush1.msra.mxu0 0.0
        %4188 = vmatprep.subr.mxu0 0.0
        %4189 = vmatpush1.msra.mxu0 0.0
        %4190 = vmatprep.subr.mxu0 0.0
        %4191 = vmatpush1.msra.mxu0 0.0
        %4192 = vmatprep.subr.mxu0 0.0
        %4193 = vmatpush1.msra.mxu0 0.0
        %4194 = vmatprep.subr.mxu0 0.0
        %4195 = vmatpush1.msra.mxu0 0.0
        %4196 = vmatprep.subr.mxu0 0.0
        %4197 = vmatpush1.msra.mxu0 0.0
        %4198 = vmatprep.subr.mxu0 0.0
        %4199 = vmatpush1.msra.mxu0 0.0
        %4200 = vmatprep.subr.mxu0 0.0
        %4201 = vmatpush1.msra.mxu0 0.0
        %4202 = vmatprep.subr.mxu0 0.0
        %4203 = vmatpush1.msra.mxu0 0.0
        %4204 = vmatprep.subr.mxu0 0.0
        %4205 = vmatpush1.msra.mxu0 0.0
        %4206 = vmatprep.mubr.f32.mxu0 0.0
        %v4207 = vand.u32 %v4041, 4294901760
        %4208 = vmatmul.mubr.f32.gmra.mrb[0].mxu0 %v4207
        %v4209 = vpop.f32.mrb[0].mxu0
        %v4210 = vadd.f32 %v4119, %v4209
        %v4211 = vpop.f32.mrb[0].mxu0
        %4212 = vdwg.mxu0
        %4213 = vmatprep.subr.mxu0 0.0
        %v4214 = vand.u32 %v4029, 4294901760
        %v4215 = vsub.f32 %v4029, %v4214
        %4216 = vmatpush1.msra.mxu0 %v4215
        %4217 = vmatprep.subr.mxu0 0.0
        %v4218 = vand.u32 %v4030, 4294901760
        %v4219 = vsub.f32 %v4030, %v4218
        %4220 = vmatpush1.msra.mxu0 %v4219
        %4221 = vmatprep.subr.mxu0 0.0
        %v4222 = vand.u32 %v4031, 4294901760
        %v4223 = vsub.f32 %v4031, %v4222
        %4224 = vmatpush1.msra.mxu0 %v4223
        %4225 = vmatprep.subr.mxu0 0.0
        %v4226 = vand.u32 %v4032, 4294901760
        %v4227 = vsub.f32 %v4032, %v4226
        %4228 = vmatpush1.msra.mxu0 %v4227
        %4229 = vmatprep.subr.mxu0 0.0
        %4230 = vmatpush1.msra.mxu0 0.0
        %4231 = vmatprep.subr.mxu0 0.0
        %4232 = vmatpush1.msra.mxu0 0.0
        %4233 = vmatprep.subr.mxu0 0.0
        %4234 = vmatpush1.msra.mxu0 0.0
        %4235 = vmatprep.subr.mxu0 0.0
        %4236 = vmatpush1.msra.mxu0 0.0
        %4237 = vmatprep.subr.mxu0 0.0
        %4238 = vmatpush1.msra.mxu0 0.0
        %4239 = vmatprep.subr.mxu0 0.0
        %4240 = vmatpush1.msra.mxu0 0.0
        %4241 = vmatprep.subr.mxu0 0.0
        %4242 = vmatpush1.msra.mxu0 0.0
        %4243 = vmatprep.subr.mxu0 0.0
        %4244 = vmatpush1.msra.mxu0 0.0
        %4245 = vmatprep.subr.mxu0 0.0
        %4246 = vmatpush1.msra.mxu0 0.0
        %4247 = vmatprep.subr.mxu0 0.0
        %4248 = vmatpush1.msra.mxu0 0.0
        %4249 = vmatprep.subr.mxu0 0.0
        %4250 = vmatpush1.msra.mxu0 0.0
        %4251 = vmatprep.subr.mxu0 0.0
        %4252 = vmatpush1.msra.mxu0 0.0
        %4253 = vmatprep.subr.mxu0 0.0
        %4254 = vmatpush1.msra.mxu0 0.0
        %4255 = vmatprep.subr.mxu0 0.0
        %4256 = vmatpush1.msra.mxu0 0.0
        %4257 = vmatprep.subr.mxu0 0.0
        %4258 = vmatpush1.msra.mxu0 0.0
        %4259 = vmatprep.subr.mxu0 0.0
        %4260 = vmatpush1.msra.mxu0 0.0
        %4261 = vmatprep.subr.mxu0 0.0
        %4262 = vmatpush1.msra.mxu0 0.0
        %4263 = vmatprep.subr.mxu0 0.0
        %4264 = vmatpush1.msra.mxu0 0.0
        %4265 = vmatprep.subr.mxu0 0.0
        %4266 = vmatpush1.msra.mxu0 0.0
        %4267 = vmatprep.subr.mxu0 0.0
        %4268 = vmatpush1.msra.mxu0 0.0
        %4269 = vmatprep.subr.mxu0 0.0
        %4270 = vmatpush1.msra.mxu0 0.0
        %4271 = vmatprep.subr.mxu0 0.0
        %4272 = vmatpush1.msra.mxu0 0.0
        %4273 = vmatprep.subr.mxu0 0.0
        %4274 = vmatpush1.msra.mxu0 0.0
        %4275 = vmatprep.subr.mxu0 0.0
        %4276 = vmatpush1.msra.mxu0 0.0
        %4277 = vmatprep.subr.mxu0 0.0
        %4278 = vmatpush1.msra.mxu0 0.0
        %4279 = vmatprep.subr.mxu0 0.0
        %4280 = vmatpush1.msra.mxu0 0.0
        %4281 = vmatprep.subr.mxu0 0.0
        %4282 = vmatpush1.msra.mxu0 0.0
        %4283 = vmatprep.subr.mxu0 0.0
        %4284 = vmatpush1.msra.mxu0 0.0
        %4285 = vmatprep.mubr.f32.mxu0 0.0
        %v4286 = vand.u32 %v4041, 4294901760
        %v4287 = vsub.f32 %v4041, %v4286
        %4288 = vmatmul.mubr.f32.gmra.mrb[0].mxu0 %v4287
        %v4289 = vpop.f32.mrb[0].mxu0
        %v4290 = vadd.f32 %v4210, %v4289
        %v4291 = vpop.f32.mrb[0].mxu0
        %4292 = vdwg.mxu0
        %4293 = vmatprep.subr.mxu0 0.0
        %v4294 = vand.u32 %v4029, 4294901760
        %4295 = vmatpush1.msra.mxu0 %v4294
        %4296 = vmatprep.subr.mxu0 0.0
        %v4297 = vand.u32 %v4030, 4294901760
        %4298 = vmatpush1.msra.mxu0 %v4297
        %4299 = vmatprep.subr.mxu0 0.0
        %v4300 = vand.u32 %v4031, 4294901760
        %4301 = vmatpush1.msra.mxu0 %v4300
        %4302 = vmatprep.subr.mxu0 0.0
        %v4303 = vand.u32 %v4032, 4294901760
        %4304 = vmatpush1.msra.mxu0 %v4303
        %4305 = vmatprep.subr.mxu0 0.0
        %4306 = vmatpush1.msra.mxu0 0.0
        %4307 = vmatprep.subr.mxu0 0.0
        %4308 = vmatpush1.msra.mxu0 0.0
        %4309 = vmatprep.subr.mxu0 0.0
        %4310 = vmatpush1.msra.mxu0 0.0
        %4311 = vmatprep.subr.mxu0 0.0
        %4312 = vmatpush1.msra.mxu0 0.0
        %4313 = vmatprep.subr.mxu0 0.0
        %4314 = vmatpush1.msra.mxu0 0.0
        %4315 = vmatprep.subr.mxu0 0.0
        %4316 = vmatpush1.msra.mxu0 0.0
        %4317 = vmatprep.subr.mxu0 0.0
        %4318 = vmatpush1.msra.mxu0 0.0
        %4319 = vmatprep.subr.mxu0 0.0
        %4320 = vmatpush1.msra.mxu0 0.0
        %4321 = vmatprep.subr.mxu0 0.0
        %4322 = vmatpush1.msra.mxu0 0.0
        %4323 = vmatprep.subr.mxu0 0.0
        %4324 = vmatpush1.msra.mxu0 0.0
        %4325 = vmatprep.subr.mxu0 0.0
        %4326 = vmatpush1.msra.mxu0 0.0
        %4327 = vmatprep.subr.mxu0 0.0
        %4328 = vmatpush1.msra.mxu0 0.0
        %4329 = vmatprep.subr.mxu0 0.0
        %4330 = vmatpush1.msra.mxu0 0.0
        %4331 = vmatprep.subr.mxu0 0.0
        %4332 = vmatpush1.msra.mxu0 0.0
        %4333 = vmatprep.subr.mxu0 0.0
        %4334 = vmatpush1.msra.mxu0 0.0
        %4335 = vmatprep.subr.mxu0 0.0
        %4336 = vmatpush1.msra.mxu0 0.0
        %4337 = vmatprep.subr.mxu0 0.0
        %4338 = vmatpush1.msra.mxu0 0.0
        %4339 = vmatprep.subr.mxu0 0.0
        %4340 = vmatpush1.msra.mxu0 0.0
        %4341 = vmatprep.subr.mxu0 0.0
        %4342 = vmatpush1.msra.mxu0 0.0
        %4343 = vmatprep.subr.mxu0 0.0
        %4344 = vmatpush1.msra.mxu0 0.0
        %4345 = vmatprep.subr.mxu0 0.0
        %4346 = vmatpush1.msra.mxu0 0.0
        %4347 = vmatprep.subr.mxu0 0.0
        %4348 = vmatpush1.msra.mxu0 0.0
        %4349 = vmatprep.subr.mxu0 0.0
        %4350 = vmatpush1.msra.mxu0 0.0
        %4351 = vmatprep.subr.mxu0 0.0
        %4352 = vmatpush1.msra.mxu0 0.0
        %4353 = vmatprep.subr.mxu0 0.0
        %4354 = vmatpush1.msra.mxu0 0.0
        %4355 = vmatprep.subr.mxu0 0.0
        %4356 = vmatpush1.msra.mxu0 0.0
        %4357 = vmatprep.subr.mxu0 0.0
        %4358 = vmatpush1.msra.mxu0 0.0
        %4359 = vmatprep.subr.mxu0 0.0
        %4360 = vmatpush1.msra.mxu0 0.0
        %4361 = vmatprep.mubr.f32.mxu0 0.0
        %v4362 = vand.u32 %v4041, 4294901760
        %v4363 = vsub.f32 %v4041, %v4362
        %v4364 = vand.u32 %v4363, 4294901760
        %4365 = vmatmul.mubr.f32.gmra.mrb[0].mxu0 %v4364
        %v4366 = vpop.f32.mrb[0].mxu0
        %v4367 = vadd.f32 %v4290, %v4366
        %v4368 = vpop.f32.mrb[0].mxu0
        %4369 = vdwg.mxu0
        %4370 = vmatprep.subr.mxu0 0.0
        %v4371 = vand.u32 %v4029, 4294901760
        %v4372 = vsub.f32 %v4029, %v4371
        %v4373 = vand.u32 %v4372, 4294901760
        %4374 = vmatpush1.msra.mxu0 %v4373
        %4375 = vmatprep.subr.mxu0 0.0
        %v4376 = vand.u32 %v4030, 4294901760
        %v4377 = vsub.f32 %v4030, %v4376
        %v4378 = vand.u32 %v4377, 4294901760
        %4379 = vmatpush1.msra.mxu0 %v4378
        %4380 = vmatprep.subr.mxu0 0.0
        %v4381 = vand.u32 %v4031, 4294901760
        %v4382 = vsub.f32 %v4031, %v4381
        %v4383 = vand.u32 %v4382, 4294901760
        %4384 = vmatpush1.msra.mxu0 %v4383
        %4385 = vmatprep.subr.mxu0 0.0
        %v4386 = vand.u32 %v4032, 4294901760
        %v4387 = vsub.f32 %v4032, %v4386
        %v4388 = vand.u32 %v4387, 4294901760
        %4389 = vmatpush1.msra.mxu0 %v4388
        %4390 = vmatprep.subr.mxu0 0.0
        %4391 = vmatpush1.msra.mxu0 0.0
        %4392 = vmatprep.subr.mxu0 0.0
        %4393 = vmatpush1.msra.mxu0 0.0
        %4394 = vmatprep.subr.mxu0 0.0
        %4395 = vmatpush1.msra.mxu0 0.0
        %4396 = vmatprep.subr.mxu0 0.0
        %4397 = vmatpush1.msra.mxu0 0.0
        %4398 = vmatprep.subr.mxu0 0.0
        %4399 = vmatpush1.msra.mxu0 0.0
        %4400 = vmatprep.subr.mxu0 0.0
        %4401 = vmatpush1.msra.mxu0 0.0
        %4402 = vmatprep.subr.mxu0 0.0
        %4403 = vmatpush1.msra.mxu0 0.0
        %4404 = vmatprep.subr.mxu0 0.0
        %4405 = vmatpush1.msra.mxu0 0.0
        %4406 = vmatprep.subr.mxu0 0.0
        %4407 = vmatpush1.msra.mxu0 0.0
        %4408 = vmatprep.subr.mxu0 0.0
        %4409 = vmatpush1.msra.mxu0 0.0
        %4410 = vmatprep.subr.mxu0 0.0
        %4411 = vmatpush1.msra.mxu0 0.0
        %4412 = vmatprep.subr.mxu0 0.0
        %4413 = vmatpush1.msra.mxu0 0.0
        %4414 = vmatprep.subr.mxu0 0.0
        %4415 = vmatpush1.msra.mxu0 0.0
        %4416 = vmatprep.subr.mxu0 0.0
        %4417 = vmatpush1.msra.mxu0 0.0
        %4418 = vmatprep.subr.mxu0 0.0
        %4419 = vmatpush1.msra.mxu0 0.0
        %4420 = vmatprep.subr.mxu0 0.0
        %4421 = vmatpush1.msra.mxu0 0.0
        %4422 = vmatprep.subr.mxu0 0.0
        %4423 = vmatpush1.msra.mxu0 0.0
        %4424 = vmatprep.subr.mxu0 0.0
        %4425 = vmatpush1.msra.mxu0 0.0
        %4426 = vmatprep.subr.mxu0 0.0
        %4427 = vmatpush1.msra.mxu0 0.0
        %4428 = vmatprep.subr.mxu0 0.0
        %4429 = vmatpush1.msra.mxu0 0.0
        %4430 = vmatprep.subr.mxu0 0.0
        %4431 = vmatpush1.msra.mxu0 0.0
        %4432 = vmatprep.subr.mxu0 0.0
        %4433 = vmatpush1.msra.mxu0 0.0
        %4434 = vmatprep.subr.mxu0 0.0
        %4435 = vmatpush1.msra.mxu0 0.0
        %4436 = vmatprep.subr.mxu0 0.0
        %4437 = vmatpush1.msra.mxu0 0.0
        %4438 = vmatprep.subr.mxu0 0.0
        %4439 = vmatpush1.msra.mxu0 0.0
        %4440 = vmatprep.subr.mxu0 0.0
        %4441 = vmatpush1.msra.mxu0 0.0
        %4442 = vmatprep.subr.mxu0 0.0
        %4443 = vmatpush1.msra.mxu0 0.0
        %4444 = vmatprep.subr.mxu0 0.0
        %4445 = vmatpush1.msra.mxu0 0.0
        %4446 = vmatprep.mubr.f32.mxu0 0.0
        %v4447 = vand.u32 %v4041, 4294901760
        %4448 = vmatmul.mubr.f32.gmra.mrb[0].mxu0 %v4447
        %v4449 = vpop.f32.mrb[0].mxu0
        %v4450 = vadd.f32 %v4367, %v4449
        %v4451 = vpop.f32.mrb[0].mxu0
        %4452 = vdwg.mxu0
        %4453 = vmatprep.subr.mxu0 0.0
        %v4454 = vand.u32 %v4029, 4294901760
        %4455 = vmatpush1.msra.mxu0 %v4454
        %4456 = vmatprep.subr.mxu0 0.0
        %v4457 = vand.u32 %v4030, 4294901760
        %4458 = vmatpush1.msra.mxu0 %v4457
        %4459 = vmatprep.subr.mxu0 0.0
        %v4460 = vand.u32 %v4031, 4294901760
        %4461 = vmatpush1.msra.mxu0 %v4460
        %4462 = vmatprep.subr.mxu0 0.0
        %v4463 = vand.u32 %v4032, 4294901760
        %4464 = vmatpush1.msra.mxu0 %v4463
        %4465 = vmatprep.subr.mxu0 0.0
        %4466 = vmatpush1.msra.mxu0 0.0
        %4467 = vmatprep.subr.mxu0 0.0
        %4468 = vmatpush1.msra.mxu0 0.0
        %4469 = vmatprep.subr.mxu0 0.0
        %4470 = vmatpush1.msra.mxu0 0.0
        %4471 = vmatprep.subr.mxu0 0.0
        %4472 = vmatpush1.msra.mxu0 0.0
        %4473 = vmatprep.subr.mxu0 0.0
        %4474 = vmatpush1.msra.mxu0 0.0
        %4475 = vmatprep.subr.mxu0 0.0
        %4476 = vmatpush1.msra.mxu0 0.0
        %4477 = vmatprep.subr.mxu0 0.0
        %4478 = vmatpush1.msra.mxu0 0.0
        %4479 = vmatprep.subr.mxu0 0.0
        %4480 = vmatpush1.msra.mxu0 0.0
        %4481 = vmatprep.subr.mxu0 0.0
        %4482 = vmatpush1.msra.mxu0 0.0
        %4483 = vmatprep.subr.mxu0 0.0
        %4484 = vmatpush1.msra.mxu0 0.0
        %4485 = vmatprep.subr.mxu0 0.0
        %4486 = vmatpush1.msra.mxu0 0.0
        %4487 = vmatprep.subr.mxu0 0.0
        %4488 = vmatpush1.msra.mxu0 0.0
        %4489 = vmatprep.subr.mxu0 0.0
        %4490 = vmatpush1.msra.mxu0 0.0
        %4491 = vmatprep.subr.mxu0 0.0
        %4492 = vmatpush1.msra.mxu0 0.0
        %4493 = vmatprep.subr.mxu0 0.0
        %4494 = vmatpush1.msra.mxu0 0.0
        %4495 = vmatprep.subr.mxu0 0.0
        %4496 = vmatpush1.msra.mxu0 0.0
        %4497 = vmatprep.subr.mxu0 0.0
        %4498 = vmatpush1.msra.mxu0 0.0
        %4499 = vmatprep.subr.mxu0 0.0
        %4500 = vmatpush1.msra.mxu0 0.0
        %4501 = vmatprep.subr.mxu0 0.0
        %4502 = vmatpush1.msra.mxu0 0.0
        %4503 = vmatprep.subr.mxu0 0.0
        %4504 = vmatpush1.msra.mxu0 0.0
        %4505 = vmatprep.subr.mxu0 0.0
        %4506 = vmatpush1.msra.mxu0 0.0
        %4507 = vmatprep.subr.mxu0 0.0
        %4508 = vmatpush1.msra.mxu0 0.0
        %4509 = vmatprep.subr.mxu0 0.0
        %4510 = vmatpush1.msra.mxu0 0.0
        %4511 = vmatprep.subr.mxu0 0.0
        %4512 = vmatpush1.msra.mxu0 0.0
        %4513 = vmatprep.subr.mxu0 0.0
        %4514 = vmatpush1.msra.mxu0 0.0
        %4515 = vmatprep.subr.mxu0 0.0
        %4516 = vmatpush1.msra.mxu0 0.0
        %4517 = vmatprep.subr.mxu0 0.0
        %4518 = vmatpush1.msra.mxu0 0.0
        %4519 = vmatprep.subr.mxu0 0.0
        %4520 = vmatpush1.msra.mxu0 0.0
        %4521 = vmatprep.mubr.f32.mxu0 0.0
        %v4522 = vand.u32 %v4041, 4294901760
        %4523 = vmatmul.mubr.f32.gmra.mrb[0].mxu0 %v4522
        %v4524 = vpop.f32.mrb[0].mxu0
        %v4525 = vadd.f32 %v4450, %v4524
        %v4526 = vpop.f32.mrb[0].mxu0
        %4527 = vdwg.mxu0
        %v4528 = vmul.f32 %v4525, 0.5
        %v4529 = vmul.f32 %v4525, 0.70710677
        %v4530 = verf.f32.pop %v4529
        %v4531 = vadd.f32 %v4530, 1.0
        %v4532 = vmul.f32 %v4528, %v4531
        %v4533 = vld [vmem:[%s10] sm:$0xff]
        %v4534 = vld [vmem:[%s10 + $0x8] sm:$0xff]
        %v4535 = vld [vmem:[%s10 + $0x10] sm:$0xff]
        %v4536 = vld [vmem:[%s10 + $0x18] sm:$0xff]
        %v4537 = vld [vmem:[%s10 + $0x20] sm:$0xff]
        %v4538 = vld [vmem:[%s10 + $0x28] sm:$0xff]
        %v4539 = vld [vmem:[%s10 + $0x30] sm:$0xff]
        %v4540 = vld [vmem:[%s10 + $0x38] sm:$0xff]
        %v4541 = vld [vmem:[%s10 + $0x40] sm:$0xff]
        %v4542 = vld [vmem:[%s10 + $0x48] sm:$0xff]
        %v4543 = vld [vmem:[%s10 + $0x50] sm:$0xff]
        %v4544 = vld [vmem:[%s10 + $0x58] sm:$0xff]
        %v4545 = vld [vmem:[%s10 + $0x60] sm:$0xff]
        %v4546 = vld [vmem:[%s10 + $0x68] sm:$0xff]
        %v4547 = vld [vmem:[%s10 + $0x70] sm:$0xff]
        %v4548 = vld [vmem:[%s10 + $0x78] sm:$0xff]
        %v4549 = vld [vmem:[%s11] sm:$0x1]
        %v4551 = vlaneseq
        %v4552 = vshrl.u32 %v4551, 7
        %v4553 = vsub.s32 0, %v4552
        %v4554 = vrot.slane %v4549, %v4553
        %4556 = vmatprep.subr.mxu0 0.0
        %v4557 = vand.u32 %v4533, 4294901760
        %4558 = vmatpush1.msra.mxu0 %v4557
        %4559 = vmatprep.subr.mxu0 0.0
        %v4560 = vand.u32 %v4534, 4294901760
        %4561 = vmatpush1.msra.mxu0 %v4560
        %4562 = vmatprep.subr.mxu0 0.0
        %v4563 = vand.u32 %v4535, 4294901760
        %4564 = vmatpush1.msra.mxu0 %v4563
        %4565 = vmatprep.subr.mxu0 0.0
        %v4566 = vand.u32 %v4536, 4294901760
        %4567 = vmatpush1.msra.mxu0 %v4566
        %4568 = vmatprep.subr.mxu0 0.0
        %v4569 = vand.u32 %v4537, 4294901760
        %4570 = vmatpush1.msra.mxu0 %v4569
        %4571 = vmatprep.subr.mxu0 0.0
        %v4572 = vand.u32 %v4538, 4294901760
        %4573 = vmatpush1.msra.mxu0 %v4572
        %4574 = vmatprep.subr.mxu0 0.0
        %v4575 = vand.u32 %v4539, 4294901760
        %4576 = vmatpush1.msra.mxu0 %v4575
        %4577 = vmatprep.subr.mxu0 0.0
        %v4578 = vand.u32 %v4540, 4294901760
        %4579 = vmatpush1.msra.mxu0 %v4578
        %4580 = vmatprep.subr.mxu0 0.0
        %v4581 = vand.u32 %v4541, 4294901760
        %4582 = vmatpush1.msra.mxu0 %v4581
        %4583 = vmatprep.subr.mxu0 0.0
        %v4584 = vand.u32 %v4542, 4294901760
        %4585 = vmatpush1.msra.mxu0 %v4584
        %4586 = vmatprep.subr.mxu0 0.0
        %v4587 = vand.u32 %v4543, 4294901760
        %4588 = vmatpush1.msra.mxu0 %v4587
        %4589 = vmatprep.subr.mxu0 0.0
        %v4590 = vand.u32 %v4544, 4294901760
        %4591 = vmatpush1.msra.mxu0 %v4590
        %4592 = vmatprep.subr.mxu0 0.0
        %v4593 = vand.u32 %v4545, 4294901760
        %4594 = vmatpush1.msra.mxu0 %v4593
        %4595 = vmatprep.subr.mxu0 0.0
        %v4596 = vand.u32 %v4546, 4294901760
        %4597 = vmatpush1.msra.mxu0 %v4596
        %4598 = vmatprep.subr.mxu0 0.0
        %v4599 = vand.u32 %v4547, 4294901760
        %4600 = vmatpush1.msra.mxu0 %v4599
        %4601 = vmatprep.subr.mxu0 0.0
        %v4602 = vand.u32 %v4548, 4294901760
        %4603 = vmatpush1.msra.mxu0 %v4602
        %4604 = vmatprep.subr.mxu0 0.0
        %4605 = vmatpush1.msra.mxu0 0.0
        %4606 = vmatprep.subr.mxu0 0.0
        %4607 = vmatpush1.msra.mxu0 0.0
        %4608 = vmatprep.subr.mxu0 0.0
        %4609 = vmatpush1.msra.mxu0 0.0
        %4610 = vmatprep.subr.mxu0 0.0
        %4611 = vmatpush1.msra.mxu0 0.0
        %4612 = vmatprep.subr.mxu0 0.0
        %4613 = vmatpush1.msra.mxu0 0.0
        %4614 = vmatprep.subr.mxu0 0.0
        %4615 = vmatpush1.msra.mxu0 0.0
        %4616 = vmatprep.subr.mxu0 0.0
        %4617 = vmatpush1.msra.mxu0 0.0
        %4618 = vmatprep.subr.mxu0 0.0
        %4619 = vmatpush1.msra.mxu0 0.0
        %4620 = vmatprep.subr.mxu0 0.0
        %4621 = vmatpush1.msra.mxu0 0.0
        %4622 = vmatprep.subr.mxu0 0.0
        %4623 = vmatpush1.msra.mxu0 0.0
        %4624 = vmatprep.subr.mxu0 0.0
        %4625 = vmatpush1.msra.mxu0 0.0
        %4626 = vmatprep.subr.mxu0 0.0
        %4627 = vmatpush1.msra.mxu0 0.0
        %4628 = vmatprep.subr.mxu0 0.0
        %4629 = vmatpush1.msra.mxu0 0.0
        %4630 = vmatprep.subr.mxu0 0.0
        %4631 = vmatpush1.msra.mxu0 0.0
        %4632 = vmatprep.subr.mxu0 0.0
        %4633 = vmatpush1.msra.mxu0 0.0
        %4634 = vmatprep.subr.mxu0 0.0
        %4635 = vmatpush1.msra.mxu0 0.0
        %4636 = vmatprep.mubr.f32.mxu0 0.0
        %v4637 = vand.u32 %v4532, 4294901760
        %v4638 = vsub.f32 %v4532, %v4637
        %v4639 = vand.u32 %v4638, 4294901760
        %v4640 = vsub.f32 %v4638, %v4639
        %v4641 = vand.u32 %v4640, 4294901760
        %4642 = vmatmul.mubr.f32.gmra.mrb[0].mxu0 %v4641
        %v4643 = vpop.f32.mrb[0].mxu0
        %v4644 = vadd.f32 %v4554, %v4643
        %v4645 = vpop.f32.mrb[0].mxu0
        %4646 = vdwg.mxu0
        %4647 = vmatprep.subr.mxu0 0.0
        %v4648 = vand.u32 %v4533, 4294901760
        %v4649 = vsub.f32 %v4533, %v4648
        %v4650 = vand.u32 %v4649, 4294901760
        %v4651 = vsub.f32 %v4649, %v4650
        %v4652 = vand.u32 %v4651, 4294901760
        %4653 = vmatpush1.msra.mxu0 %v4652
        %4654 = vmatprep.subr.mxu0 0.0
        %v4655 = vand.u32 %v4534, 4294901760
        %v4656 = vsub.f32 %v4534, %v4655
        %v4657 = vand.u32 %v4656, 4294901760
        %v4658 = vsub.f32 %v4656, %v4657
        %v4659 = vand.u32 %v4658, 4294901760
        %4660 = vmatpush1.msra.mxu0 %v4659
        %4661 = vmatprep.subr.mxu0 0.0
        %v4662 = vand.u32 %v4535, 4294901760
        %v4663 = vsub.f32 %v4535, %v4662
        %v4664 = vand.u32 %v4663, 4294901760
        %v4665 = vsub.f32 %v4663, %v4664
        %v4666 = vand.u32 %v4665, 4294901760
        %4667 = vmatpush1.msra.mxu0 %v4666
        %4668 = vmatprep.subr.mxu0 0.0
        %v4669 = vand.u32 %v4536, 4294901760
        %v4670 = vsub.f32 %v4536, %v4669
        %v4671 = vand.u32 %v4670, 4294901760
        %v4672 = vsub.f32 %v4670, %v4671
        %v4673 = vand.u32 %v4672, 4294901760
        %4674 = vmatpush1.msra.mxu0 %v4673
        %4675 = vmatprep.subr.mxu0 0.0
        %v4676 = vand.u32 %v4537, 4294901760
        %v4677 = vsub.f32 %v4537, %v4676
        %v4678 = vand.u32 %v4677, 4294901760
        %v4679 = vsub.f32 %v4677, %v4678
        %v4680 = vand.u32 %v4679, 4294901760
        %4681 = vmatpush1.msra.mxu0 %v4680
        %4682 = vmatprep.subr.mxu0 0.0
        %v4683 = vand.u32 %v4538, 4294901760
        %v4684 = vsub.f32 %v4538, %v4683
        %v4685 = vand.u32 %v4684, 4294901760
        %v4686 = vsub.f32 %v4684, %v4685
        %v4687 = vand.u32 %v4686, 4294901760
        %4688 = vmatpush1.msra.mxu0 %v4687
        %4689 = vmatprep.subr.mxu0 0.0
        %v4690 = vand.u32 %v4539, 4294901760
        %v4691 = vsub.f32 %v4539, %v4690
        %v4692 = vand.u32 %v4691, 4294901760
        %v4693 = vsub.f32 %v4691, %v4692
        %v4694 = vand.u32 %v4693, 4294901760
        %4695 = vmatpush1.msra.mxu0 %v4694
        %4696 = vmatprep.subr.mxu0 0.0
        %v4697 = vand.u32 %v4540, 4294901760
        %v4698 = vsub.f32 %v4540, %v4697
        %v4699 = vand.u32 %v4698, 4294901760
        %v4700 = vsub.f32 %v4698, %v4699
        %v4701 = vand.u32 %v4700, 4294901760
        %4702 = vmatpush1.msra.mxu0 %v4701
        %4703 = vmatprep.subr.mxu0 0.0
        %v4704 = vand.u32 %v4541, 4294901760
        %v4705 = vsub.f32 %v4541, %v4704
        %v4706 = vand.u32 %v4705, 4294901760
        %v4707 = vsub.f32 %v4705, %v4706
        %v4708 = vand.u32 %v4707, 4294901760
        %4709 = vmatpush1.msra.mxu0 %v4708
        %4710 = vmatprep.subr.mxu0 0.0
        %v4711 = vand.u32 %v4542, 4294901760
        %v4712 = vsub.f32 %v4542, %v4711
        %v4713 = vand.u32 %v4712, 4294901760
        %v4714 = vsub.f32 %v4712, %v4713
        %v4715 = vand.u32 %v4714, 4294901760
        %4716 = vmatpush1.msra.mxu0 %v4715
        %4717 = vmatprep.subr.mxu0 0.0
        %v4718 = vand.u32 %v4543, 4294901760
        %v4719 = vsub.f32 %v4543, %v4718
        %v4720 = vand.u32 %v4719, 4294901760
        %v4721 = vsub.f32 %v4719, %v4720
        %v4722 = vand.u32 %v4721, 4294901760
        %4723 = vmatpush1.msra.mxu0 %v4722
        %4724 = vmatprep.subr.mxu0 0.0
        %v4725 = vand.u32 %v4544, 4294901760
        %v4726 = vsub.f32 %v4544, %v4725
        %v4727 = vand.u32 %v4726, 4294901760
        %v4728 = vsub.f32 %v4726, %v4727
        %v4729 = vand.u32 %v4728, 4294901760
        %4730 = vmatpush1.msra.mxu0 %v4729
        %4731 = vmatprep.subr.mxu0 0.0
        %v4732 = vand.u32 %v4545, 4294901760
        %v4733 = vsub.f32 %v4545, %v4732
        %v4734 = vand.u32 %v4733, 4294901760
        %v4735 = vsub.f32 %v4733, %v4734
        %v4736 = vand.u32 %v4735, 4294901760
        %4737 = vmatpush1.msra.mxu0 %v4736
        %4738 = vmatprep.subr.mxu0 0.0
        %v4739 = vand.u32 %v4546, 4294901760
        %v4740 = vsub.f32 %v4546, %v4739
        %v4741 = vand.u32 %v4740, 4294901760
        %v4742 = vsub.f32 %v4740, %v4741
        %v4743 = vand.u32 %v4742, 4294901760
        %4744 = vmatpush1.msra.mxu0 %v4743
        %4745 = vmatprep.subr.mxu0 0.0
        %v4746 = vand.u32 %v4547, 4294901760
        %v4747 = vsub.f32 %v4547, %v4746
        %v4748 = vand.u32 %v4747, 4294901760
        %v4749 = vsub.f32 %v4747, %v4748
        %v4750 = vand.u32 %v4749, 4294901760
        %4751 = vmatpush1.msra.mxu0 %v4750
        %4752 = vmatprep.subr.mxu0 0.0
        %v4753 = vand.u32 %v4548, 4294901760
        %v4754 = vsub.f32 %v4548, %v4753
        %v4755 = vand.u32 %v4754, 4294901760
        %v4756 = vsub.f32 %v4754, %v4755
        %v4757 = vand.u32 %v4756, 4294901760
        %4758 = vmatpush1.msra.mxu0 %v4757
        %4759 = vmatprep.subr.mxu0 0.0
        %4760 = vmatpush1.msra.mxu0 0.0
        %4761 = vmatprep.subr.mxu0 0.0
        %4762 = vmatpush1.msra.mxu0 0.0
        %4763 = vmatprep.subr.mxu0 0.0
        %4764 = vmatpush1.msra.mxu0 0.0
        %4765 = vmatprep.subr.mxu0 0.0
        %4766 = vmatpush1.msra.mxu0 0.0
        %4767 = vmatprep.subr.mxu0 0.0
        %4768 = vmatpush1.msra.mxu0 0.0
        %4769 = vmatprep.subr.mxu0 0.0
        %4770 = vmatpush1.msra.mxu0 0.0
        %4771 = vmatprep.subr.mxu0 0.0
        %4772 = vmatpush1.msra.mxu0 0.0
        %4773 = vmatprep.subr.mxu0 0.0
        %4774 = vmatpush1.msra.mxu0 0.0
        %4775 = vmatprep.subr.mxu0 0.0
        %4776 = vmatpush1.msra.mxu0 0.0
        %4777 = vmatprep.subr.mxu0 0.0
        %4778 = vmatpush1.msra.mxu0 0.0
        %4779 = vmatprep.subr.mxu0 0.0
        %4780 = vmatpush1.msra.mxu0 0.0
        %4781 = vmatprep.subr.mxu0 0.0
        %4782 = vmatpush1.msra.mxu0 0.0
        %4783 = vmatprep.subr.mxu0 0.0
        %4784 = vmatpush1.msra.mxu0 0.0
        %4785 = vmatprep.subr.mxu0 0.0
        %4786 = vmatpush1.msra.mxu0 0.0
        %4787 = vmatprep.subr.mxu0 0.0
        %4788 = vmatpush1.msra.mxu0 0.0
        %4789 = vmatprep.subr.mxu0 0.0
        %4790 = vmatpush1.msra.mxu0 0.0
        %4791 = vmatprep.mubr.f32.mxu0 0.0
        %v4792 = vand.u32 %v4532, 4294901760
        %4793 = vmatmul.mubr.f32.gmra.mrb[0].mxu0 %v4792
        %v4794 = vpop.f32.mrb[0].mxu0
        %v4795 = vadd.f32 %v4644, %v4794
        %v4796 = vpop.f32.mrb[0].mxu0
        %4797 = vdwg.mxu0
        %4798 = vmatprep.subr.mxu0 0.0
        %v4799 = vand.u32 %v4533, 4294901760
        %v4800 = vsub.f32 %v4533, %v4799
        %4801 = vmatpush1.msra.mxu0 %v4800
        %4802 = vmatprep.subr.mxu0 0.0
        %v4803 = vand.u32 %v4534, 4294901760
        %v4804 = vsub.f32 %v4534, %v4803
        %4805 = vmatpush1.msra.mxu0 %v4804
        %4806 = vmatprep.subr.mxu0 0.0
        %v4807 = vand.u32 %v4535, 4294901760
        %v4808 = vsub.f32 %v4535, %v4807
        %4809 = vmatpush1.msra.mxu0 %v4808
        %4810 = vmatprep.subr.mxu0 0.0
        %v4811 = vand.u32 %v4536, 4294901760
        %v4812 = vsub.f32 %v4536, %v4811
        %4813 = vmatpush1.msra.mxu0 %v4812
        %4814 = vmatprep.subr.mxu0 0.0
        %v4815 = vand.u32 %v4537, 4294901760
        %v4816 = vsub.f32 %v4537, %v4815
        %4817 = vmatpush1.msra.mxu0 %v4816
        %4818 = vmatprep.subr.mxu0 0.0
        %v4819 = vand.u32 %v4538, 4294901760
        %v4820 = vsub.f32 %v4538, %v4819
        %4821 = vmatpush1.msra.mxu0 %v4820
        %4822 = vmatprep.subr.mxu0 0.0
        %v4823 = vand.u32 %v4539, 4294901760
        %v4824 = vsub.f32 %v4539, %v4823
        %4825 = vmatpush1.msra.mxu0 %v4824
        %4826 = vmatprep.subr.mxu0 0.0
        %v4827 = vand.u32 %v4540, 4294901760
        %v4828 = vsub.f32 %v4540, %v4827
        %4829 = vmatpush1.msra.mxu0 %v4828
        %4830 = vmatprep.subr.mxu0 0.0
        %v4831 = vand.u32 %v4541, 4294901760
        %v4832 = vsub.f32 %v4541, %v4831
        %4833 = vmatpush1.msra.mxu0 %v4832
        %4834 = vmatprep.subr.mxu0 0.0
        %v4835 = vand.u32 %v4542, 4294901760
        %v4836 = vsub.f32 %v4542, %v4835
        %4837 = vmatpush1.msra.mxu0 %v4836
        %4838 = vmatprep.subr.mxu0 0.0
        %v4839 = vand.u32 %v4543, 4294901760
        %v4840 = vsub.f32 %v4543, %v4839
        %4841 = vmatpush1.msra.mxu0 %v4840
        %4842 = vmatprep.subr.mxu0 0.0
        %v4843 = vand.u32 %v4544, 4294901760
        %v4844 = vsub.f32 %v4544, %v4843
        %4845 = vmatpush1.msra.mxu0 %v4844
        %4846 = vmatprep.subr.mxu0 0.0
        %v4847 = vand.u32 %v4545, 4294901760
        %v4848 = vsub.f32 %v4545, %v4847
        %4849 = vmatpush1.msra.mxu0 %v4848
        %4850 = vmatprep.subr.mxu0 0.0
        %v4851 = vand.u32 %v4546, 4294901760
        %v4852 = vsub.f32 %v4546, %v4851
        %4853 = vmatpush1.msra.mxu0 %v4852
        %4854 = vmatprep.subr.mxu0 0.0
        %v4855 = vand.u32 %v4547, 4294901760
        %v4856 = vsub.f32 %v4547, %v4855
        %4857 = vmatpush1.msra.mxu0 %v4856
        %4858 = vmatprep.subr.mxu0 0.0
        %v4859 = vand.u32 %v4548, 4294901760
        %v4860 = vsub.f32 %v4548, %v4859
        %4861 = vmatpush1.msra.mxu0 %v4860
        %4862 = vmatprep.subr.mxu0 0.0
        %4863 = vmatpush1.msra.mxu0 0.0
        %4864 = vmatprep.subr.mxu0 0.0
        %4865 = vmatpush1.msra.mxu0 0.0
        %4866 = vmatprep.subr.mxu0 0.0
        %4867 = vmatpush1.msra.mxu0 0.0
        %4868 = vmatprep.subr.mxu0 0.0
        %4869 = vmatpush1.msra.mxu0 0.0
        %4870 = vmatprep.subr.mxu0 0.0
        %4871 = vmatpush1.msra.mxu0 0.0
        %4872 = vmatprep.subr.mxu0 0.0
        %4873 = vmatpush1.msra.mxu0 0.0
        %4874 = vmatprep.subr.mxu0 0.0
        %4875 = vmatpush1.msra.mxu0 0.0
        %4876 = vmatprep.subr.mxu0 0.0
        %4877 = vmatpush1.msra.mxu0 0.0
        %4878 = vmatprep.subr.mxu0 0.0
        %4879 = vmatpush1.msra.mxu0 0.0
        %4880 = vmatprep.subr.mxu0 0.0
        %4881 = vmatpush1.msra.mxu0 0.0
        %4882 = vmatprep.subr.mxu0 0.0
        %4883 = vmatpush1.msra.mxu0 0.0
        %4884 = vmatprep.subr.mxu0 0.0
        %4885 = vmatpush1.msra.mxu0 0.0
        %4886 = vmatprep.subr.mxu0 0.0
        %4887 = vmatpush1.msra.mxu0 0.0
        %4888 = vmatprep.subr.mxu0 0.0
        %4889 = vmatpush1.msra.mxu0 0.0
        %4890 = vmatprep.subr.mxu0 0.0
        %4891 = vmatpush1.msra.mxu0 0.0
        %4892 = vmatprep.subr.mxu0 0.0
        %4893 = vmatpush1.msra.mxu0 0.0
        %4894 = vmatprep.mubr.f32.mxu0 0.0
        %v4895 = vand.u32 %v4532, 4294901760
        %v4896 = vsub.f32 %v4532, %v4895
        %4897 = vmatmul.mubr.f32.gmra.mrb[0].mxu0 %v4896
        %v4898 = vpop.f32.mrb[0].mxu0
        %v4899 = vadd.f32 %v4795, %v4898
        %v4900 = vpop.f32.mrb[0].mxu0
        %4901 = vdwg.mxu0
        %4902 = vmatprep.subr.mxu0 0.0
        %v4903 = vand.u32 %v4533, 4294901760
        %4904 = vmatpush1.msra.mxu0 %v4903
        %4905 = vmatprep.subr.mxu0 0.0
        %v4906 = vand.u32 %v4534, 4294901760
        %4907 = vmatpush1.msra.mxu0 %v4906
        %4908 = vmatprep.subr.mxu0 0.0
        %v4909 = vand.u32 %v4535, 4294901760
        %4910 = vmatpush1.msra.mxu0 %v4909
        %4911 = vmatprep.subr.mxu0 0.0
        %v4912 = vand.u32 %v4536, 4294901760
        %4913 = vmatpush1.msra.mxu0 %v4912
        %4914 = vmatprep.subr.mxu0 0.0
        %v4915 = vand.u32 %v4537, 4294901760
        %4916 = vmatpush1.msra.mxu0 %v4915
        %4917 = vmatprep.subr.mxu0 0.0
        %v4918 = vand.u32 %v4538, 4294901760
        %4919 = vmatpush1.msra.mxu0 %v4918
        %4920 = vmatprep.subr.mxu0 0.0
        %v4921 = vand.u32 %v4539, 4294901760
        %4922 = vmatpush1.msra.mxu0 %v4921
        %4923 = vmatprep.subr.mxu0 0.0
        %v4924 = vand.u32 %v4540, 4294901760
        %4925 = vmatpush1.msra.mxu0 %v4924
        %4926 = vmatprep.subr.mxu0 0.0
        %v4927 = vand.u32 %v4541, 4294901760
        %4928 = vmatpush1.msra.mxu0 %v4927
        %4929 = vmatprep.subr.mxu0 0.0
        %v4930 = vand.u32 %v4542, 4294901760
        %4931 = vmatpush1.msra.mxu0 %v4930
        %4932 = vmatprep.subr.mxu0 0.0
        %v4933 = vand.u32 %v4543, 4294901760
        %4934 = vmatpush1.msra.mxu0 %v4933
        %4935 = vmatprep.subr.mxu0 0.0
        %v4936 = vand.u32 %v4544, 4294901760
        %4937 = vmatpush1.msra.mxu0 %v4936
        %4938 = vmatprep.subr.mxu0 0.0
        %v4939 = vand.u32 %v4545, 4294901760
        %4940 = vmatpush1.msra.mxu0 %v4939
        %4941 = vmatprep.subr.mxu0 0.0
        %v4942 = vand.u32 %v4546, 4294901760
        %4943 = vmatpush1.msra.mxu0 %v4942
        %4944 = vmatprep.subr.mxu0 0.0
        %v4945 = vand.u32 %v4547, 4294901760
        %4946 = vmatpush1.msra.mxu0 %v4945
        %4947 = vmatprep.subr.mxu0 0.0
        %v4948 = vand.u32 %v4548, 4294901760
        %4949 = vmatpush1.msra.mxu0 %v4948
        %4950 = vmatprep.subr.mxu0 0.0
        %4951 = vmatpush1.msra.mxu0 0.0
        %4952 = vmatprep.subr.mxu0 0.0
        %4953 = vmatpush1.msra.mxu0 0.0
        %4954 = vmatprep.subr.mxu0 0.0
        %4955 = vmatpush1.msra.mxu0 0.0
        %4956 = vmatprep.subr.mxu0 0.0
        %4957 = vmatpush1.msra.mxu0 0.0
        %4958 = vmatprep.subr.mxu0 0.0
        %4959 = vmatpush1.msra.mxu0 0.0
        %4960 = vmatprep.subr.mxu0 0.0
        %4961 = vmatpush1.msra.mxu0 0.0
        %4962 = vmatprep.subr.mxu0 0.0
        %4963 = vmatpush1.msra.mxu0 0.0
        %4964 = vmatprep.subr.mxu0 0.0
        %4965 = vmatpush1.msra.mxu0 0.0
        %4966 = vmatprep.subr.mxu0 0.0
        %4967 = vmatpush1.msra.mxu0 0.0
        %4968 = vmatprep.subr.mxu0 0.0
        %4969 = vmatpush1.msra.mxu0 0.0
        %4970 = vmatprep.subr.mxu0 0.0
        %4971 = vmatpush1.msra.mxu0 0.0
        %4972 = vmatprep.subr.mxu0 0.0
        %4973 = vmatpush1.msra.mxu0 0.0
        %4974 = vmatprep.subr.mxu0 0.0
        %4975 = vmatpush1.msra.mxu0 0.0
        %4976 = vmatprep.subr.mxu0 0.0
        %4977 = vmatpush1.msra.mxu0 0.0
        %4978 = vmatprep.subr.mxu0 0.0
        %4979 = vmatpush1.msra.mxu0 0.0
        %4980 = vmatprep.subr.mxu0 0.0
        %4981 = vmatpush1.msra.mxu0 0.0
        %4982 = vmatprep.mubr.f32.mxu0 0.0
        %v4983 = vand.u32 %v4532, 4294901760
        %v4984 = vsub.f32 %v4532, %v4983
        %v4985 = vand.u32 %v4984, 4294901760
        %4986 = vmatmul.mubr.f32.gmra.mrb[0].mxu0 %v4985
        %v4987 = vpop.f32.mrb[0].mxu0
        %v4988 = vadd.f32 %v4899, %v4987
        %v4989 = vpop.f32.mrb[0].mxu0
        %4990 = vdwg.mxu0
        %4991 = vmatprep.subr.mxu0 0.0
        %v4992 = vand.u32 %v4533, 4294901760
        %v4993 = vsub.f32 %v4533, %v4992
        %v4994 = vand.u32 %v4993, 4294901760
        %4995 = vmatpush1.msra.mxu0 %v4994
        %4996 = vmatprep.subr.mxu0 0.0
        %v4997 = vand.u32 %v4534, 4294901760
        %v4998 = vsub.f32 %v4534, %v4997
        %v4999 = vand.u32 %v4998, 4294901760
        %5000 = vmatpush1.msra.mxu0 %v4999
        %5001 = vmatprep.subr.mxu0 0.0
        %v5002 = vand.u32 %v4535, 4294901760
        %v5003 = vsub.f32 %v4535, %v5002
        %v5004 = vand.u32 %v5003, 4294901760
        %5005 = vmatpush1.msra.mxu0 %v5004
        %5006 = vmatprep.subr.mxu0 0.0
        %v5007 = vand.u32 %v4536, 4294901760
        %v5008 = vsub.f32 %v4536, %v5007
        %v5009 = vand.u32 %v5008, 4294901760
        %5010 = vmatpush1.msra.mxu0 %v5009
        %5011 = vmatprep.subr.mxu0 0.0
        %v5012 = vand.u32 %v4537, 4294901760
        %v5013 = vsub.f32 %v4537, %v5012
        %v5014 = vand.u32 %v5013, 4294901760
        %5015 = vmatpush1.msra.mxu0 %v5014
        %5016 = vmatprep.subr.mxu0 0.0
        %v5017 = vand.u32 %v4538, 4294901760
        %v5018 = vsub.f32 %v4538, %v5017
        %v5019 = vand.u32 %v5018, 4294901760
        %5020 = vmatpush1.msra.mxu0 %v5019
        %5021 = vmatprep.subr.mxu0 0.0
        %v5022 = vand.u32 %v4539, 4294901760
        %v5023 = vsub.f32 %v4539, %v5022
        %v5024 = vand.u32 %v5023, 4294901760
        %5025 = vmatpush1.msra.mxu0 %v5024
        %5026 = vmatprep.subr.mxu0 0.0
        %v5027 = vand.u32 %v4540, 4294901760
        %v5028 = vsub.f32 %v4540, %v5027
        %v5029 = vand.u32 %v5028, 4294901760
        %5030 = vmatpush1.msra.mxu0 %v5029
        %5031 = vmatprep.subr.mxu0 0.0
        %v5032 = vand.u32 %v4541, 4294901760
        %v5033 = vsub.f32 %v4541, %v5032
        %v5034 = vand.u32 %v5033, 4294901760
        %5035 = vmatpush1.msra.mxu0 %v5034
        %5036 = vmatprep.subr.mxu0 0.0
        %v5037 = vand.u32 %v4542, 4294901760
        %v5038 = vsub.f32 %v4542, %v5037
        %v5039 = vand.u32 %v5038, 4294901760
        %5040 = vmatpush1.msra.mxu0 %v5039
        %5041 = vmatprep.subr.mxu0 0.0
        %v5042 = vand.u32 %v4543, 4294901760
        %v5043 = vsub.f32 %v4543, %v5042
        %v5044 = vand.u32 %v5043, 4294901760
        %5045 = vmatpush1.msra.mxu0 %v5044
        %5046 = vmatprep.subr.mxu0 0.0
        %v5047 = vand.u32 %v4544, 4294901760
        %v5048 = vsub.f32 %v4544, %v5047
        %v5049 = vand.u32 %v5048, 4294901760
        %5050 = vmatpush1.msra.mxu0 %v5049
        %5051 = vmatprep.subr.mxu0 0.0
        %v5052 = vand.u32 %v4545, 4294901760
        %v5053 = vsub.f32 %v4545, %v5052
        %v5054 = vand.u32 %v5053, 4294901760
        %5055 = vmatpush1.msra.mxu0 %v5054
        %5056 = vmatprep.subr.mxu0 0.0
        %v5057 = vand.u32 %v4546, 4294901760
        %v5058 = vsub.f32 %v4546, %v5057
        %v5059 = vand.u32 %v5058, 4294901760
        %5060 = vmatpush1.msra.mxu0 %v5059
        %5061 = vmatprep.subr.mxu0 0.0
        %v5062 = vand.u32 %v4547, 4294901760
        %v5063 = vsub.f32 %v4547, %v5062
        %v5064 = vand.u32 %v5063, 4294901760
        %5065 = vmatpush1.msra.mxu0 %v5064
        %5066 = vmatprep.subr.mxu0 0.0
        %v5067 = vand.u32 %v4548, 4294901760
        %v5068 = vsub.f32 %v4548, %v5067
        %v5069 = vand.u32 %v5068, 4294901760
        %5070 = vmatpush1.msra.mxu0 %v5069
        %5071 = vmatprep.subr.mxu0 0.0
        %5072 = vmatpush1.msra.mxu0 0.0
        %5073 = vmatprep.subr.mxu0 0.0
        %5074 = vmatpush1.msra.mxu0 0.0
        %5075 = vmatprep.subr.mxu0 0.0
        %5076 = vmatpush1.msra.mxu0 0.0
        %5077 = vmatprep.subr.mxu0 0.0
        %5078 = vmatpush1.msra.mxu0 0.0
        %5079 = vmatprep.subr.mxu0 0.0
        %5080 = vmatpush1.msra.mxu0 0.0
        %5081 = vmatprep.subr.mxu0 0.0
        %5082 = vmatpush1.msra.mxu0 0.0
        %5083 = vmatprep.subr.mxu0 0.0
        %5084 = vmatpush1.msra.mxu0 0.0
        %5085 = vmatprep.subr.mxu0 0.0
        %5086 = vmatpush1.msra.mxu0 0.0
        %5087 = vmatprep.subr.mxu0 0.0
        %5088 = vmatpush1.msra.mxu0 0.0
        %5089 = vmatprep.subr.mxu0 0.0
        %5090 = vmatpush1.msra.mxu0 0.0
        %5091 = vmatprep.subr.mxu0 0.0
        %5092 = vmatpush1.msra.mxu0 0.0
        %5093 = vmatprep.subr.mxu0 0.0
        %5094 = vmatpush1.msra.mxu0 0.0
        %5095 = vmatprep.subr.mxu0 0.0
        %5096 = vmatpush1.msra.mxu0 0.0
        %5097 = vmatprep.subr.mxu0 0.0
        %5098 = vmatpush1.msra.mxu0 0.0
        %5099 = vmatprep.subr.mxu0 0.0
        %5100 = vmatpush1.msra.mxu0 0.0
        %5101 = vmatprep.subr.mxu0 0.0
        %5102 = vmatpush1.msra.mxu0 0.0
        %5103 = vmatprep.mubr.f32.mxu0 0.0
        %v5104 = vand.u32 %v4532, 4294901760
        %5105 = vmatmul.mubr.f32.gmra.mrb[0].mxu0 %v5104
        %v5106 = vpop.f32.mrb[0].mxu0
        %v5107 = vadd.f32 %v4988, %v5106
        %v5108 = vpop.f32.mrb[0].mxu0
        %5109 = vdwg.mxu0
        %5110 = vmatprep.subr.mxu0 0.0
        %v5111 = vand.u32 %v4533, 4294901760
        %5112 = vmatpush1.msra.mxu0 %v5111
        %5113 = vmatprep.subr.mxu0 0.0
        %v5114 = vand.u32 %v4534, 4294901760
        %5115 = vmatpush1.msra.mxu0 %v5114
        %5116 = vmatprep.subr.mxu0 0.0
        %v5117 = vand.u32 %v4535, 4294901760
        %5118 = vmatpush1.msra.mxu0 %v5117
        %5119 = vmatprep.subr.mxu0 0.0
        %v5120 = vand.u32 %v4536, 4294901760
        %5121 = vmatpush1.msra.mxu0 %v5120
        %5122 = vmatprep.subr.mxu0 0.0
        %v5123 = vand.u32 %v4537, 4294901760
        %5124 = vmatpush1.msra.mxu0 %v5123
        %5125 = vmatprep.subr.mxu0 0.0
        %v5126 = vand.u32 %v4538, 4294901760
        %5127 = vmatpush1.msra.mxu0 %v5126
        %5128 = vmatprep.subr.mxu0 0.0
        %v5129 = vand.u32 %v4539, 4294901760
        %5130 = vmatpush1.msra.mxu0 %v5129
        %5131 = vmatprep.subr.mxu0 0.0
        %v5132 = vand.u32 %v4540, 4294901760
        %5133 = vmatpush1.msra.mxu0 %v5132
        %5134 = vmatprep.subr.mxu0 0.0
        %v5135 = vand.u32 %v4541, 4294901760
        %5136 = vmatpush1.msra.mxu0 %v5135
        %5137 = vmatprep.subr.mxu0 0.0
        %v5138 = vand.u32 %v4542, 4294901760
        %5139 = vmatpush1.msra.mxu0 %v5138
        %5140 = vmatprep.subr.mxu0 0.0
        %v5141 = vand.u32 %v4543, 4294901760
        %5142 = vmatpush1.msra.mxu0 %v5141
        %5143 = vmatprep.subr.mxu0 0.0
        %v5144 = vand.u32 %v4544, 4294901760
        %5145 = vmatpush1.msra.mxu0 %v5144
        %5146 = vmatprep.subr.mxu0 0.0
        %v5147 = vand.u32 %v4545, 4294901760
        %5148 = vmatpush1.msra.mxu0 %v5147
        %5149 = vmatprep.subr.mxu0 0.0
        %v5150 = vand.u32 %v4546, 4294901760
        %5151 = vmatpush1.msra.mxu0 %v5150
        %5152 = vmatprep.subr.mxu0 0.0
        %v5153 = vand.u32 %v4547, 4294901760
        %5154 = vmatpush1.msra.mxu0 %v5153
        %5155 = vmatprep.subr.mxu0 0.0
        %v5156 = vand.u32 %v4548, 4294901760
        %5157 = vmatpush1.msra.mxu0 %v5156
        %5158 = vmatprep.subr.mxu0 0.0
        %5159 = vmatpush1.msra.mxu0 0.0
        %5160 = vmatprep.subr.mxu0 0.0
        %5161 = vmatpush1.msra.mxu0 0.0
        %5162 = vmatprep.subr.mxu0 0.0
        %5163 = vmatpush1.msra.mxu0 0.0
        %5164 = vmatprep.subr.mxu0 0.0
        %5165 = vmatpush1.msra.mxu0 0.0
        %5166 = vmatprep.subr.mxu0 0.0
        %5167 = vmatpush1.msra.mxu0 0.0
        %5168 = vmatprep.subr.mxu0 0.0
        %5169 = vmatpush1.msra.mxu0 0.0
        %5170 = vmatprep.subr.mxu0 0.0
        %5171 = vmatpush1.msra.mxu0 0.0
        %5172 = vmatprep.subr.mxu0 0.0
        %5173 = vmatpush1.msra.mxu0 0.0
        %5174 = vmatprep.subr.mxu0 0.0
        %5175 = vmatpush1.msra.mxu0 0.0
        %5176 = vmatprep.subr.mxu0 0.0
        %5177 = vmatpush1.msra.mxu0 0.0
        %5178 = vmatprep.subr.mxu0 0.0
        %5179 = vmatpush1.msra.mxu0 0.0
        %5180 = vmatprep.subr.mxu0 0.0
        %5181 = vmatpush1.msra.mxu0 0.0
        %5182 = vmatprep.subr.mxu0 0.0
        %5183 = vmatpush1.msra.mxu0 0.0
        %5184 = vmatprep.subr.mxu0 0.0
        %5185 = vmatpush1.msra.mxu0 0.0
        %5186 = vmatprep.subr.mxu0 0.0
        %5187 = vmatpush1.msra.mxu0 0.0
        %5188 = vmatprep.subr.mxu0 0.0
        %5189 = vmatpush1.msra.mxu0 0.0
        %5190 = vmatprep.mubr.f32.mxu0 0.0
        %v5191 = vand.u32 %v4532, 4294901760
        %5192 = vmatmul.mubr.f32.gmra.mrb[0].mxu0 %v5191
        %v5193 = vpop.f32.mrb[0].mxu0
        %v5194 = vadd.f32 %v5107, %v5193
        %v5195 = vpop.f32.mrb[0].mxu0
        %5196 = vdwg.mxu0
        %v5197 = vadd.f32 %v4028, %v5194
        %v5198 = vsel %vm465, %v5197, 0.0
        %5199 = vadd.xlane.f32.xlu0 %v5198
        %v5200 = vpop.xlane.xlu0 %5199
        %v5201 = vmul.f32 %v5200, %v3999
        %v5202 = vmul.f32 %v5197, %v5197
        %v5203 = vsel %vm465, %v5202, 0.0
        %5204 = vadd.xlane.f32.xlu0 %v5203
        %v5205 = vpop.xlane.xlu0 %5204
        %v5206 = vmul.f32 %v5205, %v3999
        %v5207 = vmul.f32 %v5201, %v5201
        %v5208 = vsub.f32 %v5206, %v5207
        %v5209 = vmax.f32 %v5208, 0.0
        %v5210 = vsub.f32 %v5197, %v5201
        %v5211 = vadd.f32 %v5209, 1e-05
        %v5212 = vrsqrt.pop %v5211
        %v5213 = vmul.f32 %v5210, %v5212
        %v5214 = vld [vmem:[%s12] sm:$0x1]
        %v5216 = vlaneseq
        %v5217 = vshrl.u32 %v5216, 7
        %v5218 = vsub.s32 0, %v5217
        %v5219 = vrot.slane %v5214, %v5218
        %v5221 = vmul.f32 %v5213, %v5219
        %v5222 = vld [vmem:[%s13] sm:$0x1]
        %v5224 = vlaneseq
        %v5225 = vshrl.u32 %v5224, 7
        %v5226 = vsub.s32 0, %v5225
        %v5227 = vrot.slane %v5222, %v5226
        %v5229 = vadd.f32 %v5221, %v5227
        %5230 = vst.msk [vmem:[%s458] sm:$0xff] %vm465, %v5229
        %s5231 = sand.u32 %s335, 1
        %s5232 = scalar_lea.sflag [#allocation3], %s5231
        %s5233 = sand.u32 %s335, 1
        %s5234 = smul.addr %s5233, 8
        %s5235 = scalar_lea.vmem [#allocation2], %s5234
        // Predicated region
        $region77: #{tpu_custom_call.1} parent=75 // pred_check
          %p5236 = pneg %p345
        $region78: #{tpu_custom_call.1} parent=75 // pred_check_branch
          %5238 = sbr.rel (%p5236) target = $region80
        $region79: #{tpu_custom_call.1} parent=75 // pred_region
          %s5240 = ssub.s32 128, 128
          %5241 = vsyncadd %s5232, %s5240
          %s5242 = smul.addr %s28, 128
          %s5243 = scalar_lea.hbm %s14, %s5242
          %s5245 = sshll.u32 %s5235, 4
          %s5246 = int_to_ptr.vmem [resolvable:$true] %s5245
          %5248 = dma.vmem_to_hbm [thread:$0]  %s5246, 128, %s5243, %s5232
        $region80: #{tpu_custom_call.1} parent=75 // pred_fallthru
          _
      $region76: #{tpu_custom_call.1} parent=5 // pred_fallthru
        _
      %p5249 = scmp.le.s32.totalorder 2, %s23
      // Predicated region
      $region81: #{tpu_custom_call.1} parent=5 // pred_check
        %p5250 = pneg %p5249
      $region82: #{tpu_custom_call.1} parent=5 // pred_check_branch
        %5252 = sbr.rel (%p5250) target = $region84
      $region83: #{tpu_custom_call.1} parent=5 // pred_region
        %s5253 = ssub.s32 %s23, 2
        // Predicated region
        $region85: #{tpu_custom_call.1} parent=83 // pred_check
          %p5254 = pneg %p351
        $region86: #{tpu_custom_call.1} parent=83 // pred_check_branch
          %5256 = sbr.rel (%p5254) target = $region88
        $region87: #{tpu_custom_call.1} parent=83 // pred_region
          %s5257 = sand.u32 %s336, 1
          %s5258 = scalar_lea.sflag [#allocation3], %s5257
          %s5259 = sand.u32 %s336, 1
          %s5260 = smul.addr %s5259, 8
          %s5261 = scalar_lea.vmem [#allocation2], %s5260
          %5262 = dma.done %s5258, 128
        $region88: #{tpu_custom_call.1} parent=83 // pred_fallthru
          _
      $region84: #{tpu_custom_call.1} parent=5 // pred_fallthru
        _
    $region6: #{tpu_custom_call.1} parent=1 // loop_footer
      %s27 = sadd.s32 1, %s23
    $region7: #{tpu_custom_call.1} parent=1 // loop_footer_branch
      %22 = sbr.rel target = $region3
    $region8: #{tpu_custom_call.1} parent=1 // loop_exit
      _
    %5263 = vsyncpa [#allocation3], 1
    %s5264 = scalar_lea.sflag [#allocation3], 1
    %5265 = vsyncpa %s5264, 1

</llo_original>
